<compile_context>
chip_gen: v6e
topology: v6e:2x2x1
jax: 0.10.0
libtpu: 0.0.40
codegen_flags: <defaults>
</compile_context>

<pallas_src>
import functools

import jax
import jax.numpy as jnp
from jax.experimental import pallas as pl
from jax.experimental.pallas import tpu as pltpu

EPS = 1e-5
CUTOFF = 5.0


# ---------------------------------------------------------------- helpers
def _ln(x, g, b):
    """Row-wise LayerNorm (eps=1e-5, affine), matches nn.LayerNorm."""
    mu = jnp.mean(x, axis=-1, keepdims=True)
    xc = x - mu
    var = jnp.mean(xc * xc, axis=-1, keepdims=True)
    return xc * jax.lax.rsqrt(var + EPS) * g + b


def _cfconv(x, refs):
    """SchNet CFConv on in-VMEM refs; x is an already-loaded (N_in, H) f32 value.

    Gather/scatter expressed as bf16 one-hot matmuls (exact 0/1) with f32 MXU
    accumulation; all other math in f32 (v5e-safe).
    """
    (src_ref, dstT_ref, cut_ref, ea_ref,
     wf1, bf1, wf2, bf2, w1, b1, w2, b2) = refs
    # filter MLP on RBF edge attrs: Linear -> SiLU -> Linear, then cosine cutoff
    f = jnp.dot(ea_ref[...], wf1[...], preferred_element_type=jnp.float32) + bf1[...]
    f = f * jax.nn.sigmoid(f)                             # SiLU
    f = jnp.dot(f, wf2[...], preferred_element_type=jnp.float32) + bf2[...]
    f = f * cut_ref[...]                                  # (E, H) * (E, 1) cutoff
    # node transform -> gather(src) -> message -> scatter-add(dst) -> out linear
    h = jnp.dot(x, w1[...], preferred_element_type=jnp.float32) + b1[...]
    h_src = jnp.dot(src_ref[...], h.astype(jnp.bfloat16),
                    preferred_element_type=jnp.float32)   # (E, H) gather
    msg = h_src * f
    agg = jnp.dot(dstT_ref[...], msg.astype(jnp.bfloat16),
                  preferred_element_type=jnp.float32)     # (N_dst, H) scatter-add
    return jnp.dot(agg, w2[...], preferred_element_type=jnp.float32) + b2[...]


# --------------------------------------------------- single fused layer kernel
def _fused_layer_kernel(*refs, num_heads, G, B, scale):
    (a_ref, m_ref,
     gS, bS, gL, bL, gA, bA, gM, bM) = refs[:10]
    short_refs = refs[10:22]
    a2m_refs = refs[22:34]
    m2a_refs = refs[34:46]
    wqkv, bqkv, wo, bo = refs[46:50]
    oa_ref, om_ref = refs[50:52]
    mnew_sc = refs[52]                                    # VMEM scratch for m_new

    a_x = a_ref[...]
    m_x = m_ref[...]
    H = a_x.shape[1]
    hd = H // num_heads

    # ---- short-range path (atoms): LayerNorm + CFConv -> a_new
    a_new = _cfconv(_ln(a_x, gS[...], bS[...]), short_refs)

    # ---- long-range path (mesh): LayerNorm + multi-head self-attention -> m_new
    m_ln = _ln(m_x, gL[...], bL[...])
    qkv = jnp.dot(m_ln, wqkv[...], preferred_element_type=jnp.float32) + bqkv[...]
    wo_v = wo[...]
    bo_v = bo[...]
    for bi in range(B):                                   # static unroll (small B)
        qkv_b = qkv[bi * G:(bi + 1) * G, :]
        out_b = jnp.zeros((G, H), jnp.float32)
        for h in range(num_heads):                        # static unroll, all heads
            q = qkv_b[:, h * hd:(h + 1) * hd] * scale
            k = qkv_b[:, H + h * hd:H + (h + 1) * hd]
            v = qkv_b[:, 2 * H + h * hd:2 * H + (h + 1) * hd]
            # contract last dims directly (avoids the k.T relayout)
            s = jax.lax.dot_general(q, k, (((1,), (1,)), ((), ())),
                                    preferred_element_type=jnp.float32)
            s = s - jnp.max(s, axis=-1, keepdims=True)
            p = jnp.exp(s)
            p = p / jnp.sum(p, axis=-1, keepdims=True)    # exact softmax
            o_h = jnp.dot(p, v, preferred_element_type=jnp.float32)
            # accumulate straight into the output projection (no head concat)
            out_b = out_b + jnp.dot(o_h, wo_v[h * hd:(h + 1) * hd, :],
                                    preferred_element_type=jnp.float32)
        mnew_sc[bi * G:(bi + 1) * G, :] = out_b + bo_v
    m_new = mnew_sc[...]

    # ---- cross messages + LayerNorms + residual adds (dual output)
    a2m_msg = _ln(_cfconv(a_new, a2m_refs), gA[...], bA[...])   # (Nm, H)
    m2a_msg = _ln(_cfconv(m_new, m2a_refs), gM[...], bM[...])   # (Na, H)

    oa_ref[...] = a_new + m2a_msg + a_x
    om_ref[...] = m_new + a2m_msg + m_x


# ---------------------------------------------------------------- wrapper
def _cfconv_args(edge_index, edge_weight, edge_attr, n_src, n_dst, p):
    """bf16 one-hot gather/scatter matrices, precomputed cosine cutoff, params."""
    src_oh = jax.nn.one_hot(edge_index[0], n_src, dtype=jnp.bfloat16)      # (E, N_src)
    dst_ohT = jax.nn.one_hot(edge_index[1], n_dst, dtype=jnp.bfloat16).T   # (N_dst, E)
    w = edge_weight.reshape(-1, 1).astype(jnp.float32)
    cut = jnp.where(w < CUTOFF, 0.5 * (jnp.cos(jnp.pi * w / CUTOFF) + 1.0), 0.0)
    return [src_oh, dst_ohT, cut, edge_attr.astype(jnp.float32),
            p["wf1"], p["bf1"], p["wf2"], p["bf2"],
            p["w1"], p["b1"], p["w2"], p["b2"]]


def short_long_mix_forward(params, a_x, m_x,
                           a2a_edge_index, a2m_edge_index, m2a_edge_index,
                           a2a_edge_weights, a2m_edge_weights, m2a_edge_weights,
                           a2a_edge_attr, a2m_edge_attr, m2a_edge_attr,
                           num_grids, num_heads):
    Na, H = a_x.shape
    Nm = m_x.shape[0]
    G = num_grids[0] * num_grids[1] * num_grids[2]
    assert Nm % G == 0, "mesh rows must be a multiple of prod(num_grids)"
    assert H % num_heads == 0, "hidden_channels must be divisible by num_heads"
    B = Nm // G
    scale = 1.0 / float(H // num_heads) ** 0.5

    args = (
        [a_x.astype(jnp.float32), m_x.astype(jnp.float32),
         params["ln_short_g"], params["ln_short_b"],
         params["ln_long_g"], params["ln_long_b"],
         params["ln_a2m_g"], params["ln_a2m_b"],
         params["ln_m2a_g"], params["ln_m2a_b"]]
        + _cfconv_args(a2a_edge_index, a2a_edge_weights, a2a_edge_attr,
                       Na, Na, params["short_mp"])
        + _cfconv_args(a2m_edge_index, a2m_edge_weights, a2m_edge_attr,
                       Na, Nm, params["a2m_mp"])
        + _cfconv_args(m2a_edge_index, m2a_edge_weights, m2a_edge_attr,
                       Nm, Na, params["m2a_mp"])
        + [params["long_mp"]["wqkv"], params["long_mp"]["bqkv"],
           params["long_mp"]["wo"], params["long_mp"]["bo"]]
    )

    # scoped-VMEM budget from the actual operand footprint (+ headroom for temps)
    out_bytes = (Na * H + Nm * H) * 4
    in_bytes = sum(int(x.size) * x.dtype.itemsize for x in args)
    vmem_limit = int(min(96 * 2**20, max(32 * 2**20, 4 * (in_bytes + out_bytes))))

    kern = functools.partial(_fused_layer_kernel,
                             num_heads=num_heads, G=G, B=B, scale=scale)
    out_a, out_m = pl.pallas_call(
        kern,
        out_shape=(jax.ShapeDtypeStruct((Na, H), jnp.float32),
                   jax.ShapeDtypeStruct((Nm, H), jnp.float32)),
        in_specs=[pl.BlockSpec(memory_space=pltpu.MemorySpace.VMEM) for _ in args],
        out_specs=(pl.BlockSpec(memory_space=pltpu.MemorySpace.VMEM),
                   pl.BlockSpec(memory_space=pltpu.MemorySpace.VMEM)),
        scratch_shapes=[pltpu.VMEM((Nm, H), jnp.float32)],   # m_new stays in VMEM
        compiler_params=pltpu.CompilerParams(vmem_limit_bytes=vmem_limit),
    )(*args)
    return out_a, out_m


# ---------------------------------------------------------------- params
def _init_linear(key, din, dout, scale=0.1):
    kw, kb = jax.random.split(key)
    w = jax.random.normal(kw, (din, dout), jnp.float32) * scale
    b = jax.random.normal(kb, (1, dout), jnp.float32) * scale
    return w, b


def _init_cfconv(key, hidden, num_rbf):
    k = jax.random.split(key, 4)
    wf1, bf1 = _init_linear(k[0], num_rbf, hidden)
    wf2, bf2 = _init_linear(k[1], hidden, hidden)
    w1, b1 = _init_linear(k[2], hidden, hidden)
    w2, b2 = _init_linear(k[3], hidden, hidden)
    return dict(wf1=wf1, bf1=bf1, wf2=wf2, bf2=bf2,
                w1=w1, b1=b1, w2=w2, b2=b2)


def _init_mha(key, hidden):
    k = jax.random.split(key, 4)
    wq, bq = _init_linear(k[0], hidden, hidden)
    wk, bk = _init_linear(k[1], hidden, hidden)
    wv, bv = _init_linear(k[2], hidden, hidden)
    wo, bo = _init_linear(k[3], hidden, hidden)
    # packed QKV projection (H, 3H): one MXU pass in-kernel
    return dict(wqkv=jnp.concatenate([wq, wk, wv], axis=1),
                bqkv=jnp.concatenate([bq, bk, bv], axis=1),
                wo=wo, bo=bo)


def init_params(key, hidden, num_rbf):
    k = jax.random.split(key, 4)
    ones = jnp.ones((1, hidden), jnp.float32)
    zeros = jnp.zeros((1, hidden), jnp.float32)
    return dict(
        ln_short_g=ones, ln_short_b=zeros,
        ln_long_g=ones, ln_long_b=zeros,
        ln_a2m_g=ones, ln_a2m_b=zeros,
        ln_m2a_g=ones, ln_m2a_b=zeros,
        short_mp=_init_cfconv(k[0], hidden, num_rbf),
        a2m_mp=_init_cfconv(k[1], hidden, num_rbf),
        m2a_mp=_init_cfconv(k[2], hidden, num_rbf),
        long_mp=_init_mha(k[3], hidden),
    )


# ---------------------------------------------------------------- main
if __name__ == "__main__":
    H = 32                    # hidden_channels
    R = 16                    # num RBF (edge_attr features)
    num_grids = [4, 4, 4]
    num_heads = 4
    B = 2                     # batch of systems
    Na = 16                   # atoms
    G = num_grids[0] * num_grids[1] * num_grids[2]
    Nm = B * G                # mesh nodes
    E_aa, E_am, E_ma = 48, 64, 64

    key = jax.random.PRNGKey(0)
    ks = jax.random.split(key, 20)

    a_x = jax.random.normal(ks[0], (Na, H), jnp.float32)
    m_x = jax.random.normal(ks[1], (Nm, H), jnp.float32)

    a2a_ei = jnp.stack([jax.random.randint(ks[2], (E_aa,), 0, Na),
                        jax.random.randint(ks[3], (E_aa,), 0, Na)])
    a2m_ei = jnp.stack([jax.random.randint(ks[4], (E_am,), 0, Na),
                        jax.random.randint(ks[5], (E_am,), 0, Nm)])
    m2a_ei = jnp.stack([jax.random.randint(ks[6], (E_ma,), 0, Nm),
                        jax.random.randint(ks[7], (E_ma,), 0, Na)])

    a2a_ew = jax.random.uniform(ks[8], (E_aa,), minval=0.1, maxval=CUTOFF)
    a2m_ew = jax.random.uniform(ks[9], (E_am,), minval=0.1, maxval=CUTOFF)
    m2a_ew = jax.random.uniform(ks[10], (E_ma,), minval=0.1, maxval=CUTOFF)

    a2a_ea = jax.random.normal(ks[11], (E_aa, R), jnp.float32)
    a2m_ea = jax.random.normal(ks[12], (E_am, R), jnp.float32)
    m2a_ea = jax.random.normal(ks[13], (E_ma, R), jnp.float32)

    params = init_params(ks[14], H, R)

    out_a, out_m = short_long_mix_forward(
        params, a_x, m_x,
        a2a_ei, a2m_ei, m2a_ei,
        a2a_ew, a2m_ew, m2a_ew,
        a2a_ea, a2m_ea, m2a_ea,
        num_grids, num_heads,
    )
    jax.block_until_ready((out_a, out_m))
    assert out_a.shape == (Na, H) and out_m.shape == (Nm, H)
    assert bool(jnp.all(jnp.isfinite(out_a))) and bool(jnp.all(jnp.isfinite(out_m)))
    print("KERNEL_OK")
</pallas_src>

<mosaic_0001>
module attributes {stable_mosaic.version = 11 : i64} {
  func.func @_fused_layer_kernel(%arg0: memref<16x32xf32, #tpu.memory_space<vmem>>, %arg1: memref<128x32xf32, #tpu.memory_space<vmem>>, %arg2: memref<1x32xf32, #tpu.memory_space<vmem>>, %arg3: memref<1x32xf32, #tpu.memory_space<vmem>>, %arg4: memref<1x32xf32, #tpu.memory_space<vmem>>, %arg5: memref<1x32xf32, #tpu.memory_space<vmem>>, %arg6: memref<1x32xf32, #tpu.memory_space<vmem>>, %arg7: memref<1x32xf32, #tpu.memory_space<vmem>>, %arg8: memref<1x32xf32, #tpu.memory_space<vmem>>, %arg9: memref<1x32xf32, #tpu.memory_space<vmem>>, %arg10: memref<48x16xbf16, #tpu.memory_space<vmem>>, %arg11: memref<16x48xbf16, #tpu.memory_space<vmem>>, %arg12: memref<48x1xf32, #tpu.memory_space<vmem>>, %arg13: memref<48x16xf32, #tpu.memory_space<vmem>>, %arg14: memref<16x32xf32, #tpu.memory_space<vmem>>, %arg15: memref<1x32xf32, #tpu.memory_space<vmem>>, %arg16: memref<32x32xf32, #tpu.memory_space<vmem>>, %arg17: memref<1x32xf32, #tpu.memory_space<vmem>>, %arg18: memref<32x32xf32, #tpu.memory_space<vmem>>, %arg19: memref<1x32xf32, #tpu.memory_space<vmem>>, %arg20: memref<32x32xf32, #tpu.memory_space<vmem>>, %arg21: memref<1x32xf32, #tpu.memory_space<vmem>>, %arg22: memref<64x16xbf16, #tpu.memory_space<vmem>>, %arg23: memref<128x64xbf16, #tpu.memory_space<vmem>>, %arg24: memref<64x1xf32, #tpu.memory_space<vmem>>, %arg25: memref<64x16xf32, #tpu.memory_space<vmem>>, %arg26: memref<16x32xf32, #tpu.memory_space<vmem>>, %arg27: memref<1x32xf32, #tpu.memory_space<vmem>>, %arg28: memref<32x32xf32, #tpu.memory_space<vmem>>, %arg29: memref<1x32xf32, #tpu.memory_space<vmem>>, %arg30: memref<32x32xf32, #tpu.memory_space<vmem>>, %arg31: memref<1x32xf32, #tpu.memory_space<vmem>>, %arg32: memref<32x32xf32, #tpu.memory_space<vmem>>, %arg33: memref<1x32xf32, #tpu.memory_space<vmem>>, %arg34: memref<64x128xbf16, #tpu.memory_space<vmem>>, %arg35: memref<16x64xbf16, #tpu.memory_space<vmem>>, %arg36: memref<64x1xf32, #tpu.memory_space<vmem>>, %arg37: memref<64x16xf32, #tpu.memory_space<vmem>>, %arg38: memref<16x32xf32, #tpu.memory_space<vmem>>, %arg39: memref<1x32xf32, #tpu.memory_space<vmem>>, %arg40: memref<32x32xf32, #tpu.memory_space<vmem>>, %arg41: memref<1x32xf32, #tpu.memory_space<vmem>>, %arg42: memref<32x32xf32, #tpu.memory_space<vmem>>, %arg43: memref<1x32xf32, #tpu.memory_space<vmem>>, %arg44: memref<32x32xf32, #tpu.memory_space<vmem>>, %arg45: memref<1x32xf32, #tpu.memory_space<vmem>>, %arg46: memref<32x96xf32, #tpu.memory_space<vmem>>, %arg47: memref<1x96xf32, #tpu.memory_space<vmem>>, %arg48: memref<32x32xf32, #tpu.memory_space<vmem>>, %arg49: memref<1x32xf32, #tpu.memory_space<vmem>>, %arg50: memref<16x32xf32, #tpu.memory_space<vmem>>, %arg51: memref<128x32xf32, #tpu.memory_space<vmem>>, %arg52: memref<128x32xf32, #tpu.memory_space<vmem>>) attributes {dimension_semantics = [], scalar_prefetch = 0 : i64, scratch_operands = 1 : i64, tpu.core_type = #tpu.core_type<tc>} {
    %c0 = arith.constant 0 : index
    %c0_0 = arith.constant 0 : index
    %0 = vector.load %arg0[%c0, %c0_0] : memref<16x32xf32, #tpu.memory_space<vmem>>, vector<16x32xf32>
    %c0_1 = arith.constant 0 : index
    %c0_2 = arith.constant 0 : index
    %1 = vector.load %arg1[%c0_1, %c0_2] : memref<128x32xf32, #tpu.memory_space<vmem>>, vector<128x32xf32>
    %c0_3 = arith.constant 0 : index
    %c0_4 = arith.constant 0 : index
    %2 = vector.load %arg2[%c0_3, %c0_4] : memref<1x32xf32, #tpu.memory_space<vmem>>, vector<1x32xf32>
    %c0_5 = arith.constant 0 : index
    %c0_6 = arith.constant 0 : index
    %3 = vector.load %arg3[%c0_5, %c0_6] : memref<1x32xf32, #tpu.memory_space<vmem>>, vector<1x32xf32>
    %cst = arith.constant dense<0.000000e+00> : vector<16xf32>
    %4 = vector.multi_reduction <add>, %0, %cst [1] : vector<16x32xf32> to vector<16xf32>
    %5 = vector.shape_cast %4 : vector<16xf32> to vector<16x1xf32>
    %cst_7 = arith.constant 3.200000e+01 : f32
    %6 = vector.broadcast %cst_7 : f32 to vector<16x1xf32>
    %7 = arith.divf %5, %6 : vector<16x1xf32>
    %8 = vector.broadcast %7 : vector<16x1xf32> to vector<16x32xf32>
    %9 = arith.subf %0, %8 : vector<16x32xf32>
    %10 = arith.mulf %9, %9 : vector<16x32xf32>
    %cst_8 = arith.constant dense<0.000000e+00> : vector<16xf32>
    %11 = vector.multi_reduction <add>, %10, %cst_8 [1] : vector<16x32xf32> to vector<16xf32>
    %12 = vector.shape_cast %11 : vector<16xf32> to vector<16x1xf32>
    %cst_9 = arith.constant 3.200000e+01 : f32
    %13 = vector.broadcast %cst_9 : f32 to vector<16x1xf32>
    %14 = arith.divf %12, %13 : vector<16x1xf32>
    %cst_10 = arith.constant 9.99999974E-6 : f32
    %15 = vector.broadcast %cst_10 : f32 to vector<16x1xf32>
    %16 = arith.addf %14, %15 : vector<16x1xf32>
    %17 = math.rsqrt %16 : vector<16x1xf32>
    %18 = vector.broadcast %17 : vector<16x1xf32> to vector<16x32xf32>
    %19 = arith.mulf %9, %18 : vector<16x32xf32>
    %20 = vector.broadcast %2 : vector<1x32xf32> to vector<16x32xf32>
    %21 = arith.mulf %19, %20 : vector<16x32xf32>
    %22 = vector.broadcast %3 : vector<1x32xf32> to vector<16x32xf32>
    %23 = arith.addf %21, %22 : vector<16x32xf32>
    %c0_11 = arith.constant 0 : index
    %c0_12 = arith.constant 0 : index
    %24 = vector.load %arg13[%c0_11, %c0_12] : memref<48x16xf32, #tpu.memory_space<vmem>>, vector<48x16xf32>
    %c0_13 = arith.constant 0 : index
    %c0_14 = arith.constant 0 : index
    %25 = vector.load %arg14[%c0_13, %c0_14] : memref<16x32xf32, #tpu.memory_space<vmem>>, vector<16x32xf32>
    %cst_15 = arith.constant dense<0.000000e+00> : vector<48x32xf32>
    %26 = tpu.matmul %24, %25, %cst_15 {dimension_numbers = #tpu.dot_dimension_numbers<[1], [0], [0], [1], [0, 0, 1, 1], [], []>} : vector<48x16xf32>, vector<16x32xf32>, vector<48x32xf32> -> vector<48x32xf32>
    %c0_16 = arith.constant 0 : index
    %c0_17 = arith.constant 0 : index
    %27 = vector.load %arg15[%c0_16, %c0_17] : memref<1x32xf32, #tpu.memory_space<vmem>>, vector<1x32xf32>
    %28 = vector.broadcast %27 : vector<1x32xf32> to vector<48x32xf32>
    %29 = arith.addf %26, %28 : vector<48x32xf32>
    %30 = arith.negf %29 : vector<48x32xf32>
    %31 = math.exp %30 : vector<48x32xf32>
    %cst_18 = arith.constant 1.000000e+00 : f32
    %32 = vector.broadcast %cst_18 : f32 to vector<48x32xf32>
    %33 = arith.addf %32, %31 : vector<48x32xf32>
    %34 = arith.divf %32, %33 : vector<48x32xf32>
    %35 = arith.mulf %29, %34 : vector<48x32xf32>
    %c0_19 = arith.constant 0 : index
    %c0_20 = arith.constant 0 : index
    %36 = vector.load %arg16[%c0_19, %c0_20] : memref<32x32xf32, #tpu.memory_space<vmem>>, vector<32x32xf32>
    %cst_21 = arith.constant dense<0.000000e+00> : vector<48x32xf32>
    %37 = tpu.matmul %35, %36, %cst_21 {dimension_numbers = #tpu.dot_dimension_numbers<[1], [0], [0], [1], [0, 0, 1, 1], [], []>} : vector<48x32xf32>, vector<32x32xf32>, vector<48x32xf32> -> vector<48x32xf32>
    %c0_22 = arith.constant 0 : index
    %c0_23 = arith.constant 0 : index
    %38 = vector.load %arg17[%c0_22, %c0_23] : memref<1x32xf32, #tpu.memory_space<vmem>>, vector<1x32xf32>
    %39 = vector.broadcast %38 : vector<1x32xf32> to vector<48x32xf32>
    %40 = arith.addf %37, %39 : vector<48x32xf32>
    %c0_24 = arith.constant 0 : index
    %c0_25 = arith.constant 0 : index
    %41 = vector.load %arg12[%c0_24, %c0_25] : memref<48x1xf32, #tpu.memory_space<vmem>>, vector<48x1xf32>
    %42 = vector.broadcast %41 : vector<48x1xf32> to vector<48x32xf32>
    %43 = arith.mulf %40, %42 : vector<48x32xf32>
    %c0_26 = arith.constant 0 : index
    %c0_27 = arith.constant 0 : index
    %44 = vector.load %arg18[%c0_26, %c0_27] : memref<32x32xf32, #tpu.memory_space<vmem>>, vector<32x32xf32>
    %cst_28 = arith.constant dense<0.000000e+00> : vector<16x32xf32>
    %45 = tpu.matmul %23, %44, %cst_28 {dimension_numbers = #tpu.dot_dimension_numbers<[1], [0], [0], [1], [0, 0, 1, 1], [], []>} : vector<16x32xf32>, vector<32x32xf32>, vector<16x32xf32> -> vector<16x32xf32>
    %c0_29 = arith.constant 0 : index
    %c0_30 = arith.constant 0 : index
    %46 = vector.load %arg19[%c0_29, %c0_30] : memref<1x32xf32, #tpu.memory_space<vmem>>, vector<1x32xf32>
    %47 = vector.broadcast %46 : vector<1x32xf32> to vector<16x32xf32>
    %48 = arith.addf %45, %47 : vector<16x32xf32>
    %c0_31 = arith.constant 0 : index
    %c0_32 = arith.constant 0 : index
    %49 = vector.load %arg10[%c0_31, %c0_32] : memref<48x16xbf16, #tpu.memory_space<vmem>>, vector<48x16xbf16>
    %50 = arith.truncf %48 : vector<16x32xf32> to vector<16x32xbf16>
    %cst_33 = arith.constant dense<0.000000e+00> : vector<48x32xf32>
    %51 = tpu.matmul %49, %50, %cst_33 {dimension_numbers = #tpu.dot_dimension_numbers<[1], [0], [0], [1], [0, 0, 1, 1], [], []>} : vector<48x16xbf16>, vector<16x32xbf16>, vector<48x32xf32> -> vector<48x32xf32>
    %52 = arith.mulf %51, %43 : vector<48x32xf32>
    %c0_34 = arith.constant 0 : index
    %c0_35 = arith.constant 0 : index
    %53 = vector.load %arg11[%c0_34, %c0_35] : memref<16x48xbf16, #tpu.memory_space<vmem>>, vector<16x48xbf16>
    %54 = arith.truncf %52 : vector<48x32xf32> to vector<48x32xbf16>
    %cst_36 = arith.constant dense<0.000000e+00> : vector<16x32xf32>
    %55 = tpu.matmul %53, %54, %cst_36 {dimension_numbers = #tpu.dot_dimension_numbers<[1], [0], [0], [1], [0, 0, 1, 1], [], []>} : vector<16x48xbf16>, vector<48x32xbf16>, vector<16x32xf32> -> vector<16x32xf32>
    %c0_37 = arith.constant 0 : index
    %c0_38 = arith.constant 0 : index
    %56 = vector.load %arg20[%c0_37, %c0_38] : memref<32x32xf32, #tpu.memory_space<vmem>>, vector<32x32xf32>
    %cst_39 = arith.constant dense<0.000000e+00> : vector<16x32xf32>
    %57 = tpu.matmul %55, %56, %cst_39 {dimension_numbers = #tpu.dot_dimension_numbers<[1], [0], [0], [1], [0, 0, 1, 1], [], []>} : vector<16x32xf32>, vector<32x32xf32>, vector<16x32xf32> -> vector<16x32xf32>
    %c0_40 = arith.constant 0 : index
    %c0_41 = arith.constant 0 : index
    %58 = vector.load %arg21[%c0_40, %c0_41] : memref<1x32xf32, #tpu.memory_space<vmem>>, vector<1x32xf32>
    %59 = vector.broadcast %58 : vector<1x32xf32> to vector<16x32xf32>
    %60 = arith.addf %57, %59 : vector<16x32xf32>
    %c0_42 = arith.constant 0 : index
    %c0_43 = arith.constant 0 : index
    %61 = vector.load %arg4[%c0_42, %c0_43] : memref<1x32xf32, #tpu.memory_space<vmem>>, vector<1x32xf32>
    %c0_44 = arith.constant 0 : index
    %c0_45 = arith.constant 0 : index
    %62 = vector.load %arg5[%c0_44, %c0_45] : memref<1x32xf32, #tpu.memory_space<vmem>>, vector<1x32xf32>
    %cst_46 = arith.constant dense<0.000000e+00> : vector<128xf32>
    %63 = vector.multi_reduction <add>, %1, %cst_46 [1] : vector<128x32xf32> to vector<128xf32>
    %64 = vector.shape_cast %63 : vector<128xf32> to vector<128x1xf32>
    %cst_47 = arith.constant 3.200000e+01 : f32
    %65 = vector.broadcast %cst_47 : f32 to vector<128x1xf32>
    %66 = arith.divf %64, %65 : vector<128x1xf32>
    %67 = vector.broadcast %66 : vector<128x1xf32> to vector<128x32xf32>
    %68 = arith.subf %1, %67 : vector<128x32xf32>
    %69 = arith.mulf %68, %68 : vector<128x32xf32>
    %cst_48 = arith.constant dense<0.000000e+00> : vector<128xf32>
    %70 = vector.multi_reduction <add>, %69, %cst_48 [1] : vector<128x32xf32> to vector<128xf32>
    %71 = vector.shape_cast %70 : vector<128xf32> to vector<128x1xf32>
    %cst_49 = arith.constant 3.200000e+01 : f32
    %72 = vector.broadcast %cst_49 : f32 to vector<128x1xf32>
    %73 = arith.divf %71, %72 : vector<128x1xf32>
    %cst_50 = arith.constant 9.99999974E-6 : f32
    %74 = vector.broadcast %cst_50 : f32 to vector<128x1xf32>
    %75 = arith.addf %73, %74 : vector<128x1xf32>
    %76 = math.rsqrt %75 : vector<128x1xf32>
    %77 = vector.broadcast %76 : vector<128x1xf32> to vector<128x32xf32>
    %78 = arith.mulf %68, %77 : vector<128x32xf32>
    %79 = vector.broadcast %61 : vector<1x32xf32> to vector<128x32xf32>
    %80 = arith.mulf %78, %79 : vector<128x32xf32>
    %81 = vector.broadcast %62 : vector<1x32xf32> to vector<128x32xf32>
    %82 = arith.addf %80, %81 : vector<128x32xf32>
    %c0_51 = arith.constant 0 : index
    %c0_52 = arith.constant 0 : index
    %83 = vector.load %arg46[%c0_51, %c0_52] : memref<32x96xf32, #tpu.memory_space<vmem>>, vector<32x96xf32>
    %cst_53 = arith.constant dense<0.000000e+00> : vector<128x96xf32>
    %84 = tpu.matmul %82, %83, %cst_53 {dimension_numbers = #tpu.dot_dimension_numbers<[1], [0], [0], [1], [0, 0, 1, 1], [], []>} : vector<128x32xf32>, vector<32x96xf32>, vector<128x96xf32> -> vector<128x96xf32>
    %c0_54 = arith.constant 0 : index
    %c0_55 = arith.constant 0 : index
    %85 = vector.load %arg47[%c0_54, %c0_55] : memref<1x96xf32, #tpu.memory_space<vmem>>, vector<1x96xf32>
    %86 = vector.broadcast %85 : vector<1x96xf32> to vector<128x96xf32>
    %87 = arith.addf %84, %86 : vector<128x96xf32>
    %c0_56 = arith.constant 0 : index
    %c0_57 = arith.constant 0 : index
    %88 = vector.load %arg48[%c0_56, %c0_57] : memref<32x32xf32, #tpu.memory_space<vmem>>, vector<32x32xf32>
    %c0_58 = arith.constant 0 : index
    %c0_59 = arith.constant 0 : index
    %89 = vector.load %arg49[%c0_58, %c0_59] : memref<1x32xf32, #tpu.memory_space<vmem>>, vector<1x32xf32>
    %90 = vector.extract_strided_slice %87 {offsets = [0, 0], sizes = [64, 96], strides = [1, 1]} : vector<128x96xf32> to vector<64x96xf32>
    %cst_60 = arith.constant 0.000000e+00 : f32
    %91 = vector.broadcast %cst_60 : f32 to vector<64x32xf32>
    %92 = vector.extract_strided_slice %90 {offsets = [0, 0], sizes = [64, 8], strides = [1, 1]} : vector<64x96xf32> to vector<64x8xf32>
    %cst_61 = arith.constant 0.353553385 : f32
    %93 = vector.broadcast %cst_61 : f32 to vector<64x8xf32>
    %94 = arith.mulf %92, %93 : vector<64x8xf32>
    %95 = vector.extract_strided_slice %90 {offsets = [0, 32], sizes = [64, 8], strides = [1, 1]} : vector<64x96xf32> to vector<64x8xf32>
    %96 = vector.extract_strided_slice %90 {offsets = [0, 64], sizes = [64, 8], strides = [1, 1]} : vector<64x96xf32> to vector<64x8xf32>
    %cst_62 = arith.constant dense<0.000000e+00> : vector<64x64xf32>
    %97 = tpu.matmul %94, %95, %cst_62 {dimension_numbers = #tpu.dot_dimension_numbers<[1], [1], [0], [0], [0, 0, 1, 0], [], []>} : vector<64x8xf32>, vector<64x8xf32>, vector<64x64xf32> -> vector<64x64xf32>
    %cst_63 = arith.constant dense<0xFF800000> : vector<64xf32>
    %98 = vector.multi_reduction <maximumf>, %97, %cst_63 [1] : vector<64x64xf32> to vector<64xf32>
    %99 = vector.shape_cast %98 : vector<64xf32> to vector<64x1xf32>
    %100 = vector.broadcast %99 : vector<64x1xf32> to vector<64x64xf32>
    %101 = arith.subf %97, %100 : vector<64x64xf32>
    %102 = math.exp %101 : vector<64x64xf32>
    %cst_64 = arith.constant dense<0.000000e+00> : vector<64xf32>
    %103 = vector.multi_reduction <add>, %102, %cst_64 [1] : vector<64x64xf32> to vector<64xf32>
    %104 = vector.shape_cast %103 : vector<64xf32> to vector<64x1xf32>
    %105 = vector.broadcast %104 : vector<64x1xf32> to vector<64x64xf32>
    %106 = arith.divf %102, %105 : vector<64x64xf32>
    %cst_65 = arith.constant dense<0.000000e+00> : vector<64x8xf32>
    %107 = tpu.matmul %106, %96, %cst_65 {dimension_numbers = #tpu.dot_dimension_numbers<[1], [0], [0], [1], [0, 0, 1, 1], [], []>} : vector<64x64xf32>, vector<64x8xf32>, vector<64x8xf32> -> vector<64x8xf32>
    %108 = vector.extract_strided_slice %88 {offsets = [0, 0], sizes = [8, 32], strides = [1, 1]} : vector<32x32xf32> to vector<8x32xf32>
    %cst_66 = arith.constant dense<0.000000e+00> : vector<64x32xf32>
    %109 = tpu.matmul %107, %108, %cst_66 {dimension_numbers = #tpu.dot_dimension_numbers<[1], [0], [0], [1], [0, 0, 1, 1], [], []>} : vector<64x8xf32>, vector<8x32xf32>, vector<64x32xf32> -> vector<64x32xf32>
    %110 = arith.addf %91, %109 : vector<64x32xf32>
    %111 = vector.extract_strided_slice %90 {offsets = [0, 8], sizes = [64, 8], strides = [1, 1]} : vector<64x96xf32> to vector<64x8xf32>
    %cst_67 = arith.constant 0.353553385 : f32
    %112 = vector.broadcast %cst_67 : f32 to vector<64x8xf32>
    %113 = arith.mulf %111, %112 : vector<64x8xf32>
    %114 = vector.extract_strided_slice %90 {offsets = [0, 40], sizes = [64, 8], strides = [1, 1]} : vector<64x96xf32> to vector<64x8xf32>
    %115 = vector.extract_strided_slice %90 {offsets = [0, 72], sizes = [64, 8], strides = [1, 1]} : vector<64x96xf32> to vector<64x8xf32>
    %cst_68 = arith.constant dense<0.000000e+00> : vector<64x64xf32>
    %116 = tpu.matmul %113, %114, %cst_68 {dimension_numbers = #tpu.dot_dimension_numbers<[1], [1], [0], [0], [0, 0, 1, 0], [], []>} : vector<64x8xf32>, vector<64x8xf32>, vector<64x64xf32> -> vector<64x64xf32>
    %cst_69 = arith.constant dense<0xFF800000> : vector<64xf32>
    %117 = vector.multi_reduction <maximumf>, %116, %cst_69 [1] : vector<64x64xf32> to vector<64xf32>
    %118 = vector.shape_cast %117 : vector<64xf32> to vector<64x1xf32>
    %119 = vector.broadcast %118 : vector<64x1xf32> to vector<64x64xf32>
    %120 = arith.subf %116, %119 : vector<64x64xf32>
    %121 = math.exp %120 : vector<64x64xf32>
    %cst_70 = arith.constant dense<0.000000e+00> : vector<64xf32>
    %122 = vector.multi_reduction <add>, %121, %cst_70 [1] : vector<64x64xf32> to vector<64xf32>
    %123 = vector.shape_cast %122 : vector<64xf32> to vector<64x1xf32>
    %124 = vector.broadcast %123 : vector<64x1xf32> to vector<64x64xf32>
    %125 = arith.divf %121, %124 : vector<64x64xf32>
    %cst_71 = arith.constant dense<0.000000e+00> : vector<64x8xf32>
    %126 = tpu.matmul %125, %115, %cst_71 {dimension_numbers = #tpu.dot_dimension_numbers<[1], [0], [0], [1], [0, 0, 1, 1], [], []>} : vector<64x64xf32>, vector<64x8xf32>, vector<64x8xf32> -> vector<64x8xf32>
    %127 = vector.extract_strided_slice %88 {offsets = [8, 0], sizes = [8, 32], strides = [1, 1]} : vector<32x32xf32> to vector<8x32xf32>
    %cst_72 = arith.constant dense<0.000000e+00> : vector<64x32xf32>
    %128 = tpu.matmul %126, %127, %cst_72 {dimension_numbers = #tpu.dot_dimension_numbers<[1], [0], [0], [1], [0, 0, 1, 1], [], []>} : vector<64x8xf32>, vector<8x32xf32>, vector<64x32xf32> -> vector<64x32xf32>
    %129 = arith.addf %110, %128 : vector<64x32xf32>
    %130 = vector.extract_strided_slice %90 {offsets = [0, 16], sizes = [64, 8], strides = [1, 1]} : vector<64x96xf32> to vector<64x8xf32>
    %cst_73 = arith.constant 0.353553385 : f32
    %131 = vector.broadcast %cst_73 : f32 to vector<64x8xf32>
    %132 = arith.mulf %130, %131 : vector<64x8xf32>
    %133 = vector.extract_strided_slice %90 {offsets = [0, 48], sizes = [64, 8], strides = [1, 1]} : vector<64x96xf32> to vector<64x8xf32>
    %134 = vector.extract_strided_slice %90 {offsets = [0, 80], sizes = [64, 8], strides = [1, 1]} : vector<64x96xf32> to vector<64x8xf32>
    %cst_74 = arith.constant dense<0.000000e+00> : vector<64x64xf32>
    %135 = tpu.matmul %132, %133, %cst_74 {dimension_numbers = #tpu.dot_dimension_numbers<[1], [1], [0], [0], [0, 0, 1, 0], [], []>} : vector<64x8xf32>, vector<64x8xf32>, vector<64x64xf32> -> vector<64x64xf32>
    %cst_75 = arith.constant dense<0xFF800000> : vector<64xf32>
    %136 = vector.multi_reduction <maximumf>, %135, %cst_75 [1] : vector<64x64xf32> to vector<64xf32>
    %137 = vector.shape_cast %136 : vector<64xf32> to vector<64x1xf32>
    %138 = vector.broadcast %137 : vector<64x1xf32> to vector<64x64xf32>
    %139 = arith.subf %135, %138 : vector<64x64xf32>
    %140 = math.exp %139 : vector<64x64xf32>
    %cst_76 = arith.constant dense<0.000000e+00> : vector<64xf32>
    %141 = vector.multi_reduction <add>, %140, %cst_76 [1] : vector<64x64xf32> to vector<64xf32>
    %142 = vector.shape_cast %141 : vector<64xf32> to vector<64x1xf32>
    %143 = vector.broadcast %142 : vector<64x1xf32> to vector<64x64xf32>
    %144 = arith.divf %140, %143 : vector<64x64xf32>
    %cst_77 = arith.constant dense<0.000000e+00> : vector<64x8xf32>
    %145 = tpu.matmul %144, %134, %cst_77 {dimension_numbers = #tpu.dot_dimension_numbers<[1], [0], [0], [1], [0, 0, 1, 1], [], []>} : vector<64x64xf32>, vector<64x8xf32>, vector<64x8xf32> -> vector<64x8xf32>
    %146 = vector.extract_strided_slice %88 {offsets = [16, 0], sizes = [8, 32], strides = [1, 1]} : vector<32x32xf32> to vector<8x32xf32>
    %cst_78 = arith.constant dense<0.000000e+00> : vector<64x32xf32>
    %147 = tpu.matmul %145, %146, %cst_78 {dimension_numbers = #tpu.dot_dimension_numbers<[1], [0], [0], [1], [0, 0, 1, 1], [], []>} : vector<64x8xf32>, vector<8x32xf32>, vector<64x32xf32> -> vector<64x32xf32>
    %148 = arith.addf %129, %147 : vector<64x32xf32>
    %149 = vector.extract_strided_slice %90 {offsets = [0, 24], sizes = [64, 8], strides = [1, 1]} : vector<64x96xf32> to vector<64x8xf32>
    %cst_79 = arith.constant 0.353553385 : f32
    %150 = vector.broadcast %cst_79 : f32 to vector<64x8xf32>
    %151 = arith.mulf %149, %150 : vector<64x8xf32>
    %152 = vector.extract_strided_slice %90 {offsets = [0, 56], sizes = [64, 8], strides = [1, 1]} : vector<64x96xf32> to vector<64x8xf32>
    %153 = vector.extract_strided_slice %90 {offsets = [0, 88], sizes = [64, 8], strides = [1, 1]} : vector<64x96xf32> to vector<64x8xf32>
    %cst_80 = arith.constant dense<0.000000e+00> : vector<64x64xf32>
    %154 = tpu.matmul %151, %152, %cst_80 {dimension_numbers = #tpu.dot_dimension_numbers<[1], [1], [0], [0], [0, 0, 1, 0], [], []>} : vector<64x8xf32>, vector<64x8xf32>, vector<64x64xf32> -> vector<64x64xf32>
    %cst_81 = arith.constant dense<0xFF800000> : vector<64xf32>
    %155 = vector.multi_reduction <maximumf>, %154, %cst_81 [1] : vector<64x64xf32> to vector<64xf32>
    %156 = vector.shape_cast %155 : vector<64xf32> to vector<64x1xf32>
    %157 = vector.broadcast %156 : vector<64x1xf32> to vector<64x64xf32>
    %158 = arith.subf %154, %157 : vector<64x64xf32>
    %159 = math.exp %158 : vector<64x64xf32>
    %cst_82 = arith.constant dense<0.000000e+00> : vector<64xf32>
    %160 = vector.multi_reduction <add>, %159, %cst_82 [1] : vector<64x64xf32> to vector<64xf32>
    %161 = vector.shape_cast %160 : vector<64xf32> to vector<64x1xf32>
    %162 = vector.broadcast %161 : vector<64x1xf32> to vector<64x64xf32>
    %163 = arith.divf %159, %162 : vector<64x64xf32>
    %cst_83 = arith.constant dense<0.000000e+00> : vector<64x8xf32>
    %164 = tpu.matmul %163, %153, %cst_83 {dimension_numbers = #tpu.dot_dimension_numbers<[1], [0], [0], [1], [0, 0, 1, 1], [], []>} : vector<64x64xf32>, vector<64x8xf32>, vector<64x8xf32> -> vector<64x8xf32>
    %165 = vector.extract_strided_slice %88 {offsets = [24, 0], sizes = [8, 32], strides = [1, 1]} : vector<32x32xf32> to vector<8x32xf32>
    %cst_84 = arith.constant dense<0.000000e+00> : vector<64x32xf32>
    %166 = tpu.matmul %164, %165, %cst_84 {dimension_numbers = #tpu.dot_dimension_numbers<[1], [0], [0], [1], [0, 0, 1, 1], [], []>} : vector<64x8xf32>, vector<8x32xf32>, vector<64x32xf32> -> vector<64x32xf32>
    %167 = arith.addf %148, %166 : vector<64x32xf32>
    %168 = vector.broadcast %89 : vector<1x32xf32> to vector<64x32xf32>
    %169 = arith.addf %167, %168 : vector<64x32xf32>
    %c0_85 = arith.constant 0 : index
    %c0_86 = arith.constant 0 : index
    %170 = vector.load %arg52[%c0_85, %c0_86] : memref<128x32xf32, #tpu.memory_space<vmem>>, vector<64x32xf32>
    tpu.vector_store %arg52[%c0_85, %c0_86], %169 {strides = array<i32>} : memref<128x32xf32, #tpu.memory_space<vmem>>, vector<64x32xf32>,
    %171 = vector.extract_strided_slice %87 {offsets = [64, 0], sizes = [64, 96], strides = [1, 1]} : vector<128x96xf32> to vector<64x96xf32>
    %cst_87 = arith.constant 0.000000e+00 : f32
    %172 = vector.broadcast %cst_87 : f32 to vector<64x32xf32>
    %173 = vector.extract_strided_slice %171 {offsets = [0, 0], sizes = [64, 8], strides = [1, 1]} : vector<64x96xf32> to vector<64x8xf32>
    %cst_88 = arith.constant 0.353553385 : f32
    %174 = vector.broadcast %cst_88 : f32 to vector<64x8xf32>
    %175 = arith.mulf %173, %174 : vector<64x8xf32>
    %176 = vector.extract_strided_slice %171 {offsets = [0, 32], sizes = [64, 8], strides = [1, 1]} : vector<64x96xf32> to vector<64x8xf32>
    %177 = vector.extract_strided_slice %171 {offsets = [0, 64], sizes = [64, 8], strides = [1, 1]} : vector<64x96xf32> to vector<64x8xf32>
    %cst_89 = arith.constant dense<0.000000e+00> : vector<64x64xf32>
    %178 = tpu.matmul %175, %176, %cst_89 {dimension_numbers = #tpu.dot_dimension_numbers<[1], [1], [0], [0], [0, 0, 1, 0], [], []>} : vector<64x8xf32>, vector<64x8xf32>, vector<64x64xf32> -> vector<64x64xf32>
    %cst_90 = arith.constant dense<0xFF800000> : vector<64xf32>
    %179 = vector.multi_reduction <maximumf>, %178, %cst_90 [1] : vector<64x64xf32> to vector<64xf32>
    %180 = vector.shape_cast %179 : vector<64xf32> to vector<64x1xf32>
    %181 = vector.broadcast %180 : vector<64x1xf32> to vector<64x64xf32>
    %182 = arith.subf %178, %181 : vector<64x64xf32>
    %183 = math.exp %182 : vector<64x64xf32>
    %cst_91 = arith.constant dense<0.000000e+00> : vector<64xf32>
    %184 = vector.multi_reduction <add>, %183, %cst_91 [1] : vector<64x64xf32> to vector<64xf32>
    %185 = vector.shape_cast %184 : vector<64xf32> to vector<64x1xf32>
    %186 = vector.broadcast %185 : vector<64x1xf32> to vector<64x64xf32>
    %187 = arith.divf %183, %186 : vector<64x64xf32>
    %cst_92 = arith.constant dense<0.000000e+00> : vector<64x8xf32>
    %188 = tpu.matmul %187, %177, %cst_92 {dimension_numbers = #tpu.dot_dimension_numbers<[1], [0], [0], [1], [0, 0, 1, 1], [], []>} : vector<64x64xf32>, vector<64x8xf32>, vector<64x8xf32> -> vector<64x8xf32>
    %189 = vector.extract_strided_slice %88 {offsets = [0, 0], sizes = [8, 32], strides = [1, 1]} : vector<32x32xf32> to vector<8x32xf32>
    %cst_93 = arith.constant dense<0.000000e+00> : vector<64x32xf32>
    %190 = tpu.matmul %188, %189, %cst_93 {dimension_numbers = #tpu.dot_dimension_numbers<[1], [0], [0], [1], [0, 0, 1, 1], [], []>} : vector<64x8xf32>, vector<8x32xf32>, vector<64x32xf32> -> vector<64x32xf32>
    %191 = arith.addf %172, %190 : vector<64x32xf32>
    %192 = vector.extract_strided_slice %171 {offsets = [0, 8], sizes = [64, 8], strides = [1, 1]} : vector<64x96xf32> to vector<64x8xf32>
    %cst_94 = arith.constant 0.353553385 : f32
    %193 = vector.broadcast %cst_94 : f32 to vector<64x8xf32>
    %194 = arith.mulf %192, %193 : vector<64x8xf32>
    %195 = vector.extract_strided_slice %171 {offsets = [0, 40], sizes = [64, 8], strides = [1, 1]} : vector<64x96xf32> to vector<64x8xf32>
    %196 = vector.extract_strided_slice %171 {offsets = [0, 72], sizes = [64, 8], strides = [1, 1]} : vector<64x96xf32> to vector<64x8xf32>
    %cst_95 = arith.constant dense<0.000000e+00> : vector<64x64xf32>
    %197 = tpu.matmul %194, %195, %cst_95 {dimension_numbers = #tpu.dot_dimension_numbers<[1], [1], [0], [0], [0, 0, 1, 0], [], []>} : vector<64x8xf32>, vector<64x8xf32>, vector<64x64xf32> -> vector<64x64xf32>
    %cst_96 = arith.constant dense<0xFF800000> : vector<64xf32>
    %198 = vector.multi_reduction <maximumf>, %197, %cst_96 [1] : vector<64x64xf32> to vector<64xf32>
    %199 = vector.shape_cast %198 : vector<64xf32> to vector<64x1xf32>
    %200 = vector.broadcast %199 : vector<64x1xf32> to vector<64x64xf32>
    %201 = arith.subf %197, %200 : vector<64x64xf32>
    %202 = math.exp %201 : vector<64x64xf32>
    %cst_97 = arith.constant dense<0.000000e+00> : vector<64xf32>
    %203 = vector.multi_reduction <add>, %202, %cst_97 [1] : vector<64x64xf32> to vector<64xf32>
    %204 = vector.shape_cast %203 : vector<64xf32> to vector<64x1xf32>
    %205 = vector.broadcast %204 : vector<64x1xf32> to vector<64x64xf32>
    %206 = arith.divf %202, %205 : vector<64x64xf32>
    %cst_98 = arith.constant dense<0.000000e+00> : vector<64x8xf32>
    %207 = tpu.matmul %206, %196, %cst_98 {dimension_numbers = #tpu.dot_dimension_numbers<[1], [0], [0], [1], [0, 0, 1, 1], [], []>} : vector<64x64xf32>, vector<64x8xf32>, vector<64x8xf32> -> vector<64x8xf32>
    %208 = vector.extract_strided_slice %88 {offsets = [8, 0], sizes = [8, 32], strides = [1, 1]} : vector<32x32xf32> to vector<8x32xf32>
    %cst_99 = arith.constant dense<0.000000e+00> : vector<64x32xf32>
    %209 = tpu.matmul %207, %208, %cst_99 {dimension_numbers = #tpu.dot_dimension_numbers<[1], [0], [0], [1], [0, 0, 1, 1], [], []>} : vector<64x8xf32>, vector<8x32xf32>, vector<64x32xf32> -> vector<64x32xf32>
    %210 = arith.addf %191, %209 : vector<64x32xf32>
    %211 = vector.extract_strided_slice %171 {offsets = [0, 16], sizes = [64, 8], strides = [1, 1]} : vector<64x96xf32> to vector<64x8xf32>
    %cst_100 = arith.constant 0.353553385 : f32
    %212 = vector.broadcast %cst_100 : f32 to vector<64x8xf32>
    %213 = arith.mulf %211, %212 : vector<64x8xf32>
    %214 = vector.extract_strided_slice %171 {offsets = [0, 48], sizes = [64, 8], strides = [1, 1]} : vector<64x96xf32> to vector<64x8xf32>
    %215 = vector.extract_strided_slice %171 {offsets = [0, 80], sizes = [64, 8], strides = [1, 1]} : vector<64x96xf32> to vector<64x8xf32>
    %cst_101 = arith.constant dense<0.000000e+00> : vector<64x64xf32>
    %216 = tpu.matmul %213, %214, %cst_101 {dimension_numbers = #tpu.dot_dimension_numbers<[1], [1], [0], [0], [0, 0, 1, 0], [], []>} : vector<64x8xf32>, vector<64x8xf32>, vector<64x64xf32> -> vector<64x64xf32>
    %cst_102 = arith.constant dense<0xFF800000> : vector<64xf32>
    %217 = vector.multi_reduction <maximumf>, %216, %cst_102 [1] : vector<64x64xf32> to vector<64xf32>
    %218 = vector.shape_cast %217 : vector<64xf32> to vector<64x1xf32>
    %219 = vector.broadcast %218 : vector<64x1xf32> to vector<64x64xf32>
    %220 = arith.subf %216, %219 : vector<64x64xf32>
    %221 = math.exp %220 : vector<64x64xf32>
    %cst_103 = arith.constant dense<0.000000e+00> : vector<64xf32>
    %222 = vector.multi_reduction <add>, %221, %cst_103 [1] : vector<64x64xf32> to vector<64xf32>
    %223 = vector.shape_cast %222 : vector<64xf32> to vector<64x1xf32>
    %224 = vector.broadcast %223 : vector<64x1xf32> to vector<64x64xf32>
    %225 = arith.divf %221, %224 : vector<64x64xf32>
    %cst_104 = arith.constant dense<0.000000e+00> : vector<64x8xf32>
    %226 = tpu.matmul %225, %215, %cst_104 {dimension_numbers = #tpu.dot_dimension_numbers<[1], [0], [0], [1], [0, 0, 1, 1], [], []>} : vector<64x64xf32>, vector<64x8xf32>, vector<64x8xf32> -> vector<64x8xf32>
    %227 = vector.extract_strided_slice %88 {offsets = [16, 0], sizes = [8, 32], strides = [1, 1]} : vector<32x32xf32> to vector<8x32xf32>
    %cst_105 = arith.constant dense<0.000000e+00> : vector<64x32xf32>
    %228 = tpu.matmul %226, %227, %cst_105 {dimension_numbers = #tpu.dot_dimension_numbers<[1], [0], [0], [1], [0, 0, 1, 1], [], []>} : vector<64x8xf32>, vector<8x32xf32>, vector<64x32xf32> -> vector<64x32xf32>
    %229 = arith.addf %210, %228 : vector<64x32xf32>
    %230 = vector.extract_strided_slice %171 {offsets = [0, 24], sizes = [64, 8], strides = [1, 1]} : vector<64x96xf32> to vector<64x8xf32>
    %cst_106 = arith.constant 0.353553385 : f32
    %231 = vector.broadcast %cst_106 : f32 to vector<64x8xf32>
    %232 = arith.mulf %230, %231 : vector<64x8xf32>
    %233 = vector.extract_strided_slice %171 {offsets = [0, 56], sizes = [64, 8], strides = [1, 1]} : vector<64x96xf32> to vector<64x8xf32>
    %234 = vector.extract_strided_slice %171 {offsets = [0, 88], sizes = [64, 8], strides = [1, 1]} : vector<64x96xf32> to vector<64x8xf32>
    %cst_107 = arith.constant dense<0.000000e+00> : vector<64x64xf32>
    %235 = tpu.matmul %232, %233, %cst_107 {dimension_numbers = #tpu.dot_dimension_numbers<[1], [1], [0], [0], [0, 0, 1, 0], [], []>} : vector<64x8xf32>, vector<64x8xf32>, vector<64x64xf32> -> vector<64x64xf32>
    %cst_108 = arith.constant dense<0xFF800000> : vector<64xf32>
    %236 = vector.multi_reduction <maximumf>, %235, %cst_108 [1] : vector<64x64xf32> to vector<64xf32>
    %237 = vector.shape_cast %236 : vector<64xf32> to vector<64x1xf32>
    %238 = vector.broadcast %237 : vector<64x1xf32> to vector<64x64xf32>
    %239 = arith.subf %235, %238 : vector<64x64xf32>
    %240 = math.exp %239 : vector<64x64xf32>
    %cst_109 = arith.constant dense<0.000000e+00> : vector<64xf32>
    %241 = vector.multi_reduction <add>, %240, %cst_109 [1] : vector<64x64xf32> to vector<64xf32>
    %242 = vector.shape_cast %241 : vector<64xf32> to vector<64x1xf32>
    %243 = vector.broadcast %242 : vector<64x1xf32> to vector<64x64xf32>
    %244 = arith.divf %240, %243 : vector<64x64xf32>
    %cst_110 = arith.constant dense<0.000000e+00> : vector<64x8xf32>
    %245 = tpu.matmul %244, %234, %cst_110 {dimension_numbers = #tpu.dot_dimension_numbers<[1], [0], [0], [1], [0, 0, 1, 1], [], []>} : vector<64x64xf32>, vector<64x8xf32>, vector<64x8xf32> -> vector<64x8xf32>
    %246 = vector.extract_strided_slice %88 {offsets = [24, 0], sizes = [8, 32], strides = [1, 1]} : vector<32x32xf32> to vector<8x32xf32>
    %cst_111 = arith.constant dense<0.000000e+00> : vector<64x32xf32>
    %247 = tpu.matmul %245, %246, %cst_111 {dimension_numbers = #tpu.dot_dimension_numbers<[1], [0], [0], [1], [0, 0, 1, 1], [], []>} : vector<64x8xf32>, vector<8x32xf32>, vector<64x32xf32> -> vector<64x32xf32>
    %248 = arith.addf %229, %247 : vector<64x32xf32>
    %249 = vector.broadcast %89 : vector<1x32xf32> to vector<64x32xf32>
    %250 = arith.addf %248, %249 : vector<64x32xf32>
    %c64 = arith.constant 64 : index
    %c0_112 = arith.constant 0 : index
    %251 = vector.load %arg52[%c64, %c0_112] : memref<128x32xf32, #tpu.memory_space<vmem>>, vector<64x32xf32>
    tpu.vector_store %arg52[%c64, %c0_112], %250 {strides = array<i32>} : memref<128x32xf32, #tpu.memory_space<vmem>>, vector<64x32xf32>,
    %c0_113 = arith.constant 0 : index
    %c0_114 = arith.constant 0 : index
    %252 = vector.load %arg52[%c0_113, %c0_114] : memref<128x32xf32, #tpu.memory_space<vmem>>, vector<128x32xf32>
    %c0_115 = arith.constant 0 : index
    %c0_116 = arith.constant 0 : index
    %253 = vector.load %arg25[%c0_115, %c0_116] : memref<64x16xf32, #tpu.memory_space<vmem>>, vector<64x16xf32>
    %c0_117 = arith.constant 0 : index
    %c0_118 = arith.constant 0 : index
    %254 = vector.load %arg26[%c0_117, %c0_118] : memref<16x32xf32, #tpu.memory_space<vmem>>, vector<16x32xf32>
    %cst_119 = arith.constant dense<0.000000e+00> : vector<64x32xf32>
    %255 = tpu.matmul %253, %254, %cst_119 {dimension_numbers = #tpu.dot_dimension_numbers<[1], [0], [0], [1], [0, 0, 1, 1], [], []>} : vector<64x16xf32>, vector<16x32xf32>, vector<64x32xf32> -> vector<64x32xf32>
    %c0_120 = arith.constant 0 : index
    %c0_121 = arith.constant 0 : index
    %256 = vector.load %arg27[%c0_120, %c0_121] : memref<1x32xf32, #tpu.memory_space<vmem>>, vector<1x32xf32>
    %257 = vector.broadcast %256 : vector<1x32xf32> to vector<64x32xf32>
    %258 = arith.addf %255, %257 : vector<64x32xf32>
    %259 = arith.negf %258 : vector<64x32xf32>
    %260 = math.exp %259 : vector<64x32xf32>
    %cst_122 = arith.constant 1.000000e+00 : f32
    %261 = vector.broadcast %cst_122 : f32 to vector<64x32xf32>
    %262 = arith.addf %261, %260 : vector<64x32xf32>
    %263 = arith.divf %261, %262 : vector<64x32xf32>
    %264 = arith.mulf %258, %263 : vector<64x32xf32>
    %c0_123 = arith.constant 0 : index
    %c0_124 = arith.constant 0 : index
    %265 = vector.load %arg28[%c0_123, %c0_124] : memref<32x32xf32, #tpu.memory_space<vmem>>, vector<32x32xf32>
    %cst_125 = arith.constant dense<0.000000e+00> : vector<64x32xf32>
    %266 = tpu.matmul %264, %265, %cst_125 {dimension_numbers = #tpu.dot_dimension_numbers<[1], [0], [0], [1], [0, 0, 1, 1], [], []>} : vector<64x32xf32>, vector<32x32xf32>, vector<64x32xf32> -> vector<64x32xf32>
    %c0_126 = arith.constant 0 : index
    %c0_127 = arith.constant 0 : index
    %267 = vector.load %arg29[%c0_126, %c0_127] : memref<1x32xf32, #tpu.memory_space<vmem>>, vector<1x32xf32>
    %268 = vector.broadcast %267 : vector<1x32xf32> to vector<64x32xf32>
    %269 = arith.addf %266, %268 : vector<64x32xf32>
    %c0_128 = arith.constant 0 : index
    %c0_129 = arith.constant 0 : index
    %270 = vector.load %arg24[%c0_128, %c0_129] : memref<64x1xf32, #tpu.memory_space<vmem>>, vector<64x1xf32>
    %271 = vector.broadcast %270 : vector<64x1xf32> to vector<64x32xf32>
    %272 = arith.mulf %269, %271 : vector<64x32xf32>
    %c0_130 = arith.constant 0 : index
    %c0_131 = arith.constant 0 : index
    %273 = vector.load %arg30[%c0_130, %c0_131] : memref<32x32xf32, #tpu.memory_space<vmem>>, vector<32x32xf32>
    %cst_132 = arith.constant dense<0.000000e+00> : vector<16x32xf32>
    %274 = tpu.matmul %60, %273, %cst_132 {dimension_numbers = #tpu.dot_dimension_numbers<[1], [0], [0], [1], [0, 0, 1, 1], [], []>} : vector<16x32xf32>, vector<32x32xf32>, vector<16x32xf32> -> vector<16x32xf32>
    %c0_133 = arith.constant 0 : index
    %c0_134 = arith.constant 0 : index
    %275 = vector.load %arg31[%c0_133, %c0_134] : memref<1x32xf32, #tpu.memory_space<vmem>>, vector<1x32xf32>
    %276 = vector.broadcast %275 : vector<1x32xf32> to vector<16x32xf32>
    %277 = arith.addf %274, %276 : vector<16x32xf32>
    %c0_135 = arith.constant 0 : index
    %c0_136 = arith.constant 0 : index
    %278 = vector.load %arg22[%c0_135, %c0_136] : memref<64x16xbf16, #tpu.memory_space<vmem>>, vector<64x16xbf16>
    %279 = arith.truncf %277 : vector<16x32xf32> to vector<16x32xbf16>
    %cst_137 = arith.constant dense<0.000000e+00> : vector<64x32xf32>
    %280 = tpu.matmul %278, %279, %cst_137 {dimension_numbers = #tpu.dot_dimension_numbers<[1], [0], [0], [1], [0, 0, 1, 1], [], []>} : vector<64x16xbf16>, vector<16x32xbf16>, vector<64x32xf32> -> vector<64x32xf32>
    %281 = arith.mulf %280, %272 : vector<64x32xf32>
    %c0_138 = arith.constant 0 : index
    %c0_139 = arith.constant 0 : index
    %282 = vector.load %arg23[%c0_138, %c0_139] : memref<128x64xbf16, #tpu.memory_space<vmem>>, vector<128x64xbf16>
    %283 = arith.truncf %281 : vector<64x32xf32> to vector<64x32xbf16>
    %cst_140 = arith.constant dense<0.000000e+00> : vector<128x32xf32>
    %284 = tpu.matmul %282, %283, %cst_140 {dimension_numbers = #tpu.dot_dimension_numbers<[1], [0], [0], [1], [0, 0, 1, 1], [], []>} : vector<128x64xbf16>, vector<64x32xbf16>, vector<128x32xf32> -> vector<128x32xf32>
    %c0_141 = arith.constant 0 : index
    %c0_142 = arith.constant 0 : index
    %285 = vector.load %arg32[%c0_141, %c0_142] : memref<32x32xf32, #tpu.memory_space<vmem>>, vector<32x32xf32>
    %cst_143 = arith.constant dense<0.000000e+00> : vector<128x32xf32>
    %286 = tpu.matmul %284, %285, %cst_143 {dimension_numbers = #tpu.dot_dimension_numbers<[1], [0], [0], [1], [0, 0, 1, 1], [], []>} : vector<128x32xf32>, vector<32x32xf32>, vector<128x32xf32> -> vector<128x32xf32>
    %c0_144 = arith.constant 0 : index
    %c0_145 = arith.constant 0 : index
    %287 = vector.load %arg33[%c0_144, %c0_145] : memref<1x32xf32, #tpu.memory_space<vmem>>, vector<1x32xf32>
    %288 = vector.broadcast %287 : vector<1x32xf32> to vector<128x32xf32>
    %289 = arith.addf %286, %288 : vector<128x32xf32>
    %c0_146 = arith.constant 0 : index
    %c0_147 = arith.constant 0 : index
    %290 = vector.load %arg6[%c0_146, %c0_147] : memref<1x32xf32, #tpu.memory_space<vmem>>, vector<1x32xf32>
    %c0_148 = arith.constant 0 : index
    %c0_149 = arith.constant 0 : index
    %291 = vector.load %arg7[%c0_148, %c0_149] : memref<1x32xf32, #tpu.memory_space<vmem>>, vector<1x32xf32>
    %cst_150 = arith.constant dense<0.000000e+00> : vector<128xf32>
    %292 = vector.multi_reduction <add>, %289, %cst_150 [1] : vector<128x32xf32> to vector<128xf32>
    %293 = vector.shape_cast %292 : vector<128xf32> to vector<128x1xf32>
    %cst_151 = arith.constant 3.200000e+01 : f32
    %294 = vector.broadcast %cst_151 : f32 to vector<128x1xf32>
    %295 = arith.divf %293, %294 : vector<128x1xf32>
    %296 = vector.broadcast %295 : vector<128x1xf32> to vector<128x32xf32>
    %297 = arith.subf %289, %296 : vector<128x32xf32>
    %298 = arith.mulf %297, %297 : vector<128x32xf32>
    %cst_152 = arith.constant dense<0.000000e+00> : vector<128xf32>
    %299 = vector.multi_reduction <add>, %298, %cst_152 [1] : vector<128x32xf32> to vector<128xf32>
    %300 = vector.shape_cast %299 : vector<128xf32> to vector<128x1xf32>
    %cst_153 = arith.constant 3.200000e+01 : f32
    %301 = vector.broadcast %cst_153 : f32 to vector<128x1xf32>
    %302 = arith.divf %300, %301 : vector<128x1xf32>
    %cst_154 = arith.constant 9.99999974E-6 : f32
    %303 = vector.broadcast %cst_154 : f32 to vector<128x1xf32>
    %304 = arith.addf %302, %303 : vector<128x1xf32>
    %305 = math.rsqrt %304 : vector<128x1xf32>
    %306 = vector.broadcast %305 : vector<128x1xf32> to vector<128x32xf32>
    %307 = arith.mulf %297, %306 : vector<128x32xf32>
    %308 = vector.broadcast %290 : vector<1x32xf32> to vector<128x32xf32>
    %309 = arith.mulf %307, %308 : vector<128x32xf32>
    %310 = vector.broadcast %291 : vector<1x32xf32> to vector<128x32xf32>
    %311 = arith.addf %309, %310 : vector<128x32xf32>
    %c0_155 = arith.constant 0 : index
    %c0_156 = arith.constant 0 : index
    %312 = vector.load %arg37[%c0_155, %c0_156] : memref<64x16xf32, #tpu.memory_space<vmem>>, vector<64x16xf32>
    %c0_157 = arith.constant 0 : index
    %c0_158 = arith.constant 0 : index
    %313 = vector.load %arg38[%c0_157, %c0_158] : memref<16x32xf32, #tpu.memory_space<vmem>>, vector<16x32xf32>
    %cst_159 = arith.constant dense<0.000000e+00> : vector<64x32xf32>
    %314 = tpu.matmul %312, %313, %cst_159 {dimension_numbers = #tpu.dot_dimension_numbers<[1], [0], [0], [1], [0, 0, 1, 1], [], []>} : vector<64x16xf32>, vector<16x32xf32>, vector<64x32xf32> -> vector<64x32xf32>
    %c0_160 = arith.constant 0 : index
    %c0_161 = arith.constant 0 : index
    %315 = vector.load %arg39[%c0_160, %c0_161] : memref<1x32xf32, #tpu.memory_space<vmem>>, vector<1x32xf32>
    %316 = vector.broadcast %315 : vector<1x32xf32> to vector<64x32xf32>
    %317 = arith.addf %314, %316 : vector<64x32xf32>
    %318 = arith.negf %317 : vector<64x32xf32>
    %319 = math.exp %318 : vector<64x32xf32>
    %cst_162 = arith.constant 1.000000e+00 : f32
    %320 = vector.broadcast %cst_162 : f32 to vector<64x32xf32>
    %321 = arith.addf %320, %319 : vector<64x32xf32>
    %322 = arith.divf %320, %321 : vector<64x32xf32>
    %323 = arith.mulf %317, %322 : vector<64x32xf32>
    %c0_163 = arith.constant 0 : index
    %c0_164 = arith.constant 0 : index
    %324 = vector.load %arg40[%c0_163, %c0_164] : memref<32x32xf32, #tpu.memory_space<vmem>>, vector<32x32xf32>
    %cst_165 = arith.constant dense<0.000000e+00> : vector<64x32xf32>
    %325 = tpu.matmul %323, %324, %cst_165 {dimension_numbers = #tpu.dot_dimension_numbers<[1], [0], [0], [1], [0, 0, 1, 1], [], []>} : vector<64x32xf32>, vector<32x32xf32>, vector<64x32xf32> -> vector<64x32xf32>
    %c0_166 = arith.constant 0 : index
    %c0_167 = arith.constant 0 : index
    %326 = vector.load %arg41[%c0_166, %c0_167] : memref<1x32xf32, #tpu.memory_space<vmem>>, vector<1x32xf32>
    %327 = vector.broadcast %326 : vector<1x32xf32> to vector<64x32xf32>
    %328 = arith.addf %325, %327 : vector<64x32xf32>
    %c0_168 = arith.constant 0 : index
    %c0_169 = arith.constant 0 : index
    %329 = vector.load %arg36[%c0_168, %c0_169] : memref<64x1xf32, #tpu.memory_space<vmem>>, vector<64x1xf32>
    %330 = vector.broadcast %329 : vector<64x1xf32> to vector<64x32xf32>
    %331 = arith.mulf %328, %330 : vector<64x32xf32>
    %c0_170 = arith.constant 0 : index
    %c0_171 = arith.constant 0 : index
    %332 = vector.load %arg42[%c0_170, %c0_171] : memref<32x32xf32, #tpu.memory_space<vmem>>, vector<32x32xf32>
    %cst_172 = arith.constant dense<0.000000e+00> : vector<128x32xf32>
    %333 = tpu.matmul %252, %332, %cst_172 {dimension_numbers = #tpu.dot_dimension_numbers<[1], [0], [0], [1], [0, 0, 1, 1], [], []>} : vector<128x32xf32>, vector<32x32xf32>, vector<128x32xf32> -> vector<128x32xf32>
    %c0_173 = arith.constant 0 : index
    %c0_174 = arith.constant 0 : index
    %334 = vector.load %arg43[%c0_173, %c0_174] : memref<1x32xf32, #tpu.memory_space<vmem>>, vector<1x32xf32>
    %335 = vector.broadcast %334 : vector<1x32xf32> to vector<128x32xf32>
    %336 = arith.addf %333, %335 : vector<128x32xf32>
    %c0_175 = arith.constant 0 : index
    %c0_176 = arith.constant 0 : index
    %337 = vector.load %arg34[%c0_175, %c0_176] : memref<64x128xbf16, #tpu.memory_space<vmem>>, vector<64x128xbf16>
    %338 = arith.truncf %336 : vector<128x32xf32> to vector<128x32xbf16>
    %cst_177 = arith.constant dense<0.000000e+00> : vector<64x32xf32>
    %339 = tpu.matmul %337, %338, %cst_177 {dimension_numbers = #tpu.dot_dimension_numbers<[1], [0], [0], [1], [0, 0, 1, 1], [], []>} : vector<64x128xbf16>, vector<128x32xbf16>, vector<64x32xf32> -> vector<64x32xf32>
    %340 = arith.mulf %339, %331 : vector<64x32xf32>
    %c0_178 = arith.constant 0 : index
    %c0_179 = arith.constant 0 : index
    %341 = vector.load %arg35[%c0_178, %c0_179] : memref<16x64xbf16, #tpu.memory_space<vmem>>, vector<16x64xbf16>
    %342 = arith.truncf %340 : vector<64x32xf32> to vector<64x32xbf16>
    %cst_180 = arith.constant dense<0.000000e+00> : vector<16x32xf32>
    %343 = tpu.matmul %341, %342, %cst_180 {dimension_numbers = #tpu.dot_dimension_numbers<[1], [0], [0], [1], [0, 0, 1, 1], [], []>} : vector<16x64xbf16>, vector<64x32xbf16>, vector<16x32xf32> -> vector<16x32xf32>
    %c0_181 = arith.constant 0 : index
    %c0_182 = arith.constant 0 : index
    %344 = vector.load %arg44[%c0_181, %c0_182] : memref<32x32xf32, #tpu.memory_space<vmem>>, vector<32x32xf32>
    %cst_183 = arith.constant dense<0.000000e+00> : vector<16x32xf32>
    %345 = tpu.matmul %343, %344, %cst_183 {dimension_numbers = #tpu.dot_dimension_numbers<[1], [0], [0], [1], [0, 0, 1, 1], [], []>} : vector<16x32xf32>, vector<32x32xf32>, vector<16x32xf32> -> vector<16x32xf32>
    %c0_184 = arith.constant 0 : index
    %c0_185 = arith.constant 0 : index
    %346 = vector.load %arg45[%c0_184, %c0_185] : memref<1x32xf32, #tpu.memory_space<vmem>>, vector<1x32xf32>
    %347 = vector.broadcast %346 : vector<1x32xf32> to vector<16x32xf32>
    %348 = arith.addf %345, %347 : vector<16x32xf32>
    %c0_186 = arith.constant 0 : index
    %c0_187 = arith.constant 0 : index
    %349 = vector.load %arg8[%c0_186, %c0_187] : memref<1x32xf32, #tpu.memory_space<vmem>>, vector<1x32xf32>
    %c0_188 = arith.constant 0 : index
    %c0_189 = arith.constant 0 : index
    %350 = vector.load %arg9[%c0_188, %c0_189] : memref<1x32xf32, #tpu.memory_space<vmem>>, vector<1x32xf32>
    %cst_190 = arith.constant dense<0.000000e+00> : vector<16xf32>
    %351 = vector.multi_reduction <add>, %348, %cst_190 [1] : vector<16x32xf32> to vector<16xf32>
    %352 = vector.shape_cast %351 : vector<16xf32> to vector<16x1xf32>
    %cst_191 = arith.constant 3.200000e+01 : f32
    %353 = vector.broadcast %cst_191 : f32 to vector<16x1xf32>
    %354 = arith.divf %352, %353 : vector<16x1xf32>
    %355 = vector.broadcast %354 : vector<16x1xf32> to vector<16x32xf32>
    %356 = arith.subf %348, %355 : vector<16x32xf32>
    %357 = arith.mulf %356, %356 : vector<16x32xf32>
    %cst_192 = arith.constant dense<0.000000e+00> : vector<16xf32>
    %358 = vector.multi_reduction <add>, %357, %cst_192 [1] : vector<16x32xf32> to vector<16xf32>
    %359 = vector.shape_cast %358 : vector<16xf32> to vector<16x1xf32>
    %cst_193 = arith.constant 3.200000e+01 : f32
    %360 = vector.broadcast %cst_193 : f32 to vector<16x1xf32>
    %361 = arith.divf %359, %360 : vector<16x1xf32>
    %cst_194 = arith.constant 9.99999974E-6 : f32
    %362 = vector.broadcast %cst_194 : f32 to vector<16x1xf32>
    %363 = arith.addf %361, %362 : vector<16x1xf32>
    %364 = math.rsqrt %363 : vector<16x1xf32>
    %365 = vector.broadcast %364 : vector<16x1xf32> to vector<16x32xf32>
    %366 = arith.mulf %356, %365 : vector<16x32xf32>
    %367 = vector.broadcast %349 : vector<1x32xf32> to vector<16x32xf32>
    %368 = arith.mulf %366, %367 : vector<16x32xf32>
    %369 = vector.broadcast %350 : vector<1x32xf32> to vector<16x32xf32>
    %370 = arith.addf %368, %369 : vector<16x32xf32>
    %371 = arith.addf %60, %370 : vector<16x32xf32>
    %372 = arith.addf %371, %0 : vector<16x32xf32>
    %c0_195 = arith.constant 0 : index
    %c0_196 = arith.constant 0 : index
    %373 = vector.load %arg50[%c0_195, %c0_196] : memref<16x32xf32, #tpu.memory_space<vmem>>, vector<16x32xf32>
    tpu.vector_store %arg50[%c0_195, %c0_196], %372 {strides = array<i32>} : memref<16x32xf32, #tpu.memory_space<vmem>>, vector<16x32xf32>,
    %374 = arith.addf %252, %311 : vector<128x32xf32>
    %375 = arith.addf %374, %1 : vector<128x32xf32>
    %c0_197 = arith.constant 0 : index
    %c0_198 = arith.constant 0 : index
    %376 = vector.load %arg51[%c0_197, %c0_198] : memref<128x32xf32, #tpu.memory_space<vmem>>, vector<128x32xf32>
    tpu.vector_store %arg51[%c0_197, %c0_198], %375 {strides = array<i32>} : memref<128x32xf32, #tpu.memory_space<vmem>>, vector<128x32xf32>,
    return
  }
}

</mosaic_0001>

<llo_original>
// kernel: tpu_custom_call.1
$region0: #{tpu_custom_call.1}
  #allocation0 [shape = 'u32[]', space=smem, size = 0x4, offset = 0x4, fixed_abs, tag = 'smem constant byte address 0x4 - core index']
  #allocation1 [shape = 'u32[144,128]{1,0:T(1,128)}', space=vmem, size = 0x12000, scoped, tag = 'internal scratch']
  #allocation2 [shape = 'f32[128,32]{1,0:T(8,128)}', space=vmem, size = 0x10000, scoped, tag = 'scratch operand']
  %s0 = inlined_call_operand.smem [shape: u32[52], index: -1, kind: input, shape index: {}]
  %s1 = sld [smem:[%s0]]
  %s2 = scalar_lea.smem %s0, 1
  %s3 = sld [smem:[%s2]]
  %s4 = scalar_lea.smem %s0, 2
  %s5 = sld [smem:[%s4]]
  %s6 = scalar_lea.smem %s0, 3
  %s7 = sld [smem:[%s6]]
  %s8 = scalar_lea.smem %s0, 4
  %s9 = sld [smem:[%s8]]
  %s10 = scalar_lea.smem %s0, 5
  %s11 = sld [smem:[%s10]]
  %s12 = scalar_lea.smem %s0, 6
  %s13 = sld [smem:[%s12]]
  %s14 = scalar_lea.smem %s0, 7
  %s15 = sld [smem:[%s14]]
  %s16 = scalar_lea.smem %s0, 8
  %s17 = sld [smem:[%s16]]
  %s18 = scalar_lea.smem %s0, 9
  %s19 = sld [smem:[%s18]]
  %s20 = scalar_lea.smem %s0, 10
  %s21 = sld [smem:[%s20]]
  %s22 = scalar_lea.smem %s0, 11
  %s23 = sld [smem:[%s22]]
  %s24 = scalar_lea.smem %s0, 12
  %s25 = sld [smem:[%s24]]
  %s26 = scalar_lea.smem %s0, 13
  %s27 = sld [smem:[%s26]]
  %s28 = scalar_lea.smem %s0, 14
  %s29 = sld [smem:[%s28]]
  %s30 = scalar_lea.smem %s0, 15
  %s31 = sld [smem:[%s30]]
  %s32 = scalar_lea.smem %s0, 16
  %s33 = sld [smem:[%s32]]
  %s34 = scalar_lea.smem %s0, 17
  %s35 = sld [smem:[%s34]]
  %s36 = scalar_lea.smem %s0, 18
  %s37 = sld [smem:[%s36]]
  %s38 = scalar_lea.smem %s0, 19
  %s39 = sld [smem:[%s38]]
  %s40 = scalar_lea.smem %s0, 20
  %s41 = sld [smem:[%s40]]
  %s42 = scalar_lea.smem %s0, 21
  %s43 = sld [smem:[%s42]]
  %s44 = scalar_lea.smem %s0, 22
  %s45 = sld [smem:[%s44]]
  %s46 = scalar_lea.smem %s0, 23
  %s47 = sld [smem:[%s46]]
  %s48 = scalar_lea.smem %s0, 24
  %s49 = sld [smem:[%s48]]
  %s50 = scalar_lea.smem %s0, 25
  %s51 = sld [smem:[%s50]]
  %s52 = scalar_lea.smem %s0, 26
  %s53 = sld [smem:[%s52]]
  %s54 = scalar_lea.smem %s0, 27
  %s55 = sld [smem:[%s54]]
  %s56 = scalar_lea.smem %s0, 28
  %s57 = sld [smem:[%s56]]
  %s58 = scalar_lea.smem %s0, 29
  %s59 = sld [smem:[%s58]]
  %s60 = scalar_lea.smem %s0, 30
  %s61 = sld [smem:[%s60]]
  %s62 = scalar_lea.smem %s0, 31
  %s63 = sld [smem:[%s62]]
  %s64 = scalar_lea.smem %s0, 32
  %s65 = sld [smem:[%s64]]
  %s66 = scalar_lea.smem %s0, 33
  %s67 = sld [smem:[%s66]]
  %s68 = scalar_lea.smem %s0, 34
  %s69 = sld [smem:[%s68]]
  %s70 = scalar_lea.smem %s0, 35
  %s71 = sld [smem:[%s70]]
  %s72 = scalar_lea.smem %s0, 36
  %s73 = sld [smem:[%s72]]
  %s74 = scalar_lea.smem %s0, 37
  %s75 = sld [smem:[%s74]]
  %s76 = scalar_lea.smem %s0, 38
  %s77 = sld [smem:[%s76]]
  %s78 = scalar_lea.smem %s0, 39
  %s79 = sld [smem:[%s78]]
  %s80 = scalar_lea.smem %s0, 40
  %s81 = sld [smem:[%s80]]
  %s82 = scalar_lea.smem %s0, 41
  %s83 = sld [smem:[%s82]]
  %s84 = scalar_lea.smem %s0, 42
  %s85 = sld [smem:[%s84]]
  %s86 = scalar_lea.smem %s0, 43
  %s87 = sld [smem:[%s86]]
  %s88 = scalar_lea.smem %s0, 44
  %s89 = sld [smem:[%s88]]
  %s90 = scalar_lea.smem %s0, 45
  %s91 = sld [smem:[%s90]]
  %s92 = scalar_lea.smem %s0, 46
  %s93 = sld [smem:[%s92]]
  %s94 = scalar_lea.smem %s0, 47
  %s95 = sld [smem:[%s94]]
  %s96 = scalar_lea.smem %s0, 48
  %s97 = sld [smem:[%s96]]
  %s98 = scalar_lea.smem %s0, 49
  %s99 = sld [smem:[%s98]]
  %s100 = scalar_lea.smem %s0, 50
  %s101 = sld [smem:[%s100]]
  %s102 = scalar_lea.smem %s0, 51
  %s103 = sld [smem:[%s102]]
  %104 = xla_tuple %s101, %s103
  %s105 = sld [smem:[#allocation0]]
  $region238: #{tpu_custom_call.1} parent=0
    _
  %s107 = ssub.s32 1, %s105
  %s108 = scalar_select 0, %s107, %s105
  $region1: #{tpu_custom_call.1} parent=0
    #allocation3 [shape = 'u8[512]{0}', space=vmem, size = 0x400, scoped, tag = 'input window, operand 41, single buffered']
    #allocation4 [shape = 's32[1]{0}', space=sflag, size = 0x4, scoped, tag = 'scoped memory for tpu_custom_call.1']
    #allocation5 [shape = 's32[1]{0}', space=sflag, size = 0x4, scoped, tag = 'scoped memory for tpu_custom_call.1']
    #allocation6 [shape = 'u8[512]{0}', space=vmem, size = 0x400, scoped, tag = 'input window, operand 43, single buffered']
    #allocation7 [shape = 's32[1]{0}', space=sflag, size = 0x4, scoped, tag = 'scoped memory for tpu_custom_call.1']
    #allocation8 [shape = 'u8[512]{0}', space=vmem, size = 0x400, scoped, tag = 'input window, operand 45, single buffered']
    #allocation9 [shape = 'u8[512]{0}', space=vmem, size = 0x400, scoped, tag = 'input window, operand 47, single buffered']
    #allocation10 [shape = 's32[1]{0}', space=sflag, size = 0x4, scoped, tag = 'scoped memory for tpu_custom_call.1']
    #allocation11 [shape = 'u8[512]{0}', space=vmem, size = 0x400, scoped, tag = 'input window, operand 49, single buffered']
    #allocation12 [shape = 'u8[8192]{0}', space=vmem, size = 0x2000, scoped, tag = 'output window, operand 0, single buffered']
    %109 = vsyncpa [#allocation4], 0
    %110 = vsyncpa [#allocation7], 0
    %111 = vsyncpa [#allocation10], 0
    %112 = vsyncpa [#allocation5], 0
    // Predicated region
    $region2: #{tpu_custom_call.1} parent=1 // pred_check
      _
    $region3: #{tpu_custom_call.1} parent=1 // pred_check_branch
      %114 = sbr.rel (0) target = $region5
    $region4: #{tpu_custom_call.1} parent=1 // pred_region
      _
    $region5: #{tpu_custom_call.1} parent=1 // pred_fallthru
      _
    // Predicated region
    $region6: #{tpu_custom_call.1} parent=1 // pred_check
      _
    $region7: #{tpu_custom_call.1} parent=1 // pred_check_branch
      %116 = sbr.rel (0) target = $region9
    $region8: #{tpu_custom_call.1} parent=1 // pred_region
      _
    $region9: #{tpu_custom_call.1} parent=1 // pred_fallthru
      _
    // Predicated region
    $region10: #{tpu_custom_call.1} parent=1 // pred_check
      _
    $region11: #{tpu_custom_call.1} parent=1 // pred_check_branch
      %118 = sbr.rel (0) target = $region13
    $region12: #{tpu_custom_call.1} parent=1 // pred_region
      _
    $region13: #{tpu_custom_call.1} parent=1 // pred_fallthru
      _
    // Predicated region
    $region14: #{tpu_custom_call.1} parent=1 // pred_check
      _
    $region15: #{tpu_custom_call.1} parent=1 // pred_check_branch
      %120 = sbr.rel (0) target = $region17
    $region16: #{tpu_custom_call.1} parent=1 // pred_region
      _
    $region17: #{tpu_custom_call.1} parent=1 // pred_fallthru
      _
    // Predicated region
    $region18: #{tpu_custom_call.1} parent=1 // pred_check
      _
    $region19: #{tpu_custom_call.1} parent=1 // pred_check_branch
      %122 = sbr.rel (0) target = $region21
    $region20: #{tpu_custom_call.1} parent=1 // pred_region
      _
    $region21: #{tpu_custom_call.1} parent=1 // pred_fallthru
      _
    // Predicated region
    $region22: #{tpu_custom_call.1} parent=1 // pred_check
      _
    $region23: #{tpu_custom_call.1} parent=1 // pred_check_branch
      %124 = sbr.rel (0) target = $region25
    $region24: #{tpu_custom_call.1} parent=1 // pred_region
      _
    $region25: #{tpu_custom_call.1} parent=1 // pred_fallthru
      _
    // Predicated region
    $region26: #{tpu_custom_call.1} parent=1 // pred_check
      _
    $region27: #{tpu_custom_call.1} parent=1 // pred_check_branch
      %126 = sbr.rel (0) target = $region29
    $region28: #{tpu_custom_call.1} parent=1 // pred_region
      _
    $region29: #{tpu_custom_call.1} parent=1 // pred_fallthru
      _
    // Predicated region
    $region30: #{tpu_custom_call.1} parent=1 // pred_check
      _
    $region31: #{tpu_custom_call.1} parent=1 // pred_check_branch
      %128 = sbr.rel (0) target = $region33
    $region32: #{tpu_custom_call.1} parent=1 // pred_region
      _
    $region33: #{tpu_custom_call.1} parent=1 // pred_fallthru
      _
    // Predicated region
    $region34: #{tpu_custom_call.1} parent=1 // pred_check
      _
    $region35: #{tpu_custom_call.1} parent=1 // pred_check_branch
      %130 = sbr.rel (0) target = $region37
    $region36: #{tpu_custom_call.1} parent=1 // pred_region
      _
    $region37: #{tpu_custom_call.1} parent=1 // pred_fallthru
      _
    // Predicated region
    $region38: #{tpu_custom_call.1} parent=1 // pred_check
      _
    $region39: #{tpu_custom_call.1} parent=1 // pred_check_branch
      %132 = sbr.rel (0) target = $region41
    $region40: #{tpu_custom_call.1} parent=1 // pred_region
      _
    $region41: #{tpu_custom_call.1} parent=1 // pred_fallthru
      _
    // Predicated region
    $region42: #{tpu_custom_call.1} parent=1 // pred_check
      _
    $region43: #{tpu_custom_call.1} parent=1 // pred_check_branch
      %134 = sbr.rel (0) target = $region45
    $region44: #{tpu_custom_call.1} parent=1 // pred_region
      _
    $region45: #{tpu_custom_call.1} parent=1 // pred_fallthru
      _
    // Predicated region
    $region46: #{tpu_custom_call.1} parent=1 // pred_check
      _
    $region47: #{tpu_custom_call.1} parent=1 // pred_check_branch
      %136 = sbr.rel (0) target = $region49
    $region48: #{tpu_custom_call.1} parent=1 // pred_region
      _
    $region49: #{tpu_custom_call.1} parent=1 // pred_fallthru
      _
    // Predicated region
    $region50: #{tpu_custom_call.1} parent=1 // pred_check
      _
    $region51: #{tpu_custom_call.1} parent=1 // pred_check_branch
      %138 = sbr.rel (0) target = $region53
    $region52: #{tpu_custom_call.1} parent=1 // pred_region
      _
    $region53: #{tpu_custom_call.1} parent=1 // pred_fallthru
      _
    // Predicated region
    $region54: #{tpu_custom_call.1} parent=1 // pred_check
      _
    $region55: #{tpu_custom_call.1} parent=1 // pred_check_branch
      %140 = sbr.rel (0) target = $region57
    $region56: #{tpu_custom_call.1} parent=1 // pred_region
      _
    $region57: #{tpu_custom_call.1} parent=1 // pred_fallthru
      _
    // Predicated region
    $region58: #{tpu_custom_call.1} parent=1 // pred_check
      _
    $region59: #{tpu_custom_call.1} parent=1 // pred_check_branch
      %142 = sbr.rel (0) target = $region61
    $region60: #{tpu_custom_call.1} parent=1 // pred_region
      _
    $region61: #{tpu_custom_call.1} parent=1 // pred_fallthru
      _
    // Predicated region
    $region62: #{tpu_custom_call.1} parent=1 // pred_check
      _
    $region63: #{tpu_custom_call.1} parent=1 // pred_check_branch
      %144 = sbr.rel (0) target = $region65
    $region64: #{tpu_custom_call.1} parent=1 // pred_region
      _
    $region65: #{tpu_custom_call.1} parent=1 // pred_fallthru
      _
    // Predicated region
    $region66: #{tpu_custom_call.1} parent=1 // pred_check
      _
    $region67: #{tpu_custom_call.1} parent=1 // pred_check_branch
      %146 = sbr.rel (0) target = $region69
    $region68: #{tpu_custom_call.1} parent=1 // pred_region
      _
    $region69: #{tpu_custom_call.1} parent=1 // pred_fallthru
      _
    // Predicated region
    $region70: #{tpu_custom_call.1} parent=1 // pred_check
      _
    $region71: #{tpu_custom_call.1} parent=1 // pred_check_branch
      %148 = sbr.rel (0) target = $region73
    $region72: #{tpu_custom_call.1} parent=1 // pred_region
      _
    $region73: #{tpu_custom_call.1} parent=1 // pred_fallthru
      _
    // Predicated region
    $region74: #{tpu_custom_call.1} parent=1 // pred_check
      _
    $region75: #{tpu_custom_call.1} parent=1 // pred_check_branch
      %150 = sbr.rel (0) target = $region77
    $region76: #{tpu_custom_call.1} parent=1 // pred_region
      _
    $region77: #{tpu_custom_call.1} parent=1 // pred_fallthru
      _
    // Predicated region
    $region78: #{tpu_custom_call.1} parent=1 // pred_check
      _
    $region79: #{tpu_custom_call.1} parent=1 // pred_check_branch
      %152 = sbr.rel (0) target = $region81
    $region80: #{tpu_custom_call.1} parent=1 // pred_region
      _
    $region81: #{tpu_custom_call.1} parent=1 // pred_fallthru
      _
    // Predicated region
    $region82: #{tpu_custom_call.1} parent=1 // pred_check
      _
    $region83: #{tpu_custom_call.1} parent=1 // pred_check_branch
      %154 = sbr.rel (0) target = $region85
    $region84: #{tpu_custom_call.1} parent=1 // pred_region
      _
    $region85: #{tpu_custom_call.1} parent=1 // pred_fallthru
      _
    // Predicated region
    $region86: #{tpu_custom_call.1} parent=1 // pred_check
      _
    $region87: #{tpu_custom_call.1} parent=1 // pred_check_branch
      %156 = sbr.rel (0) target = $region89
    $region88: #{tpu_custom_call.1} parent=1 // pred_region
      _
    $region89: #{tpu_custom_call.1} parent=1 // pred_fallthru
      _
    // Predicated region
    $region90: #{tpu_custom_call.1} parent=1 // pred_check
      _
    $region91: #{tpu_custom_call.1} parent=1 // pred_check_branch
      %158 = sbr.rel (0) target = $region93
    $region92: #{tpu_custom_call.1} parent=1 // pred_region
      _
    $region93: #{tpu_custom_call.1} parent=1 // pred_fallthru
      _
    // Predicated region
    $region94: #{tpu_custom_call.1} parent=1 // pred_check
      _
    $region95: #{tpu_custom_call.1} parent=1 // pred_check_branch
      %160 = sbr.rel (0) target = $region97
    $region96: #{tpu_custom_call.1} parent=1 // pred_region
      _
    $region97: #{tpu_custom_call.1} parent=1 // pred_fallthru
      _
    // Predicated region
    $region98: #{tpu_custom_call.1} parent=1 // pred_check
      _
    $region99: #{tpu_custom_call.1} parent=1 // pred_check_branch
      %162 = sbr.rel (0) target = $region101
    $region100: #{tpu_custom_call.1} parent=1 // pred_region
      _
    $region101: #{tpu_custom_call.1} parent=1 // pred_fallthru
      _
    // Predicated region
    $region102: #{tpu_custom_call.1} parent=1 // pred_check
      _
    $region103: #{tpu_custom_call.1} parent=1 // pred_check_branch
      %164 = sbr.rel (0) target = $region105
    $region104: #{tpu_custom_call.1} parent=1 // pred_region
      _
    $region105: #{tpu_custom_call.1} parent=1 // pred_fallthru
      _
    // Predicated region
    $region106: #{tpu_custom_call.1} parent=1 // pred_check
      _
    $region107: #{tpu_custom_call.1} parent=1 // pred_check_branch
      %166 = sbr.rel (0) target = $region109
    $region108: #{tpu_custom_call.1} parent=1 // pred_region
      _
    $region109: #{tpu_custom_call.1} parent=1 // pred_fallthru
      _
    // Predicated region
    $region110: #{tpu_custom_call.1} parent=1 // pred_check
      _
    $region111: #{tpu_custom_call.1} parent=1 // pred_check_branch
      %168 = sbr.rel (0) target = $region113
    $region112: #{tpu_custom_call.1} parent=1 // pred_region
      _
    $region113: #{tpu_custom_call.1} parent=1 // pred_fallthru
      _
    // Predicated region
    $region114: #{tpu_custom_call.1} parent=1 // pred_check
      _
    $region115: #{tpu_custom_call.1} parent=1 // pred_check_branch
      %170 = sbr.rel (0) target = $region117
    $region116: #{tpu_custom_call.1} parent=1 // pred_region
      _
    $region117: #{tpu_custom_call.1} parent=1 // pred_fallthru
      _
    // Predicated region
    $region118: #{tpu_custom_call.1} parent=1 // pred_check
      _
    $region119: #{tpu_custom_call.1} parent=1 // pred_check_branch
      %172 = sbr.rel (0) target = $region121
    $region120: #{tpu_custom_call.1} parent=1 // pred_region
      _
    $region121: #{tpu_custom_call.1} parent=1 // pred_fallthru
      _
    // Predicated region
    $region122: #{tpu_custom_call.1} parent=1 // pred_check
      _
    $region123: #{tpu_custom_call.1} parent=1 // pred_check_branch
      %174 = sbr.rel (0) target = $region125
    $region124: #{tpu_custom_call.1} parent=1 // pred_region
      _
    $region125: #{tpu_custom_call.1} parent=1 // pred_fallthru
      _
    // Predicated region
    $region126: #{tpu_custom_call.1} parent=1 // pred_check
      _
    $region127: #{tpu_custom_call.1} parent=1 // pred_check_branch
      %176 = sbr.rel (0) target = $region129
    $region128: #{tpu_custom_call.1} parent=1 // pred_region
      _
    $region129: #{tpu_custom_call.1} parent=1 // pred_fallthru
      _
    // Predicated region
    $region130: #{tpu_custom_call.1} parent=1 // pred_check
      _
    $region131: #{tpu_custom_call.1} parent=1 // pred_check_branch
      %178 = sbr.rel (0) target = $region133
    $region132: #{tpu_custom_call.1} parent=1 // pred_region
      _
    $region133: #{tpu_custom_call.1} parent=1 // pred_fallthru
      _
    // Predicated region
    $region134: #{tpu_custom_call.1} parent=1 // pred_check
      _
    $region135: #{tpu_custom_call.1} parent=1 // pred_check_branch
      %180 = sbr.rel (0) target = $region137
    $region136: #{tpu_custom_call.1} parent=1 // pred_region
      _
    $region137: #{tpu_custom_call.1} parent=1 // pred_fallthru
      _
    // Predicated region
    $region138: #{tpu_custom_call.1} parent=1 // pred_check
      _
    $region139: #{tpu_custom_call.1} parent=1 // pred_check_branch
      %182 = sbr.rel (0) target = $region141
    $region140: #{tpu_custom_call.1} parent=1 // pred_region
      _
    $region141: #{tpu_custom_call.1} parent=1 // pred_fallthru
      _
    // Predicated region
    $region142: #{tpu_custom_call.1} parent=1 // pred_check
      _
    $region143: #{tpu_custom_call.1} parent=1 // pred_check_branch
      %184 = sbr.rel (0) target = $region145
    $region144: #{tpu_custom_call.1} parent=1 // pred_region
      _
    $region145: #{tpu_custom_call.1} parent=1 // pred_fallthru
      _
    // Predicated region
    $region146: #{tpu_custom_call.1} parent=1 // pred_check
      _
    $region147: #{tpu_custom_call.1} parent=1 // pred_check_branch
      %186 = sbr.rel (0) target = $region149
    $region148: #{tpu_custom_call.1} parent=1 // pred_region
      _
    $region149: #{tpu_custom_call.1} parent=1 // pred_fallthru
      _
    // Predicated region
    $region150: #{tpu_custom_call.1} parent=1 // pred_check
      _
    $region151: #{tpu_custom_call.1} parent=1 // pred_check_branch
      %188 = sbr.rel (0) target = $region153
    $region152: #{tpu_custom_call.1} parent=1 // pred_region
      _
    $region153: #{tpu_custom_call.1} parent=1 // pred_fallthru
      _
    // Predicated region
    $region154: #{tpu_custom_call.1} parent=1 // pred_check
      _
    $region155: #{tpu_custom_call.1} parent=1 // pred_check_branch
      %190 = sbr.rel (0) target = $region157
    $region156: #{tpu_custom_call.1} parent=1 // pred_region
      _
    $region157: #{tpu_custom_call.1} parent=1 // pred_fallthru
      _
    // Predicated region
    $region158: #{tpu_custom_call.1} parent=1 // pred_check
      _
    $region159: #{tpu_custom_call.1} parent=1 // pred_check_branch
      %192 = sbr.rel (0) target = $region161
    $region160: #{tpu_custom_call.1} parent=1 // pred_region
      _
    $region161: #{tpu_custom_call.1} parent=1 // pred_fallthru
      _
    // Predicated region
    $region162: #{tpu_custom_call.1} parent=1 // pred_check
      _
    $region163: #{tpu_custom_call.1} parent=1 // pred_check_branch
      %194 = sbr.rel (0) target = $region165
    $region164: #{tpu_custom_call.1} parent=1 // pred_region
      _
    $region165: #{tpu_custom_call.1} parent=1 // pred_fallthru
      _
    // Predicated region
    $region166: #{tpu_custom_call.1} parent=1 // pred_check
      _
    $region167: #{tpu_custom_call.1} parent=1 // pred_check_branch
      %196 = sbr.rel (0) target = $region169
    $region168: #{tpu_custom_call.1} parent=1 // pred_region
      %s198 = ssub.s32 16, 16
      %199 = vsyncadd [#allocation4], %s198
      %s201 = sshll.u32 [#allocation3], 4
      %s202 = int_to_ptr.vmem [resolvable:$true] %s201
      %204 = dma.hbm_to_vmem [thread:$0]  %s83, 16, %s202, [#allocation4]
    $region169: #{tpu_custom_call.1} parent=1 // pred_fallthru
      _
    // Predicated region
    $region170: #{tpu_custom_call.1} parent=1 // pred_check
      _
    $region171: #{tpu_custom_call.1} parent=1 // pred_check_branch
      %206 = sbr.rel (0) target = $region173
    $region172: #{tpu_custom_call.1} parent=1 // pred_region
      _
    $region173: #{tpu_custom_call.1} parent=1 // pred_fallthru
      _
    // Predicated region
    $region174: #{tpu_custom_call.1} parent=1 // pred_check
      _
    $region175: #{tpu_custom_call.1} parent=1 // pred_check_branch
      %208 = sbr.rel (0) target = $region177
    $region176: #{tpu_custom_call.1} parent=1 // pred_region
      %s210 = ssub.s32 16, 16
      %211 = vsyncadd [#allocation7], %s210
      %s213 = sshll.u32 [#allocation6], 4
      %s214 = int_to_ptr.vmem [resolvable:$true] %s213
      %216 = dma.hbm_to_vmem [thread:$0]  %s87, 16, %s214, [#allocation7]
    $region177: #{tpu_custom_call.1} parent=1 // pred_fallthru
      _
    // Predicated region
    $region178: #{tpu_custom_call.1} parent=1 // pred_check
      _
    $region179: #{tpu_custom_call.1} parent=1 // pred_check_branch
      %218 = sbr.rel (0) target = $region181
    $region180: #{tpu_custom_call.1} parent=1 // pred_region
      _
    $region181: #{tpu_custom_call.1} parent=1 // pred_fallthru
      _
    // Predicated region
    $region182: #{tpu_custom_call.1} parent=1 // pred_check
      _
    $region183: #{tpu_custom_call.1} parent=1 // pred_check_branch
      %220 = sbr.rel (0) target = $region185
    $region184: #{tpu_custom_call.1} parent=1 // pred_region
      %s222 = ssub.s32 16, 16
      %223 = vsyncadd [#allocation7], %s222
      %s225 = sshll.u32 [#allocation8], 4
      %s226 = int_to_ptr.vmem [resolvable:$true] %s225
      %228 = dma.hbm_to_vmem [thread:$0]  %s91, 16, %s226, [#allocation7]
    $region185: #{tpu_custom_call.1} parent=1 // pred_fallthru
      _
    // Predicated region
    $region186: #{tpu_custom_call.1} parent=1 // pred_check
      _
    $region187: #{tpu_custom_call.1} parent=1 // pred_check_branch
      %230 = sbr.rel (0) target = $region189
    $region188: #{tpu_custom_call.1} parent=1 // pred_region
      _
    $region189: #{tpu_custom_call.1} parent=1 // pred_fallthru
      _
    // Predicated region
    $region190: #{tpu_custom_call.1} parent=1 // pred_check
      _
    $region191: #{tpu_custom_call.1} parent=1 // pred_check_branch
      %232 = sbr.rel (0) target = $region193
    $region192: #{tpu_custom_call.1} parent=1 // pred_region
      %s234 = ssub.s32 16, 16
      %235 = vsyncadd [#allocation10], %s234
      %s237 = sshll.u32 [#allocation9], 4
      %s238 = int_to_ptr.vmem [resolvable:$true] %s237
      %240 = dma.hbm_to_vmem [thread:$0]  %s95, 16, %s238, [#allocation10]
    $region193: #{tpu_custom_call.1} parent=1 // pred_fallthru
      _
    // Predicated region
    $region194: #{tpu_custom_call.1} parent=1 // pred_check
      _
    $region195: #{tpu_custom_call.1} parent=1 // pred_check_branch
      %242 = sbr.rel (0) target = $region197
    $region196: #{tpu_custom_call.1} parent=1 // pred_region
      _
    $region197: #{tpu_custom_call.1} parent=1 // pred_fallthru
      _
    // Predicated region
    $region198: #{tpu_custom_call.1} parent=1 // pred_check
      _
    $region199: #{tpu_custom_call.1} parent=1 // pred_check_branch
      %244 = sbr.rel (0) target = $region201
    $region200: #{tpu_custom_call.1} parent=1 // pred_region
      %s246 = ssub.s32 16, 16
      %247 = vsyncadd [#allocation10], %s246
      %s249 = sshll.u32 [#allocation11], 4
      %s250 = int_to_ptr.vmem [resolvable:$true] %s249
      %252 = dma.hbm_to_vmem [thread:$0]  %s99, 16, %s250, [#allocation10]
    $region201: #{tpu_custom_call.1} parent=1 // pred_fallthru
      _
    // Predicated region
    $region202: #{tpu_custom_call.1} parent=1 // pred_check
      _
    $region203: #{tpu_custom_call.1} parent=1 // pred_check_branch
      %254 = sbr.rel (0) target = $region205
    $region204: #{tpu_custom_call.1} parent=1 // pred_region
      %255 = dma.done [#allocation4], 16
    $region205: #{tpu_custom_call.1} parent=1 // pred_fallthru
      _
    // Predicated region
    $region206: #{tpu_custom_call.1} parent=1 // pred_check
      _
    $region207: #{tpu_custom_call.1} parent=1 // pred_check_branch
      %257 = sbr.rel (0) target = $region209
    $region208: #{tpu_custom_call.1} parent=1 // pred_region
      %258 = dma.done [#allocation7], 16
    $region209: #{tpu_custom_call.1} parent=1 // pred_fallthru
      _
    // Predicated region
    $region210: #{tpu_custom_call.1} parent=1 // pred_check
      _
    $region211: #{tpu_custom_call.1} parent=1 // pred_check_branch
      %260 = sbr.rel (0) target = $region213
    $region212: #{tpu_custom_call.1} parent=1 // pred_region
      %261 = dma.done [#allocation7], 16
    $region213: #{tpu_custom_call.1} parent=1 // pred_fallthru
      _
    // Predicated region
    $region214: #{tpu_custom_call.1} parent=1 // pred_check
      _
    $region215: #{tpu_custom_call.1} parent=1 // pred_check_branch
      %263 = sbr.rel (0) target = $region217
    $region216: #{tpu_custom_call.1} parent=1 // pred_region
      %264 = dma.done [#allocation10], 16
    $region217: #{tpu_custom_call.1} parent=1 // pred_fallthru
      _
    // Predicated region
    $region218: #{tpu_custom_call.1} parent=1 // pred_check
      _
    $region219: #{tpu_custom_call.1} parent=1 // pred_check_branch
      %266 = sbr.rel (0) target = $region221
    $region220: #{tpu_custom_call.1} parent=1 // pred_region
      %267 = dma.done [#allocation10], 16
    $region221: #{tpu_custom_call.1} parent=1 // pred_fallthru
      _
    %v269 = vld [vmem:[%s1] sm:$0xff]
    %v270 = vld [vmem:[%s1 + $0x8] sm:$0xff]
    %v271 = vld [vmem:[%s3] sm:$0xff]
    %v272 = vld [vmem:[%s3 + $0x8] sm:$0xff]
    %v273 = vld [vmem:[%s3 + $0x10] sm:$0xff]
    %v274 = vld [vmem:[%s3 + $0x18] sm:$0xff]
    %v275 = vld [vmem:[%s3 + $0x20] sm:$0xff]
    %v276 = vld [vmem:[%s3 + $0x28] sm:$0xff]
    %v277 = vld [vmem:[%s3 + $0x30] sm:$0xff]
    %v278 = vld [vmem:[%s3 + $0x38] sm:$0xff]
    %v279 = vld [vmem:[%s3 + $0x40] sm:$0xff]
    %v280 = vld [vmem:[%s3 + $0x48] sm:$0xff]
    %v281 = vld [vmem:[%s3 + $0x50] sm:$0xff]
    %v282 = vld [vmem:[%s3 + $0x58] sm:$0xff]
    %v283 = vld [vmem:[%s3 + $0x60] sm:$0xff]
    %v284 = vld [vmem:[%s3 + $0x68] sm:$0xff]
    %v285 = vld [vmem:[%s3 + $0x70] sm:$0xff]
    %v286 = vld [vmem:[%s3 + $0x78] sm:$0xff]
    %v287 = vld [vmem:[%s5] sm:$0x1]
    %v288 = vld [vmem:[%s7] sm:$0x1]
    %vm289 = vcmask 261120
    %v290 = vsel %vm289, %v269, 0.0
    %291 = vadd.xlane.f32.xlu0 %v290
    %v292 = vpop.xlane.xlu0 %291
    %v293 = vsel %vm289, %v270, 0.0
    %294 = vadd.xlane.f32.xlu0 %v293
    %v295 = vpop.xlane.xlu0 %294
    %v296 = vrcp.pop 32.0
    %v297 = vmul.f32 %v292, %v296
    %v298 = vmul.f32 %v295, %v296
    %v299 = vsub.f32 %v269, %v297
    %v300 = vsub.f32 %v270, %v298
    %v301 = vmul.f32 %v299, %v299
    %v302 = vmul.f32 %v300, %v300
    %v303 = vsel %vm289, %v301, 0.0
    %304 = vadd.xlane.f32.xlu0 %v303
    %v305 = vpop.xlane.xlu0 %304
    %v306 = vsel %vm289, %v302, 0.0
    %307 = vadd.xlane.f32.xlu0 %v306
    %v308 = vpop.xlane.xlu0 %307
    %v309 = vmul.f32 %v305, %v296
    %v310 = vmul.f32 %v308, %v296
    %v311 = vadd.f32 %v309, 1e-05
    %v312 = vadd.f32 %v310, 1e-05
    %v313 = vrsqrt.pop %v311
    %v314 = vrsqrt.pop %v312
    %v315 = vmul.f32 %v299, %v313
    %v316 = vmul.f32 %v300, %v314
    %v318 = vlaneseq
    %v319 = vshrl.u32 %v318, 7
    %v320 = vsub.s32 0, %v319
    %v321 = vrot.slane %v287, %v320
    %v323 = vmul.f32 %v315, %v321
    %v324 = vmul.f32 %v316, %v321
    %v326 = vlaneseq
    %v327 = vshrl.u32 %v326, 7
    %v328 = vsub.s32 0, %v327
    %v329 = vrot.slane %v288, %v328
    %v331 = vadd.f32 %v323, %v329
    %v332 = vadd.f32 %v324, %v329
    %v333 = vld [vmem:[%s27] sm:$0xff]
    %v334 = vld [vmem:[%s27 + $0x8] sm:$0xff]
    %v335 = vld [vmem:[%s27 + $0x10] sm:$0xff]
    %v336 = vld [vmem:[%s27 + $0x18] sm:$0xff]
    %v337 = vld [vmem:[%s27 + $0x20] sm:$0xff]
    %v338 = vld [vmem:[%s27 + $0x28] sm:$0xff]
    %v339 = vld [vmem:[%s29] sm:$0xff]
    %v340 = vld [vmem:[%s29 + $0x8] sm:$0xff]
    %v341 = vld [vmem:[%s31] sm:$0x1]
    %v343 = vlaneseq
    %v344 = vshrl.u32 %v343, 7
    %v345 = vsub.s32 0, %v344
    %v346 = vrot.slane %v341, %v345
    %vm348 = vcmask 130048
    %v350 = vsel %vm348, %v333, 0
    %v353 = vsel %vm348, %v334, 0
    %v356 = vsel %vm348, %v335, 0
    %v359 = vsel %vm348, %v336, 0
    %v362 = vsel %vm348, %v337, 0
    %v365 = vsel %vm348, %v338, 0
    %367 = vmatprep.subr.mxu0 0.0
    %368 = vmatpush1.msra.mxu0 0.0
    %369 = vmatprep.subr.mxu0 0.0
    %370 = vmatpush1.msra.mxu0 0.0
    %371 = vmatprep.subr.mxu0 0.0
    %372 = vmatpush1.msra.mxu0 0.0
    %373 = vmatprep.subr.mxu0 0.0
    %374 = vmatpush1.msra.mxu0 0.0
    %375 = vmatprep.subr.mxu0 0.0
    %376 = vmatpush1.msra.mxu0 0.0
    %377 = vmatprep.subr.mxu0 0.0
    %378 = vmatpush1.msra.mxu0 0.0
    %379 = vmatprep.subr.mxu0 0.0
    %380 = vmatpush1.msra.mxu0 0.0
    %381 = vmatprep.subr.mxu0 0.0
    %382 = vmatpush1.msra.mxu0 0.0
    %383 = vmatprep.subr.mxu0 0.0
    %384 = vmatpush1.msra.mxu0 0.0
    %385 = vmatprep.subr.mxu0 0.0
    %386 = vmatpush1.msra.mxu0 0.0
    %387 = vmatprep.subr.mxu0 0.0
    %388 = vmatpush1.msra.mxu0 0.0
    %389 = vmatprep.subr.mxu0 0.0
    %390 = vmatpush1.msra.mxu0 0.0
    %391 = vmatprep.subr.mxu0 0.0
    %392 = vmatpush1.msra.mxu0 0.0
    %393 = vmatprep.subr.mxu0 0.0
    %394 = vmatpush1.msra.mxu0 0.0
    %395 = vmatprep.subr.mxu0 0.0
    %396 = vmatpush1.msra.mxu0 %v340
    %397 = vmatprep.subr.mxu0 0.0
    %398 = vmatpush1.msra.mxu0 %v339
    %399 = vmatprep.subr.mxu0 0.0
    %400 = vmatpush2.msra.mxu0 0.0
    %401 = vmatprep.subr.mxu0 0.0
    %402 = vmatpush2.msra.mxu0 0.0
    %403 = vmatprep.subr.mxu0 0.0
    %404 = vmatpush2.msra.mxu0 0.0
    %405 = vmatprep.subr.mxu0 0.0
    %406 = vmatpush2.msra.mxu0 0.0
    %407 = vmatprep.subr.mxu0 0.0
    %408 = vmatpush2.msra.mxu0 0.0
    %409 = vmatprep.subr.mxu0 0.0
    %410 = vmatpush2.msra.mxu0 0.0
    %411 = vmatprep.subr.mxu0 0.0
    %412 = vmatpush2.msra.mxu0 0.0
    %413 = vmatprep.subr.mxu0 0.0
    %414 = vmatpush2.msra.mxu0 0.0
    %415 = vmatprep.subr.mxu0 0.0
    %416 = vmatpush2.msra.mxu0 0.0
    %417 = vmatprep.subr.mxu0 0.0
    %418 = vmatpush2.msra.mxu0 0.0
    %419 = vmatprep.subr.mxu0 0.0
    %420 = vmatpush2.msra.mxu0 0.0
    %421 = vmatprep.subr.mxu0 0.0
    %422 = vmatpush2.msra.mxu0 0.0
    %423 = vmatprep.subr.mxu0 0.0
    %424 = vmatpush2.msra.mxu0 0.0
    %425 = vmatprep.subr.mxu0 0.0
    %426 = vmatpush2.msra.mxu0 0.0
    %427 = vmatprep.subr.mxu0 0.0
    %428 = vmatpush2.msra.mxu0 0.0
    %429 = vmatprep.subr.mxu0 0.0
    %430 = vmatpush2.msra.mxu0 0.0
    %431 = vmatprep.mubr.f32.mxu0 0.0
    %432 = vmatmul.mubr.f32.gmra.mxu0 %v350
    %v433 = vpop.f32.mrf.mxu0
    %v434 = vadd.f32 %v346, %v433
    %v435 = vpop.f32.mrf.mxu0
    %436 = vmatprep.mubr.f32.mxu0 0.0
    %437 = vmatmul.mubr.f32.gmra.mxu0 %v353
    %v438 = vpop.f32.mrf.mxu0
    %v439 = vadd.f32 %v346, %v438
    %v440 = vpop.f32.mrf.mxu0
    %441 = vmatprep.mubr.f32.mxu0 0.0
    %442 = vmatmul.mubr.f32.gmra.mxu0 %v356
    %v443 = vpop.f32.mrf.mxu0
    %v444 = vadd.f32 %v346, %v443
    %v445 = vpop.f32.mrf.mxu0
    %446 = vmatprep.mubr.f32.mxu0 0.0
    %447 = vmatmul.mubr.f32.gmra.mxu0 %v359
    %v448 = vpop.f32.mrf.mxu0
    %v449 = vadd.f32 %v346, %v448
    %v450 = vpop.f32.mrf.mxu0
    %451 = vmatprep.mubr.f32.mxu0 0.0
    %452 = vmatmul.mubr.f32.gmra.mxu0 %v362
    %v453 = vpop.f32.mrf.mxu0
    %v454 = vadd.f32 %v346, %v453
    %v455 = vpop.f32.mrf.mxu0
    %456 = vmatprep.mubr.f32.mxu0 0.0
    %457 = vmatmul.mubr.f32.gmra.mxu0 %v365
    %v458 = vpop.f32.mrf.mxu0
    %v459 = vadd.f32 %v346, %v458
    %v460 = vpop.f32.mrf.mxu0
    %461 = vdwg.mxu0
    %v462 = vxor.u32 %v434, 2147483648
    %v463 = vxor.u32 %v439, 2147483648
    %v464 = vxor.u32 %v444, 2147483648
    %v465 = vxor.u32 %v449, 2147483648
    %v466 = vxor.u32 %v454, 2147483648
    %v467 = vxor.u32 %v459, 2147483648
    %v468 = vmul.f32 %v462, 1.442695
    %v469 = vpow.pop %v468
    %v470 = vmul.f32 %v463, 1.442695
    %v471 = vpow.pop %v470
    %v472 = vmul.f32 %v464, 1.442695
    %v473 = vpow.pop %v472
    %v474 = vmul.f32 %v465, 1.442695
    %v475 = vpow.pop %v474
    %v476 = vmul.f32 %v466, 1.442695
    %v477 = vpow.pop %v476
    %v478 = vmul.f32 %v467, 1.442695
    %v479 = vpow.pop %v478
    %v480 = vadd.f32 %v469, 1.0
    %v481 = vadd.f32 %v471, 1.0
    %v482 = vadd.f32 %v473, 1.0
    %v483 = vadd.f32 %v475, 1.0
    %v484 = vadd.f32 %v477, 1.0
    %v485 = vadd.f32 %v479, 1.0
    %v486 = vrcp.pop %v480
    %v487 = vmul.f32 1.0, %v486
    %v488 = vrcp.pop %v481
    %v489 = vmul.f32 1.0, %v488
    %v490 = vrcp.pop %v482
    %v491 = vmul.f32 1.0, %v490
    %v492 = vrcp.pop %v483
    %v493 = vmul.f32 1.0, %v492
    %v494 = vrcp.pop %v484
    %v495 = vmul.f32 1.0, %v494
    %v496 = vrcp.pop %v485
    %v497 = vmul.f32 1.0, %v496
    %v498 = vmul.f32 %v434, %v487
    %v499 = vmul.f32 %v439, %v489
    %v500 = vmul.f32 %v444, %v491
    %v501 = vmul.f32 %v449, %v493
    %v502 = vmul.f32 %v454, %v495
    %v503 = vmul.f32 %v459, %v497
    %v504 = vld [vmem:[%s33] sm:$0xff]
    %v505 = vld [vmem:[%s33 + $0x8] sm:$0xff]
    %v506 = vld [vmem:[%s33 + $0x10] sm:$0xff]
    %v507 = vld [vmem:[%s33 + $0x18] sm:$0xff]
    %v508 = vld [vmem:[%s35] sm:$0x1]
    %v510 = vlaneseq
    %v511 = vshrl.u32 %v510, 7
    %v512 = vsub.s32 0, %v511
    %v513 = vrot.slane %v508, %v512
    %v516 = vsel %vm289, %v498, 0
    %v519 = vsel %vm289, %v499, 0
    %v522 = vsel %vm289, %v500, 0
    %v525 = vsel %vm289, %v501, 0
    %v528 = vsel %vm289, %v502, 0
    %v531 = vsel %vm289, %v503, 0
    %533 = vmatprep.subr.mxu0 0.0
    %534 = vmatpush1.msra.mxu0 0.0
    %535 = vmatprep.subr.mxu0 0.0
    %536 = vmatpush1.msra.mxu0 0.0
    %537 = vmatprep.subr.mxu0 0.0
    %538 = vmatpush1.msra.mxu0 0.0
    %539 = vmatprep.subr.mxu0 0.0
    %540 = vmatpush1.msra.mxu0 0.0
    %541 = vmatprep.subr.mxu0 0.0
    %542 = vmatpush1.msra.mxu0 0.0
    %543 = vmatprep.subr.mxu0 0.0
    %544 = vmatpush1.msra.mxu0 0.0
    %545 = vmatprep.subr.mxu0 0.0
    %546 = vmatpush1.msra.mxu0 0.0
    %547 = vmatprep.subr.mxu0 0.0
    %548 = vmatpush1.msra.mxu0 0.0
    %549 = vmatprep.subr.mxu0 0.0
    %550 = vmatpush1.msra.mxu0 0.0
    %551 = vmatprep.subr.mxu0 0.0
    %552 = vmatpush1.msra.mxu0 0.0
    %553 = vmatprep.subr.mxu0 0.0
    %554 = vmatpush1.msra.mxu0 0.0
    %555 = vmatprep.subr.mxu0 0.0
    %556 = vmatpush1.msra.mxu0 0.0
    %557 = vmatprep.subr.mxu0 0.0
    %558 = vmatpush1.msra.mxu0 %v507
    %559 = vmatprep.subr.mxu0 0.0
    %560 = vmatpush1.msra.mxu0 %v506
    %561 = vmatprep.subr.mxu0 0.0
    %562 = vmatpush1.msra.mxu0 %v505
    %563 = vmatprep.subr.mxu0 0.0
    %564 = vmatpush1.msra.mxu0 %v504
    %565 = vmatprep.subr.mxu0 0.0
    %566 = vmatpush2.msra.mxu0 0.0
    %567 = vmatprep.subr.mxu0 0.0
    %568 = vmatpush2.msra.mxu0 0.0
    %569 = vmatprep.subr.mxu0 0.0
    %570 = vmatpush2.msra.mxu0 0.0
    %571 = vmatprep.subr.mxu0 0.0
    %572 = vmatpush2.msra.mxu0 0.0
    %573 = vmatprep.subr.mxu0 0.0
    %574 = vmatpush2.msra.mxu0 0.0
    %575 = vmatprep.subr.mxu0 0.0
    %576 = vmatpush2.msra.mxu0 0.0
    %577 = vmatprep.subr.mxu0 0.0
    %578 = vmatpush2.msra.mxu0 0.0
    %579 = vmatprep.subr.mxu0 0.0
    %580 = vmatpush2.msra.mxu0 0.0
    %581 = vmatprep.subr.mxu0 0.0
    %582 = vmatpush2.msra.mxu0 0.0
    %583 = vmatprep.subr.mxu0 0.0
    %584 = vmatpush2.msra.mxu0 0.0
    %585 = vmatprep.subr.mxu0 0.0
    %586 = vmatpush2.msra.mxu0 0.0
    %587 = vmatprep.subr.mxu0 0.0
    %588 = vmatpush2.msra.mxu0 0.0
    %589 = vmatprep.subr.mxu0 0.0
    %590 = vmatpush2.msra.mxu0 0.0
    %591 = vmatprep.subr.mxu0 0.0
    %592 = vmatpush2.msra.mxu0 0.0
    %593 = vmatprep.subr.mxu0 0.0
    %594 = vmatpush2.msra.mxu0 0.0
    %595 = vmatprep.subr.mxu0 0.0
    %596 = vmatpush2.msra.mxu0 0.0
    %597 = vmatprep.mubr.f32.mxu0 0.0
    %598 = vmatmul.mubr.f32.gmra.mxu0 %v516
    %v599 = vpop.f32.mrf.mxu0
    %v600 = vadd.f32 %v513, %v599
    %v601 = vpop.f32.mrf.mxu0
    %602 = vmatprep.mubr.f32.mxu0 0.0
    %603 = vmatmul.mubr.f32.gmra.mxu0 %v519
    %v604 = vpop.f32.mrf.mxu0
    %v605 = vadd.f32 %v513, %v604
    %v606 = vpop.f32.mrf.mxu0
    %607 = vmatprep.mubr.f32.mxu0 0.0
    %608 = vmatmul.mubr.f32.gmra.mxu0 %v522
    %v609 = vpop.f32.mrf.mxu0
    %v610 = vadd.f32 %v513, %v609
    %v611 = vpop.f32.mrf.mxu0
    %612 = vmatprep.mubr.f32.mxu0 0.0
    %613 = vmatmul.mubr.f32.gmra.mxu0 %v525
    %v614 = vpop.f32.mrf.mxu0
    %v615 = vadd.f32 %v513, %v614
    %v616 = vpop.f32.mrf.mxu0
    %617 = vmatprep.mubr.f32.mxu0 0.0
    %618 = vmatmul.mubr.f32.gmra.mxu0 %v528
    %v619 = vpop.f32.mrf.mxu0
    %v620 = vadd.f32 %v513, %v619
    %v621 = vpop.f32.mrf.mxu0
    %622 = vmatprep.mubr.f32.mxu0 0.0
    %623 = vmatmul.mubr.f32.gmra.mxu0 %v531
    %v624 = vpop.f32.mrf.mxu0
    %v625 = vadd.f32 %v513, %v624
    %v626 = vpop.f32.mrf.mxu0
    %627 = vdwg.mxu0
    %v628 = vld [vmem:[%s25] sm:$0xff]
    %v629 = vld [vmem:[%s25 + $0x8] sm:$0xff]
    %v630 = vld [vmem:[%s25 + $0x10] sm:$0xff]
    %v631 = vld [vmem:[%s25 + $0x18] sm:$0xff]
    %v632 = vld [vmem:[%s25 + $0x20] sm:$0xff]
    %v633 = vld [vmem:[%s25 + $0x28] sm:$0xff]
    %635 = vset.pattern.permute.xlu0 0
    %636 = vperm.xlu0 %635, %v628
    %v637 = vpop.permute.xlu0 %636
    %640 = vset.pattern.permute.xlu0 0
    %641 = vperm.xlu0 %640, %v629
    %v642 = vpop.permute.xlu0 %641
    %645 = vset.pattern.permute.xlu0 0
    %646 = vperm.xlu0 %645, %v630
    %v647 = vpop.permute.xlu0 %646
    %650 = vset.pattern.permute.xlu0 0
    %651 = vperm.xlu0 %650, %v631
    %v652 = vpop.permute.xlu0 %651
    %655 = vset.pattern.permute.xlu0 0
    %656 = vperm.xlu0 %655, %v632
    %v657 = vpop.permute.xlu0 %656
    %660 = vset.pattern.permute.xlu0 0
    %661 = vperm.xlu0 %660, %v633
    %v662 = vpop.permute.xlu0 %661
    %v664 = vmul.f32 %v600, %v637
    %v665 = vmul.f32 %v605, %v642
    %v666 = vmul.f32 %v610, %v647
    %v667 = vmul.f32 %v615, %v652
    %v668 = vmul.f32 %v620, %v657
    %v669 = vmul.f32 %v625, %v662
    %v670 = vld [vmem:[%s37] sm:$0xff]
    %v671 = vld [vmem:[%s37 + $0x8] sm:$0xff]
    %v672 = vld [vmem:[%s37 + $0x10] sm:$0xff]
    %v673 = vld [vmem:[%s37 + $0x18] sm:$0xff]
    %v674 = vld [vmem:[%s39] sm:$0x1]
    %v676 = vlaneseq
    %v677 = vshrl.u32 %v676, 7
    %v678 = vsub.s32 0, %v677
    %v679 = vrot.slane %v674, %v678
    %v682 = vsel %vm289, %v331, 0
    %v685 = vsel %vm289, %v332, 0
    %687 = vmatprep.subr.mxu0 0.0
    %688 = vmatpush1.msra.mxu0 0.0
    %689 = vmatprep.subr.mxu0 0.0
    %690 = vmatpush1.msra.mxu0 0.0
    %691 = vmatprep.subr.mxu0 0.0
    %692 = vmatpush1.msra.mxu0 0.0
    %693 = vmatprep.subr.mxu0 0.0
    %694 = vmatpush1.msra.mxu0 0.0
    %695 = vmatprep.subr.mxu0 0.0
    %696 = vmatpush1.msra.mxu0 0.0
    %697 = vmatprep.subr.mxu0 0.0
    %698 = vmatpush1.msra.mxu0 0.0
    %699 = vmatprep.subr.mxu0 0.0
    %700 = vmatpush1.msra.mxu0 0.0
    %701 = vmatprep.subr.mxu0 0.0
    %702 = vmatpush1.msra.mxu0 0.0
    %703 = vmatprep.subr.mxu0 0.0
    %704 = vmatpush1.msra.mxu0 0.0
    %705 = vmatprep.subr.mxu0 0.0
    %706 = vmatpush1.msra.mxu0 0.0
    %707 = vmatprep.subr.mxu0 0.0
    %708 = vmatpush1.msra.mxu0 0.0
    %709 = vmatprep.subr.mxu0 0.0
    %710 = vmatpush1.msra.mxu0 0.0
    %711 = vmatprep.subr.mxu0 0.0
    %712 = vmatpush1.msra.mxu0 %v673
    %713 = vmatprep.subr.mxu0 0.0
    %714 = vmatpush1.msra.mxu0 %v672
    %715 = vmatprep.subr.mxu0 0.0
    %716 = vmatpush1.msra.mxu0 %v671
    %717 = vmatprep.subr.mxu0 0.0
    %718 = vmatpush1.msra.mxu0 %v670
    %719 = vmatprep.subr.mxu0 0.0
    %720 = vmatpush2.msra.mxu0 0.0
    %721 = vmatprep.subr.mxu0 0.0
    %722 = vmatpush2.msra.mxu0 0.0
    %723 = vmatprep.subr.mxu0 0.0
    %724 = vmatpush2.msra.mxu0 0.0
    %725 = vmatprep.subr.mxu0 0.0
    %726 = vmatpush2.msra.mxu0 0.0
    %727 = vmatprep.subr.mxu0 0.0
    %728 = vmatpush2.msra.mxu0 0.0
    %729 = vmatprep.subr.mxu0 0.0
    %730 = vmatpush2.msra.mxu0 0.0
    %731 = vmatprep.subr.mxu0 0.0
    %732 = vmatpush2.msra.mxu0 0.0
    %733 = vmatprep.subr.mxu0 0.0
    %734 = vmatpush2.msra.mxu0 0.0
    %735 = vmatprep.subr.mxu0 0.0
    %736 = vmatpush2.msra.mxu0 0.0
    %737 = vmatprep.subr.mxu0 0.0
    %738 = vmatpush2.msra.mxu0 0.0
    %739 = vmatprep.subr.mxu0 0.0
    %740 = vmatpush2.msra.mxu0 0.0
    %741 = vmatprep.subr.mxu0 0.0
    %742 = vmatpush2.msra.mxu0 0.0
    %743 = vmatprep.subr.mxu0 0.0
    %744 = vmatpush2.msra.mxu0 0.0
    %745 = vmatprep.subr.mxu0 0.0
    %746 = vmatpush2.msra.mxu0 0.0
    %747 = vmatprep.subr.mxu0 0.0
    %748 = vmatpush2.msra.mxu0 0.0
    %749 = vmatprep.subr.mxu0 0.0
    %750 = vmatpush2.msra.mxu0 0.0
    %751 = vmatprep.mubr.f32.mxu0 0.0
    %752 = vmatmul.mubr.f32.gmra.mxu0 %v682
    %v753 = vpop.f32.mrf.mxu0
    %v754 = vadd.f32 %v679, %v753
    %v755 = vpop.f32.mrf.mxu0
    %756 = vmatprep.mubr.f32.mxu0 0.0
    %757 = vmatmul.mubr.f32.gmra.mxu0 %v685
    %v758 = vpop.f32.mrf.mxu0
    %v759 = vadd.f32 %v679, %v758
    %v760 = vpop.f32.mrf.mxu0
    %761 = vdwg.mxu0
    %v762 = vld [vmem:[%s21] sm:$0xf]
    %v763 = vld [vmem:[%s21 + $0x4] sm:$0xf]
    %v764 = vld [vmem:[%s21 + $0x8] sm:$0xf]
    %v765 = vld [vmem:[%s21 + $0xc] sm:$0xf]
    %v766 = vld [vmem:[%s21 + $0x10] sm:$0xf]
    %v767 = vld [vmem:[%s21 + $0x14] sm:$0xf]
    %v768 = vpack.c.bf16 %v759, %v754
    %v775 = vunpack.c.l.b16 %v762
    %v776 = vunpack.c.l.b16 %v763
    %v777 = vunpack.c.l.b16 %v764
    %v778 = vunpack.c.l.b16 %v765
    %v779 = vunpack.c.l.b16 %v766
    %v780 = vunpack.c.l.b16 %v767
    %v781 = vpack.c.b16 %v776, %v775
    %v782 = vpack.c.b16 %v778, %v777
    %v783 = vpack.c.b16 %v780, %v779
    %v785 = vsel %vm348, %v781, 0
    %v788 = vsel %vm348, %v782, 0
    %v791 = vsel %vm348, %v783, 0
    %793 = vmatprep.subr.bf16.mxu0 0
    %794 = vmatpush1.bf16.msra.mxu0 0
    %795 = vmatprep.subr.bf16.mxu0 0
    %796 = vmatpush1.bf16.msra.mxu0 0
    %797 = vmatprep.subr.bf16.mxu0 0
    %798 = vmatpush1.bf16.msra.mxu0 0
    %799 = vmatprep.subr.bf16.mxu0 0
    %800 = vmatpush1.bf16.msra.mxu0 0
    %801 = vmatprep.subr.bf16.mxu0 0
    %802 = vmatpush1.bf16.msra.mxu0 0
    %803 = vmatprep.subr.bf16.mxu0 0
    %804 = vmatpush1.bf16.msra.mxu0 0
    %805 = vmatprep.subr.bf16.mxu0 0
    %806 = vmatpush1.bf16.msra.mxu0 0
    %807 = vmatprep.subr.bf16.mxu0 0
    %808 = vmatpush1.bf16.msra.mxu0 %v768
    %809 = vmatprep.subr.bf16.mxu0 0
    %810 = vmatpush2.bf16.msra.mxu0 0
    %811 = vmatprep.subr.bf16.mxu0 0
    %812 = vmatpush2.bf16.msra.mxu0 0
    %813 = vmatprep.subr.bf16.mxu0 0
    %814 = vmatpush2.bf16.msra.mxu0 0
    %815 = vmatprep.subr.bf16.mxu0 0
    %816 = vmatpush2.bf16.msra.mxu0 0
    %817 = vmatprep.subr.bf16.mxu0 0
    %818 = vmatpush2.bf16.msra.mxu0 0
    %819 = vmatprep.subr.bf16.mxu0 0
    %820 = vmatpush2.bf16.msra.mxu0 0
    %821 = vmatprep.subr.bf16.mxu0 0
    %822 = vmatpush2.bf16.msra.mxu0 0
    %823 = vmatprep.subr.bf16.mxu0 0
    %824 = vmatpush2.bf16.msra.mxu0 0
    %825 = vmatprep.mubr.bf16.mxu0 0
    %826 = vmatmul.mubr.bf16.gmra.mxu0 %v785
    %v827 = vpop.f32.mrf.mxu0
    %v828 = vadd.f32 0.0, %v827
    %v829 = vpop.f32.mrf.mxu0
    %v830 = vpop.f32.mrf.mxu0
    %v831 = vadd.f32 0.0, %v830
    %v832 = vpop.f32.mrf.mxu0
    %833 = vmatprep.mubr.bf16.mxu0 0
    %834 = vmatmul.mubr.bf16.gmra.mxu0 %v788
    %v835 = vpop.f32.mrf.mxu0
    %v836 = vadd.f32 0.0, %v835
    %v837 = vpop.f32.mrf.mxu0
    %v838 = vpop.f32.mrf.mxu0
    %v839 = vadd.f32 0.0, %v838
    %v840 = vpop.f32.mrf.mxu0
    %841 = vmatprep.mubr.bf16.mxu0 0
    %842 = vmatmul.mubr.bf16.gmra.mxu0 %v791
    %v843 = vpop.f32.mrf.mxu0
    %v844 = vadd.f32 0.0, %v843
    %v845 = vpop.f32.mrf.mxu0
    %v846 = vpop.f32.mrf.mxu0
    %v847 = vadd.f32 0.0, %v846
    %v848 = vpop.f32.mrf.mxu0
    %849 = vdwg.mxu0
    %v850 = vmul.f32 %v828, %v664
    %v851 = vmul.f32 %v831, %v665
    %v852 = vmul.f32 %v836, %v666
    %v853 = vmul.f32 %v839, %v667
    %v854 = vmul.f32 %v844, %v668
    %v855 = vmul.f32 %v847, %v669
    %v856 = vld [vmem:[%s23] sm:$0xf]
    %v857 = vld [vmem:[%s23 + $0x4] sm:$0xf]
    %v858 = vpack.c.bf16 %v851, %v850
    %v859 = vpack.c.bf16 %v853, %v852
    %v860 = vpack.c.bf16 %v855, %v854
    %v863 = vunpack.c.l.b16 %v856
    %v864 = vunpack.c.l.b16 %v857
    %v865 = vpack.c.b16 %v864, %v863
    %vm866 = vcmask 392192
    %v868 = vsel %vm866, %v865, 0
    %870 = vmatprep.subr.bf16.mxu0 0
    %871 = vmatpush1.bf16.msra.mxu0 0
    %872 = vmatprep.subr.bf16.mxu0 0
    %873 = vmatpush1.bf16.msra.mxu0 0
    %874 = vmatprep.subr.bf16.mxu0 0
    %875 = vmatpush1.bf16.msra.mxu0 0
    %876 = vmatprep.subr.bf16.mxu0 0
    %877 = vmatpush1.bf16.msra.mxu0 0
    %878 = vmatprep.subr.bf16.mxu0 0
    %879 = vmatpush1.bf16.msra.mxu0 0
    %880 = vmatprep.subr.bf16.mxu0 0
    %881 = vmatpush1.bf16.msra.mxu0 %v860
    %882 = vmatprep.subr.bf16.mxu0 0
    %883 = vmatpush1.bf16.msra.mxu0 %v859
    %884 = vmatprep.subr.bf16.mxu0 0
    %885 = vmatpush1.bf16.msra.mxu0 %v858
    %886 = vmatprep.subr.bf16.mxu0 0
    %887 = vmatpush2.bf16.msra.mxu0 0
    %888 = vmatprep.subr.bf16.mxu0 0
    %889 = vmatpush2.bf16.msra.mxu0 0
    %890 = vmatprep.subr.bf16.mxu0 0
    %891 = vmatpush2.bf16.msra.mxu0 0
    %892 = vmatprep.subr.bf16.mxu0 0
    %893 = vmatpush2.bf16.msra.mxu0 0
    %894 = vmatprep.subr.bf16.mxu0 0
    %895 = vmatpush2.bf16.msra.mxu0 0
    %896 = vmatprep.subr.bf16.mxu0 0
    %897 = vmatpush2.bf16.msra.mxu0 0
    %898 = vmatprep.subr.bf16.mxu0 0
    %899 = vmatpush2.bf16.msra.mxu0 0
    %900 = vmatprep.subr.bf16.mxu0 0
    %901 = vmatpush2.bf16.msra.mxu0 0
    %902 = vmatprep.mubr.bf16.mxu0 0
    %903 = vmatmul.mubr.bf16.gmra.mxu0 %v868
    %v904 = vpop.f32.mrf.mxu0
    %v905 = vadd.f32 0.0, %v904
    %v906 = vpop.f32.mrf.mxu0
    %v907 = vpop.f32.mrf.mxu0
    %v908 = vadd.f32 0.0, %v907
    %v909 = vpop.f32.mrf.mxu0
    %910 = vdwg.mxu0
    %v911 = vld [vmem:[%s41] sm:$0xff]
    %v912 = vld [vmem:[%s41 + $0x8] sm:$0xff]
    %v913 = vld [vmem:[%s41 + $0x10] sm:$0xff]
    %v914 = vld [vmem:[%s41 + $0x18] sm:$0xff]
    %v915 = vld [vmem:[%s43] sm:$0x1]
    %v917 = vlaneseq
    %v918 = vshrl.u32 %v917, 7
    %v919 = vsub.s32 0, %v918
    %v920 = vrot.slane %v915, %v919
    %v923 = vsel %vm289, %v905, 0
    %v926 = vsel %vm289, %v908, 0
    %928 = vmatprep.subr.mxu0 0.0
    %929 = vmatpush1.msra.mxu0 0.0
    %930 = vmatprep.subr.mxu0 0.0
    %931 = vmatpush1.msra.mxu0 0.0
    %932 = vmatprep.subr.mxu0 0.0
    %933 = vmatpush1.msra.mxu0 0.0
    %934 = vmatprep.subr.mxu0 0.0
    %935 = vmatpush1.msra.mxu0 0.0
    %936 = vmatprep.subr.mxu0 0.0
    %937 = vmatpush1.msra.mxu0 0.0
    %938 = vmatprep.subr.mxu0 0.0
    %939 = vmatpush1.msra.mxu0 0.0
    %940 = vmatprep.subr.mxu0 0.0
    %941 = vmatpush1.msra.mxu0 0.0
    %942 = vmatprep.subr.mxu0 0.0
    %943 = vmatpush1.msra.mxu0 0.0
    %944 = vmatprep.subr.mxu0 0.0
    %945 = vmatpush1.msra.mxu0 0.0
    %946 = vmatprep.subr.mxu0 0.0
    %947 = vmatpush1.msra.mxu0 0.0
    %948 = vmatprep.subr.mxu0 0.0
    %949 = vmatpush1.msra.mxu0 0.0
    %950 = vmatprep.subr.mxu0 0.0
    %951 = vmatpush1.msra.mxu0 0.0
    %952 = vmatprep.subr.mxu0 0.0
    %953 = vmatpush1.msra.mxu0 %v914
    %954 = vmatprep.subr.mxu0 0.0
    %955 = vmatpush1.msra.mxu0 %v913
    %956 = vmatprep.subr.mxu0 0.0
    %957 = vmatpush1.msra.mxu0 %v912
    %958 = vmatprep.subr.mxu0 0.0
    %959 = vmatpush1.msra.mxu0 %v911
    %960 = vmatprep.subr.mxu0 0.0
    %961 = vmatpush2.msra.mxu0 0.0
    %962 = vmatprep.subr.mxu0 0.0
    %963 = vmatpush2.msra.mxu0 0.0
    %964 = vmatprep.subr.mxu0 0.0
    %965 = vmatpush2.msra.mxu0 0.0
    %966 = vmatprep.subr.mxu0 0.0
    %967 = vmatpush2.msra.mxu0 0.0
    %968 = vmatprep.subr.mxu0 0.0
    %969 = vmatpush2.msra.mxu0 0.0
    %970 = vmatprep.subr.mxu0 0.0
    %971 = vmatpush2.msra.mxu0 0.0
    %972 = vmatprep.subr.mxu0 0.0
    %973 = vmatpush2.msra.mxu0 0.0
    %974 = vmatprep.subr.mxu0 0.0
    %975 = vmatpush2.msra.mxu0 0.0
    %976 = vmatprep.subr.mxu0 0.0
    %977 = vmatpush2.msra.mxu0 0.0
    %978 = vmatprep.subr.mxu0 0.0
    %979 = vmatpush2.msra.mxu0 0.0
    %980 = vmatprep.subr.mxu0 0.0
    %981 = vmatpush2.msra.mxu0 0.0
    %982 = vmatprep.subr.mxu0 0.0
    %983 = vmatpush2.msra.mxu0 0.0
    %984 = vmatprep.subr.mxu0 0.0
    %985 = vmatpush2.msra.mxu0 0.0
    %986 = vmatprep.subr.mxu0 0.0
    %987 = vmatpush2.msra.mxu0 0.0
    %988 = vmatprep.subr.mxu0 0.0
    %989 = vmatpush2.msra.mxu0 0.0
    %990 = vmatprep.subr.mxu0 0.0
    %991 = vmatpush2.msra.mxu0 0.0
    %992 = vmatprep.mubr.f32.mxu0 0.0
    %993 = vmatmul.mubr.f32.gmra.mxu0 %v923
    %v994 = vpop.f32.mrf.mxu0
    %v995 = vadd.f32 %v920, %v994
    %v996 = vpop.f32.mrf.mxu0
    %997 = vmatprep.mubr.f32.mxu0 0.0
    %998 = vmatmul.mubr.f32.gmra.mxu0 %v926
    %v999 = vpop.f32.mrf.mxu0
    %v1000 = vadd.f32 %v920, %v999
    %v1001 = vpop.f32.mrf.mxu0
    %1002 = vdwg.mxu0
    %v1003 = vld [vmem:[%s9] sm:$0x1]
    %v1004 = vld [vmem:[%s11] sm:$0x1]
    %v1005 = vsel %vm289, %v271, 0.0
    %1006 = vadd.xlane.f32.xlu0 %v1005
    %v1007 = vpop.xlane.xlu0 %1006
    %v1008 = vsel %vm289, %v272, 0.0
    %1009 = vadd.xlane.f32.xlu0 %v1008
    %v1010 = vpop.xlane.xlu0 %1009
    %v1011 = vsel %vm289, %v273, 0.0
    %1012 = vadd.xlane.f32.xlu0 %v1011
    %v1013 = vpop.xlane.xlu0 %1012
    %v1014 = vsel %vm289, %v274, 0.0
    %1015 = vadd.xlane.f32.xlu0 %v1014
    %v1016 = vpop.xlane.xlu0 %1015
    %v1017 = vsel %vm289, %v275, 0.0
    %1018 = vadd.xlane.f32.xlu0 %v1017
    %v1019 = vpop.xlane.xlu0 %1018
    %v1020 = vsel %vm289, %v276, 0.0
    %1021 = vadd.xlane.f32.xlu0 %v1020
    %v1022 = vpop.xlane.xlu0 %1021
    %v1023 = vsel %vm289, %v277, 0.0
    %1024 = vadd.xlane.f32.xlu0 %v1023
    %v1025 = vpop.xlane.xlu0 %1024
    %v1026 = vsel %vm289, %v278, 0.0
    %1027 = vadd.xlane.f32.xlu0 %v1026
    %v1028 = vpop.xlane.xlu0 %1027
    %v1029 = vsel %vm289, %v279, 0.0
    %1030 = vadd.xlane.f32.xlu0 %v1029
    %v1031 = vpop.xlane.xlu0 %1030
    %v1032 = vsel %vm289, %v280, 0.0
    %1033 = vadd.xlane.f32.xlu0 %v1032
    %v1034 = vpop.xlane.xlu0 %1033
    %v1035 = vsel %vm289, %v281, 0.0
    %1036 = vadd.xlane.f32.xlu0 %v1035
    %v1037 = vpop.xlane.xlu0 %1036
    %v1038 = vsel %vm289, %v282, 0.0
    %1039 = vadd.xlane.f32.xlu0 %v1038
    %v1040 = vpop.xlane.xlu0 %1039
    %v1041 = vsel %vm289, %v283, 0.0
    %1042 = vadd.xlane.f32.xlu0 %v1041
    %v1043 = vpop.xlane.xlu0 %1042
    %v1044 = vsel %vm289, %v284, 0.0
    %1045 = vadd.xlane.f32.xlu0 %v1044
    %v1046 = vpop.xlane.xlu0 %1045
    %v1047 = vsel %vm289, %v285, 0.0
    %1048 = vadd.xlane.f32.xlu0 %v1047
    %v1049 = vpop.xlane.xlu0 %1048
    %v1050 = vsel %vm289, %v286, 0.0
    %1051 = vadd.xlane.f32.xlu0 %v1050
    %v1052 = vpop.xlane.xlu0 %1051
    %v1053 = vmul.f32 %v1007, %v296
    %v1054 = vmul.f32 %v1010, %v296
    %v1055 = vmul.f32 %v1013, %v296
    %v1056 = vmul.f32 %v1016, %v296
    %v1057 = vmul.f32 %v1019, %v296
    %v1058 = vmul.f32 %v1022, %v296
    %v1059 = vmul.f32 %v1025, %v296
    %v1060 = vmul.f32 %v1028, %v296
    %v1061 = vmul.f32 %v1031, %v296
    %v1062 = vmul.f32 %v1034, %v296
    %v1063 = vmul.f32 %v1037, %v296
    %v1064 = vmul.f32 %v1040, %v296
    %v1065 = vmul.f32 %v1043, %v296
    %v1066 = vmul.f32 %v1046, %v296
    %v1067 = vmul.f32 %v1049, %v296
    %v1068 = vmul.f32 %v1052, %v296
    %v1069 = vsub.f32 %v271, %v1053
    %v1070 = vsub.f32 %v272, %v1054
    %v1071 = vsub.f32 %v273, %v1055
    %v1072 = vsub.f32 %v274, %v1056
    %v1073 = vsub.f32 %v275, %v1057
    %v1074 = vsub.f32 %v276, %v1058
    %v1075 = vsub.f32 %v277, %v1059
    %v1076 = vsub.f32 %v278, %v1060
    %v1077 = vsub.f32 %v279, %v1061
    %v1078 = vsub.f32 %v280, %v1062
    %v1079 = vsub.f32 %v281, %v1063
    %v1080 = vsub.f32 %v282, %v1064
    %v1081 = vsub.f32 %v283, %v1065
    %v1082 = vsub.f32 %v284, %v1066
    %v1083 = vsub.f32 %v285, %v1067
    %v1084 = vsub.f32 %v286, %v1068
    %v1085 = vmul.f32 %v1069, %v1069
    %v1086 = vmul.f32 %v1070, %v1070
    %v1087 = vmul.f32 %v1071, %v1071
    %v1088 = vmul.f32 %v1072, %v1072
    %v1089 = vmul.f32 %v1073, %v1073
    %v1090 = vmul.f32 %v1074, %v1074
    %v1091 = vmul.f32 %v1075, %v1075
    %v1092 = vmul.f32 %v1076, %v1076
    %v1093 = vmul.f32 %v1077, %v1077
    %v1094 = vmul.f32 %v1078, %v1078
    %v1095 = vmul.f32 %v1079, %v1079
    %v1096 = vmul.f32 %v1080, %v1080
    %v1097 = vmul.f32 %v1081, %v1081
    %v1098 = vmul.f32 %v1082, %v1082
    %v1099 = vmul.f32 %v1083, %v1083
    %v1100 = vmul.f32 %v1084, %v1084
    %v1101 = vsel %vm289, %v1085, 0.0
    %1102 = vadd.xlane.f32.xlu0 %v1101
    %v1103 = vpop.xlane.xlu0 %1102
    %v1104 = vsel %vm289, %v1086, 0.0
    %1105 = vadd.xlane.f32.xlu0 %v1104
    %v1106 = vpop.xlane.xlu0 %1105
    %v1107 = vsel %vm289, %v1087, 0.0
    %1108 = vadd.xlane.f32.xlu0 %v1107
    %v1109 = vpop.xlane.xlu0 %1108
    %v1110 = vsel %vm289, %v1088, 0.0
    %1111 = vadd.xlane.f32.xlu0 %v1110
    %v1112 = vpop.xlane.xlu0 %1111
    %v1113 = vsel %vm289, %v1089, 0.0
    %1114 = vadd.xlane.f32.xlu0 %v1113
    %v1115 = vpop.xlane.xlu0 %1114
    %v1116 = vsel %vm289, %v1090, 0.0
    %1117 = vadd.xlane.f32.xlu0 %v1116
    %v1118 = vpop.xlane.xlu0 %1117
    %v1119 = vsel %vm289, %v1091, 0.0
    %1120 = vadd.xlane.f32.xlu0 %v1119
    %v1121 = vpop.xlane.xlu0 %1120
    %v1122 = vsel %vm289, %v1092, 0.0
    %1123 = vadd.xlane.f32.xlu0 %v1122
    %v1124 = vpop.xlane.xlu0 %1123
    %v1125 = vsel %vm289, %v1093, 0.0
    %1126 = vadd.xlane.f32.xlu0 %v1125
    %v1127 = vpop.xlane.xlu0 %1126
    %v1128 = vsel %vm289, %v1094, 0.0
    %1129 = vadd.xlane.f32.xlu0 %v1128
    %v1130 = vpop.xlane.xlu0 %1129
    %v1131 = vsel %vm289, %v1095, 0.0
    %1132 = vadd.xlane.f32.xlu0 %v1131
    %v1133 = vpop.xlane.xlu0 %1132
    %v1134 = vsel %vm289, %v1096, 0.0
    %1135 = vadd.xlane.f32.xlu0 %v1134
    %v1136 = vpop.xlane.xlu0 %1135
    %v1137 = vsel %vm289, %v1097, 0.0
    %1138 = vadd.xlane.f32.xlu0 %v1137
    %v1139 = vpop.xlane.xlu0 %1138
    %v1140 = vsel %vm289, %v1098, 0.0
    %1141 = vadd.xlane.f32.xlu0 %v1140
    %v1142 = vpop.xlane.xlu0 %1141
    %v1143 = vsel %vm289, %v1099, 0.0
    %1144 = vadd.xlane.f32.xlu0 %v1143
    %v1145 = vpop.xlane.xlu0 %1144
    %v1146 = vsel %vm289, %v1100, 0.0
    %1147 = vadd.xlane.f32.xlu0 %v1146
    %v1148 = vpop.xlane.xlu0 %1147
    %v1149 = vmul.f32 %v1103, %v296
    %v1150 = vmul.f32 %v1106, %v296
    %v1151 = vmul.f32 %v1109, %v296
    %v1152 = vmul.f32 %v1112, %v296
    %v1153 = vmul.f32 %v1115, %v296
    %v1154 = vmul.f32 %v1118, %v296
    %v1155 = vmul.f32 %v1121, %v296
    %v1156 = vmul.f32 %v1124, %v296
    %v1157 = vmul.f32 %v1127, %v296
    %v1158 = vmul.f32 %v1130, %v296
    %v1159 = vmul.f32 %v1133, %v296
    %v1160 = vmul.f32 %v1136, %v296
    %v1161 = vmul.f32 %v1139, %v296
    %v1162 = vmul.f32 %v1142, %v296
    %v1163 = vmul.f32 %v1145, %v296
    %v1164 = vmul.f32 %v1148, %v296
    %v1165 = vadd.f32 %v1149, 1e-05
    %v1166 = vadd.f32 %v1150, 1e-05
    %v1167 = vadd.f32 %v1151, 1e-05
    %v1168 = vadd.f32 %v1152, 1e-05
    %v1169 = vadd.f32 %v1153, 1e-05
    %v1170 = vadd.f32 %v1154, 1e-05
    %v1171 = vadd.f32 %v1155, 1e-05
    %v1172 = vadd.f32 %v1156, 1e-05
    %v1173 = vadd.f32 %v1157, 1e-05
    %v1174 = vadd.f32 %v1158, 1e-05
    %v1175 = vadd.f32 %v1159, 1e-05
    %v1176 = vadd.f32 %v1160, 1e-05
    %v1177 = vadd.f32 %v1161, 1e-05
    %v1178 = vadd.f32 %v1162, 1e-05
    %v1179 = vadd.f32 %v1163, 1e-05
    %v1180 = vadd.f32 %v1164, 1e-05
    %v1181 = vrsqrt.pop %v1165
    %v1182 = vrsqrt.pop %v1166
    %v1183 = vrsqrt.pop %v1167
    %v1184 = vrsqrt.pop %v1168
    %v1185 = vrsqrt.pop %v1169
    %v1186 = vrsqrt.pop %v1170
    %v1187 = vrsqrt.pop %v1171
    %v1188 = vrsqrt.pop %v1172
    %v1189 = vrsqrt.pop %v1173
    %v1190 = vrsqrt.pop %v1174
    %v1191 = vrsqrt.pop %v1175
    %v1192 = vrsqrt.pop %v1176
    %v1193 = vrsqrt.pop %v1177
    %v1194 = vrsqrt.pop %v1178
    %v1195 = vrsqrt.pop %v1179
    %v1196 = vrsqrt.pop %v1180
    %v1197 = vmul.f32 %v1069, %v1181
    %v1198 = vmul.f32 %v1070, %v1182
    %v1199 = vmul.f32 %v1071, %v1183
    %v1200 = vmul.f32 %v1072, %v1184
    %v1201 = vmul.f32 %v1073, %v1185
    %v1202 = vmul.f32 %v1074, %v1186
    %v1203 = vmul.f32 %v1075, %v1187
    %v1204 = vmul.f32 %v1076, %v1188
    %v1205 = vmul.f32 %v1077, %v1189
    %v1206 = vmul.f32 %v1078, %v1190
    %v1207 = vmul.f32 %v1079, %v1191
    %v1208 = vmul.f32 %v1080, %v1192
    %v1209 = vmul.f32 %v1081, %v1193
    %v1210 = vmul.f32 %v1082, %v1194
    %v1211 = vmul.f32 %v1083, %v1195
    %v1212 = vmul.f32 %v1084, %v1196
    %v1214 = vlaneseq
    %v1215 = vshrl.u32 %v1214, 7
    %v1216 = vsub.s32 0, %v1215
    %v1217 = vrot.slane %v1003, %v1216
    %v1219 = vmul.f32 %v1197, %v1217
    %v1220 = vmul.f32 %v1198, %v1217
    %v1221 = vmul.f32 %v1199, %v1217
    %v1222 = vmul.f32 %v1200, %v1217
    %v1223 = vmul.f32 %v1201, %v1217
    %v1224 = vmul.f32 %v1202, %v1217
    %v1225 = vmul.f32 %v1203, %v1217
    %v1226 = vmul.f32 %v1204, %v1217
    %v1227 = vmul.f32 %v1205, %v1217
    %v1228 = vmul.f32 %v1206, %v1217
    %v1229 = vmul.f32 %v1207, %v1217
    %v1230 = vmul.f32 %v1208, %v1217
    %v1231 = vmul.f32 %v1209, %v1217
    %v1232 = vmul.f32 %v1210, %v1217
    %v1233 = vmul.f32 %v1211, %v1217
    %v1234 = vmul.f32 %v1212, %v1217
    %v1236 = vlaneseq
    %v1237 = vshrl.u32 %v1236, 7
    %v1238 = vsub.s32 0, %v1237
    %v1239 = vrot.slane %v1004, %v1238
    %v1241 = vadd.f32 %v1219, %v1239
    %v1242 = vadd.f32 %v1220, %v1239
    %v1243 = vadd.f32 %v1221, %v1239
    %v1244 = vadd.f32 %v1222, %v1239
    %v1245 = vadd.f32 %v1223, %v1239
    %v1246 = vadd.f32 %v1224, %v1239
    %v1247 = vadd.f32 %v1225, %v1239
    %v1248 = vadd.f32 %v1226, %v1239
    %v1249 = vadd.f32 %v1227, %v1239
    %v1250 = vadd.f32 %v1228, %v1239
    %v1251 = vadd.f32 %v1229, %v1239
    %v1252 = vadd.f32 %v1230, %v1239
    %v1253 = vadd.f32 %v1231, %v1239
    %v1254 = vadd.f32 %v1232, %v1239
    %v1255 = vadd.f32 %v1233, %v1239
    %v1256 = vadd.f32 %v1234, %v1239
    %v1257 = vld [vmem:[%s93] sm:$0xff]
    %v1258 = vld [vmem:[%s93 + $0x8] sm:$0xff]
    %v1259 = vld [vmem:[%s93 + $0x10] sm:$0xff]
    %v1260 = vld [vmem:[%s93 + $0x18] sm:$0xff]
    %v1261 = vld [vmem:[#allocation9] sm:$0x1]
    %v1263 = vlaneseq
    %v1264 = vshrl.u32 %v1263, 7
    %v1265 = vsub.s32 0, %v1264
    %v1266 = vrot.slane %v1261, %v1265
    %v1269 = vsel %vm289, %v1241, 0
    %v1272 = vsel %vm289, %v1242, 0
    %v1275 = vsel %vm289, %v1243, 0
    %v1278 = vsel %vm289, %v1244, 0
    %v1281 = vsel %vm289, %v1245, 0
    %v1284 = vsel %vm289, %v1246, 0
    %v1287 = vsel %vm289, %v1247, 0
    %v1290 = vsel %vm289, %v1248, 0
    %v1293 = vsel %vm289, %v1249, 0
    %v1296 = vsel %vm289, %v1250, 0
    %v1299 = vsel %vm289, %v1251, 0
    %v1302 = vsel %vm289, %v1252, 0
    %v1305 = vsel %vm289, %v1253, 0
    %v1308 = vsel %vm289, %v1254, 0
    %v1311 = vsel %vm289, %v1255, 0
    %v1314 = vsel %vm289, %v1256, 0
    %1316 = vmatprep.subr.mxu0 0.0
    %1317 = vmatpush1.msra.mxu0 0.0
    %1318 = vmatprep.subr.mxu0 0.0
    %1319 = vmatpush1.msra.mxu0 0.0
    %1320 = vmatprep.subr.mxu0 0.0
    %1321 = vmatpush1.msra.mxu0 0.0
    %1322 = vmatprep.subr.mxu0 0.0
    %1323 = vmatpush1.msra.mxu0 0.0
    %1324 = vmatprep.subr.mxu0 0.0
    %1325 = vmatpush1.msra.mxu0 0.0
    %1326 = vmatprep.subr.mxu0 0.0
    %1327 = vmatpush1.msra.mxu0 0.0
    %1328 = vmatprep.subr.mxu0 0.0
    %1329 = vmatpush1.msra.mxu0 0.0
    %1330 = vmatprep.subr.mxu0 0.0
    %1331 = vmatpush1.msra.mxu0 0.0
    %1332 = vmatprep.subr.mxu0 0.0
    %1333 = vmatpush1.msra.mxu0 0.0
    %1334 = vmatprep.subr.mxu0 0.0
    %1335 = vmatpush1.msra.mxu0 0.0
    %1336 = vmatprep.subr.mxu0 0.0
    %1337 = vmatpush1.msra.mxu0 0.0
    %1338 = vmatprep.subr.mxu0 0.0
    %1339 = vmatpush1.msra.mxu0 0.0
    %1340 = vmatprep.subr.mxu0 0.0
    %1341 = vmatpush1.msra.mxu0 %v1260
    %1342 = vmatprep.subr.mxu0 0.0
    %1343 = vmatpush1.msra.mxu0 %v1259
    %1344 = vmatprep.subr.mxu0 0.0
    %1345 = vmatpush1.msra.mxu0 %v1258
    %1346 = vmatprep.subr.mxu0 0.0
    %1347 = vmatpush1.msra.mxu0 %v1257
    %1348 = vmatprep.subr.mxu0 0.0
    %1349 = vmatpush2.msra.mxu0 0.0
    %1350 = vmatprep.subr.mxu0 0.0
    %1351 = vmatpush2.msra.mxu0 0.0
    %1352 = vmatprep.subr.mxu0 0.0
    %1353 = vmatpush2.msra.mxu0 0.0
    %1354 = vmatprep.subr.mxu0 0.0
    %1355 = vmatpush2.msra.mxu0 0.0
    %1356 = vmatprep.subr.mxu0 0.0
    %1357 = vmatpush2.msra.mxu0 0.0
    %1358 = vmatprep.subr.mxu0 0.0
    %1359 = vmatpush2.msra.mxu0 0.0
    %1360 = vmatprep.subr.mxu0 0.0
    %1361 = vmatpush2.msra.mxu0 0.0
    %1362 = vmatprep.subr.mxu0 0.0
    %1363 = vmatpush2.msra.mxu0 0.0
    %1364 = vmatprep.subr.mxu0 0.0
    %1365 = vmatpush2.msra.mxu0 0.0
    %1366 = vmatprep.subr.mxu0 0.0
    %1367 = vmatpush2.msra.mxu0 0.0
    %1368 = vmatprep.subr.mxu0 0.0
    %1369 = vmatpush2.msra.mxu0 0.0
    %1370 = vmatprep.subr.mxu0 0.0
    %1371 = vmatpush2.msra.mxu0 0.0
    %1372 = vmatprep.subr.mxu0 0.0
    %1373 = vmatpush2.msra.mxu0 0.0
    %1374 = vmatprep.subr.mxu0 0.0
    %1375 = vmatpush2.msra.mxu0 0.0
    %1376 = vmatprep.subr.mxu0 0.0
    %1377 = vmatpush2.msra.mxu0 0.0
    %1378 = vmatprep.subr.mxu0 0.0
    %1379 = vmatpush2.msra.mxu0 0.0
    %1380 = vmatprep.mubr.f32.mxu0 0.0
    %1381 = vmatmul.mubr.f32.gmra.mxu0 %v1269
    %v1382 = vpop.f32.mrf.mxu0
    %v1383 = vadd.f32 %v1266, %v1382
    %v1384 = vpop.f32.mrf.mxu0
    %1385 = vmatprep.mubr.f32.mxu0 0.0
    %1386 = vmatmul.mubr.f32.gmra.mxu0 %v1272
    %v1387 = vpop.f32.mrf.mxu0
    %v1388 = vadd.f32 %v1266, %v1387
    %v1389 = vpop.f32.mrf.mxu0
    %1390 = vmatprep.mubr.f32.mxu0 0.0
    %1391 = vmatmul.mubr.f32.gmra.mxu0 %v1275
    %v1392 = vpop.f32.mrf.mxu0
    %v1393 = vadd.f32 %v1266, %v1392
    %v1394 = vpop.f32.mrf.mxu0
    %1395 = vmatprep.mubr.f32.mxu0 0.0
    %1396 = vmatmul.mubr.f32.gmra.mxu0 %v1278
    %v1397 = vpop.f32.mrf.mxu0
    %v1398 = vadd.f32 %v1266, %v1397
    %v1399 = vpop.f32.mrf.mxu0
    %1400 = vmatprep.mubr.f32.mxu0 0.0
    %1401 = vmatmul.mubr.f32.gmra.mxu0 %v1281
    %v1402 = vpop.f32.mrf.mxu0
    %v1403 = vadd.f32 %v1266, %v1402
    %v1404 = vpop.f32.mrf.mxu0
    %1405 = vmatprep.mubr.f32.mxu0 0.0
    %1406 = vmatmul.mubr.f32.gmra.mxu0 %v1284
    %v1407 = vpop.f32.mrf.mxu0
    %v1408 = vadd.f32 %v1266, %v1407
    %v1409 = vpop.f32.mrf.mxu0
    %1410 = vmatprep.mubr.f32.mxu0 0.0
    %1411 = vmatmul.mubr.f32.gmra.mxu0 %v1287
    %v1412 = vpop.f32.mrf.mxu0
    %v1413 = vadd.f32 %v1266, %v1412
    %v1414 = vpop.f32.mrf.mxu0
    %1415 = vmatprep.mubr.f32.mxu0 0.0
    %1416 = vmatmul.mubr.f32.gmra.mxu0 %v1290
    %v1417 = vpop.f32.mrf.mxu0
    %v1418 = vadd.f32 %v1266, %v1417
    %v1419 = vpop.f32.mrf.mxu0
    %1420 = vmatprep.mubr.f32.mxu0 0.0
    %1421 = vmatmul.mubr.f32.gmra.mxu0 %v1293
    %v1422 = vpop.f32.mrf.mxu0
    %v1423 = vadd.f32 %v1266, %v1422
    %v1424 = vpop.f32.mrf.mxu0
    %1425 = vmatprep.mubr.f32.mxu0 0.0
    %1426 = vmatmul.mubr.f32.gmra.mxu0 %v1296
    %v1427 = vpop.f32.mrf.mxu0
    %v1428 = vadd.f32 %v1266, %v1427
    %v1429 = vpop.f32.mrf.mxu0
    %1430 = vmatprep.mubr.f32.mxu0 0.0
    %1431 = vmatmul.mubr.f32.gmra.mxu0 %v1299
    %v1432 = vpop.f32.mrf.mxu0
    %v1433 = vadd.f32 %v1266, %v1432
    %v1434 = vpop.f32.mrf.mxu0
    %1435 = vmatprep.mubr.f32.mxu0 0.0
    %1436 = vmatmul.mubr.f32.gmra.mxu0 %v1302
    %v1437 = vpop.f32.mrf.mxu0
    %v1438 = vadd.f32 %v1266, %v1437
    %v1439 = vpop.f32.mrf.mxu0
    %1440 = vmatprep.mubr.f32.mxu0 0.0
    %1441 = vmatmul.mubr.f32.gmra.mxu0 %v1305
    %v1442 = vpop.f32.mrf.mxu0
    %v1443 = vadd.f32 %v1266, %v1442
    %v1444 = vpop.f32.mrf.mxu0
    %1445 = vmatprep.mubr.f32.mxu0 0.0
    %1446 = vmatmul.mubr.f32.gmra.mxu0 %v1308
    %v1447 = vpop.f32.mrf.mxu0
    %v1448 = vadd.f32 %v1266, %v1447
    %v1449 = vpop.f32.mrf.mxu0
    %1450 = vmatprep.mubr.f32.mxu0 0.0
    %1451 = vmatmul.mubr.f32.gmra.mxu0 %v1311
    %v1452 = vpop.f32.mrf.mxu0
    %v1453 = vadd.f32 %v1266, %v1452
    %v1454 = vpop.f32.mrf.mxu0
    %1455 = vmatprep.mubr.f32.mxu0 0.0
    %1456 = vmatmul.mubr.f32.gmra.mxu0 %v1314
    %v1457 = vpop.f32.mrf.mxu0
    %v1458 = vadd.f32 %v1266, %v1457
    %v1459 = vpop.f32.mrf.mxu0
    %1460 = vdwg.mxu0
    %v1461 = vld [vmem:[%s97] sm:$0xff]
    %v1462 = vld [vmem:[%s97 + $0x8] sm:$0xff]
    %v1463 = vld [vmem:[%s97 + $0x10] sm:$0xff]
    %v1464 = vld [vmem:[%s97 + $0x18] sm:$0xff]
    %v1465 = vld [vmem:[#allocation11] sm:$0x1]
    %v1466 = vmul.f32 %v1383, 0.35355338
    %v1467 = vmul.f32 %v1388, 0.35355338
    %v1468 = vmul.f32 %v1393, 0.35355338
    %v1469 = vmul.f32 %v1398, 0.35355338
    %v1470 = vmul.f32 %v1403, 0.35355338
    %v1471 = vmul.f32 %v1408, 0.35355338
    %v1472 = vmul.f32 %v1413, 0.35355338
    %v1473 = vmul.f32 %v1418, 0.35355338
    %1482 = vrot.lane.b32.xlu0 %v1383, 96
    %v1483 = vpop.permute.xlu0 %1482
    %1484 = vrot.lane.b32.xlu0 %v1388, 96
    %v1485 = vpop.permute.xlu0 %1484
    %1486 = vrot.lane.b32.xlu0 %v1393, 96
    %v1487 = vpop.permute.xlu0 %1486
    %1488 = vrot.lane.b32.xlu0 %v1398, 96
    %v1489 = vpop.permute.xlu0 %1488
    %1490 = vrot.lane.b32.xlu0 %v1403, 96
    %v1491 = vpop.permute.xlu0 %1490
    %1492 = vrot.lane.b32.xlu0 %v1408, 96
    %v1493 = vpop.permute.xlu0 %1492
    %1494 = vrot.lane.b32.xlu0 %v1413, 96
    %v1495 = vpop.permute.xlu0 %1494
    %1496 = vrot.lane.b32.xlu0 %v1418, 96
    %v1497 = vpop.permute.xlu0 %1496
    %vm1498 = vcmask 64512
    %v1500 = vsel %vm1498, %v1466, 0
    %v1503 = vsel %vm1498, %v1467, 0
    %v1506 = vsel %vm1498, %v1468, 0
    %v1509 = vsel %vm1498, %v1469, 0
    %v1512 = vsel %vm1498, %v1470, 0
    %v1515 = vsel %vm1498, %v1471, 0
    %v1518 = vsel %vm1498, %v1472, 0
    %v1521 = vsel %vm1498, %v1473, 0
    %v1523 = vsel %vm1498, %v1483, 0
    %v1525 = vsel %vm1498, %v1485, 0
    %v1527 = vsel %vm1498, %v1487, 0
    %v1529 = vsel %vm1498, %v1489, 0
    %v1531 = vsel %vm1498, %v1491, 0
    %v1533 = vsel %vm1498, %v1493, 0
    %v1535 = vsel %vm1498, %v1495, 0
    %v1537 = vsel %vm1498, %v1497, 0
    %1539 = vmatprep.subr.mxu0 0.0
    %1540 = vmatpush1.xpose.msra.mxu0 0.0
    %1541 = vmatprep.subr.mxu0 0.0
    %1542 = vmatpush1.xpose.msra.mxu0 0.0
    %1543 = vmatprep.subr.mxu0 0.0
    %1544 = vmatpush1.xpose.msra.mxu0 0.0
    %1545 = vmatprep.subr.mxu0 0.0
    %1546 = vmatpush1.xpose.msra.mxu0 0.0
    %1547 = vmatprep.subr.mxu0 0.0
    %1548 = vmatpush1.xpose.msra.mxu0 0.0
    %1549 = vmatprep.subr.mxu0 0.0
    %1550 = vmatpush1.xpose.msra.mxu0 0.0
    %1551 = vmatprep.subr.mxu0 0.0
    %1552 = vmatpush1.xpose.msra.mxu0 0.0
    %1553 = vmatprep.subr.mxu0 0.0
    %1554 = vmatpush1.xpose.msra.mxu0 0.0
    %1555 = vmatprep.subr.mxu0 0.0
    %1556 = vmatpush1.xpose.msra.mxu0 %v1537
    %1557 = vmatprep.subr.mxu0 0.0
    %1558 = vmatpush1.xpose.msra.mxu0 %v1535
    %1559 = vmatprep.subr.mxu0 0.0
    %1560 = vmatpush1.xpose.msra.mxu0 %v1533
    %1561 = vmatprep.subr.mxu0 0.0
    %1562 = vmatpush1.xpose.msra.mxu0 %v1531
    %1563 = vmatprep.subr.mxu0 0.0
    %1564 = vmatpush1.xpose.msra.mxu0 %v1529
    %1565 = vmatprep.subr.mxu0 0.0
    %1566 = vmatpush1.xpose.msra.mxu0 %v1527
    %1567 = vmatprep.subr.mxu0 0.0
    %1568 = vmatpush1.xpose.msra.mxu0 %v1525
    %1569 = vmatprep.subr.mxu0 0.0
    %1570 = vmatpush1.xpose.msra.mxu0 %v1523
    %1571 = vmatprep.subr.mxu0 0.0
    %1572 = vmatpush2.xpose.msra.mxu0 0.0
    %1573 = vmatprep.subr.mxu0 0.0
    %1574 = vmatpush2.xpose.msra.mxu0 0.0
    %1575 = vmatprep.subr.mxu0 0.0
    %1576 = vmatpush2.xpose.msra.mxu0 0.0
    %1577 = vmatprep.subr.mxu0 0.0
    %1578 = vmatpush2.xpose.msra.mxu0 0.0
    %1579 = vmatprep.subr.mxu0 0.0
    %1580 = vmatpush2.xpose.msra.mxu0 0.0
    %1581 = vmatprep.subr.mxu0 0.0
    %1582 = vmatpush2.xpose.msra.mxu0 0.0
    %1583 = vmatprep.subr.mxu0 0.0
    %1584 = vmatpush2.xpose.msra.mxu0 0.0
    %1585 = vmatprep.subr.mxu0 0.0
    %1586 = vmatpush2.xpose.msra.mxu0 0.0
    %1587 = vmatprep.subr.mxu0 0.0
    %1588 = vmatpush2.xpose.msra.mxu0 0.0
    %1589 = vmatprep.subr.mxu0 0.0
    %1590 = vmatpush2.xpose.msra.mxu0 0.0
    %1591 = vmatprep.subr.mxu0 0.0
    %1592 = vmatpush2.xpose.msra.mxu0 0.0
    %1593 = vmatprep.subr.mxu0 0.0
    %1594 = vmatpush2.xpose.msra.mxu0 0.0
    %1595 = vmatprep.subr.mxu0 0.0
    %1596 = vmatpush2.xpose.msra.mxu0 0.0
    %1597 = vmatprep.subr.mxu0 0.0
    %1598 = vmatpush2.xpose.msra.mxu0 0.0
    %1599 = vmatprep.subr.mxu0 0.0
    %1600 = vmatpush2.xpose.msra.mxu0 0.0
    %1601 = vmatprep.subr.mxu0 0.0
    %1602 = vmatpush2.xpose.msra.mxu0 0.0
    %1603 = vmatprep.mubr.f32.mxu0 0.0
    %1604 = vmatmul.mubr.f32.gmra.mxu0 %v1500
    %v1605 = vpop.f32.mrf.mxu0
    %v1606 = vadd.f32 0.0, %v1605
    %v1607 = vpop.f32.mrf.mxu0
    %1608 = vmatprep.mubr.f32.mxu0 0.0
    %1609 = vmatmul.mubr.f32.gmra.mxu0 %v1503
    %v1610 = vpop.f32.mrf.mxu0
    %v1611 = vadd.f32 0.0, %v1610
    %v1612 = vpop.f32.mrf.mxu0
    %1613 = vmatprep.mubr.f32.mxu0 0.0
    %1614 = vmatmul.mubr.f32.gmra.mxu0 %v1506
    %v1615 = vpop.f32.mrf.mxu0
    %v1616 = vadd.f32 0.0, %v1615
    %v1617 = vpop.f32.mrf.mxu0
    %1618 = vmatprep.mubr.f32.mxu0 0.0
    %1619 = vmatmul.mubr.f32.gmra.mxu0 %v1509
    %v1620 = vpop.f32.mrf.mxu0
    %v1621 = vadd.f32 0.0, %v1620
    %v1622 = vpop.f32.mrf.mxu0
    %1623 = vmatprep.mubr.f32.mxu0 0.0
    %1624 = vmatmul.mubr.f32.gmra.mxu0 %v1512
    %v1625 = vpop.f32.mrf.mxu0
    %v1626 = vadd.f32 0.0, %v1625
    %v1627 = vpop.f32.mrf.mxu0
    %1628 = vmatprep.mubr.f32.mxu0 0.0
    %1629 = vmatmul.mubr.f32.gmra.mxu0 %v1515
    %v1630 = vpop.f32.mrf.mxu0
    %v1631 = vadd.f32 0.0, %v1630
    %v1632 = vpop.f32.mrf.mxu0
    %1633 = vmatprep.mubr.f32.mxu0 0.0
    %1634 = vmatmul.mubr.f32.gmra.mxu0 %v1518
    %v1635 = vpop.f32.mrf.mxu0
    %v1636 = vadd.f32 0.0, %v1635
    %v1637 = vpop.f32.mrf.mxu0
    %1638 = vmatprep.mubr.f32.mxu0 0.0
    %1639 = vmatmul.mubr.f32.gmra.mxu0 %v1521
    %v1640 = vpop.f32.mrf.mxu0
    %v1641 = vadd.f32 0.0, %v1640
    %v1642 = vpop.f32.mrf.mxu0
    %1643 = vdwg.mxu0
    %vm1644 = vcmask 523264
    %v1645 = vsel %vm1644, %v1606, -inf
    %1646 = vmax.xlane.f32.xlu0 %v1645
    %v1647 = vpop.xlane.xlu0 %1646
    %v1648 = vsel %vm1644, %v1611, -inf
    %1649 = vmax.xlane.f32.xlu0 %v1648
    %v1650 = vpop.xlane.xlu0 %1649
    %v1651 = vsel %vm1644, %v1616, -inf
    %1652 = vmax.xlane.f32.xlu0 %v1651
    %v1653 = vpop.xlane.xlu0 %1652
    %v1654 = vsel %vm1644, %v1621, -inf
    %1655 = vmax.xlane.f32.xlu0 %v1654
    %v1656 = vpop.xlane.xlu0 %1655
    %v1657 = vsel %vm1644, %v1626, -inf
    %1658 = vmax.xlane.f32.xlu0 %v1657
    %v1659 = vpop.xlane.xlu0 %1658
    %v1660 = vsel %vm1644, %v1631, -inf
    %1661 = vmax.xlane.f32.xlu0 %v1660
    %v1662 = vpop.xlane.xlu0 %1661
    %v1663 = vsel %vm1644, %v1636, -inf
    %1664 = vmax.xlane.f32.xlu0 %v1663
    %v1665 = vpop.xlane.xlu0 %1664
    %v1666 = vsel %vm1644, %v1641, -inf
    %1667 = vmax.xlane.f32.xlu0 %v1666
    %v1668 = vpop.xlane.xlu0 %1667
    %v1669 = vsub.f32 %v1606, %v1647
    %v1670 = vsub.f32 %v1611, %v1650
    %v1671 = vsub.f32 %v1616, %v1653
    %v1672 = vsub.f32 %v1621, %v1656
    %v1673 = vsub.f32 %v1626, %v1659
    %v1674 = vsub.f32 %v1631, %v1662
    %v1675 = vsub.f32 %v1636, %v1665
    %v1676 = vsub.f32 %v1641, %v1668
    %v1677 = vmul.f32 %v1669, 1.442695
    %v1678 = vpow.pop %v1677
    %v1679 = vmul.f32 %v1670, 1.442695
    %v1680 = vpow.pop %v1679
    %v1681 = vmul.f32 %v1671, 1.442695
    %v1682 = vpow.pop %v1681
    %v1683 = vmul.f32 %v1672, 1.442695
    %v1684 = vpow.pop %v1683
    %v1685 = vmul.f32 %v1673, 1.442695
    %v1686 = vpow.pop %v1685
    %v1687 = vmul.f32 %v1674, 1.442695
    %v1688 = vpow.pop %v1687
    %v1689 = vmul.f32 %v1675, 1.442695
    %v1690 = vpow.pop %v1689
    %v1691 = vmul.f32 %v1676, 1.442695
    %v1692 = vpow.pop %v1691
    %v1693 = vsel %vm1644, %v1678, 0.0
    %1694 = vadd.xlane.f32.xlu0 %v1693
    %v1695 = vpop.xlane.xlu0 %1694
    %v1696 = vsel %vm1644, %v1680, 0.0
    %1697 = vadd.xlane.f32.xlu0 %v1696
    %v1698 = vpop.xlane.xlu0 %1697
    %v1699 = vsel %vm1644, %v1682, 0.0
    %1700 = vadd.xlane.f32.xlu0 %v1699
    %v1701 = vpop.xlane.xlu0 %1700
    %v1702 = vsel %vm1644, %v1684, 0.0
    %1703 = vadd.xlane.f32.xlu0 %v1702
    %v1704 = vpop.xlane.xlu0 %1703
    %v1705 = vsel %vm1644, %v1686, 0.0
    %1706 = vadd.xlane.f32.xlu0 %v1705
    %v1707 = vpop.xlane.xlu0 %1706
    %v1708 = vsel %vm1644, %v1688, 0.0
    %1709 = vadd.xlane.f32.xlu0 %v1708
    %v1710 = vpop.xlane.xlu0 %1709
    %v1711 = vsel %vm1644, %v1690, 0.0
    %1712 = vadd.xlane.f32.xlu0 %v1711
    %v1713 = vpop.xlane.xlu0 %1712
    %v1714 = vsel %vm1644, %v1692, 0.0
    %1715 = vadd.xlane.f32.xlu0 %v1714
    %v1716 = vpop.xlane.xlu0 %1715
    %v1717 = vrcp.pop %v1695
    %v1718 = vmul.f32 %v1678, %v1717
    %v1719 = vrcp.pop %v1698
    %v1720 = vmul.f32 %v1680, %v1719
    %v1721 = vrcp.pop %v1701
    %v1722 = vmul.f32 %v1682, %v1721
    %v1723 = vrcp.pop %v1704
    %v1724 = vmul.f32 %v1684, %v1723
    %v1725 = vrcp.pop %v1707
    %v1726 = vmul.f32 %v1686, %v1725
    %v1727 = vrcp.pop %v1710
    %v1728 = vmul.f32 %v1688, %v1727
    %v1729 = vrcp.pop %v1713
    %v1730 = vmul.f32 %v1690, %v1729
    %v1731 = vrcp.pop %v1716
    %v1732 = vmul.f32 %v1692, %v1731
    %1733 = vrot.lane.b32.xlu0 %v1383, 64
    %v1734 = vpop.permute.xlu0 %1733
    %1735 = vrot.lane.b32.xlu0 %v1388, 64
    %v1736 = vpop.permute.xlu0 %1735
    %1737 = vrot.lane.b32.xlu0 %v1393, 64
    %v1738 = vpop.permute.xlu0 %1737
    %1739 = vrot.lane.b32.xlu0 %v1398, 64
    %v1740 = vpop.permute.xlu0 %1739
    %1741 = vrot.lane.b32.xlu0 %v1403, 64
    %v1742 = vpop.permute.xlu0 %1741
    %1743 = vrot.lane.b32.xlu0 %v1408, 64
    %v1744 = vpop.permute.xlu0 %1743
    %1745 = vrot.lane.b32.xlu0 %v1413, 64
    %v1746 = vpop.permute.xlu0 %1745
    %1747 = vrot.lane.b32.xlu0 %v1418, 64
    %v1748 = vpop.permute.xlu0 %1747
    %v1758 = vsel %vm1644, %v1718, 0
    %v1761 = vsel %vm1644, %v1720, 0
    %v1764 = vsel %vm1644, %v1722, 0
    %v1767 = vsel %vm1644, %v1724, 0
    %v1770 = vsel %vm1644, %v1726, 0
    %v1773 = vsel %vm1644, %v1728, 0
    %v1776 = vsel %vm1644, %v1730, 0
    %v1779 = vsel %vm1644, %v1732, 0
    %1781 = vmatprep.subr.mxu0 0.0
    %1782 = vmatpush1.msra.mxu0 0.0
    %1783 = vmatprep.subr.mxu0 0.0
    %1784 = vmatpush1.msra.mxu0 0.0
    %1785 = vmatprep.subr.mxu0 0.0
    %1786 = vmatpush1.msra.mxu0 0.0
    %1787 = vmatprep.subr.mxu0 0.0
    %1788 = vmatpush1.msra.mxu0 0.0
    %1789 = vmatprep.subr.mxu0 0.0
    %1790 = vmatpush1.msra.mxu0 0.0
    %1791 = vmatprep.subr.mxu0 0.0
    %1792 = vmatpush1.msra.mxu0 0.0
    %1793 = vmatprep.subr.mxu0 0.0
    %1794 = vmatpush1.msra.mxu0 0.0
    %1795 = vmatprep.subr.mxu0 0.0
    %1796 = vmatpush1.msra.mxu0 0.0
    %1797 = vmatprep.subr.mxu0 0.0
    %1798 = vmatpush1.msra.mxu0 %v1748
    %1799 = vmatprep.subr.mxu0 0.0
    %1800 = vmatpush1.msra.mxu0 %v1746
    %1801 = vmatprep.subr.mxu0 0.0
    %1802 = vmatpush1.msra.mxu0 %v1744
    %1803 = vmatprep.subr.mxu0 0.0
    %1804 = vmatpush1.msra.mxu0 %v1742
    %1805 = vmatprep.subr.mxu0 0.0
    %1806 = vmatpush1.msra.mxu0 %v1740
    %1807 = vmatprep.subr.mxu0 0.0
    %1808 = vmatpush1.msra.mxu0 %v1738
    %1809 = vmatprep.subr.mxu0 0.0
    %1810 = vmatpush1.msra.mxu0 %v1736
    %1811 = vmatprep.subr.mxu0 0.0
    %1812 = vmatpush1.msra.mxu0 %v1734
    %1813 = vmatprep.subr.mxu0 0.0
    %1814 = vmatpush2.msra.mxu0 0.0
    %1815 = vmatprep.subr.mxu0 0.0
    %1816 = vmatpush2.msra.mxu0 0.0
    %1817 = vmatprep.subr.mxu0 0.0
    %1818 = vmatpush2.msra.mxu0 0.0
    %1819 = vmatprep.subr.mxu0 0.0
    %1820 = vmatpush2.msra.mxu0 0.0
    %1821 = vmatprep.subr.mxu0 0.0
    %1822 = vmatpush2.msra.mxu0 0.0
    %1823 = vmatprep.subr.mxu0 0.0
    %1824 = vmatpush2.msra.mxu0 0.0
    %1825 = vmatprep.subr.mxu0 0.0
    %1826 = vmatpush2.msra.mxu0 0.0
    %1827 = vmatprep.subr.mxu0 0.0
    %1828 = vmatpush2.msra.mxu0 0.0
    %1829 = vmatprep.subr.mxu0 0.0
    %1830 = vmatpush2.msra.mxu0 0.0
    %1831 = vmatprep.subr.mxu0 0.0
    %1832 = vmatpush2.msra.mxu0 0.0
    %1833 = vmatprep.subr.mxu0 0.0
    %1834 = vmatpush2.msra.mxu0 0.0
    %1835 = vmatprep.subr.mxu0 0.0
    %1836 = vmatpush2.msra.mxu0 0.0
    %1837 = vmatprep.subr.mxu0 0.0
    %1838 = vmatpush2.msra.mxu0 0.0
    %1839 = vmatprep.subr.mxu0 0.0
    %1840 = vmatpush2.msra.mxu0 0.0
    %1841 = vmatprep.subr.mxu0 0.0
    %1842 = vmatpush2.msra.mxu0 0.0
    %1843 = vmatprep.subr.mxu0 0.0
    %1844 = vmatpush2.msra.mxu0 0.0
    %1845 = vmatprep.mubr.f32.mxu0 0.0
    %1846 = vmatmul.mubr.f32.gmra.mxu0 %v1758
    %v1847 = vpop.f32.mrf.mxu0
    %v1848 = vadd.f32 0.0, %v1847
    %v1849 = vpop.f32.mrf.mxu0
    %1850 = vmatprep.mubr.f32.mxu0 0.0
    %1851 = vmatmul.mubr.f32.gmra.mxu0 %v1761
    %v1852 = vpop.f32.mrf.mxu0
    %v1853 = vadd.f32 0.0, %v1852
    %v1854 = vpop.f32.mrf.mxu0
    %1855 = vmatprep.mubr.f32.mxu0 0.0
    %1856 = vmatmul.mubr.f32.gmra.mxu0 %v1764
    %v1857 = vpop.f32.mrf.mxu0
    %v1858 = vadd.f32 0.0, %v1857
    %v1859 = vpop.f32.mrf.mxu0
    %1860 = vmatprep.mubr.f32.mxu0 0.0
    %1861 = vmatmul.mubr.f32.gmra.mxu0 %v1767
    %v1862 = vpop.f32.mrf.mxu0
    %v1863 = vadd.f32 0.0, %v1862
    %v1864 = vpop.f32.mrf.mxu0
    %1865 = vmatprep.mubr.f32.mxu0 0.0
    %1866 = vmatmul.mubr.f32.gmra.mxu0 %v1770
    %v1867 = vpop.f32.mrf.mxu0
    %v1868 = vadd.f32 0.0, %v1867
    %v1869 = vpop.f32.mrf.mxu0
    %1870 = vmatprep.mubr.f32.mxu0 0.0
    %1871 = vmatmul.mubr.f32.gmra.mxu0 %v1773
    %v1872 = vpop.f32.mrf.mxu0
    %v1873 = vadd.f32 0.0, %v1872
    %v1874 = vpop.f32.mrf.mxu0
    %1875 = vmatprep.mubr.f32.mxu0 0.0
    %1876 = vmatmul.mubr.f32.gmra.mxu0 %v1776
    %v1877 = vpop.f32.mrf.mxu0
    %v1878 = vadd.f32 0.0, %v1877
    %v1879 = vpop.f32.mrf.mxu0
    %1880 = vmatprep.mubr.f32.mxu0 0.0
    %1881 = vmatmul.mubr.f32.gmra.mxu0 %v1779
    %v1882 = vpop.f32.mrf.mxu0
    %v1883 = vadd.f32 0.0, %v1882
    %v1884 = vpop.f32.mrf.mxu0
    %1885 = vdwg.mxu0
    %1886 = vrot.lane.b32.xlu0 %v1466, 120
    %v1887 = vpop.permute.xlu0 %1886
    %1888 = vrot.lane.b32.xlu0 %v1467, 120
    %v1889 = vpop.permute.xlu0 %1888
    %1890 = vrot.lane.b32.xlu0 %v1468, 120
    %v1891 = vpop.permute.xlu0 %1890
    %1892 = vrot.lane.b32.xlu0 %v1469, 120
    %v1893 = vpop.permute.xlu0 %1892
    %1894 = vrot.lane.b32.xlu0 %v1470, 120
    %v1895 = vpop.permute.xlu0 %1894
    %1896 = vrot.lane.b32.xlu0 %v1471, 120
    %v1897 = vpop.permute.xlu0 %1896
    %1898 = vrot.lane.b32.xlu0 %v1472, 120
    %v1899 = vpop.permute.xlu0 %1898
    %1900 = vrot.lane.b32.xlu0 %v1473, 120
    %v1901 = vpop.permute.xlu0 %1900
    %1902 = vrot.lane.b32.xlu0 %v1383, 88
    %v1903 = vpop.permute.xlu0 %1902
    %1904 = vrot.lane.b32.xlu0 %v1388, 88
    %v1905 = vpop.permute.xlu0 %1904
    %1906 = vrot.lane.b32.xlu0 %v1393, 88
    %v1907 = vpop.permute.xlu0 %1906
    %1908 = vrot.lane.b32.xlu0 %v1398, 88
    %v1909 = vpop.permute.xlu0 %1908
    %1910 = vrot.lane.b32.xlu0 %v1403, 88
    %v1911 = vpop.permute.xlu0 %1910
    %1912 = vrot.lane.b32.xlu0 %v1408, 88
    %v1913 = vpop.permute.xlu0 %1912
    %1914 = vrot.lane.b32.xlu0 %v1413, 88
    %v1915 = vpop.permute.xlu0 %1914
    %1916 = vrot.lane.b32.xlu0 %v1418, 88
    %v1917 = vpop.permute.xlu0 %1916
    %v1918 = vsel %vm1498, %v1887, 0
    %v1920 = vsel %vm1498, %v1889, 0
    %v1922 = vsel %vm1498, %v1891, 0
    %v1924 = vsel %vm1498, %v1893, 0
    %v1926 = vsel %vm1498, %v1895, 0
    %v1928 = vsel %vm1498, %v1897, 0
    %v1930 = vsel %vm1498, %v1899, 0
    %v1932 = vsel %vm1498, %v1901, 0
    %v1934 = vsel %vm1498, %v1903, 0
    %v1936 = vsel %vm1498, %v1905, 0
    %v1938 = vsel %vm1498, %v1907, 0
    %v1940 = vsel %vm1498, %v1909, 0
    %v1942 = vsel %vm1498, %v1911, 0
    %v1944 = vsel %vm1498, %v1913, 0
    %v1946 = vsel %vm1498, %v1915, 0
    %v1948 = vsel %vm1498, %v1917, 0
    %1950 = vmatprep.subr.mxu0 0.0
    %1951 = vmatpush1.xpose.msra.mxu0 0.0
    %1952 = vmatprep.subr.mxu0 0.0
    %1953 = vmatpush1.xpose.msra.mxu0 0.0
    %1954 = vmatprep.subr.mxu0 0.0
    %1955 = vmatpush1.xpose.msra.mxu0 0.0
    %1956 = vmatprep.subr.mxu0 0.0
    %1957 = vmatpush1.xpose.msra.mxu0 0.0
    %1958 = vmatprep.subr.mxu0 0.0
    %1959 = vmatpush1.xpose.msra.mxu0 0.0
    %1960 = vmatprep.subr.mxu0 0.0
    %1961 = vmatpush1.xpose.msra.mxu0 0.0
    %1962 = vmatprep.subr.mxu0 0.0
    %1963 = vmatpush1.xpose.msra.mxu0 0.0
    %1964 = vmatprep.subr.mxu0 0.0
    %1965 = vmatpush1.xpose.msra.mxu0 0.0
    %1966 = vmatprep.subr.mxu0 0.0
    %1967 = vmatpush1.xpose.msra.mxu0 %v1948
    %1968 = vmatprep.subr.mxu0 0.0
    %1969 = vmatpush1.xpose.msra.mxu0 %v1946
    %1970 = vmatprep.subr.mxu0 0.0
    %1971 = vmatpush1.xpose.msra.mxu0 %v1944
    %1972 = vmatprep.subr.mxu0 0.0
    %1973 = vmatpush1.xpose.msra.mxu0 %v1942
    %1974 = vmatprep.subr.mxu0 0.0
    %1975 = vmatpush1.xpose.msra.mxu0 %v1940
    %1976 = vmatprep.subr.mxu0 0.0
    %1977 = vmatpush1.xpose.msra.mxu0 %v1938
    %1978 = vmatprep.subr.mxu0 0.0
    %1979 = vmatpush1.xpose.msra.mxu0 %v1936
    %1980 = vmatprep.subr.mxu0 0.0
    %1981 = vmatpush1.xpose.msra.mxu0 %v1934
    %1982 = vmatprep.subr.mxu0 0.0
    %1983 = vmatpush2.xpose.msra.mxu0 0.0
    %1984 = vmatprep.subr.mxu0 0.0
    %1985 = vmatpush2.xpose.msra.mxu0 0.0
    %1986 = vmatprep.subr.mxu0 0.0
    %1987 = vmatpush2.xpose.msra.mxu0 0.0
    %1988 = vmatprep.subr.mxu0 0.0
    %1989 = vmatpush2.xpose.msra.mxu0 0.0
    %1990 = vmatprep.subr.mxu0 0.0
    %1991 = vmatpush2.xpose.msra.mxu0 0.0
    %1992 = vmatprep.subr.mxu0 0.0
    %1993 = vmatpush2.xpose.msra.mxu0 0.0
    %1994 = vmatprep.subr.mxu0 0.0
    %1995 = vmatpush2.xpose.msra.mxu0 0.0
    %1996 = vmatprep.subr.mxu0 0.0
    %1997 = vmatpush2.xpose.msra.mxu0 0.0
    %1998 = vmatprep.subr.mxu0 0.0
    %1999 = vmatpush2.xpose.msra.mxu0 0.0
    %2000 = vmatprep.subr.mxu0 0.0
    %2001 = vmatpush2.xpose.msra.mxu0 0.0
    %2002 = vmatprep.subr.mxu0 0.0
    %2003 = vmatpush2.xpose.msra.mxu0 0.0
    %2004 = vmatprep.subr.mxu0 0.0
    %2005 = vmatpush2.xpose.msra.mxu0 0.0
    %2006 = vmatprep.subr.mxu0 0.0
    %2007 = vmatpush2.xpose.msra.mxu0 0.0
    %2008 = vmatprep.subr.mxu0 0.0
    %2009 = vmatpush2.xpose.msra.mxu0 0.0
    %2010 = vmatprep.subr.mxu0 0.0
    %2011 = vmatpush2.xpose.msra.mxu0 0.0
    %2012 = vmatprep.subr.mxu0 0.0
    %2013 = vmatpush2.xpose.msra.mxu0 0.0
    %2014 = vmatprep.mubr.f32.mxu0 0.0
    %2015 = vmatmul.mubr.f32.gmra.mxu0 %v1918
    %v2016 = vpop.f32.mrf.mxu0
    %v2017 = vadd.f32 0.0, %v2016
    %v2018 = vpop.f32.mrf.mxu0
    %2019 = vmatprep.mubr.f32.mxu0 0.0
    %2020 = vmatmul.mubr.f32.gmra.mxu0 %v1920
    %v2021 = vpop.f32.mrf.mxu0
    %v2022 = vadd.f32 0.0, %v2021
    %v2023 = vpop.f32.mrf.mxu0
    %2024 = vmatprep.mubr.f32.mxu0 0.0
    %2025 = vmatmul.mubr.f32.gmra.mxu0 %v1922
    %v2026 = vpop.f32.mrf.mxu0
    %v2027 = vadd.f32 0.0, %v2026
    %v2028 = vpop.f32.mrf.mxu0
    %2029 = vmatprep.mubr.f32.mxu0 0.0
    %2030 = vmatmul.mubr.f32.gmra.mxu0 %v1924
    %v2031 = vpop.f32.mrf.mxu0
    %v2032 = vadd.f32 0.0, %v2031
    %v2033 = vpop.f32.mrf.mxu0
    %2034 = vmatprep.mubr.f32.mxu0 0.0
    %2035 = vmatmul.mubr.f32.gmra.mxu0 %v1926
    %v2036 = vpop.f32.mrf.mxu0
    %v2037 = vadd.f32 0.0, %v2036
    %v2038 = vpop.f32.mrf.mxu0
    %2039 = vmatprep.mubr.f32.mxu0 0.0
    %2040 = vmatmul.mubr.f32.gmra.mxu0 %v1928
    %v2041 = vpop.f32.mrf.mxu0
    %v2042 = vadd.f32 0.0, %v2041
    %v2043 = vpop.f32.mrf.mxu0
    %2044 = vmatprep.mubr.f32.mxu0 0.0
    %2045 = vmatmul.mubr.f32.gmra.mxu0 %v1930
    %v2046 = vpop.f32.mrf.mxu0
    %v2047 = vadd.f32 0.0, %v2046
    %v2048 = vpop.f32.mrf.mxu0
    %2049 = vmatprep.mubr.f32.mxu0 0.0
    %2050 = vmatmul.mubr.f32.gmra.mxu0 %v1932
    %v2051 = vpop.f32.mrf.mxu0
    %v2052 = vadd.f32 0.0, %v2051
    %v2053 = vpop.f32.mrf.mxu0
    %2054 = vdwg.mxu0
    %v2055 = vsel %vm1644, %v2017, -inf
    %2056 = vmax.xlane.f32.xlu0 %v2055
    %v2057 = vpop.xlane.xlu0 %2056
    %v2058 = vsel %vm1644, %v2022, -inf
    %2059 = vmax.xlane.f32.xlu0 %v2058
    %v2060 = vpop.xlane.xlu0 %2059
    %v2061 = vsel %vm1644, %v2027, -inf
    %2062 = vmax.xlane.f32.xlu0 %v2061
    %v2063 = vpop.xlane.xlu0 %2062
    %v2064 = vsel %vm1644, %v2032, -inf
    %2065 = vmax.xlane.f32.xlu0 %v2064
    %v2066 = vpop.xlane.xlu0 %2065
    %v2067 = vsel %vm1644, %v2037, -inf
    %2068 = vmax.xlane.f32.xlu0 %v2067
    %v2069 = vpop.xlane.xlu0 %2068
    %v2070 = vsel %vm1644, %v2042, -inf
    %2071 = vmax.xlane.f32.xlu0 %v2070
    %v2072 = vpop.xlane.xlu0 %2071
    %v2073 = vsel %vm1644, %v2047, -inf
    %2074 = vmax.xlane.f32.xlu0 %v2073
    %v2075 = vpop.xlane.xlu0 %2074
    %v2076 = vsel %vm1644, %v2052, -inf
    %2077 = vmax.xlane.f32.xlu0 %v2076
    %v2078 = vpop.xlane.xlu0 %2077
    %v2079 = vsub.f32 %v2017, %v2057
    %v2080 = vsub.f32 %v2022, %v2060
    %v2081 = vsub.f32 %v2027, %v2063
    %v2082 = vsub.f32 %v2032, %v2066
    %v2083 = vsub.f32 %v2037, %v2069
    %v2084 = vsub.f32 %v2042, %v2072
    %v2085 = vsub.f32 %v2047, %v2075
    %v2086 = vsub.f32 %v2052, %v2078
    %v2087 = vmul.f32 %v2079, 1.442695
    %v2088 = vpow.pop %v2087
    %v2089 = vmul.f32 %v2080, 1.442695
    %v2090 = vpow.pop %v2089
    %v2091 = vmul.f32 %v2081, 1.442695
    %v2092 = vpow.pop %v2091
    %v2093 = vmul.f32 %v2082, 1.442695
    %v2094 = vpow.pop %v2093
    %v2095 = vmul.f32 %v2083, 1.442695
    %v2096 = vpow.pop %v2095
    %v2097 = vmul.f32 %v2084, 1.442695
    %v2098 = vpow.pop %v2097
    %v2099 = vmul.f32 %v2085, 1.442695
    %v2100 = vpow.pop %v2099
    %v2101 = vmul.f32 %v2086, 1.442695
    %v2102 = vpow.pop %v2101
    %v2103 = vsel %vm1644, %v2088, 0.0
    %2104 = vadd.xlane.f32.xlu0 %v2103
    %v2105 = vpop.xlane.xlu0 %2104
    %v2106 = vsel %vm1644, %v2090, 0.0
    %2107 = vadd.xlane.f32.xlu0 %v2106
    %v2108 = vpop.xlane.xlu0 %2107
    %v2109 = vsel %vm1644, %v2092, 0.0
    %2110 = vadd.xlane.f32.xlu0 %v2109
    %v2111 = vpop.xlane.xlu0 %2110
    %v2112 = vsel %vm1644, %v2094, 0.0
    %2113 = vadd.xlane.f32.xlu0 %v2112
    %v2114 = vpop.xlane.xlu0 %2113
    %v2115 = vsel %vm1644, %v2096, 0.0
    %2116 = vadd.xlane.f32.xlu0 %v2115
    %v2117 = vpop.xlane.xlu0 %2116
    %v2118 = vsel %vm1644, %v2098, 0.0
    %2119 = vadd.xlane.f32.xlu0 %v2118
    %v2120 = vpop.xlane.xlu0 %2119
    %v2121 = vsel %vm1644, %v2100, 0.0
    %2122 = vadd.xlane.f32.xlu0 %v2121
    %v2123 = vpop.xlane.xlu0 %2122
    %v2124 = vsel %vm1644, %v2102, 0.0
    %2125 = vadd.xlane.f32.xlu0 %v2124
    %v2126 = vpop.xlane.xlu0 %2125
    %v2127 = vrcp.pop %v2105
    %v2128 = vmul.f32 %v2088, %v2127
    %v2129 = vrcp.pop %v2108
    %v2130 = vmul.f32 %v2090, %v2129
    %v2131 = vrcp.pop %v2111
    %v2132 = vmul.f32 %v2092, %v2131
    %v2133 = vrcp.pop %v2114
    %v2134 = vmul.f32 %v2094, %v2133
    %v2135 = vrcp.pop %v2117
    %v2136 = vmul.f32 %v2096, %v2135
    %v2137 = vrcp.pop %v2120
    %v2138 = vmul.f32 %v2098, %v2137
    %v2139 = vrcp.pop %v2123
    %v2140 = vmul.f32 %v2100, %v2139
    %v2141 = vrcp.pop %v2126
    %v2142 = vmul.f32 %v2102, %v2141
    %2143 = vrot.lane.b32.xlu0 %v1383, 56
    %v2144 = vpop.permute.xlu0 %2143
    %2145 = vrot.lane.b32.xlu0 %v1388, 56
    %v2146 = vpop.permute.xlu0 %2145
    %2147 = vrot.lane.b32.xlu0 %v1393, 56
    %v2148 = vpop.permute.xlu0 %2147
    %2149 = vrot.lane.b32.xlu0 %v1398, 56
    %v2150 = vpop.permute.xlu0 %2149
    %2151 = vrot.lane.b32.xlu0 %v1403, 56
    %v2152 = vpop.permute.xlu0 %2151
    %2153 = vrot.lane.b32.xlu0 %v1408, 56
    %v2154 = vpop.permute.xlu0 %2153
    %2155 = vrot.lane.b32.xlu0 %v1413, 56
    %v2156 = vpop.permute.xlu0 %2155
    %2157 = vrot.lane.b32.xlu0 %v1418, 56
    %v2158 = vpop.permute.xlu0 %2157
    %v2168 = vsel %vm1644, %v2128, 0
    %v2171 = vsel %vm1644, %v2130, 0
    %v2174 = vsel %vm1644, %v2132, 0
    %v2177 = vsel %vm1644, %v2134, 0
    %v2180 = vsel %vm1644, %v2136, 0
    %v2183 = vsel %vm1644, %v2138, 0
    %v2186 = vsel %vm1644, %v2140, 0
    %v2189 = vsel %vm1644, %v2142, 0
    %2191 = vmatprep.subr.mxu0 0.0
    %2192 = vmatpush1.msra.mxu0 0.0
    %2193 = vmatprep.subr.mxu0 0.0
    %2194 = vmatpush1.msra.mxu0 0.0
    %2195 = vmatprep.subr.mxu0 0.0
    %2196 = vmatpush1.msra.mxu0 0.0
    %2197 = vmatprep.subr.mxu0 0.0
    %2198 = vmatpush1.msra.mxu0 0.0
    %2199 = vmatprep.subr.mxu0 0.0
    %2200 = vmatpush1.msra.mxu0 0.0
    %2201 = vmatprep.subr.mxu0 0.0
    %2202 = vmatpush1.msra.mxu0 0.0
    %2203 = vmatprep.subr.mxu0 0.0
    %2204 = vmatpush1.msra.mxu0 0.0
    %2205 = vmatprep.subr.mxu0 0.0
    %2206 = vmatpush1.msra.mxu0 0.0
    %2207 = vmatprep.subr.mxu0 0.0
    %2208 = vmatpush1.msra.mxu0 %v2158
    %2209 = vmatprep.subr.mxu0 0.0
    %2210 = vmatpush1.msra.mxu0 %v2156
    %2211 = vmatprep.subr.mxu0 0.0
    %2212 = vmatpush1.msra.mxu0 %v2154
    %2213 = vmatprep.subr.mxu0 0.0
    %2214 = vmatpush1.msra.mxu0 %v2152
    %2215 = vmatprep.subr.mxu0 0.0
    %2216 = vmatpush1.msra.mxu0 %v2150
    %2217 = vmatprep.subr.mxu0 0.0
    %2218 = vmatpush1.msra.mxu0 %v2148
    %2219 = vmatprep.subr.mxu0 0.0
    %2220 = vmatpush1.msra.mxu0 %v2146
    %2221 = vmatprep.subr.mxu0 0.0
    %2222 = vmatpush1.msra.mxu0 %v2144
    %2223 = vmatprep.subr.mxu0 0.0
    %2224 = vmatpush2.msra.mxu0 0.0
    %2225 = vmatprep.subr.mxu0 0.0
    %2226 = vmatpush2.msra.mxu0 0.0
    %2227 = vmatprep.subr.mxu0 0.0
    %2228 = vmatpush2.msra.mxu0 0.0
    %2229 = vmatprep.subr.mxu0 0.0
    %2230 = vmatpush2.msra.mxu0 0.0
    %2231 = vmatprep.subr.mxu0 0.0
    %2232 = vmatpush2.msra.mxu0 0.0
    %2233 = vmatprep.subr.mxu0 0.0
    %2234 = vmatpush2.msra.mxu0 0.0
    %2235 = vmatprep.subr.mxu0 0.0
    %2236 = vmatpush2.msra.mxu0 0.0
    %2237 = vmatprep.subr.mxu0 0.0
    %2238 = vmatpush2.msra.mxu0 0.0
    %2239 = vmatprep.subr.mxu0 0.0
    %2240 = vmatpush2.msra.mxu0 0.0
    %2241 = vmatprep.subr.mxu0 0.0
    %2242 = vmatpush2.msra.mxu0 0.0
    %2243 = vmatprep.subr.mxu0 0.0
    %2244 = vmatpush2.msra.mxu0 0.0
    %2245 = vmatprep.subr.mxu0 0.0
    %2246 = vmatpush2.msra.mxu0 0.0
    %2247 = vmatprep.subr.mxu0 0.0
    %2248 = vmatpush2.msra.mxu0 0.0
    %2249 = vmatprep.subr.mxu0 0.0
    %2250 = vmatpush2.msra.mxu0 0.0
    %2251 = vmatprep.subr.mxu0 0.0
    %2252 = vmatpush2.msra.mxu0 0.0
    %2253 = vmatprep.subr.mxu0 0.0
    %2254 = vmatpush2.msra.mxu0 0.0
    %2255 = vmatprep.mubr.f32.mxu0 0.0
    %2256 = vmatmul.mubr.f32.gmra.mxu0 %v2168
    %v2257 = vpop.f32.mrf.mxu0
    %v2258 = vadd.f32 0.0, %v2257
    %v2259 = vpop.f32.mrf.mxu0
    %2260 = vmatprep.mubr.f32.mxu0 0.0
    %2261 = vmatmul.mubr.f32.gmra.mxu0 %v2171
    %v2262 = vpop.f32.mrf.mxu0
    %v2263 = vadd.f32 0.0, %v2262
    %v2264 = vpop.f32.mrf.mxu0
    %2265 = vmatprep.mubr.f32.mxu0 0.0
    %2266 = vmatmul.mubr.f32.gmra.mxu0 %v2174
    %v2267 = vpop.f32.mrf.mxu0
    %v2268 = vadd.f32 0.0, %v2267
    %v2269 = vpop.f32.mrf.mxu0
    %2270 = vmatprep.mubr.f32.mxu0 0.0
    %2271 = vmatmul.mubr.f32.gmra.mxu0 %v2177
    %v2272 = vpop.f32.mrf.mxu0
    %v2273 = vadd.f32 0.0, %v2272
    %v2274 = vpop.f32.mrf.mxu0
    %2275 = vmatprep.mubr.f32.mxu0 0.0
    %2276 = vmatmul.mubr.f32.gmra.mxu0 %v2180
    %v2277 = vpop.f32.mrf.mxu0
    %v2278 = vadd.f32 0.0, %v2277
    %v2279 = vpop.f32.mrf.mxu0
    %2280 = vmatprep.mubr.f32.mxu0 0.0
    %2281 = vmatmul.mubr.f32.gmra.mxu0 %v2183
    %v2282 = vpop.f32.mrf.mxu0
    %v2283 = vadd.f32 0.0, %v2282
    %v2284 = vpop.f32.mrf.mxu0
    %2285 = vmatprep.mubr.f32.mxu0 0.0
    %2286 = vmatmul.mubr.f32.gmra.mxu0 %v2186
    %v2287 = vpop.f32.mrf.mxu0
    %v2288 = vadd.f32 0.0, %v2287
    %v2289 = vpop.f32.mrf.mxu0
    %2290 = vmatprep.mubr.f32.mxu0 0.0
    %2291 = vmatmul.mubr.f32.gmra.mxu0 %v2189
    %v2292 = vpop.f32.mrf.mxu0
    %v2293 = vadd.f32 0.0, %v2292
    %v2294 = vpop.f32.mrf.mxu0
    %2295 = vdwg.mxu0
    %v2297 = vsel %vm1498, %v2258, 0
    %v2300 = vsel %vm1498, %v2263, 0
    %v2303 = vsel %vm1498, %v2268, 0
    %v2306 = vsel %vm1498, %v2273, 0
    %v2309 = vsel %vm1498, %v2278, 0
    %v2312 = vsel %vm1498, %v2283, 0
    %v2315 = vsel %vm1498, %v2288, 0
    %v2318 = vsel %vm1498, %v2293, 0
    %2320 = vmatprep.subr.mxu0 0.0
    %2321 = vmatpush1.msra.mxu0 0.0
    %2322 = vmatprep.subr.mxu0 0.0
    %2323 = vmatpush1.msra.mxu0 0.0
    %2324 = vmatprep.subr.mxu0 0.0
    %2325 = vmatpush1.msra.mxu0 0.0
    %2326 = vmatprep.subr.mxu0 0.0
    %2327 = vmatpush1.msra.mxu0 0.0
    %2328 = vmatprep.subr.mxu0 0.0
    %2329 = vmatpush1.msra.mxu0 0.0
    %2330 = vmatprep.subr.mxu0 0.0
    %2331 = vmatpush1.msra.mxu0 0.0
    %2332 = vmatprep.subr.mxu0 0.0
    %2333 = vmatpush1.msra.mxu0 0.0
    %2334 = vmatprep.subr.mxu0 0.0
    %2335 = vmatpush1.msra.mxu0 0.0
    %2336 = vmatprep.subr.mxu0 0.0
    %2337 = vmatpush1.msra.mxu0 0.0
    %2338 = vmatprep.subr.mxu0 0.0
    %2339 = vmatpush1.msra.mxu0 0.0
    %2340 = vmatprep.subr.mxu0 0.0
    %2341 = vmatpush1.msra.mxu0 0.0
    %2342 = vmatprep.subr.mxu0 0.0
    %2343 = vmatpush1.msra.mxu0 0.0
    %2344 = vmatprep.subr.mxu0 0.0
    %2345 = vmatpush1.msra.mxu0 0.0
    %2346 = vmatprep.subr.mxu0 0.0
    %2347 = vmatpush1.msra.mxu0 0.0
    %2348 = vmatprep.subr.mxu0 0.0
    %2349 = vmatpush1.msra.mxu0 0.0
    %2350 = vmatprep.subr.mxu0 0.0
    %2351 = vmatpush1.msra.mxu0 %v1462
    %2352 = vmatprep.subr.mxu0 0.0
    %2353 = vmatpush2.msra.mxu0 0.0
    %2354 = vmatprep.subr.mxu0 0.0
    %2355 = vmatpush2.msra.mxu0 0.0
    %2356 = vmatprep.subr.mxu0 0.0
    %2357 = vmatpush2.msra.mxu0 0.0
    %2358 = vmatprep.subr.mxu0 0.0
    %2359 = vmatpush2.msra.mxu0 0.0
    %2360 = vmatprep.subr.mxu0 0.0
    %2361 = vmatpush2.msra.mxu0 0.0
    %2362 = vmatprep.subr.mxu0 0.0
    %2363 = vmatpush2.msra.mxu0 0.0
    %2364 = vmatprep.subr.mxu0 0.0
    %2365 = vmatpush2.msra.mxu0 0.0
    %2366 = vmatprep.subr.mxu0 0.0
    %2367 = vmatpush2.msra.mxu0 0.0
    %2368 = vmatprep.subr.mxu0 0.0
    %2369 = vmatpush2.msra.mxu0 0.0
    %2370 = vmatprep.subr.mxu0 0.0
    %2371 = vmatpush2.msra.mxu0 0.0
    %2372 = vmatprep.subr.mxu0 0.0
    %2373 = vmatpush2.msra.mxu0 0.0
    %2374 = vmatprep.subr.mxu0 0.0
    %2375 = vmatpush2.msra.mxu0 0.0
    %2376 = vmatprep.subr.mxu0 0.0
    %2377 = vmatpush2.msra.mxu0 0.0
    %2378 = vmatprep.subr.mxu0 0.0
    %2379 = vmatpush2.msra.mxu0 0.0
    %2380 = vmatprep.subr.mxu0 0.0
    %2381 = vmatpush2.msra.mxu0 0.0
    %2382 = vmatprep.subr.mxu0 0.0
    %2383 = vmatpush2.msra.mxu0 0.0
    %2384 = vmatprep.mubr.f32.mxu0 0.0
    %2385 = vmatmul.mubr.f32.gmra.mxu0 %v2297
    %v2386 = vpop.f32.mrf.mxu0
    %v2387 = vadd.f32 0.0, %v2386
    %v2388 = vpop.f32.mrf.mxu0
    %2389 = vmatprep.mubr.f32.mxu0 0.0
    %2390 = vmatmul.mubr.f32.gmra.mxu0 %v2300
    %v2391 = vpop.f32.mrf.mxu0
    %v2392 = vadd.f32 0.0, %v2391
    %v2393 = vpop.f32.mrf.mxu0
    %2394 = vmatprep.mubr.f32.mxu0 0.0
    %2395 = vmatmul.mubr.f32.gmra.mxu0 %v2303
    %v2396 = vpop.f32.mrf.mxu0
    %v2397 = vadd.f32 0.0, %v2396
    %v2398 = vpop.f32.mrf.mxu0
    %2399 = vmatprep.mubr.f32.mxu0 0.0
    %2400 = vmatmul.mubr.f32.gmra.mxu0 %v2306
    %v2401 = vpop.f32.mrf.mxu0
    %v2402 = vadd.f32 0.0, %v2401
    %v2403 = vpop.f32.mrf.mxu0
    %2404 = vmatprep.mubr.f32.mxu0 0.0
    %2405 = vmatmul.mubr.f32.gmra.mxu0 %v2309
    %v2406 = vpop.f32.mrf.mxu0
    %v2407 = vadd.f32 0.0, %v2406
    %v2408 = vpop.f32.mrf.mxu0
    %2409 = vmatprep.mubr.f32.mxu0 0.0
    %2410 = vmatmul.mubr.f32.gmra.mxu0 %v2312
    %v2411 = vpop.f32.mrf.mxu0
    %v2412 = vadd.f32 0.0, %v2411
    %v2413 = vpop.f32.mrf.mxu0
    %2414 = vmatprep.mubr.f32.mxu0 0.0
    %2415 = vmatmul.mubr.f32.gmra.mxu0 %v2315
    %v2416 = vpop.f32.mrf.mxu0
    %v2417 = vadd.f32 0.0, %v2416
    %v2418 = vpop.f32.mrf.mxu0
    %2419 = vmatprep.mubr.f32.mxu0 0.0
    %2420 = vmatmul.mubr.f32.gmra.mxu0 %v2318
    %v2421 = vpop.f32.mrf.mxu0
    %v2422 = vadd.f32 0.0, %v2421
    %v2423 = vpop.f32.mrf.mxu0
    %2424 = vdwg.mxu0
    %v2426 = vsel %vm1498, %v1848, 0
    %v2429 = vsel %vm1498, %v1853, 0
    %v2432 = vsel %vm1498, %v1858, 0
    %v2435 = vsel %vm1498, %v1863, 0
    %v2438 = vsel %vm1498, %v1868, 0
    %v2441 = vsel %vm1498, %v1873, 0
    %v2444 = vsel %vm1498, %v1878, 0
    %v2447 = vsel %vm1498, %v1883, 0
    %2449 = vmatprep.subr.mxu0 0.0
    %2450 = vmatpush1.msra.mxu0 0.0
    %2451 = vmatprep.subr.mxu0 0.0
    %2452 = vmatpush1.msra.mxu0 0.0
    %2453 = vmatprep.subr.mxu0 0.0
    %2454 = vmatpush1.msra.mxu0 0.0
    %2455 = vmatprep.subr.mxu0 0.0
    %2456 = vmatpush1.msra.mxu0 0.0
    %2457 = vmatprep.subr.mxu0 0.0
    %2458 = vmatpush1.msra.mxu0 0.0
    %2459 = vmatprep.subr.mxu0 0.0
    %2460 = vmatpush1.msra.mxu0 0.0
    %2461 = vmatprep.subr.mxu0 0.0
    %2462 = vmatpush1.msra.mxu0 0.0
    %2463 = vmatprep.subr.mxu0 0.0
    %2464 = vmatpush1.msra.mxu0 0.0
    %2465 = vmatprep.subr.mxu0 0.0
    %2466 = vmatpush1.msra.mxu0 0.0
    %2467 = vmatprep.subr.mxu0 0.0
    %2468 = vmatpush1.msra.mxu0 0.0
    %2469 = vmatprep.subr.mxu0 0.0
    %2470 = vmatpush1.msra.mxu0 0.0
    %2471 = vmatprep.subr.mxu0 0.0
    %2472 = vmatpush1.msra.mxu0 0.0
    %2473 = vmatprep.subr.mxu0 0.0
    %2474 = vmatpush1.msra.mxu0 0.0
    %2475 = vmatprep.subr.mxu0 0.0
    %2476 = vmatpush1.msra.mxu0 0.0
    %2477 = vmatprep.subr.mxu0 0.0
    %2478 = vmatpush1.msra.mxu0 0.0
    %2479 = vmatprep.subr.mxu0 0.0
    %2480 = vmatpush1.msra.mxu0 %v1461
    %2481 = vmatprep.subr.mxu0 0.0
    %2482 = vmatpush2.msra.mxu0 0.0
    %2483 = vmatprep.subr.mxu0 0.0
    %2484 = vmatpush2.msra.mxu0 0.0
    %2485 = vmatprep.subr.mxu0 0.0
    %2486 = vmatpush2.msra.mxu0 0.0
    %2487 = vmatprep.subr.mxu0 0.0
    %2488 = vmatpush2.msra.mxu0 0.0
    %2489 = vmatprep.subr.mxu0 0.0
    %2490 = vmatpush2.msra.mxu0 0.0
    %2491 = vmatprep.subr.mxu0 0.0
    %2492 = vmatpush2.msra.mxu0 0.0
    %2493 = vmatprep.subr.mxu0 0.0
    %2494 = vmatpush2.msra.mxu0 0.0
    %2495 = vmatprep.subr.mxu0 0.0
    %2496 = vmatpush2.msra.mxu0 0.0
    %2497 = vmatprep.subr.mxu0 0.0
    %2498 = vmatpush2.msra.mxu0 0.0
    %2499 = vmatprep.subr.mxu0 0.0
    %2500 = vmatpush2.msra.mxu0 0.0
    %2501 = vmatprep.subr.mxu0 0.0
    %2502 = vmatpush2.msra.mxu0 0.0
    %2503 = vmatprep.subr.mxu0 0.0
    %2504 = vmatpush2.msra.mxu0 0.0
    %2505 = vmatprep.subr.mxu0 0.0
    %2506 = vmatpush2.msra.mxu0 0.0
    %2507 = vmatprep.subr.mxu0 0.0
    %2508 = vmatpush2.msra.mxu0 0.0
    %2509 = vmatprep.subr.mxu0 0.0
    %2510 = vmatpush2.msra.mxu0 0.0
    %2511 = vmatprep.subr.mxu0 0.0
    %2512 = vmatpush2.msra.mxu0 0.0
    %2513 = vmatprep.mubr.f32.mxu0 0.0
    %2514 = vmatmul.mubr.f32.gmra.mxu0 %v2426
    %v2515 = vpop.f32.mrf.mxu0
    %v2516 = vadd.f32 %v2387, %v2515
    %v2517 = vpop.f32.mrf.mxu0
    %2518 = vmatprep.mubr.f32.mxu0 0.0
    %2519 = vmatmul.mubr.f32.gmra.mxu0 %v2429
    %v2520 = vpop.f32.mrf.mxu0
    %v2521 = vadd.f32 %v2392, %v2520
    %v2522 = vpop.f32.mrf.mxu0
    %2523 = vmatprep.mubr.f32.mxu0 0.0
    %2524 = vmatmul.mubr.f32.gmra.mxu0 %v2432
    %v2525 = vpop.f32.mrf.mxu0
    %v2526 = vadd.f32 %v2397, %v2525
    %v2527 = vpop.f32.mrf.mxu0
    %2528 = vmatprep.mubr.f32.mxu0 0.0
    %2529 = vmatmul.mubr.f32.gmra.mxu0 %v2435
    %v2530 = vpop.f32.mrf.mxu0
    %v2531 = vadd.f32 %v2402, %v2530
    %v2532 = vpop.f32.mrf.mxu0
    %2533 = vmatprep.mubr.f32.mxu0 0.0
    %2534 = vmatmul.mubr.f32.gmra.mxu0 %v2438
    %v2535 = vpop.f32.mrf.mxu0
    %v2536 = vadd.f32 %v2407, %v2535
    %v2537 = vpop.f32.mrf.mxu0
    %2538 = vmatprep.mubr.f32.mxu0 0.0
    %2539 = vmatmul.mubr.f32.gmra.mxu0 %v2441
    %v2540 = vpop.f32.mrf.mxu0
    %v2541 = vadd.f32 %v2412, %v2540
    %v2542 = vpop.f32.mrf.mxu0
    %2543 = vmatprep.mubr.f32.mxu0 0.0
    %2544 = vmatmul.mubr.f32.gmra.mxu0 %v2444
    %v2545 = vpop.f32.mrf.mxu0
    %v2546 = vadd.f32 %v2417, %v2545
    %v2547 = vpop.f32.mrf.mxu0
    %2548 = vmatprep.mubr.f32.mxu0 0.0
    %2549 = vmatmul.mubr.f32.gmra.mxu0 %v2447
    %v2550 = vpop.f32.mrf.mxu0
    %v2551 = vadd.f32 %v2422, %v2550
    %v2552 = vpop.f32.mrf.mxu0
    %2553 = vdwg.mxu0
    %2554 = vrot.lane.b32.xlu0 %v1466, 112
    %v2555 = vpop.permute.xlu0 %2554
    %2556 = vrot.lane.b32.xlu0 %v1467, 112
    %v2557 = vpop.permute.xlu0 %2556
    %2558 = vrot.lane.b32.xlu0 %v1468, 112
    %v2559 = vpop.permute.xlu0 %2558
    %2560 = vrot.lane.b32.xlu0 %v1469, 112
    %v2561 = vpop.permute.xlu0 %2560
    %2562 = vrot.lane.b32.xlu0 %v1470, 112
    %v2563 = vpop.permute.xlu0 %2562
    %2564 = vrot.lane.b32.xlu0 %v1471, 112
    %v2565 = vpop.permute.xlu0 %2564
    %2566 = vrot.lane.b32.xlu0 %v1472, 112
    %v2567 = vpop.permute.xlu0 %2566
    %2568 = vrot.lane.b32.xlu0 %v1473, 112
    %v2569 = vpop.permute.xlu0 %2568
    %2570 = vrot.lane.b32.xlu0 %v1383, 80
    %v2571 = vpop.permute.xlu0 %2570
    %2572 = vrot.lane.b32.xlu0 %v1388, 80
    %v2573 = vpop.permute.xlu0 %2572
    %2574 = vrot.lane.b32.xlu0 %v1393, 80
    %v2575 = vpop.permute.xlu0 %2574
    %2576 = vrot.lane.b32.xlu0 %v1398, 80
    %v2577 = vpop.permute.xlu0 %2576
    %2578 = vrot.lane.b32.xlu0 %v1403, 80
    %v2579 = vpop.permute.xlu0 %2578
    %2580 = vrot.lane.b32.xlu0 %v1408, 80
    %v2581 = vpop.permute.xlu0 %2580
    %2582 = vrot.lane.b32.xlu0 %v1413, 80
    %v2583 = vpop.permute.xlu0 %2582
    %2584 = vrot.lane.b32.xlu0 %v1418, 80
    %v2585 = vpop.permute.xlu0 %2584
    %v2586 = vsel %vm1498, %v2555, 0
    %v2588 = vsel %vm1498, %v2557, 0
    %v2590 = vsel %vm1498, %v2559, 0
    %v2592 = vsel %vm1498, %v2561, 0
    %v2594 = vsel %vm1498, %v2563, 0
    %v2596 = vsel %vm1498, %v2565, 0
    %v2598 = vsel %vm1498, %v2567, 0
    %v2600 = vsel %vm1498, %v2569, 0
    %v2602 = vsel %vm1498, %v2571, 0
    %v2604 = vsel %vm1498, %v2573, 0
    %v2606 = vsel %vm1498, %v2575, 0
    %v2608 = vsel %vm1498, %v2577, 0
    %v2610 = vsel %vm1498, %v2579, 0
    %v2612 = vsel %vm1498, %v2581, 0
    %v2614 = vsel %vm1498, %v2583, 0
    %v2616 = vsel %vm1498, %v2585, 0
    %2618 = vmatprep.subr.mxu0 0.0
    %2619 = vmatpush1.xpose.msra.mxu0 0.0
    %2620 = vmatprep.subr.mxu0 0.0
    %2621 = vmatpush1.xpose.msra.mxu0 0.0
    %2622 = vmatprep.subr.mxu0 0.0
    %2623 = vmatpush1.xpose.msra.mxu0 0.0
    %2624 = vmatprep.subr.mxu0 0.0
    %2625 = vmatpush1.xpose.msra.mxu0 0.0
    %2626 = vmatprep.subr.mxu0 0.0
    %2627 = vmatpush1.xpose.msra.mxu0 0.0
    %2628 = vmatprep.subr.mxu0 0.0
    %2629 = vmatpush1.xpose.msra.mxu0 0.0
    %2630 = vmatprep.subr.mxu0 0.0
    %2631 = vmatpush1.xpose.msra.mxu0 0.0
    %2632 = vmatprep.subr.mxu0 0.0
    %2633 = vmatpush1.xpose.msra.mxu0 0.0
    %2634 = vmatprep.subr.mxu0 0.0
    %2635 = vmatpush1.xpose.msra.mxu0 %v2616
    %2636 = vmatprep.subr.mxu0 0.0
    %2637 = vmatpush1.xpose.msra.mxu0 %v2614
    %2638 = vmatprep.subr.mxu0 0.0
    %2639 = vmatpush1.xpose.msra.mxu0 %v2612
    %2640 = vmatprep.subr.mxu0 0.0
    %2641 = vmatpush1.xpose.msra.mxu0 %v2610
    %2642 = vmatprep.subr.mxu0 0.0
    %2643 = vmatpush1.xpose.msra.mxu0 %v2608
    %2644 = vmatprep.subr.mxu0 0.0
    %2645 = vmatpush1.xpose.msra.mxu0 %v2606
    %2646 = vmatprep.subr.mxu0 0.0
    %2647 = vmatpush1.xpose.msra.mxu0 %v2604
    %2648 = vmatprep.subr.mxu0 0.0
    %2649 = vmatpush1.xpose.msra.mxu0 %v2602
    %2650 = vmatprep.subr.mxu0 0.0
    %2651 = vmatpush2.xpose.msra.mxu0 0.0
    %2652 = vmatprep.subr.mxu0 0.0
    %2653 = vmatpush2.xpose.msra.mxu0 0.0
    %2654 = vmatprep.subr.mxu0 0.0
    %2655 = vmatpush2.xpose.msra.mxu0 0.0
    %2656 = vmatprep.subr.mxu0 0.0
    %2657 = vmatpush2.xpose.msra.mxu0 0.0
    %2658 = vmatprep.subr.mxu0 0.0
    %2659 = vmatpush2.xpose.msra.mxu0 0.0
    %2660 = vmatprep.subr.mxu0 0.0
    %2661 = vmatpush2.xpose.msra.mxu0 0.0
    %2662 = vmatprep.subr.mxu0 0.0
    %2663 = vmatpush2.xpose.msra.mxu0 0.0
    %2664 = vmatprep.subr.mxu0 0.0
    %2665 = vmatpush2.xpose.msra.mxu0 0.0
    %2666 = vmatprep.subr.mxu0 0.0
    %2667 = vmatpush2.xpose.msra.mxu0 0.0
    %2668 = vmatprep.subr.mxu0 0.0
    %2669 = vmatpush2.xpose.msra.mxu0 0.0
    %2670 = vmatprep.subr.mxu0 0.0
    %2671 = vmatpush2.xpose.msra.mxu0 0.0
    %2672 = vmatprep.subr.mxu0 0.0
    %2673 = vmatpush2.xpose.msra.mxu0 0.0
    %2674 = vmatprep.subr.mxu0 0.0
    %2675 = vmatpush2.xpose.msra.mxu0 0.0
    %2676 = vmatprep.subr.mxu0 0.0
    %2677 = vmatpush2.xpose.msra.mxu0 0.0
    %2678 = vmatprep.subr.mxu0 0.0
    %2679 = vmatpush2.xpose.msra.mxu0 0.0
    %2680 = vmatprep.subr.mxu0 0.0
    %2681 = vmatpush2.xpose.msra.mxu0 0.0
    %2682 = vmatprep.mubr.f32.mxu0 0.0
    %2683 = vmatmul.mubr.f32.gmra.mxu0 %v2586
    %v2684 = vpop.f32.mrf.mxu0
    %v2685 = vadd.f32 0.0, %v2684
    %v2686 = vpop.f32.mrf.mxu0
    %2687 = vmatprep.mubr.f32.mxu0 0.0
    %2688 = vmatmul.mubr.f32.gmra.mxu0 %v2588
    %v2689 = vpop.f32.mrf.mxu0
    %v2690 = vadd.f32 0.0, %v2689
    %v2691 = vpop.f32.mrf.mxu0
    %2692 = vmatprep.mubr.f32.mxu0 0.0
    %2693 = vmatmul.mubr.f32.gmra.mxu0 %v2590
    %v2694 = vpop.f32.mrf.mxu0
    %v2695 = vadd.f32 0.0, %v2694
    %v2696 = vpop.f32.mrf.mxu0
    %2697 = vmatprep.mubr.f32.mxu0 0.0
    %2698 = vmatmul.mubr.f32.gmra.mxu0 %v2592
    %v2699 = vpop.f32.mrf.mxu0
    %v2700 = vadd.f32 0.0, %v2699
    %v2701 = vpop.f32.mrf.mxu0
    %2702 = vmatprep.mubr.f32.mxu0 0.0
    %2703 = vmatmul.mubr.f32.gmra.mxu0 %v2594
    %v2704 = vpop.f32.mrf.mxu0
    %v2705 = vadd.f32 0.0, %v2704
    %v2706 = vpop.f32.mrf.mxu0
    %2707 = vmatprep.mubr.f32.mxu0 0.0
    %2708 = vmatmul.mubr.f32.gmra.mxu0 %v2596
    %v2709 = vpop.f32.mrf.mxu0
    %v2710 = vadd.f32 0.0, %v2709
    %v2711 = vpop.f32.mrf.mxu0
    %2712 = vmatprep.mubr.f32.mxu0 0.0
    %2713 = vmatmul.mubr.f32.gmra.mxu0 %v2598
    %v2714 = vpop.f32.mrf.mxu0
    %v2715 = vadd.f32 0.0, %v2714
    %v2716 = vpop.f32.mrf.mxu0
    %2717 = vmatprep.mubr.f32.mxu0 0.0
    %2718 = vmatmul.mubr.f32.gmra.mxu0 %v2600
    %v2719 = vpop.f32.mrf.mxu0
    %v2720 = vadd.f32 0.0, %v2719
    %v2721 = vpop.f32.mrf.mxu0
    %2722 = vdwg.mxu0
    %v2723 = vsel %vm1644, %v2685, -inf
    %2724 = vmax.xlane.f32.xlu0 %v2723
    %v2725 = vpop.xlane.xlu0 %2724
    %v2726 = vsel %vm1644, %v2690, -inf
    %2727 = vmax.xlane.f32.xlu0 %v2726
    %v2728 = vpop.xlane.xlu0 %2727
    %v2729 = vsel %vm1644, %v2695, -inf
    %2730 = vmax.xlane.f32.xlu0 %v2729
    %v2731 = vpop.xlane.xlu0 %2730
    %v2732 = vsel %vm1644, %v2700, -inf
    %2733 = vmax.xlane.f32.xlu0 %v2732
    %v2734 = vpop.xlane.xlu0 %2733
    %v2735 = vsel %vm1644, %v2705, -inf
    %2736 = vmax.xlane.f32.xlu0 %v2735
    %v2737 = vpop.xlane.xlu0 %2736
    %v2738 = vsel %vm1644, %v2710, -inf
    %2739 = vmax.xlane.f32.xlu0 %v2738
    %v2740 = vpop.xlane.xlu0 %2739
    %v2741 = vsel %vm1644, %v2715, -inf
    %2742 = vmax.xlane.f32.xlu0 %v2741
    %v2743 = vpop.xlane.xlu0 %2742
    %v2744 = vsel %vm1644, %v2720, -inf
    %2745 = vmax.xlane.f32.xlu0 %v2744
    %v2746 = vpop.xlane.xlu0 %2745
    %v2747 = vsub.f32 %v2685, %v2725
    %v2748 = vsub.f32 %v2690, %v2728
    %v2749 = vsub.f32 %v2695, %v2731
    %v2750 = vsub.f32 %v2700, %v2734
    %v2751 = vsub.f32 %v2705, %v2737
    %v2752 = vsub.f32 %v2710, %v2740
    %v2753 = vsub.f32 %v2715, %v2743
    %v2754 = vsub.f32 %v2720, %v2746
    %v2755 = vmul.f32 %v2747, 1.442695
    %v2756 = vpow.pop %v2755
    %v2757 = vmul.f32 %v2748, 1.442695
    %v2758 = vpow.pop %v2757
    %v2759 = vmul.f32 %v2749, 1.442695
    %v2760 = vpow.pop %v2759
    %v2761 = vmul.f32 %v2750, 1.442695
    %v2762 = vpow.pop %v2761
    %v2763 = vmul.f32 %v2751, 1.442695
    %v2764 = vpow.pop %v2763
    %v2765 = vmul.f32 %v2752, 1.442695
    %v2766 = vpow.pop %v2765
    %v2767 = vmul.f32 %v2753, 1.442695
    %v2768 = vpow.pop %v2767
    %v2769 = vmul.f32 %v2754, 1.442695
    %v2770 = vpow.pop %v2769
    %v2771 = vsel %vm1644, %v2756, 0.0
    %2772 = vadd.xlane.f32.xlu0 %v2771
    %v2773 = vpop.xlane.xlu0 %2772
    %v2774 = vsel %vm1644, %v2758, 0.0
    %2775 = vadd.xlane.f32.xlu0 %v2774
    %v2776 = vpop.xlane.xlu0 %2775
    %v2777 = vsel %vm1644, %v2760, 0.0
    %2778 = vadd.xlane.f32.xlu0 %v2777
    %v2779 = vpop.xlane.xlu0 %2778
    %v2780 = vsel %vm1644, %v2762, 0.0
    %2781 = vadd.xlane.f32.xlu0 %v2780
    %v2782 = vpop.xlane.xlu0 %2781
    %v2783 = vsel %vm1644, %v2764, 0.0
    %2784 = vadd.xlane.f32.xlu0 %v2783
    %v2785 = vpop.xlane.xlu0 %2784
    %v2786 = vsel %vm1644, %v2766, 0.0
    %2787 = vadd.xlane.f32.xlu0 %v2786
    %v2788 = vpop.xlane.xlu0 %2787
    %v2789 = vsel %vm1644, %v2768, 0.0
    %2790 = vadd.xlane.f32.xlu0 %v2789
    %v2791 = vpop.xlane.xlu0 %2790
    %v2792 = vsel %vm1644, %v2770, 0.0
    %2793 = vadd.xlane.f32.xlu0 %v2792
    %v2794 = vpop.xlane.xlu0 %2793
    %v2795 = vrcp.pop %v2773
    %v2796 = vmul.f32 %v2756, %v2795
    %v2797 = vrcp.pop %v2776
    %v2798 = vmul.f32 %v2758, %v2797
    %v2799 = vrcp.pop %v2779
    %v2800 = vmul.f32 %v2760, %v2799
    %v2801 = vrcp.pop %v2782
    %v2802 = vmul.f32 %v2762, %v2801
    %v2803 = vrcp.pop %v2785
    %v2804 = vmul.f32 %v2764, %v2803
    %v2805 = vrcp.pop %v2788
    %v2806 = vmul.f32 %v2766, %v2805
    %v2807 = vrcp.pop %v2791
    %v2808 = vmul.f32 %v2768, %v2807
    %v2809 = vrcp.pop %v2794
    %v2810 = vmul.f32 %v2770, %v2809
    %2811 = vrot.lane.b32.xlu0 %v1383, 48
    %v2812 = vpop.permute.xlu0 %2811
    %2813 = vrot.lane.b32.xlu0 %v1388, 48
    %v2814 = vpop.permute.xlu0 %2813
    %2815 = vrot.lane.b32.xlu0 %v1393, 48
    %v2816 = vpop.permute.xlu0 %2815
    %2817 = vrot.lane.b32.xlu0 %v1398, 48
    %v2818 = vpop.permute.xlu0 %2817
    %2819 = vrot.lane.b32.xlu0 %v1403, 48
    %v2820 = vpop.permute.xlu0 %2819
    %2821 = vrot.lane.b32.xlu0 %v1408, 48
    %v2822 = vpop.permute.xlu0 %2821
    %2823 = vrot.lane.b32.xlu0 %v1413, 48
    %v2824 = vpop.permute.xlu0 %2823
    %2825 = vrot.lane.b32.xlu0 %v1418, 48
    %v2826 = vpop.permute.xlu0 %2825
    %v2836 = vsel %vm1644, %v2796, 0
    %v2839 = vsel %vm1644, %v2798, 0
    %v2842 = vsel %vm1644, %v2800, 0
    %v2845 = vsel %vm1644, %v2802, 0
    %v2848 = vsel %vm1644, %v2804, 0
    %v2851 = vsel %vm1644, %v2806, 0
    %v2854 = vsel %vm1644, %v2808, 0
    %v2857 = vsel %vm1644, %v2810, 0
    %2859 = vmatprep.subr.mxu0 0.0
    %2860 = vmatpush1.msra.mxu0 0.0
    %2861 = vmatprep.subr.mxu0 0.0
    %2862 = vmatpush1.msra.mxu0 0.0
    %2863 = vmatprep.subr.mxu0 0.0
    %2864 = vmatpush1.msra.mxu0 0.0
    %2865 = vmatprep.subr.mxu0 0.0
    %2866 = vmatpush1.msra.mxu0 0.0
    %2867 = vmatprep.subr.mxu0 0.0
    %2868 = vmatpush1.msra.mxu0 0.0
    %2869 = vmatprep.subr.mxu0 0.0
    %2870 = vmatpush1.msra.mxu0 0.0
    %2871 = vmatprep.subr.mxu0 0.0
    %2872 = vmatpush1.msra.mxu0 0.0
    %2873 = vmatprep.subr.mxu0 0.0
    %2874 = vmatpush1.msra.mxu0 0.0
    %2875 = vmatprep.subr.mxu0 0.0
    %2876 = vmatpush1.msra.mxu0 %v2826
    %2877 = vmatprep.subr.mxu0 0.0
    %2878 = vmatpush1.msra.mxu0 %v2824
    %2879 = vmatprep.subr.mxu0 0.0
    %2880 = vmatpush1.msra.mxu0 %v2822
    %2881 = vmatprep.subr.mxu0 0.0
    %2882 = vmatpush1.msra.mxu0 %v2820
    %2883 = vmatprep.subr.mxu0 0.0
    %2884 = vmatpush1.msra.mxu0 %v2818
    %2885 = vmatprep.subr.mxu0 0.0
    %2886 = vmatpush1.msra.mxu0 %v2816
    %2887 = vmatprep.subr.mxu0 0.0
    %2888 = vmatpush1.msra.mxu0 %v2814
    %2889 = vmatprep.subr.mxu0 0.0
    %2890 = vmatpush1.msra.mxu0 %v2812
    %2891 = vmatprep.subr.mxu0 0.0
    %2892 = vmatpush2.msra.mxu0 0.0
    %2893 = vmatprep.subr.mxu0 0.0
    %2894 = vmatpush2.msra.mxu0 0.0
    %2895 = vmatprep.subr.mxu0 0.0
    %2896 = vmatpush2.msra.mxu0 0.0
    %2897 = vmatprep.subr.mxu0 0.0
    %2898 = vmatpush2.msra.mxu0 0.0
    %2899 = vmatprep.subr.mxu0 0.0
    %2900 = vmatpush2.msra.mxu0 0.0
    %2901 = vmatprep.subr.mxu0 0.0
    %2902 = vmatpush2.msra.mxu0 0.0
    %2903 = vmatprep.subr.mxu0 0.0
    %2904 = vmatpush2.msra.mxu0 0.0
    %2905 = vmatprep.subr.mxu0 0.0
    %2906 = vmatpush2.msra.mxu0 0.0
    %2907 = vmatprep.subr.mxu0 0.0
    %2908 = vmatpush2.msra.mxu0 0.0
    %2909 = vmatprep.subr.mxu0 0.0
    %2910 = vmatpush2.msra.mxu0 0.0
    %2911 = vmatprep.subr.mxu0 0.0
    %2912 = vmatpush2.msra.mxu0 0.0
    %2913 = vmatprep.subr.mxu0 0.0
    %2914 = vmatpush2.msra.mxu0 0.0
    %2915 = vmatprep.subr.mxu0 0.0
    %2916 = vmatpush2.msra.mxu0 0.0
    %2917 = vmatprep.subr.mxu0 0.0
    %2918 = vmatpush2.msra.mxu0 0.0
    %2919 = vmatprep.subr.mxu0 0.0
    %2920 = vmatpush2.msra.mxu0 0.0
    %2921 = vmatprep.subr.mxu0 0.0
    %2922 = vmatpush2.msra.mxu0 0.0
    %2923 = vmatprep.mubr.f32.mxu0 0.0
    %2924 = vmatmul.mubr.f32.gmra.mxu0 %v2836
    %v2925 = vpop.f32.mrf.mxu0
    %v2926 = vadd.f32 0.0, %v2925
    %v2927 = vpop.f32.mrf.mxu0
    %2928 = vmatprep.mubr.f32.mxu0 0.0
    %2929 = vmatmul.mubr.f32.gmra.mxu0 %v2839
    %v2930 = vpop.f32.mrf.mxu0
    %v2931 = vadd.f32 0.0, %v2930
    %v2932 = vpop.f32.mrf.mxu0
    %2933 = vmatprep.mubr.f32.mxu0 0.0
    %2934 = vmatmul.mubr.f32.gmra.mxu0 %v2842
    %v2935 = vpop.f32.mrf.mxu0
    %v2936 = vadd.f32 0.0, %v2935
    %v2937 = vpop.f32.mrf.mxu0
    %2938 = vmatprep.mubr.f32.mxu0 0.0
    %2939 = vmatmul.mubr.f32.gmra.mxu0 %v2845
    %v2940 = vpop.f32.mrf.mxu0
    %v2941 = vadd.f32 0.0, %v2940
    %v2942 = vpop.f32.mrf.mxu0
    %2943 = vmatprep.mubr.f32.mxu0 0.0
    %2944 = vmatmul.mubr.f32.gmra.mxu0 %v2848
    %v2945 = vpop.f32.mrf.mxu0
    %v2946 = vadd.f32 0.0, %v2945
    %v2947 = vpop.f32.mrf.mxu0
    %2948 = vmatprep.mubr.f32.mxu0 0.0
    %2949 = vmatmul.mubr.f32.gmra.mxu0 %v2851
    %v2950 = vpop.f32.mrf.mxu0
    %v2951 = vadd.f32 0.0, %v2950
    %v2952 = vpop.f32.mrf.mxu0
    %2953 = vmatprep.mubr.f32.mxu0 0.0
    %2954 = vmatmul.mubr.f32.gmra.mxu0 %v2854
    %v2955 = vpop.f32.mrf.mxu0
    %v2956 = vadd.f32 0.0, %v2955
    %v2957 = vpop.f32.mrf.mxu0
    %2958 = vmatprep.mubr.f32.mxu0 0.0
    %2959 = vmatmul.mubr.f32.gmra.mxu0 %v2857
    %v2960 = vpop.f32.mrf.mxu0
    %v2961 = vadd.f32 0.0, %v2960
    %v2962 = vpop.f32.mrf.mxu0
    %2963 = vdwg.mxu0
    %v2965 = vsel %vm1498, %v2926, 0
    %v2968 = vsel %vm1498, %v2931, 0
    %v2971 = vsel %vm1498, %v2936, 0
    %v2974 = vsel %vm1498, %v2941, 0
    %v2977 = vsel %vm1498, %v2946, 0
    %v2980 = vsel %vm1498, %v2951, 0
    %v2983 = vsel %vm1498, %v2956, 0
    %v2986 = vsel %vm1498, %v2961, 0
    %2988 = vmatprep.subr.mxu0 0.0
    %2989 = vmatpush1.msra.mxu0 0.0
    %2990 = vmatprep.subr.mxu0 0.0
    %2991 = vmatpush1.msra.mxu0 0.0
    %2992 = vmatprep.subr.mxu0 0.0
    %2993 = vmatpush1.msra.mxu0 0.0
    %2994 = vmatprep.subr.mxu0 0.0
    %2995 = vmatpush1.msra.mxu0 0.0
    %2996 = vmatprep.subr.mxu0 0.0
    %2997 = vmatpush1.msra.mxu0 0.0
    %2998 = vmatprep.subr.mxu0 0.0
    %2999 = vmatpush1.msra.mxu0 0.0
    %3000 = vmatprep.subr.mxu0 0.0
    %3001 = vmatpush1.msra.mxu0 0.0
    %3002 = vmatprep.subr.mxu0 0.0
    %3003 = vmatpush1.msra.mxu0 0.0
    %3004 = vmatprep.subr.mxu0 0.0
    %3005 = vmatpush1.msra.mxu0 0.0
    %3006 = vmatprep.subr.mxu0 0.0
    %3007 = vmatpush1.msra.mxu0 0.0
    %3008 = vmatprep.subr.mxu0 0.0
    %3009 = vmatpush1.msra.mxu0 0.0
    %3010 = vmatprep.subr.mxu0 0.0
    %3011 = vmatpush1.msra.mxu0 0.0
    %3012 = vmatprep.subr.mxu0 0.0
    %3013 = vmatpush1.msra.mxu0 0.0
    %3014 = vmatprep.subr.mxu0 0.0
    %3015 = vmatpush1.msra.mxu0 0.0
    %3016 = vmatprep.subr.mxu0 0.0
    %3017 = vmatpush1.msra.mxu0 0.0
    %3018 = vmatprep.subr.mxu0 0.0
    %3019 = vmatpush1.msra.mxu0 %v1463
    %3020 = vmatprep.subr.mxu0 0.0
    %3021 = vmatpush2.msra.mxu0 0.0
    %3022 = vmatprep.subr.mxu0 0.0
    %3023 = vmatpush2.msra.mxu0 0.0
    %3024 = vmatprep.subr.mxu0 0.0
    %3025 = vmatpush2.msra.mxu0 0.0
    %3026 = vmatprep.subr.mxu0 0.0
    %3027 = vmatpush2.msra.mxu0 0.0
    %3028 = vmatprep.subr.mxu0 0.0
    %3029 = vmatpush2.msra.mxu0 0.0
    %3030 = vmatprep.subr.mxu0 0.0
    %3031 = vmatpush2.msra.mxu0 0.0
    %3032 = vmatprep.subr.mxu0 0.0
    %3033 = vmatpush2.msra.mxu0 0.0
    %3034 = vmatprep.subr.mxu0 0.0
    %3035 = vmatpush2.msra.mxu0 0.0
    %3036 = vmatprep.subr.mxu0 0.0
    %3037 = vmatpush2.msra.mxu0 0.0
    %3038 = vmatprep.subr.mxu0 0.0
    %3039 = vmatpush2.msra.mxu0 0.0
    %3040 = vmatprep.subr.mxu0 0.0
    %3041 = vmatpush2.msra.mxu0 0.0
    %3042 = vmatprep.subr.mxu0 0.0
    %3043 = vmatpush2.msra.mxu0 0.0
    %3044 = vmatprep.subr.mxu0 0.0
    %3045 = vmatpush2.msra.mxu0 0.0
    %3046 = vmatprep.subr.mxu0 0.0
    %3047 = vmatpush2.msra.mxu0 0.0
    %3048 = vmatprep.subr.mxu0 0.0
    %3049 = vmatpush2.msra.mxu0 0.0
    %3050 = vmatprep.subr.mxu0 0.0
    %3051 = vmatpush2.msra.mxu0 0.0
    %3052 = vmatprep.mubr.f32.mxu0 0.0
    %3053 = vmatmul.mubr.f32.gmra.mxu0 %v2965
    %v3054 = vpop.f32.mrf.mxu0
    %v3055 = vadd.f32 0.0, %v3054
    %v3056 = vpop.f32.mrf.mxu0
    %3057 = vmatprep.mubr.f32.mxu0 0.0
    %3058 = vmatmul.mubr.f32.gmra.mxu0 %v2968
    %v3059 = vpop.f32.mrf.mxu0
    %v3060 = vadd.f32 0.0, %v3059
    %v3061 = vpop.f32.mrf.mxu0
    %3062 = vmatprep.mubr.f32.mxu0 0.0
    %3063 = vmatmul.mubr.f32.gmra.mxu0 %v2971
    %v3064 = vpop.f32.mrf.mxu0
    %v3065 = vadd.f32 0.0, %v3064
    %v3066 = vpop.f32.mrf.mxu0
    %3067 = vmatprep.mubr.f32.mxu0 0.0
    %3068 = vmatmul.mubr.f32.gmra.mxu0 %v2974
    %v3069 = vpop.f32.mrf.mxu0
    %v3070 = vadd.f32 0.0, %v3069
    %v3071 = vpop.f32.mrf.mxu0
    %3072 = vmatprep.mubr.f32.mxu0 0.0
    %3073 = vmatmul.mubr.f32.gmra.mxu0 %v2977
    %v3074 = vpop.f32.mrf.mxu0
    %v3075 = vadd.f32 0.0, %v3074
    %v3076 = vpop.f32.mrf.mxu0
    %3077 = vmatprep.mubr.f32.mxu0 0.0
    %3078 = vmatmul.mubr.f32.gmra.mxu0 %v2980
    %v3079 = vpop.f32.mrf.mxu0
    %v3080 = vadd.f32 0.0, %v3079
    %v3081 = vpop.f32.mrf.mxu0
    %3082 = vmatprep.mubr.f32.mxu0 0.0
    %3083 = vmatmul.mubr.f32.gmra.mxu0 %v2983
    %v3084 = vpop.f32.mrf.mxu0
    %v3085 = vadd.f32 0.0, %v3084
    %v3086 = vpop.f32.mrf.mxu0
    %3087 = vmatprep.mubr.f32.mxu0 0.0
    %3088 = vmatmul.mubr.f32.gmra.mxu0 %v2986
    %v3089 = vpop.f32.mrf.mxu0
    %v3090 = vadd.f32 0.0, %v3089
    %v3091 = vpop.f32.mrf.mxu0
    %3092 = vdwg.mxu0
    %v3093 = vadd.f32 %v2516, %v3055
    %v3094 = vadd.f32 %v2521, %v3060
    %v3095 = vadd.f32 %v2526, %v3065
    %v3096 = vadd.f32 %v2531, %v3070
    %v3097 = vadd.f32 %v2536, %v3075
    %v3098 = vadd.f32 %v2541, %v3080
    %v3099 = vadd.f32 %v2546, %v3085
    %v3100 = vadd.f32 %v2551, %v3090
    %3101 = vrot.lane.b32.xlu0 %v1466, 104
    %v3102 = vpop.permute.xlu0 %3101
    %3103 = vrot.lane.b32.xlu0 %v1467, 104
    %v3104 = vpop.permute.xlu0 %3103
    %3105 = vrot.lane.b32.xlu0 %v1468, 104
    %v3106 = vpop.permute.xlu0 %3105
    %3107 = vrot.lane.b32.xlu0 %v1469, 104
    %v3108 = vpop.permute.xlu0 %3107
    %3109 = vrot.lane.b32.xlu0 %v1470, 104
    %v3110 = vpop.permute.xlu0 %3109
    %3111 = vrot.lane.b32.xlu0 %v1471, 104
    %v3112 = vpop.permute.xlu0 %3111
    %3113 = vrot.lane.b32.xlu0 %v1472, 104
    %v3114 = vpop.permute.xlu0 %3113
    %3115 = vrot.lane.b32.xlu0 %v1473, 104
    %v3116 = vpop.permute.xlu0 %3115
    %3117 = vrot.lane.b32.xlu0 %v1383, 72
    %v3118 = vpop.permute.xlu0 %3117
    %3119 = vrot.lane.b32.xlu0 %v1388, 72
    %v3120 = vpop.permute.xlu0 %3119
    %3121 = vrot.lane.b32.xlu0 %v1393, 72
    %v3122 = vpop.permute.xlu0 %3121
    %3123 = vrot.lane.b32.xlu0 %v1398, 72
    %v3124 = vpop.permute.xlu0 %3123
    %3125 = vrot.lane.b32.xlu0 %v1403, 72
    %v3126 = vpop.permute.xlu0 %3125
    %3127 = vrot.lane.b32.xlu0 %v1408, 72
    %v3128 = vpop.permute.xlu0 %3127
    %3129 = vrot.lane.b32.xlu0 %v1413, 72
    %v3130 = vpop.permute.xlu0 %3129
    %3131 = vrot.lane.b32.xlu0 %v1418, 72
    %v3132 = vpop.permute.xlu0 %3131
    %v3133 = vsel %vm1498, %v3102, 0
    %v3135 = vsel %vm1498, %v3104, 0
    %v3137 = vsel %vm1498, %v3106, 0
    %v3139 = vsel %vm1498, %v3108, 0
    %v3141 = vsel %vm1498, %v3110, 0
    %v3143 = vsel %vm1498, %v3112, 0
    %v3145 = vsel %vm1498, %v3114, 0
    %v3147 = vsel %vm1498, %v3116, 0
    %v3149 = vsel %vm1498, %v3118, 0
    %v3151 = vsel %vm1498, %v3120, 0
    %v3153 = vsel %vm1498, %v3122, 0
    %v3155 = vsel %vm1498, %v3124, 0
    %v3157 = vsel %vm1498, %v3126, 0
    %v3159 = vsel %vm1498, %v3128, 0
    %v3161 = vsel %vm1498, %v3130, 0
    %v3163 = vsel %vm1498, %v3132, 0
    %3165 = vmatprep.subr.mxu0 0.0
    %3166 = vmatpush1.xpose.msra.mxu0 0.0
    %3167 = vmatprep.subr.mxu0 0.0
    %3168 = vmatpush1.xpose.msra.mxu0 0.0
    %3169 = vmatprep.subr.mxu0 0.0
    %3170 = vmatpush1.xpose.msra.mxu0 0.0
    %3171 = vmatprep.subr.mxu0 0.0
    %3172 = vmatpush1.xpose.msra.mxu0 0.0
    %3173 = vmatprep.subr.mxu0 0.0
    %3174 = vmatpush1.xpose.msra.mxu0 0.0
    %3175 = vmatprep.subr.mxu0 0.0
    %3176 = vmatpush1.xpose.msra.mxu0 0.0
    %3177 = vmatprep.subr.mxu0 0.0
    %3178 = vmatpush1.xpose.msra.mxu0 0.0
    %3179 = vmatprep.subr.mxu0 0.0
    %3180 = vmatpush1.xpose.msra.mxu0 0.0
    %3181 = vmatprep.subr.mxu0 0.0
    %3182 = vmatpush1.xpose.msra.mxu0 %v3163
    %3183 = vmatprep.subr.mxu0 0.0
    %3184 = vmatpush1.xpose.msra.mxu0 %v3161
    %3185 = vmatprep.subr.mxu0 0.0
    %3186 = vmatpush1.xpose.msra.mxu0 %v3159
    %3187 = vmatprep.subr.mxu0 0.0
    %3188 = vmatpush1.xpose.msra.mxu0 %v3157
    %3189 = vmatprep.subr.mxu0 0.0
    %3190 = vmatpush1.xpose.msra.mxu0 %v3155
    %3191 = vmatprep.subr.mxu0 0.0
    %3192 = vmatpush1.xpose.msra.mxu0 %v3153
    %3193 = vmatprep.subr.mxu0 0.0
    %3194 = vmatpush1.xpose.msra.mxu0 %v3151
    %3195 = vmatprep.subr.mxu0 0.0
    %3196 = vmatpush1.xpose.msra.mxu0 %v3149
    %3197 = vmatprep.subr.mxu0 0.0
    %3198 = vmatpush2.xpose.msra.mxu0 0.0
    %3199 = vmatprep.subr.mxu0 0.0
    %3200 = vmatpush2.xpose.msra.mxu0 0.0
    %3201 = vmatprep.subr.mxu0 0.0
    %3202 = vmatpush2.xpose.msra.mxu0 0.0
    %3203 = vmatprep.subr.mxu0 0.0
    %3204 = vmatpush2.xpose.msra.mxu0 0.0
    %3205 = vmatprep.subr.mxu0 0.0
    %3206 = vmatpush2.xpose.msra.mxu0 0.0
    %3207 = vmatprep.subr.mxu0 0.0
    %3208 = vmatpush2.xpose.msra.mxu0 0.0
    %3209 = vmatprep.subr.mxu0 0.0
    %3210 = vmatpush2.xpose.msra.mxu0 0.0
    %3211 = vmatprep.subr.mxu0 0.0
    %3212 = vmatpush2.xpose.msra.mxu0 0.0
    %3213 = vmatprep.subr.mxu0 0.0
    %3214 = vmatpush2.xpose.msra.mxu0 0.0
    %3215 = vmatprep.subr.mxu0 0.0
    %3216 = vmatpush2.xpose.msra.mxu0 0.0
    %3217 = vmatprep.subr.mxu0 0.0
    %3218 = vmatpush2.xpose.msra.mxu0 0.0
    %3219 = vmatprep.subr.mxu0 0.0
    %3220 = vmatpush2.xpose.msra.mxu0 0.0
    %3221 = vmatprep.subr.mxu0 0.0
    %3222 = vmatpush2.xpose.msra.mxu0 0.0
    %3223 = vmatprep.subr.mxu0 0.0
    %3224 = vmatpush2.xpose.msra.mxu0 0.0
    %3225 = vmatprep.subr.mxu0 0.0
    %3226 = vmatpush2.xpose.msra.mxu0 0.0
    %3227 = vmatprep.subr.mxu0 0.0
    %3228 = vmatpush2.xpose.msra.mxu0 0.0
    %3229 = vmatprep.mubr.f32.mxu0 0.0
    %3230 = vmatmul.mubr.f32.gmra.mxu0 %v3133
    %v3231 = vpop.f32.mrf.mxu0
    %v3232 = vadd.f32 0.0, %v3231
    %v3233 = vpop.f32.mrf.mxu0
    %3234 = vmatprep.mubr.f32.mxu0 0.0
    %3235 = vmatmul.mubr.f32.gmra.mxu0 %v3135
    %v3236 = vpop.f32.mrf.mxu0
    %v3237 = vadd.f32 0.0, %v3236
    %v3238 = vpop.f32.mrf.mxu0
    %3239 = vmatprep.mubr.f32.mxu0 0.0
    %3240 = vmatmul.mubr.f32.gmra.mxu0 %v3137
    %v3241 = vpop.f32.mrf.mxu0
    %v3242 = vadd.f32 0.0, %v3241
    %v3243 = vpop.f32.mrf.mxu0
    %3244 = vmatprep.mubr.f32.mxu0 0.0
    %3245 = vmatmul.mubr.f32.gmra.mxu0 %v3139
    %v3246 = vpop.f32.mrf.mxu0
    %v3247 = vadd.f32 0.0, %v3246
    %v3248 = vpop.f32.mrf.mxu0
    %3249 = vmatprep.mubr.f32.mxu0 0.0
    %3250 = vmatmul.mubr.f32.gmra.mxu0 %v3141
    %v3251 = vpop.f32.mrf.mxu0
    %v3252 = vadd.f32 0.0, %v3251
    %v3253 = vpop.f32.mrf.mxu0
    %3254 = vmatprep.mubr.f32.mxu0 0.0
    %3255 = vmatmul.mubr.f32.gmra.mxu0 %v3143
    %v3256 = vpop.f32.mrf.mxu0
    %v3257 = vadd.f32 0.0, %v3256
    %v3258 = vpop.f32.mrf.mxu0
    %3259 = vmatprep.mubr.f32.mxu0 0.0
    %3260 = vmatmul.mubr.f32.gmra.mxu0 %v3145
    %v3261 = vpop.f32.mrf.mxu0
    %v3262 = vadd.f32 0.0, %v3261
    %v3263 = vpop.f32.mrf.mxu0
    %3264 = vmatprep.mubr.f32.mxu0 0.0
    %3265 = vmatmul.mubr.f32.gmra.mxu0 %v3147
    %v3266 = vpop.f32.mrf.mxu0
    %v3267 = vadd.f32 0.0, %v3266
    %v3268 = vpop.f32.mrf.mxu0
    %3269 = vdwg.mxu0
    %v3270 = vsel %vm1644, %v3232, -inf
    %3271 = vmax.xlane.f32.xlu0 %v3270
    %v3272 = vpop.xlane.xlu0 %3271
    %v3273 = vsel %vm1644, %v3237, -inf
    %3274 = vmax.xlane.f32.xlu0 %v3273
    %v3275 = vpop.xlane.xlu0 %3274
    %v3276 = vsel %vm1644, %v3242, -inf
    %3277 = vmax.xlane.f32.xlu0 %v3276
    %v3278 = vpop.xlane.xlu0 %3277
    %v3279 = vsel %vm1644, %v3247, -inf
    %3280 = vmax.xlane.f32.xlu0 %v3279
    %v3281 = vpop.xlane.xlu0 %3280
    %v3282 = vsel %vm1644, %v3252, -inf
    %3283 = vmax.xlane.f32.xlu0 %v3282
    %v3284 = vpop.xlane.xlu0 %3283
    %v3285 = vsel %vm1644, %v3257, -inf
    %3286 = vmax.xlane.f32.xlu0 %v3285
    %v3287 = vpop.xlane.xlu0 %3286
    %v3288 = vsel %vm1644, %v3262, -inf
    %3289 = vmax.xlane.f32.xlu0 %v3288
    %v3290 = vpop.xlane.xlu0 %3289
    %v3291 = vsel %vm1644, %v3267, -inf
    %3292 = vmax.xlane.f32.xlu0 %v3291
    %v3293 = vpop.xlane.xlu0 %3292
    %v3294 = vsub.f32 %v3232, %v3272
    %v3295 = vsub.f32 %v3237, %v3275
    %v3296 = vsub.f32 %v3242, %v3278
    %v3297 = vsub.f32 %v3247, %v3281
    %v3298 = vsub.f32 %v3252, %v3284
    %v3299 = vsub.f32 %v3257, %v3287
    %v3300 = vsub.f32 %v3262, %v3290
    %v3301 = vsub.f32 %v3267, %v3293
    %v3302 = vmul.f32 %v3294, 1.442695
    %v3303 = vpow.pop %v3302
    %v3304 = vmul.f32 %v3295, 1.442695
    %v3305 = vpow.pop %v3304
    %v3306 = vmul.f32 %v3296, 1.442695
    %v3307 = vpow.pop %v3306
    %v3308 = vmul.f32 %v3297, 1.442695
    %v3309 = vpow.pop %v3308
    %v3310 = vmul.f32 %v3298, 1.442695
    %v3311 = vpow.pop %v3310
    %v3312 = vmul.f32 %v3299, 1.442695
    %v3313 = vpow.pop %v3312
    %v3314 = vmul.f32 %v3300, 1.442695
    %v3315 = vpow.pop %v3314
    %v3316 = vmul.f32 %v3301, 1.442695
    %v3317 = vpow.pop %v3316
    %v3318 = vsel %vm1644, %v3303, 0.0
    %3319 = vadd.xlane.f32.xlu0 %v3318
    %v3320 = vpop.xlane.xlu0 %3319
    %v3321 = vsel %vm1644, %v3305, 0.0
    %3322 = vadd.xlane.f32.xlu0 %v3321
    %v3323 = vpop.xlane.xlu0 %3322
    %v3324 = vsel %vm1644, %v3307, 0.0
    %3325 = vadd.xlane.f32.xlu0 %v3324
    %v3326 = vpop.xlane.xlu0 %3325
    %v3327 = vsel %vm1644, %v3309, 0.0
    %3328 = vadd.xlane.f32.xlu0 %v3327
    %v3329 = vpop.xlane.xlu0 %3328
    %v3330 = vsel %vm1644, %v3311, 0.0
    %3331 = vadd.xlane.f32.xlu0 %v3330
    %v3332 = vpop.xlane.xlu0 %3331
    %v3333 = vsel %vm1644, %v3313, 0.0
    %3334 = vadd.xlane.f32.xlu0 %v3333
    %v3335 = vpop.xlane.xlu0 %3334
    %v3336 = vsel %vm1644, %v3315, 0.0
    %3337 = vadd.xlane.f32.xlu0 %v3336
    %v3338 = vpop.xlane.xlu0 %3337
    %v3339 = vsel %vm1644, %v3317, 0.0
    %3340 = vadd.xlane.f32.xlu0 %v3339
    %v3341 = vpop.xlane.xlu0 %3340
    %v3342 = vrcp.pop %v3320
    %v3343 = vmul.f32 %v3303, %v3342
    %v3344 = vrcp.pop %v3323
    %v3345 = vmul.f32 %v3305, %v3344
    %v3346 = vrcp.pop %v3326
    %v3347 = vmul.f32 %v3307, %v3346
    %v3348 = vrcp.pop %v3329
    %v3349 = vmul.f32 %v3309, %v3348
    %v3350 = vrcp.pop %v3332
    %v3351 = vmul.f32 %v3311, %v3350
    %v3352 = vrcp.pop %v3335
    %v3353 = vmul.f32 %v3313, %v3352
    %v3354 = vrcp.pop %v3338
    %v3355 = vmul.f32 %v3315, %v3354
    %v3356 = vrcp.pop %v3341
    %v3357 = vmul.f32 %v3317, %v3356
    %3358 = vrot.lane.b32.xlu0 %v1383, 40
    %v3359 = vpop.permute.xlu0 %3358
    %3360 = vrot.lane.b32.xlu0 %v1388, 40
    %v3361 = vpop.permute.xlu0 %3360
    %3362 = vrot.lane.b32.xlu0 %v1393, 40
    %v3363 = vpop.permute.xlu0 %3362
    %3364 = vrot.lane.b32.xlu0 %v1398, 40
    %v3365 = vpop.permute.xlu0 %3364
    %3366 = vrot.lane.b32.xlu0 %v1403, 40
    %v3367 = vpop.permute.xlu0 %3366
    %3368 = vrot.lane.b32.xlu0 %v1408, 40
    %v3369 = vpop.permute.xlu0 %3368
    %3370 = vrot.lane.b32.xlu0 %v1413, 40
    %v3371 = vpop.permute.xlu0 %3370
    %3372 = vrot.lane.b32.xlu0 %v1418, 40
    %v3373 = vpop.permute.xlu0 %3372
    %v3383 = vsel %vm1644, %v3343, 0
    %v3386 = vsel %vm1644, %v3345, 0
    %v3389 = vsel %vm1644, %v3347, 0
    %v3392 = vsel %vm1644, %v3349, 0
    %v3395 = vsel %vm1644, %v3351, 0
    %v3398 = vsel %vm1644, %v3353, 0
    %v3401 = vsel %vm1644, %v3355, 0
    %v3404 = vsel %vm1644, %v3357, 0
    %3406 = vmatprep.subr.mxu0 0.0
    %3407 = vmatpush1.msra.mxu0 0.0
    %3408 = vmatprep.subr.mxu0 0.0
    %3409 = vmatpush1.msra.mxu0 0.0
    %3410 = vmatprep.subr.mxu0 0.0
    %3411 = vmatpush1.msra.mxu0 0.0
    %3412 = vmatprep.subr.mxu0 0.0
    %3413 = vmatpush1.msra.mxu0 0.0
    %3414 = vmatprep.subr.mxu0 0.0
    %3415 = vmatpush1.msra.mxu0 0.0
    %3416 = vmatprep.subr.mxu0 0.0
    %3417 = vmatpush1.msra.mxu0 0.0
    %3418 = vmatprep.subr.mxu0 0.0
    %3419 = vmatpush1.msra.mxu0 0.0
    %3420 = vmatprep.subr.mxu0 0.0
    %3421 = vmatpush1.msra.mxu0 0.0
    %3422 = vmatprep.subr.mxu0 0.0
    %3423 = vmatpush1.msra.mxu0 %v3373
    %3424 = vmatprep.subr.mxu0 0.0
    %3425 = vmatpush1.msra.mxu0 %v3371
    %3426 = vmatprep.subr.mxu0 0.0
    %3427 = vmatpush1.msra.mxu0 %v3369
    %3428 = vmatprep.subr.mxu0 0.0
    %3429 = vmatpush1.msra.mxu0 %v3367
    %3430 = vmatprep.subr.mxu0 0.0
    %3431 = vmatpush1.msra.mxu0 %v3365
    %3432 = vmatprep.subr.mxu0 0.0
    %3433 = vmatpush1.msra.mxu0 %v3363
    %3434 = vmatprep.subr.mxu0 0.0
    %3435 = vmatpush1.msra.mxu0 %v3361
    %3436 = vmatprep.subr.mxu0 0.0
    %3437 = vmatpush1.msra.mxu0 %v3359
    %3438 = vmatprep.subr.mxu0 0.0
    %3439 = vmatpush2.msra.mxu0 0.0
    %3440 = vmatprep.subr.mxu0 0.0
    %3441 = vmatpush2.msra.mxu0 0.0
    %3442 = vmatprep.subr.mxu0 0.0
    %3443 = vmatpush2.msra.mxu0 0.0
    %3444 = vmatprep.subr.mxu0 0.0
    %3445 = vmatpush2.msra.mxu0 0.0
    %3446 = vmatprep.subr.mxu0 0.0
    %3447 = vmatpush2.msra.mxu0 0.0
    %3448 = vmatprep.subr.mxu0 0.0
    %3449 = vmatpush2.msra.mxu0 0.0
    %3450 = vmatprep.subr.mxu0 0.0
    %3451 = vmatpush2.msra.mxu0 0.0
    %3452 = vmatprep.subr.mxu0 0.0
    %3453 = vmatpush2.msra.mxu0 0.0
    %3454 = vmatprep.subr.mxu0 0.0
    %3455 = vmatpush2.msra.mxu0 0.0
    %3456 = vmatprep.subr.mxu0 0.0
    %3457 = vmatpush2.msra.mxu0 0.0
    %3458 = vmatprep.subr.mxu0 0.0
    %3459 = vmatpush2.msra.mxu0 0.0
    %3460 = vmatprep.subr.mxu0 0.0
    %3461 = vmatpush2.msra.mxu0 0.0
    %3462 = vmatprep.subr.mxu0 0.0
    %3463 = vmatpush2.msra.mxu0 0.0
    %3464 = vmatprep.subr.mxu0 0.0
    %3465 = vmatpush2.msra.mxu0 0.0
    %3466 = vmatprep.subr.mxu0 0.0
    %3467 = vmatpush2.msra.mxu0 0.0
    %3468 = vmatprep.subr.mxu0 0.0
    %3469 = vmatpush2.msra.mxu0 0.0
    %3470 = vmatprep.mubr.f32.mxu0 0.0
    %3471 = vmatmul.mubr.f32.gmra.mxu0 %v3383
    %v3472 = vpop.f32.mrf.mxu0
    %v3473 = vadd.f32 0.0, %v3472
    %v3474 = vpop.f32.mrf.mxu0
    %3475 = vmatprep.mubr.f32.mxu0 0.0
    %3476 = vmatmul.mubr.f32.gmra.mxu0 %v3386
    %v3477 = vpop.f32.mrf.mxu0
    %v3478 = vadd.f32 0.0, %v3477
    %v3479 = vpop.f32.mrf.mxu0
    %3480 = vmatprep.mubr.f32.mxu0 0.0
    %3481 = vmatmul.mubr.f32.gmra.mxu0 %v3389
    %v3482 = vpop.f32.mrf.mxu0
    %v3483 = vadd.f32 0.0, %v3482
    %v3484 = vpop.f32.mrf.mxu0
    %3485 = vmatprep.mubr.f32.mxu0 0.0
    %3486 = vmatmul.mubr.f32.gmra.mxu0 %v3392
    %v3487 = vpop.f32.mrf.mxu0
    %v3488 = vadd.f32 0.0, %v3487
    %v3489 = vpop.f32.mrf.mxu0
    %3490 = vmatprep.mubr.f32.mxu0 0.0
    %3491 = vmatmul.mubr.f32.gmra.mxu0 %v3395
    %v3492 = vpop.f32.mrf.mxu0
    %v3493 = vadd.f32 0.0, %v3492
    %v3494 = vpop.f32.mrf.mxu0
    %3495 = vmatprep.mubr.f32.mxu0 0.0
    %3496 = vmatmul.mubr.f32.gmra.mxu0 %v3398
    %v3497 = vpop.f32.mrf.mxu0
    %v3498 = vadd.f32 0.0, %v3497
    %v3499 = vpop.f32.mrf.mxu0
    %3500 = vmatprep.mubr.f32.mxu0 0.0
    %3501 = vmatmul.mubr.f32.gmra.mxu0 %v3401
    %v3502 = vpop.f32.mrf.mxu0
    %v3503 = vadd.f32 0.0, %v3502
    %v3504 = vpop.f32.mrf.mxu0
    %3505 = vmatprep.mubr.f32.mxu0 0.0
    %3506 = vmatmul.mubr.f32.gmra.mxu0 %v3404
    %v3507 = vpop.f32.mrf.mxu0
    %v3508 = vadd.f32 0.0, %v3507
    %v3509 = vpop.f32.mrf.mxu0
    %3510 = vdwg.mxu0
    %v3512 = vsel %vm1498, %v3473, 0
    %v3515 = vsel %vm1498, %v3478, 0
    %v3518 = vsel %vm1498, %v3483, 0
    %v3521 = vsel %vm1498, %v3488, 0
    %v3524 = vsel %vm1498, %v3493, 0
    %v3527 = vsel %vm1498, %v3498, 0
    %v3530 = vsel %vm1498, %v3503, 0
    %v3533 = vsel %vm1498, %v3508, 0
    %3535 = vmatprep.subr.mxu0 0.0
    %3536 = vmatpush1.msra.mxu0 0.0
    %3537 = vmatprep.subr.mxu0 0.0
    %3538 = vmatpush1.msra.mxu0 0.0
    %3539 = vmatprep.subr.mxu0 0.0
    %3540 = vmatpush1.msra.mxu0 0.0
    %3541 = vmatprep.subr.mxu0 0.0
    %3542 = vmatpush1.msra.mxu0 0.0
    %3543 = vmatprep.subr.mxu0 0.0
    %3544 = vmatpush1.msra.mxu0 0.0
    %3545 = vmatprep.subr.mxu0 0.0
    %3546 = vmatpush1.msra.mxu0 0.0
    %3547 = vmatprep.subr.mxu0 0.0
    %3548 = vmatpush1.msra.mxu0 0.0
    %3549 = vmatprep.subr.mxu0 0.0
    %3550 = vmatpush1.msra.mxu0 0.0
    %3551 = vmatprep.subr.mxu0 0.0
    %3552 = vmatpush1.msra.mxu0 0.0
    %3553 = vmatprep.subr.mxu0 0.0
    %3554 = vmatpush1.msra.mxu0 0.0
    %3555 = vmatprep.subr.mxu0 0.0
    %3556 = vmatpush1.msra.mxu0 0.0
    %3557 = vmatprep.subr.mxu0 0.0
    %3558 = vmatpush1.msra.mxu0 0.0
    %3559 = vmatprep.subr.mxu0 0.0
    %3560 = vmatpush1.msra.mxu0 0.0
    %3561 = vmatprep.subr.mxu0 0.0
    %3562 = vmatpush1.msra.mxu0 0.0
    %3563 = vmatprep.subr.mxu0 0.0
    %3564 = vmatpush1.msra.mxu0 0.0
    %3565 = vmatprep.subr.mxu0 0.0
    %3566 = vmatpush1.msra.mxu0 %v1464
    %3567 = vmatprep.subr.mxu0 0.0
    %3568 = vmatpush2.msra.mxu0 0.0
    %3569 = vmatprep.subr.mxu0 0.0
    %3570 = vmatpush2.msra.mxu0 0.0
    %3571 = vmatprep.subr.mxu0 0.0
    %3572 = vmatpush2.msra.mxu0 0.0
    %3573 = vmatprep.subr.mxu0 0.0
    %3574 = vmatpush2.msra.mxu0 0.0
    %3575 = vmatprep.subr.mxu0 0.0
    %3576 = vmatpush2.msra.mxu0 0.0
    %3577 = vmatprep.subr.mxu0 0.0
    %3578 = vmatpush2.msra.mxu0 0.0
    %3579 = vmatprep.subr.mxu0 0.0
    %3580 = vmatpush2.msra.mxu0 0.0
    %3581 = vmatprep.subr.mxu0 0.0
    %3582 = vmatpush2.msra.mxu0 0.0
    %3583 = vmatprep.subr.mxu0 0.0
    %3584 = vmatpush2.msra.mxu0 0.0
    %3585 = vmatprep.subr.mxu0 0.0
    %3586 = vmatpush2.msra.mxu0 0.0
    %3587 = vmatprep.subr.mxu0 0.0
    %3588 = vmatpush2.msra.mxu0 0.0
    %3589 = vmatprep.subr.mxu0 0.0
    %3590 = vmatpush2.msra.mxu0 0.0
    %3591 = vmatprep.subr.mxu0 0.0
    %3592 = vmatpush2.msra.mxu0 0.0
    %3593 = vmatprep.subr.mxu0 0.0
    %3594 = vmatpush2.msra.mxu0 0.0
    %3595 = vmatprep.subr.mxu0 0.0
    %3596 = vmatpush2.msra.mxu0 0.0
    %3597 = vmatprep.subr.mxu0 0.0
    %3598 = vmatpush2.msra.mxu0 0.0
    %3599 = vmatprep.mubr.f32.mxu0 0.0
    %3600 = vmatmul.mubr.f32.gmra.mxu0 %v3512
    %v3601 = vpop.f32.mrf.mxu0
    %v3602 = vadd.f32 0.0, %v3601
    %v3603 = vpop.f32.mrf.mxu0
    %3604 = vmatprep.mubr.f32.mxu0 0.0
    %3605 = vmatmul.mubr.f32.gmra.mxu0 %v3515
    %v3606 = vpop.f32.mrf.mxu0
    %v3607 = vadd.f32 0.0, %v3606
    %v3608 = vpop.f32.mrf.mxu0
    %3609 = vmatprep.mubr.f32.mxu0 0.0
    %3610 = vmatmul.mubr.f32.gmra.mxu0 %v3518
    %v3611 = vpop.f32.mrf.mxu0
    %v3612 = vadd.f32 0.0, %v3611
    %v3613 = vpop.f32.mrf.mxu0
    %3614 = vmatprep.mubr.f32.mxu0 0.0
    %3615 = vmatmul.mubr.f32.gmra.mxu0 %v3521
    %v3616 = vpop.f32.mrf.mxu0
    %v3617 = vadd.f32 0.0, %v3616
    %v3618 = vpop.f32.mrf.mxu0
    %3619 = vmatprep.mubr.f32.mxu0 0.0
    %3620 = vmatmul.mubr.f32.gmra.mxu0 %v3524
    %v3621 = vpop.f32.mrf.mxu0
    %v3622 = vadd.f32 0.0, %v3621
    %v3623 = vpop.f32.mrf.mxu0
    %3624 = vmatprep.mubr.f32.mxu0 0.0
    %3625 = vmatmul.mubr.f32.gmra.mxu0 %v3527
    %v3626 = vpop.f32.mrf.mxu0
    %v3627 = vadd.f32 0.0, %v3626
    %v3628 = vpop.f32.mrf.mxu0
    %3629 = vmatprep.mubr.f32.mxu0 0.0
    %3630 = vmatmul.mubr.f32.gmra.mxu0 %v3530
    %v3631 = vpop.f32.mrf.mxu0
    %v3632 = vadd.f32 0.0, %v3631
    %v3633 = vpop.f32.mrf.mxu0
    %3634 = vmatprep.mubr.f32.mxu0 0.0
    %3635 = vmatmul.mubr.f32.gmra.mxu0 %v3533
    %v3636 = vpop.f32.mrf.mxu0
    %v3637 = vadd.f32 0.0, %v3636
    %v3638 = vpop.f32.mrf.mxu0
    %3639 = vdwg.mxu0
    %v3640 = vadd.f32 %v3093, %v3602
    %v3641 = vadd.f32 %v3094, %v3607
    %v3642 = vadd.f32 %v3095, %v3612
    %v3643 = vadd.f32 %v3096, %v3617
    %v3644 = vadd.f32 %v3097, %v3622
    %v3645 = vadd.f32 %v3098, %v3627
    %v3646 = vadd.f32 %v3099, %v3632
    %v3647 = vadd.f32 %v3100, %v3637
    %v3649 = vlaneseq
    %v3650 = vshrl.u32 %v3649, 7
    %v3651 = vsub.s32 0, %v3650
    %v3652 = vrot.slane %v1465, %v3651
    %v3654 = vadd.f32 %v3640, %v3652
    %v3655 = vadd.f32 %v3641, %v3652
    %v3656 = vadd.f32 %v3642, %v3652
    %v3657 = vadd.f32 %v3643, %v3652
    %v3658 = vadd.f32 %v3644, %v3652
    %v3659 = vadd.f32 %v3645, %v3652
    %v3660 = vadd.f32 %v3646, %v3652
    %v3661 = vadd.f32 %v3647, %v3652
    %3662 = vst.msk [vmem:[#allocation2] sm:$0xff] %vm289, %v3654
    %3663 = vst.msk [vmem:[#allocation2 + $0x8] sm:$0xff] %vm289, %v3655
    %3664 = vst.msk [vmem:[#allocation2 + $0x10] sm:$0xff] %vm289, %v3656
    %3665 = vst.msk [vmem:[#allocation2 + $0x18] sm:$0xff] %vm289, %v3657
    %3666 = vst.msk [vmem:[#allocation2 + $0x20] sm:$0xff] %vm289, %v3658
    %3667 = vst.msk [vmem:[#allocation2 + $0x28] sm:$0xff] %vm289, %v3659
    %3668 = vst.msk [vmem:[#allocation2 + $0x30] sm:$0xff] %vm289, %v3660
    %3669 = vst.msk [vmem:[#allocation2 + $0x38] sm:$0xff] %vm289, %v3661
    %v3670 = vmul.f32 %v1423, 0.35355338
    %v3671 = vmul.f32 %v1428, 0.35355338
    %v3672 = vmul.f32 %v1433, 0.35355338
    %v3673 = vmul.f32 %v1438, 0.35355338
    %v3674 = vmul.f32 %v1443, 0.35355338
    %v3675 = vmul.f32 %v1448, 0.35355338
    %v3676 = vmul.f32 %v1453, 0.35355338
    %v3677 = vmul.f32 %v1458, 0.35355338
    %3686 = vrot.lane.b32.xlu0 %v1423, 96
    %v3687 = vpop.permute.xlu0 %3686
    %3688 = vrot.lane.b32.xlu0 %v1428, 96
    %v3689 = vpop.permute.xlu0 %3688
    %3690 = vrot.lane.b32.xlu0 %v1433, 96
    %v3691 = vpop.permute.xlu0 %3690
    %3692 = vrot.lane.b32.xlu0 %v1438, 96
    %v3693 = vpop.permute.xlu0 %3692
    %3694 = vrot.lane.b32.xlu0 %v1443, 96
    %v3695 = vpop.permute.xlu0 %3694
    %3696 = vrot.lane.b32.xlu0 %v1448, 96
    %v3697 = vpop.permute.xlu0 %3696
    %3698 = vrot.lane.b32.xlu0 %v1453, 96
    %v3699 = vpop.permute.xlu0 %3698
    %3700 = vrot.lane.b32.xlu0 %v1458, 96
    %v3701 = vpop.permute.xlu0 %3700
    %v3703 = vsel %vm1498, %v3670, 0
    %v3706 = vsel %vm1498, %v3671, 0
    %v3709 = vsel %vm1498, %v3672, 0
    %v3712 = vsel %vm1498, %v3673, 0
    %v3715 = vsel %vm1498, %v3674, 0
    %v3718 = vsel %vm1498, %v3675, 0
    %v3721 = vsel %vm1498, %v3676, 0
    %v3724 = vsel %vm1498, %v3677, 0
    %v3726 = vsel %vm1498, %v3687, 0
    %v3728 = vsel %vm1498, %v3689, 0
    %v3730 = vsel %vm1498, %v3691, 0
    %v3732 = vsel %vm1498, %v3693, 0
    %v3734 = vsel %vm1498, %v3695, 0
    %v3736 = vsel %vm1498, %v3697, 0
    %v3738 = vsel %vm1498, %v3699, 0
    %v3740 = vsel %vm1498, %v3701, 0
    %3742 = vmatprep.subr.mxu0 0.0
    %3743 = vmatpush1.xpose.msra.mxu0 0.0
    %3744 = vmatprep.subr.mxu0 0.0
    %3745 = vmatpush1.xpose.msra.mxu0 0.0
    %3746 = vmatprep.subr.mxu0 0.0
    %3747 = vmatpush1.xpose.msra.mxu0 0.0
    %3748 = vmatprep.subr.mxu0 0.0
    %3749 = vmatpush1.xpose.msra.mxu0 0.0
    %3750 = vmatprep.subr.mxu0 0.0
    %3751 = vmatpush1.xpose.msra.mxu0 0.0
    %3752 = vmatprep.subr.mxu0 0.0
    %3753 = vmatpush1.xpose.msra.mxu0 0.0
    %3754 = vmatprep.subr.mxu0 0.0
    %3755 = vmatpush1.xpose.msra.mxu0 0.0
    %3756 = vmatprep.subr.mxu0 0.0
    %3757 = vmatpush1.xpose.msra.mxu0 0.0
    %3758 = vmatprep.subr.mxu0 0.0
    %3759 = vmatpush1.xpose.msra.mxu0 %v3740
    %3760 = vmatprep.subr.mxu0 0.0
    %3761 = vmatpush1.xpose.msra.mxu0 %v3738
    %3762 = vmatprep.subr.mxu0 0.0
    %3763 = vmatpush1.xpose.msra.mxu0 %v3736
    %3764 = vmatprep.subr.mxu0 0.0
    %3765 = vmatpush1.xpose.msra.mxu0 %v3734
    %3766 = vmatprep.subr.mxu0 0.0
    %3767 = vmatpush1.xpose.msra.mxu0 %v3732
    %3768 = vmatprep.subr.mxu0 0.0
    %3769 = vmatpush1.xpose.msra.mxu0 %v3730
    %3770 = vmatprep.subr.mxu0 0.0
    %3771 = vmatpush1.xpose.msra.mxu0 %v3728
    %3772 = vmatprep.subr.mxu0 0.0
    %3773 = vmatpush1.xpose.msra.mxu0 %v3726
    %3774 = vmatprep.subr.mxu0 0.0
    %3775 = vmatpush2.xpose.msra.mxu0 0.0
    %3776 = vmatprep.subr.mxu0 0.0
    %3777 = vmatpush2.xpose.msra.mxu0 0.0
    %3778 = vmatprep.subr.mxu0 0.0
    %3779 = vmatpush2.xpose.msra.mxu0 0.0
    %3780 = vmatprep.subr.mxu0 0.0
    %3781 = vmatpush2.xpose.msra.mxu0 0.0
    %3782 = vmatprep.subr.mxu0 0.0
    %3783 = vmatpush2.xpose.msra.mxu0 0.0
    %3784 = vmatprep.subr.mxu0 0.0
    %3785 = vmatpush2.xpose.msra.mxu0 0.0
    %3786 = vmatprep.subr.mxu0 0.0
    %3787 = vmatpush2.xpose.msra.mxu0 0.0
    %3788 = vmatprep.subr.mxu0 0.0
    %3789 = vmatpush2.xpose.msra.mxu0 0.0
    %3790 = vmatprep.subr.mxu0 0.0
    %3791 = vmatpush2.xpose.msra.mxu0 0.0
    %3792 = vmatprep.subr.mxu0 0.0
    %3793 = vmatpush2.xpose.msra.mxu0 0.0
    %3794 = vmatprep.subr.mxu0 0.0
    %3795 = vmatpush2.xpose.msra.mxu0 0.0
    %3796 = vmatprep.subr.mxu0 0.0
    %3797 = vmatpush2.xpose.msra.mxu0 0.0
    %3798 = vmatprep.subr.mxu0 0.0
    %3799 = vmatpush2.xpose.msra.mxu0 0.0
    %3800 = vmatprep.subr.mxu0 0.0
    %3801 = vmatpush2.xpose.msra.mxu0 0.0
    %3802 = vmatprep.subr.mxu0 0.0
    %3803 = vmatpush2.xpose.msra.mxu0 0.0
    %3804 = vmatprep.subr.mxu0 0.0
    %3805 = vmatpush2.xpose.msra.mxu0 0.0
    %3806 = vmatprep.mubr.f32.mxu0 0.0
    %3807 = vmatmul.mubr.f32.gmra.mxu0 %v3703
    %v3808 = vpop.f32.mrf.mxu0
    %v3809 = vadd.f32 0.0, %v3808
    %v3810 = vpop.f32.mrf.mxu0
    %3811 = vmatprep.mubr.f32.mxu0 0.0
    %3812 = vmatmul.mubr.f32.gmra.mxu0 %v3706
    %v3813 = vpop.f32.mrf.mxu0
    %v3814 = vadd.f32 0.0, %v3813
    %v3815 = vpop.f32.mrf.mxu0
    %3816 = vmatprep.mubr.f32.mxu0 0.0
    %3817 = vmatmul.mubr.f32.gmra.mxu0 %v3709
    %v3818 = vpop.f32.mrf.mxu0
    %v3819 = vadd.f32 0.0, %v3818
    %v3820 = vpop.f32.mrf.mxu0
    %3821 = vmatprep.mubr.f32.mxu0 0.0
    %3822 = vmatmul.mubr.f32.gmra.mxu0 %v3712
    %v3823 = vpop.f32.mrf.mxu0
    %v3824 = vadd.f32 0.0, %v3823
    %v3825 = vpop.f32.mrf.mxu0
    %3826 = vmatprep.mubr.f32.mxu0 0.0
    %3827 = vmatmul.mubr.f32.gmra.mxu0 %v3715
    %v3828 = vpop.f32.mrf.mxu0
    %v3829 = vadd.f32 0.0, %v3828
    %v3830 = vpop.f32.mrf.mxu0
    %3831 = vmatprep.mubr.f32.mxu0 0.0
    %3832 = vmatmul.mubr.f32.gmra.mxu0 %v3718
    %v3833 = vpop.f32.mrf.mxu0
    %v3834 = vadd.f32 0.0, %v3833
    %v3835 = vpop.f32.mrf.mxu0
    %3836 = vmatprep.mubr.f32.mxu0 0.0
    %3837 = vmatmul.mubr.f32.gmra.mxu0 %v3721
    %v3838 = vpop.f32.mrf.mxu0
    %v3839 = vadd.f32 0.0, %v3838
    %v3840 = vpop.f32.mrf.mxu0
    %3841 = vmatprep.mubr.f32.mxu0 0.0
    %3842 = vmatmul.mubr.f32.gmra.mxu0 %v3724
    %v3843 = vpop.f32.mrf.mxu0
    %v3844 = vadd.f32 0.0, %v3843
    %v3845 = vpop.f32.mrf.mxu0
    %3846 = vdwg.mxu0
    %v3847 = vsel %vm1644, %v3809, -inf
    %3848 = vmax.xlane.f32.xlu0 %v3847
    %v3849 = vpop.xlane.xlu0 %3848
    %v3850 = vsel %vm1644, %v3814, -inf
    %3851 = vmax.xlane.f32.xlu0 %v3850
    %v3852 = vpop.xlane.xlu0 %3851
    %v3853 = vsel %vm1644, %v3819, -inf
    %3854 = vmax.xlane.f32.xlu0 %v3853
    %v3855 = vpop.xlane.xlu0 %3854
    %v3856 = vsel %vm1644, %v3824, -inf
    %3857 = vmax.xlane.f32.xlu0 %v3856
    %v3858 = vpop.xlane.xlu0 %3857
    %v3859 = vsel %vm1644, %v3829, -inf
    %3860 = vmax.xlane.f32.xlu0 %v3859
    %v3861 = vpop.xlane.xlu0 %3860
    %v3862 = vsel %vm1644, %v3834, -inf
    %3863 = vmax.xlane.f32.xlu0 %v3862
    %v3864 = vpop.xlane.xlu0 %3863
    %v3865 = vsel %vm1644, %v3839, -inf
    %3866 = vmax.xlane.f32.xlu0 %v3865
    %v3867 = vpop.xlane.xlu0 %3866
    %v3868 = vsel %vm1644, %v3844, -inf
    %3869 = vmax.xlane.f32.xlu0 %v3868
    %v3870 = vpop.xlane.xlu0 %3869
    %v3871 = vsub.f32 %v3809, %v3849
    %v3872 = vsub.f32 %v3814, %v3852
    %v3873 = vsub.f32 %v3819, %v3855
    %v3874 = vsub.f32 %v3824, %v3858
    %v3875 = vsub.f32 %v3829, %v3861
    %v3876 = vsub.f32 %v3834, %v3864
    %v3877 = vsub.f32 %v3839, %v3867
    %v3878 = vsub.f32 %v3844, %v3870
    %v3879 = vmul.f32 %v3871, 1.442695
    %v3880 = vpow.pop %v3879
    %v3881 = vmul.f32 %v3872, 1.442695
    %v3882 = vpow.pop %v3881
    %v3883 = vmul.f32 %v3873, 1.442695
    %v3884 = vpow.pop %v3883
    %v3885 = vmul.f32 %v3874, 1.442695
    %v3886 = vpow.pop %v3885
    %v3887 = vmul.f32 %v3875, 1.442695
    %v3888 = vpow.pop %v3887
    %v3889 = vmul.f32 %v3876, 1.442695
    %v3890 = vpow.pop %v3889
    %v3891 = vmul.f32 %v3877, 1.442695
    %v3892 = vpow.pop %v3891
    %v3893 = vmul.f32 %v3878, 1.442695
    %v3894 = vpow.pop %v3893
    %v3895 = vsel %vm1644, %v3880, 0.0
    %3896 = vadd.xlane.f32.xlu0 %v3895
    %v3897 = vpop.xlane.xlu0 %3896
    %v3898 = vsel %vm1644, %v3882, 0.0
    %3899 = vadd.xlane.f32.xlu0 %v3898
    %v3900 = vpop.xlane.xlu0 %3899
    %v3901 = vsel %vm1644, %v3884, 0.0
    %3902 = vadd.xlane.f32.xlu0 %v3901
    %v3903 = vpop.xlane.xlu0 %3902
    %v3904 = vsel %vm1644, %v3886, 0.0
    %3905 = vadd.xlane.f32.xlu0 %v3904
    %v3906 = vpop.xlane.xlu0 %3905
    %v3907 = vsel %vm1644, %v3888, 0.0
    %3908 = vadd.xlane.f32.xlu0 %v3907
    %v3909 = vpop.xlane.xlu0 %3908
    %v3910 = vsel %vm1644, %v3890, 0.0
    %3911 = vadd.xlane.f32.xlu0 %v3910
    %v3912 = vpop.xlane.xlu0 %3911
    %v3913 = vsel %vm1644, %v3892, 0.0
    %3914 = vadd.xlane.f32.xlu0 %v3913
    %v3915 = vpop.xlane.xlu0 %3914
    %v3916 = vsel %vm1644, %v3894, 0.0
    %3917 = vadd.xlane.f32.xlu0 %v3916
    %v3918 = vpop.xlane.xlu0 %3917
    %v3919 = vrcp.pop %v3897
    %v3920 = vmul.f32 %v3880, %v3919
    %v3921 = vrcp.pop %v3900
    %v3922 = vmul.f32 %v3882, %v3921
    %v3923 = vrcp.pop %v3903
    %v3924 = vmul.f32 %v3884, %v3923
    %v3925 = vrcp.pop %v3906
    %v3926 = vmul.f32 %v3886, %v3925
    %v3927 = vrcp.pop %v3909
    %v3928 = vmul.f32 %v3888, %v3927
    %v3929 = vrcp.pop %v3912
    %v3930 = vmul.f32 %v3890, %v3929
    %v3931 = vrcp.pop %v3915
    %v3932 = vmul.f32 %v3892, %v3931
    %v3933 = vrcp.pop %v3918
    %v3934 = vmul.f32 %v3894, %v3933
    %3935 = vrot.lane.b32.xlu0 %v1423, 64
    %v3936 = vpop.permute.xlu0 %3935
    %3937 = vrot.lane.b32.xlu0 %v1428, 64
    %v3938 = vpop.permute.xlu0 %3937
    %3939 = vrot.lane.b32.xlu0 %v1433, 64
    %v3940 = vpop.permute.xlu0 %3939
    %3941 = vrot.lane.b32.xlu0 %v1438, 64
    %v3942 = vpop.permute.xlu0 %3941
    %3943 = vrot.lane.b32.xlu0 %v1443, 64
    %v3944 = vpop.permute.xlu0 %3943
    %3945 = vrot.lane.b32.xlu0 %v1448, 64
    %v3946 = vpop.permute.xlu0 %3945
    %3947 = vrot.lane.b32.xlu0 %v1453, 64
    %v3948 = vpop.permute.xlu0 %3947
    %3949 = vrot.lane.b32.xlu0 %v1458, 64
    %v3950 = vpop.permute.xlu0 %3949
    %v3960 = vsel %vm1644, %v3920, 0
    %v3963 = vsel %vm1644, %v3922, 0
    %v3966 = vsel %vm1644, %v3924, 0
    %v3969 = vsel %vm1644, %v3926, 0
    %v3972 = vsel %vm1644, %v3928, 0
    %v3975 = vsel %vm1644, %v3930, 0
    %v3978 = vsel %vm1644, %v3932, 0
    %v3981 = vsel %vm1644, %v3934, 0
    %3983 = vmatprep.subr.mxu0 0.0
    %3984 = vmatpush1.msra.mxu0 0.0
    %3985 = vmatprep.subr.mxu0 0.0
    %3986 = vmatpush1.msra.mxu0 0.0
    %3987 = vmatprep.subr.mxu0 0.0
    %3988 = vmatpush1.msra.mxu0 0.0
    %3989 = vmatprep.subr.mxu0 0.0
    %3990 = vmatpush1.msra.mxu0 0.0
    %3991 = vmatprep.subr.mxu0 0.0
    %3992 = vmatpush1.msra.mxu0 0.0
    %3993 = vmatprep.subr.mxu0 0.0
    %3994 = vmatpush1.msra.mxu0 0.0
    %3995 = vmatprep.subr.mxu0 0.0
    %3996 = vmatpush1.msra.mxu0 0.0
    %3997 = vmatprep.subr.mxu0 0.0
    %3998 = vmatpush1.msra.mxu0 0.0
    %3999 = vmatprep.subr.mxu0 0.0
    %4000 = vmatpush1.msra.mxu0 %v3950
    %4001 = vmatprep.subr.mxu0 0.0
    %4002 = vmatpush1.msra.mxu0 %v3948
    %4003 = vmatprep.subr.mxu0 0.0
    %4004 = vmatpush1.msra.mxu0 %v3946
    %4005 = vmatprep.subr.mxu0 0.0
    %4006 = vmatpush1.msra.mxu0 %v3944
    %4007 = vmatprep.subr.mxu0 0.0
    %4008 = vmatpush1.msra.mxu0 %v3942
    %4009 = vmatprep.subr.mxu0 0.0
    %4010 = vmatpush1.msra.mxu0 %v3940
    %4011 = vmatprep.subr.mxu0 0.0
    %4012 = vmatpush1.msra.mxu0 %v3938
    %4013 = vmatprep.subr.mxu0 0.0
    %4014 = vmatpush1.msra.mxu0 %v3936
    %4015 = vmatprep.subr.mxu0 0.0
    %4016 = vmatpush2.msra.mxu0 0.0
    %4017 = vmatprep.subr.mxu0 0.0
    %4018 = vmatpush2.msra.mxu0 0.0
    %4019 = vmatprep.subr.mxu0 0.0
    %4020 = vmatpush2.msra.mxu0 0.0
    %4021 = vmatprep.subr.mxu0 0.0
    %4022 = vmatpush2.msra.mxu0 0.0
    %4023 = vmatprep.subr.mxu0 0.0
    %4024 = vmatpush2.msra.mxu0 0.0
    %4025 = vmatprep.subr.mxu0 0.0
    %4026 = vmatpush2.msra.mxu0 0.0
    %4027 = vmatprep.subr.mxu0 0.0
    %4028 = vmatpush2.msra.mxu0 0.0
    %4029 = vmatprep.subr.mxu0 0.0
    %4030 = vmatpush2.msra.mxu0 0.0
    %4031 = vmatprep.subr.mxu0 0.0
    %4032 = vmatpush2.msra.mxu0 0.0
    %4033 = vmatprep.subr.mxu0 0.0
    %4034 = vmatpush2.msra.mxu0 0.0
    %4035 = vmatprep.subr.mxu0 0.0
    %4036 = vmatpush2.msra.mxu0 0.0
    %4037 = vmatprep.subr.mxu0 0.0
    %4038 = vmatpush2.msra.mxu0 0.0
    %4039 = vmatprep.subr.mxu0 0.0
    %4040 = vmatpush2.msra.mxu0 0.0
    %4041 = vmatprep.subr.mxu0 0.0
    %4042 = vmatpush2.msra.mxu0 0.0
    %4043 = vmatprep.subr.mxu0 0.0
    %4044 = vmatpush2.msra.mxu0 0.0
    %4045 = vmatprep.subr.mxu0 0.0
    %4046 = vmatpush2.msra.mxu0 0.0
    %4047 = vmatprep.mubr.f32.mxu0 0.0
    %4048 = vmatmul.mubr.f32.gmra.mxu0 %v3960
    %v4049 = vpop.f32.mrf.mxu0
    %v4050 = vadd.f32 0.0, %v4049
    %v4051 = vpop.f32.mrf.mxu0
    %4052 = vmatprep.mubr.f32.mxu0 0.0
    %4053 = vmatmul.mubr.f32.gmra.mxu0 %v3963
    %v4054 = vpop.f32.mrf.mxu0
    %v4055 = vadd.f32 0.0, %v4054
    %v4056 = vpop.f32.mrf.mxu0
    %4057 = vmatprep.mubr.f32.mxu0 0.0
    %4058 = vmatmul.mubr.f32.gmra.mxu0 %v3966
    %v4059 = vpop.f32.mrf.mxu0
    %v4060 = vadd.f32 0.0, %v4059
    %v4061 = vpop.f32.mrf.mxu0
    %4062 = vmatprep.mubr.f32.mxu0 0.0
    %4063 = vmatmul.mubr.f32.gmra.mxu0 %v3969
    %v4064 = vpop.f32.mrf.mxu0
    %v4065 = vadd.f32 0.0, %v4064
    %v4066 = vpop.f32.mrf.mxu0
    %4067 = vmatprep.mubr.f32.mxu0 0.0
    %4068 = vmatmul.mubr.f32.gmra.mxu0 %v3972
    %v4069 = vpop.f32.mrf.mxu0
    %v4070 = vadd.f32 0.0, %v4069
    %v4071 = vpop.f32.mrf.mxu0
    %4072 = vmatprep.mubr.f32.mxu0 0.0
    %4073 = vmatmul.mubr.f32.gmra.mxu0 %v3975
    %v4074 = vpop.f32.mrf.mxu0
    %v4075 = vadd.f32 0.0, %v4074
    %v4076 = vpop.f32.mrf.mxu0
    %4077 = vmatprep.mubr.f32.mxu0 0.0
    %4078 = vmatmul.mubr.f32.gmra.mxu0 %v3978
    %v4079 = vpop.f32.mrf.mxu0
    %v4080 = vadd.f32 0.0, %v4079
    %v4081 = vpop.f32.mrf.mxu0
    %4082 = vmatprep.mubr.f32.mxu0 0.0
    %4083 = vmatmul.mubr.f32.gmra.mxu0 %v3981
    %v4084 = vpop.f32.mrf.mxu0
    %v4085 = vadd.f32 0.0, %v4084
    %v4086 = vpop.f32.mrf.mxu0
    %4087 = vdwg.mxu0
    %4088 = vrot.lane.b32.xlu0 %v3670, 120
    %v4089 = vpop.permute.xlu0 %4088
    %4090 = vrot.lane.b32.xlu0 %v3671, 120
    %v4091 = vpop.permute.xlu0 %4090
    %4092 = vrot.lane.b32.xlu0 %v3672, 120
    %v4093 = vpop.permute.xlu0 %4092
    %4094 = vrot.lane.b32.xlu0 %v3673, 120
    %v4095 = vpop.permute.xlu0 %4094
    %4096 = vrot.lane.b32.xlu0 %v3674, 120
    %v4097 = vpop.permute.xlu0 %4096
    %4098 = vrot.lane.b32.xlu0 %v3675, 120
    %v4099 = vpop.permute.xlu0 %4098
    %4100 = vrot.lane.b32.xlu0 %v3676, 120
    %v4101 = vpop.permute.xlu0 %4100
    %4102 = vrot.lane.b32.xlu0 %v3677, 120
    %v4103 = vpop.permute.xlu0 %4102
    %4104 = vrot.lane.b32.xlu0 %v1423, 88
    %v4105 = vpop.permute.xlu0 %4104
    %4106 = vrot.lane.b32.xlu0 %v1428, 88
    %v4107 = vpop.permute.xlu0 %4106
    %4108 = vrot.lane.b32.xlu0 %v1433, 88
    %v4109 = vpop.permute.xlu0 %4108
    %4110 = vrot.lane.b32.xlu0 %v1438, 88
    %v4111 = vpop.permute.xlu0 %4110
    %4112 = vrot.lane.b32.xlu0 %v1443, 88
    %v4113 = vpop.permute.xlu0 %4112
    %4114 = vrot.lane.b32.xlu0 %v1448, 88
    %v4115 = vpop.permute.xlu0 %4114
    %4116 = vrot.lane.b32.xlu0 %v1453, 88
    %v4117 = vpop.permute.xlu0 %4116
    %4118 = vrot.lane.b32.xlu0 %v1458, 88
    %v4119 = vpop.permute.xlu0 %4118
    %v4120 = vsel %vm1498, %v4089, 0
    %v4122 = vsel %vm1498, %v4091, 0
    %v4124 = vsel %vm1498, %v4093, 0
    %v4126 = vsel %vm1498, %v4095, 0
    %v4128 = vsel %vm1498, %v4097, 0
    %v4130 = vsel %vm1498, %v4099, 0
    %v4132 = vsel %vm1498, %v4101, 0
    %v4134 = vsel %vm1498, %v4103, 0
    %v4136 = vsel %vm1498, %v4105, 0
    %v4138 = vsel %vm1498, %v4107, 0
    %v4140 = vsel %vm1498, %v4109, 0
    %v4142 = vsel %vm1498, %v4111, 0
    %v4144 = vsel %vm1498, %v4113, 0
    %v4146 = vsel %vm1498, %v4115, 0
    %v4148 = vsel %vm1498, %v4117, 0
    %v4150 = vsel %vm1498, %v4119, 0
    %4152 = vmatprep.subr.mxu0 0.0
    %4153 = vmatpush1.xpose.msra.mxu0 0.0
    %4154 = vmatprep.subr.mxu0 0.0
    %4155 = vmatpush1.xpose.msra.mxu0 0.0
    %4156 = vmatprep.subr.mxu0 0.0
    %4157 = vmatpush1.xpose.msra.mxu0 0.0
    %4158 = vmatprep.subr.mxu0 0.0
    %4159 = vmatpush1.xpose.msra.mxu0 0.0
    %4160 = vmatprep.subr.mxu0 0.0
    %4161 = vmatpush1.xpose.msra.mxu0 0.0
    %4162 = vmatprep.subr.mxu0 0.0
    %4163 = vmatpush1.xpose.msra.mxu0 0.0
    %4164 = vmatprep.subr.mxu0 0.0
    %4165 = vmatpush1.xpose.msra.mxu0 0.0
    %4166 = vmatprep.subr.mxu0 0.0
    %4167 = vmatpush1.xpose.msra.mxu0 0.0
    %4168 = vmatprep.subr.mxu0 0.0
    %4169 = vmatpush1.xpose.msra.mxu0 %v4150
    %4170 = vmatprep.subr.mxu0 0.0
    %4171 = vmatpush1.xpose.msra.mxu0 %v4148
    %4172 = vmatprep.subr.mxu0 0.0
    %4173 = vmatpush1.xpose.msra.mxu0 %v4146
    %4174 = vmatprep.subr.mxu0 0.0
    %4175 = vmatpush1.xpose.msra.mxu0 %v4144
    %4176 = vmatprep.subr.mxu0 0.0
    %4177 = vmatpush1.xpose.msra.mxu0 %v4142
    %4178 = vmatprep.subr.mxu0 0.0
    %4179 = vmatpush1.xpose.msra.mxu0 %v4140
    %4180 = vmatprep.subr.mxu0 0.0
    %4181 = vmatpush1.xpose.msra.mxu0 %v4138
    %4182 = vmatprep.subr.mxu0 0.0
    %4183 = vmatpush1.xpose.msra.mxu0 %v4136
    %4184 = vmatprep.subr.mxu0 0.0
    %4185 = vmatpush2.xpose.msra.mxu0 0.0
    %4186 = vmatprep.subr.mxu0 0.0
    %4187 = vmatpush2.xpose.msra.mxu0 0.0
    %4188 = vmatprep.subr.mxu0 0.0
    %4189 = vmatpush2.xpose.msra.mxu0 0.0
    %4190 = vmatprep.subr.mxu0 0.0
    %4191 = vmatpush2.xpose.msra.mxu0 0.0
    %4192 = vmatprep.subr.mxu0 0.0
    %4193 = vmatpush2.xpose.msra.mxu0 0.0
    %4194 = vmatprep.subr.mxu0 0.0
    %4195 = vmatpush2.xpose.msra.mxu0 0.0
    %4196 = vmatprep.subr.mxu0 0.0
    %4197 = vmatpush2.xpose.msra.mxu0 0.0
    %4198 = vmatprep.subr.mxu0 0.0
    %4199 = vmatpush2.xpose.msra.mxu0 0.0
    %4200 = vmatprep.subr.mxu0 0.0
    %4201 = vmatpush2.xpose.msra.mxu0 0.0
    %4202 = vmatprep.subr.mxu0 0.0
    %4203 = vmatpush2.xpose.msra.mxu0 0.0
    %4204 = vmatprep.subr.mxu0 0.0
    %4205 = vmatpush2.xpose.msra.mxu0 0.0
    %4206 = vmatprep.subr.mxu0 0.0
    %4207 = vmatpush2.xpose.msra.mxu0 0.0
    %4208 = vmatprep.subr.mxu0 0.0
    %4209 = vmatpush2.xpose.msra.mxu0 0.0
    %4210 = vmatprep.subr.mxu0 0.0
    %4211 = vmatpush2.xpose.msra.mxu0 0.0
    %4212 = vmatprep.subr.mxu0 0.0
    %4213 = vmatpush2.xpose.msra.mxu0 0.0
    %4214 = vmatprep.subr.mxu0 0.0
    %4215 = vmatpush2.xpose.msra.mxu0 0.0
    %4216 = vmatprep.mubr.f32.mxu0 0.0
    %4217 = vmatmul.mubr.f32.gmra.mxu0 %v4120
    %v4218 = vpop.f32.mrf.mxu0
    %v4219 = vadd.f32 0.0, %v4218
    %v4220 = vpop.f32.mrf.mxu0
    %4221 = vmatprep.mubr.f32.mxu0 0.0
    %4222 = vmatmul.mubr.f32.gmra.mxu0 %v4122
    %v4223 = vpop.f32.mrf.mxu0
    %v4224 = vadd.f32 0.0, %v4223
    %v4225 = vpop.f32.mrf.mxu0
    %4226 = vmatprep.mubr.f32.mxu0 0.0
    %4227 = vmatmul.mubr.f32.gmra.mxu0 %v4124
    %v4228 = vpop.f32.mrf.mxu0
    %v4229 = vadd.f32 0.0, %v4228
    %v4230 = vpop.f32.mrf.mxu0
    %4231 = vmatprep.mubr.f32.mxu0 0.0
    %4232 = vmatmul.mubr.f32.gmra.mxu0 %v4126
    %v4233 = vpop.f32.mrf.mxu0
    %v4234 = vadd.f32 0.0, %v4233
    %v4235 = vpop.f32.mrf.mxu0
    %4236 = vmatprep.mubr.f32.mxu0 0.0
    %4237 = vmatmul.mubr.f32.gmra.mxu0 %v4128
    %v4238 = vpop.f32.mrf.mxu0
    %v4239 = vadd.f32 0.0, %v4238
    %v4240 = vpop.f32.mrf.mxu0
    %4241 = vmatprep.mubr.f32.mxu0 0.0
    %4242 = vmatmul.mubr.f32.gmra.mxu0 %v4130
    %v4243 = vpop.f32.mrf.mxu0
    %v4244 = vadd.f32 0.0, %v4243
    %v4245 = vpop.f32.mrf.mxu0
    %4246 = vmatprep.mubr.f32.mxu0 0.0
    %4247 = vmatmul.mubr.f32.gmra.mxu0 %v4132
    %v4248 = vpop.f32.mrf.mxu0
    %v4249 = vadd.f32 0.0, %v4248
    %v4250 = vpop.f32.mrf.mxu0
    %4251 = vmatprep.mubr.f32.mxu0 0.0
    %4252 = vmatmul.mubr.f32.gmra.mxu0 %v4134
    %v4253 = vpop.f32.mrf.mxu0
    %v4254 = vadd.f32 0.0, %v4253
    %v4255 = vpop.f32.mrf.mxu0
    %4256 = vdwg.mxu0
    %v4257 = vsel %vm1644, %v4219, -inf
    %4258 = vmax.xlane.f32.xlu0 %v4257
    %v4259 = vpop.xlane.xlu0 %4258
    %v4260 = vsel %vm1644, %v4224, -inf
    %4261 = vmax.xlane.f32.xlu0 %v4260
    %v4262 = vpop.xlane.xlu0 %4261
    %v4263 = vsel %vm1644, %v4229, -inf
    %4264 = vmax.xlane.f32.xlu0 %v4263
    %v4265 = vpop.xlane.xlu0 %4264
    %v4266 = vsel %vm1644, %v4234, -inf
    %4267 = vmax.xlane.f32.xlu0 %v4266
    %v4268 = vpop.xlane.xlu0 %4267
    %v4269 = vsel %vm1644, %v4239, -inf
    %4270 = vmax.xlane.f32.xlu0 %v4269
    %v4271 = vpop.xlane.xlu0 %4270
    %v4272 = vsel %vm1644, %v4244, -inf
    %4273 = vmax.xlane.f32.xlu0 %v4272
    %v4274 = vpop.xlane.xlu0 %4273
    %v4275 = vsel %vm1644, %v4249, -inf
    %4276 = vmax.xlane.f32.xlu0 %v4275
    %v4277 = vpop.xlane.xlu0 %4276
    %v4278 = vsel %vm1644, %v4254, -inf
    %4279 = vmax.xlane.f32.xlu0 %v4278
    %v4280 = vpop.xlane.xlu0 %4279
    %v4281 = vsub.f32 %v4219, %v4259
    %v4282 = vsub.f32 %v4224, %v4262
    %v4283 = vsub.f32 %v4229, %v4265
    %v4284 = vsub.f32 %v4234, %v4268
    %v4285 = vsub.f32 %v4239, %v4271
    %v4286 = vsub.f32 %v4244, %v4274
    %v4287 = vsub.f32 %v4249, %v4277
    %v4288 = vsub.f32 %v4254, %v4280
    %v4289 = vmul.f32 %v4281, 1.442695
    %v4290 = vpow.pop %v4289
    %v4291 = vmul.f32 %v4282, 1.442695
    %v4292 = vpow.pop %v4291
    %v4293 = vmul.f32 %v4283, 1.442695
    %v4294 = vpow.pop %v4293
    %v4295 = vmul.f32 %v4284, 1.442695
    %v4296 = vpow.pop %v4295
    %v4297 = vmul.f32 %v4285, 1.442695
    %v4298 = vpow.pop %v4297
    %v4299 = vmul.f32 %v4286, 1.442695
    %v4300 = vpow.pop %v4299
    %v4301 = vmul.f32 %v4287, 1.442695
    %v4302 = vpow.pop %v4301
    %v4303 = vmul.f32 %v4288, 1.442695
    %v4304 = vpow.pop %v4303
    %v4305 = vsel %vm1644, %v4290, 0.0
    %4306 = vadd.xlane.f32.xlu0 %v4305
    %v4307 = vpop.xlane.xlu0 %4306
    %v4308 = vsel %vm1644, %v4292, 0.0
    %4309 = vadd.xlane.f32.xlu0 %v4308
    %v4310 = vpop.xlane.xlu0 %4309
    %v4311 = vsel %vm1644, %v4294, 0.0
    %4312 = vadd.xlane.f32.xlu0 %v4311
    %v4313 = vpop.xlane.xlu0 %4312
    %v4314 = vsel %vm1644, %v4296, 0.0
    %4315 = vadd.xlane.f32.xlu0 %v4314
    %v4316 = vpop.xlane.xlu0 %4315
    %v4317 = vsel %vm1644, %v4298, 0.0
    %4318 = vadd.xlane.f32.xlu0 %v4317
    %v4319 = vpop.xlane.xlu0 %4318
    %v4320 = vsel %vm1644, %v4300, 0.0
    %4321 = vadd.xlane.f32.xlu0 %v4320
    %v4322 = vpop.xlane.xlu0 %4321
    %v4323 = vsel %vm1644, %v4302, 0.0
    %4324 = vadd.xlane.f32.xlu0 %v4323
    %v4325 = vpop.xlane.xlu0 %4324
    %v4326 = vsel %vm1644, %v4304, 0.0
    %4327 = vadd.xlane.f32.xlu0 %v4326
    %v4328 = vpop.xlane.xlu0 %4327
    %v4329 = vrcp.pop %v4307
    %v4330 = vmul.f32 %v4290, %v4329
    %v4331 = vrcp.pop %v4310
    %v4332 = vmul.f32 %v4292, %v4331
    %v4333 = vrcp.pop %v4313
    %v4334 = vmul.f32 %v4294, %v4333
    %v4335 = vrcp.pop %v4316
    %v4336 = vmul.f32 %v4296, %v4335
    %v4337 = vrcp.pop %v4319
    %v4338 = vmul.f32 %v4298, %v4337
    %v4339 = vrcp.pop %v4322
    %v4340 = vmul.f32 %v4300, %v4339
    %v4341 = vrcp.pop %v4325
    %v4342 = vmul.f32 %v4302, %v4341
    %v4343 = vrcp.pop %v4328
    %v4344 = vmul.f32 %v4304, %v4343
    %4345 = vrot.lane.b32.xlu0 %v1423, 56
    %v4346 = vpop.permute.xlu0 %4345
    %4347 = vrot.lane.b32.xlu0 %v1428, 56
    %v4348 = vpop.permute.xlu0 %4347
    %4349 = vrot.lane.b32.xlu0 %v1433, 56
    %v4350 = vpop.permute.xlu0 %4349
    %4351 = vrot.lane.b32.xlu0 %v1438, 56
    %v4352 = vpop.permute.xlu0 %4351
    %4353 = vrot.lane.b32.xlu0 %v1443, 56
    %v4354 = vpop.permute.xlu0 %4353
    %4355 = vrot.lane.b32.xlu0 %v1448, 56
    %v4356 = vpop.permute.xlu0 %4355
    %4357 = vrot.lane.b32.xlu0 %v1453, 56
    %v4358 = vpop.permute.xlu0 %4357
    %4359 = vrot.lane.b32.xlu0 %v1458, 56
    %v4360 = vpop.permute.xlu0 %4359
    %v4370 = vsel %vm1644, %v4330, 0
    %v4373 = vsel %vm1644, %v4332, 0
    %v4376 = vsel %vm1644, %v4334, 0
    %v4379 = vsel %vm1644, %v4336, 0
    %v4382 = vsel %vm1644, %v4338, 0
    %v4385 = vsel %vm1644, %v4340, 0
    %v4388 = vsel %vm1644, %v4342, 0
    %v4391 = vsel %vm1644, %v4344, 0
    %4393 = vmatprep.subr.mxu0 0.0
    %4394 = vmatpush1.msra.mxu0 0.0
    %4395 = vmatprep.subr.mxu0 0.0
    %4396 = vmatpush1.msra.mxu0 0.0
    %4397 = vmatprep.subr.mxu0 0.0
    %4398 = vmatpush1.msra.mxu0 0.0
    %4399 = vmatprep.subr.mxu0 0.0
    %4400 = vmatpush1.msra.mxu0 0.0
    %4401 = vmatprep.subr.mxu0 0.0
    %4402 = vmatpush1.msra.mxu0 0.0
    %4403 = vmatprep.subr.mxu0 0.0
    %4404 = vmatpush1.msra.mxu0 0.0
    %4405 = vmatprep.subr.mxu0 0.0
    %4406 = vmatpush1.msra.mxu0 0.0
    %4407 = vmatprep.subr.mxu0 0.0
    %4408 = vmatpush1.msra.mxu0 0.0
    %4409 = vmatprep.subr.mxu0 0.0
    %4410 = vmatpush1.msra.mxu0 %v4360
    %4411 = vmatprep.subr.mxu0 0.0
    %4412 = vmatpush1.msra.mxu0 %v4358
    %4413 = vmatprep.subr.mxu0 0.0
    %4414 = vmatpush1.msra.mxu0 %v4356
    %4415 = vmatprep.subr.mxu0 0.0
    %4416 = vmatpush1.msra.mxu0 %v4354
    %4417 = vmatprep.subr.mxu0 0.0
    %4418 = vmatpush1.msra.mxu0 %v4352
    %4419 = vmatprep.subr.mxu0 0.0
    %4420 = vmatpush1.msra.mxu0 %v4350
    %4421 = vmatprep.subr.mxu0 0.0
    %4422 = vmatpush1.msra.mxu0 %v4348
    %4423 = vmatprep.subr.mxu0 0.0
    %4424 = vmatpush1.msra.mxu0 %v4346
    %4425 = vmatprep.subr.mxu0 0.0
    %4426 = vmatpush2.msra.mxu0 0.0
    %4427 = vmatprep.subr.mxu0 0.0
    %4428 = vmatpush2.msra.mxu0 0.0
    %4429 = vmatprep.subr.mxu0 0.0
    %4430 = vmatpush2.msra.mxu0 0.0
    %4431 = vmatprep.subr.mxu0 0.0
    %4432 = vmatpush2.msra.mxu0 0.0
    %4433 = vmatprep.subr.mxu0 0.0
    %4434 = vmatpush2.msra.mxu0 0.0
    %4435 = vmatprep.subr.mxu0 0.0
    %4436 = vmatpush2.msra.mxu0 0.0
    %4437 = vmatprep.subr.mxu0 0.0
    %4438 = vmatpush2.msra.mxu0 0.0
    %4439 = vmatprep.subr.mxu0 0.0
    %4440 = vmatpush2.msra.mxu0 0.0
    %4441 = vmatprep.subr.mxu0 0.0
    %4442 = vmatpush2.msra.mxu0 0.0
    %4443 = vmatprep.subr.mxu0 0.0
    %4444 = vmatpush2.msra.mxu0 0.0
    %4445 = vmatprep.subr.mxu0 0.0
    %4446 = vmatpush2.msra.mxu0 0.0
    %4447 = vmatprep.subr.mxu0 0.0
    %4448 = vmatpush2.msra.mxu0 0.0
    %4449 = vmatprep.subr.mxu0 0.0
    %4450 = vmatpush2.msra.mxu0 0.0
    %4451 = vmatprep.subr.mxu0 0.0
    %4452 = vmatpush2.msra.mxu0 0.0
    %4453 = vmatprep.subr.mxu0 0.0
    %4454 = vmatpush2.msra.mxu0 0.0
    %4455 = vmatprep.subr.mxu0 0.0
    %4456 = vmatpush2.msra.mxu0 0.0
    %4457 = vmatprep.mubr.f32.mxu0 0.0
    %4458 = vmatmul.mubr.f32.gmra.mxu0 %v4370
    %v4459 = vpop.f32.mrf.mxu0
    %v4460 = vadd.f32 0.0, %v4459
    %v4461 = vpop.f32.mrf.mxu0
    %4462 = vmatprep.mubr.f32.mxu0 0.0
    %4463 = vmatmul.mubr.f32.gmra.mxu0 %v4373
    %v4464 = vpop.f32.mrf.mxu0
    %v4465 = vadd.f32 0.0, %v4464
    %v4466 = vpop.f32.mrf.mxu0
    %4467 = vmatprep.mubr.f32.mxu0 0.0
    %4468 = vmatmul.mubr.f32.gmra.mxu0 %v4376
    %v4469 = vpop.f32.mrf.mxu0
    %v4470 = vadd.f32 0.0, %v4469
    %v4471 = vpop.f32.mrf.mxu0
    %4472 = vmatprep.mubr.f32.mxu0 0.0
    %4473 = vmatmul.mubr.f32.gmra.mxu0 %v4379
    %v4474 = vpop.f32.mrf.mxu0
    %v4475 = vadd.f32 0.0, %v4474
    %v4476 = vpop.f32.mrf.mxu0
    %4477 = vmatprep.mubr.f32.mxu0 0.0
    %4478 = vmatmul.mubr.f32.gmra.mxu0 %v4382
    %v4479 = vpop.f32.mrf.mxu0
    %v4480 = vadd.f32 0.0, %v4479
    %v4481 = vpop.f32.mrf.mxu0
    %4482 = vmatprep.mubr.f32.mxu0 0.0
    %4483 = vmatmul.mubr.f32.gmra.mxu0 %v4385
    %v4484 = vpop.f32.mrf.mxu0
    %v4485 = vadd.f32 0.0, %v4484
    %v4486 = vpop.f32.mrf.mxu0
    %4487 = vmatprep.mubr.f32.mxu0 0.0
    %4488 = vmatmul.mubr.f32.gmra.mxu0 %v4388
    %v4489 = vpop.f32.mrf.mxu0
    %v4490 = vadd.f32 0.0, %v4489
    %v4491 = vpop.f32.mrf.mxu0
    %4492 = vmatprep.mubr.f32.mxu0 0.0
    %4493 = vmatmul.mubr.f32.gmra.mxu0 %v4391
    %v4494 = vpop.f32.mrf.mxu0
    %v4495 = vadd.f32 0.0, %v4494
    %v4496 = vpop.f32.mrf.mxu0
    %4497 = vdwg.mxu0
    %v4499 = vsel %vm1498, %v4460, 0
    %v4502 = vsel %vm1498, %v4465, 0
    %v4505 = vsel %vm1498, %v4470, 0
    %v4508 = vsel %vm1498, %v4475, 0
    %v4511 = vsel %vm1498, %v4480, 0
    %v4514 = vsel %vm1498, %v4485, 0
    %v4517 = vsel %vm1498, %v4490, 0
    %v4520 = vsel %vm1498, %v4495, 0
    %4522 = vmatprep.subr.mxu0 0.0
    %4523 = vmatpush1.msra.mxu0 0.0
    %4524 = vmatprep.subr.mxu0 0.0
    %4525 = vmatpush1.msra.mxu0 0.0
    %4526 = vmatprep.subr.mxu0 0.0
    %4527 = vmatpush1.msra.mxu0 0.0
    %4528 = vmatprep.subr.mxu0 0.0
    %4529 = vmatpush1.msra.mxu0 0.0
    %4530 = vmatprep.subr.mxu0 0.0
    %4531 = vmatpush1.msra.mxu0 0.0
    %4532 = vmatprep.subr.mxu0 0.0
    %4533 = vmatpush1.msra.mxu0 0.0
    %4534 = vmatprep.subr.mxu0 0.0
    %4535 = vmatpush1.msra.mxu0 0.0
    %4536 = vmatprep.subr.mxu0 0.0
    %4537 = vmatpush1.msra.mxu0 0.0
    %4538 = vmatprep.subr.mxu0 0.0
    %4539 = vmatpush1.msra.mxu0 0.0
    %4540 = vmatprep.subr.mxu0 0.0
    %4541 = vmatpush1.msra.mxu0 0.0
    %4542 = vmatprep.subr.mxu0 0.0
    %4543 = vmatpush1.msra.mxu0 0.0
    %4544 = vmatprep.subr.mxu0 0.0
    %4545 = vmatpush1.msra.mxu0 0.0
    %4546 = vmatprep.subr.mxu0 0.0
    %4547 = vmatpush1.msra.mxu0 0.0
    %4548 = vmatprep.subr.mxu0 0.0
    %4549 = vmatpush1.msra.mxu0 0.0
    %4550 = vmatprep.subr.mxu0 0.0
    %4551 = vmatpush1.msra.mxu0 0.0
    %4552 = vmatprep.subr.mxu0 0.0
    %4553 = vmatpush1.msra.mxu0 %v1462
    %4554 = vmatprep.subr.mxu0 0.0
    %4555 = vmatpush2.msra.mxu0 0.0
    %4556 = vmatprep.subr.mxu0 0.0
    %4557 = vmatpush2.msra.mxu0 0.0
    %4558 = vmatprep.subr.mxu0 0.0
    %4559 = vmatpush2.msra.mxu0 0.0
    %4560 = vmatprep.subr.mxu0 0.0
    %4561 = vmatpush2.msra.mxu0 0.0
    %4562 = vmatprep.subr.mxu0 0.0
    %4563 = vmatpush2.msra.mxu0 0.0
    %4564 = vmatprep.subr.mxu0 0.0
    %4565 = vmatpush2.msra.mxu0 0.0
    %4566 = vmatprep.subr.mxu0 0.0
    %4567 = vmatpush2.msra.mxu0 0.0
    %4568 = vmatprep.subr.mxu0 0.0
    %4569 = vmatpush2.msra.mxu0 0.0
    %4570 = vmatprep.subr.mxu0 0.0
    %4571 = vmatpush2.msra.mxu0 0.0
    %4572 = vmatprep.subr.mxu0 0.0
    %4573 = vmatpush2.msra.mxu0 0.0
    %4574 = vmatprep.subr.mxu0 0.0
    %4575 = vmatpush2.msra.mxu0 0.0
    %4576 = vmatprep.subr.mxu0 0.0
    %4577 = vmatpush2.msra.mxu0 0.0
    %4578 = vmatprep.subr.mxu0 0.0
    %4579 = vmatpush2.msra.mxu0 0.0
    %4580 = vmatprep.subr.mxu0 0.0
    %4581 = vmatpush2.msra.mxu0 0.0
    %4582 = vmatprep.subr.mxu0 0.0
    %4583 = vmatpush2.msra.mxu0 0.0
    %4584 = vmatprep.subr.mxu0 0.0
    %4585 = vmatpush2.msra.mxu0 0.0
    %4586 = vmatprep.mubr.f32.mxu0 0.0
    %4587 = vmatmul.mubr.f32.gmra.mxu0 %v4499
    %v4588 = vpop.f32.mrf.mxu0
    %v4589 = vadd.f32 0.0, %v4588
    %v4590 = vpop.f32.mrf.mxu0
    %4591 = vmatprep.mubr.f32.mxu0 0.0
    %4592 = vmatmul.mubr.f32.gmra.mxu0 %v4502
    %v4593 = vpop.f32.mrf.mxu0
    %v4594 = vadd.f32 0.0, %v4593
    %v4595 = vpop.f32.mrf.mxu0
    %4596 = vmatprep.mubr.f32.mxu0 0.0
    %4597 = vmatmul.mubr.f32.gmra.mxu0 %v4505
    %v4598 = vpop.f32.mrf.mxu0
    %v4599 = vadd.f32 0.0, %v4598
    %v4600 = vpop.f32.mrf.mxu0
    %4601 = vmatprep.mubr.f32.mxu0 0.0
    %4602 = vmatmul.mubr.f32.gmra.mxu0 %v4508
    %v4603 = vpop.f32.mrf.mxu0
    %v4604 = vadd.f32 0.0, %v4603
    %v4605 = vpop.f32.mrf.mxu0
    %4606 = vmatprep.mubr.f32.mxu0 0.0
    %4607 = vmatmul.mubr.f32.gmra.mxu0 %v4511
    %v4608 = vpop.f32.mrf.mxu0
    %v4609 = vadd.f32 0.0, %v4608
    %v4610 = vpop.f32.mrf.mxu0
    %4611 = vmatprep.mubr.f32.mxu0 0.0
    %4612 = vmatmul.mubr.f32.gmra.mxu0 %v4514
    %v4613 = vpop.f32.mrf.mxu0
    %v4614 = vadd.f32 0.0, %v4613
    %v4615 = vpop.f32.mrf.mxu0
    %4616 = vmatprep.mubr.f32.mxu0 0.0
    %4617 = vmatmul.mubr.f32.gmra.mxu0 %v4517
    %v4618 = vpop.f32.mrf.mxu0
    %v4619 = vadd.f32 0.0, %v4618
    %v4620 = vpop.f32.mrf.mxu0
    %4621 = vmatprep.mubr.f32.mxu0 0.0
    %4622 = vmatmul.mubr.f32.gmra.mxu0 %v4520
    %v4623 = vpop.f32.mrf.mxu0
    %v4624 = vadd.f32 0.0, %v4623
    %v4625 = vpop.f32.mrf.mxu0
    %4626 = vdwg.mxu0
    %v4628 = vsel %vm1498, %v4050, 0
    %v4631 = vsel %vm1498, %v4055, 0
    %v4634 = vsel %vm1498, %v4060, 0
    %v4637 = vsel %vm1498, %v4065, 0
    %v4640 = vsel %vm1498, %v4070, 0
    %v4643 = vsel %vm1498, %v4075, 0
    %v4646 = vsel %vm1498, %v4080, 0
    %v4649 = vsel %vm1498, %v4085, 0
    %4651 = vmatprep.subr.mxu0 0.0
    %4652 = vmatpush1.msra.mxu0 0.0
    %4653 = vmatprep.subr.mxu0 0.0
    %4654 = vmatpush1.msra.mxu0 0.0
    %4655 = vmatprep.subr.mxu0 0.0
    %4656 = vmatpush1.msra.mxu0 0.0
    %4657 = vmatprep.subr.mxu0 0.0
    %4658 = vmatpush1.msra.mxu0 0.0
    %4659 = vmatprep.subr.mxu0 0.0
    %4660 = vmatpush1.msra.mxu0 0.0
    %4661 = vmatprep.subr.mxu0 0.0
    %4662 = vmatpush1.msra.mxu0 0.0
    %4663 = vmatprep.subr.mxu0 0.0
    %4664 = vmatpush1.msra.mxu0 0.0
    %4665 = vmatprep.subr.mxu0 0.0
    %4666 = vmatpush1.msra.mxu0 0.0
    %4667 = vmatprep.subr.mxu0 0.0
    %4668 = vmatpush1.msra.mxu0 0.0
    %4669 = vmatprep.subr.mxu0 0.0
    %4670 = vmatpush1.msra.mxu0 0.0
    %4671 = vmatprep.subr.mxu0 0.0
    %4672 = vmatpush1.msra.mxu0 0.0
    %4673 = vmatprep.subr.mxu0 0.0
    %4674 = vmatpush1.msra.mxu0 0.0
    %4675 = vmatprep.subr.mxu0 0.0
    %4676 = vmatpush1.msra.mxu0 0.0
    %4677 = vmatprep.subr.mxu0 0.0
    %4678 = vmatpush1.msra.mxu0 0.0
    %4679 = vmatprep.subr.mxu0 0.0
    %4680 = vmatpush1.msra.mxu0 0.0
    %4681 = vmatprep.subr.mxu0 0.0
    %4682 = vmatpush1.msra.mxu0 %v1461
    %4683 = vmatprep.subr.mxu0 0.0
    %4684 = vmatpush2.msra.mxu0 0.0
    %4685 = vmatprep.subr.mxu0 0.0
    %4686 = vmatpush2.msra.mxu0 0.0
    %4687 = vmatprep.subr.mxu0 0.0
    %4688 = vmatpush2.msra.mxu0 0.0
    %4689 = vmatprep.subr.mxu0 0.0
    %4690 = vmatpush2.msra.mxu0 0.0
    %4691 = vmatprep.subr.mxu0 0.0
    %4692 = vmatpush2.msra.mxu0 0.0
    %4693 = vmatprep.subr.mxu0 0.0
    %4694 = vmatpush2.msra.mxu0 0.0
    %4695 = vmatprep.subr.mxu0 0.0
    %4696 = vmatpush2.msra.mxu0 0.0
    %4697 = vmatprep.subr.mxu0 0.0
    %4698 = vmatpush2.msra.mxu0 0.0
    %4699 = vmatprep.subr.mxu0 0.0
    %4700 = vmatpush2.msra.mxu0 0.0
    %4701 = vmatprep.subr.mxu0 0.0
    %4702 = vmatpush2.msra.mxu0 0.0
    %4703 = vmatprep.subr.mxu0 0.0
    %4704 = vmatpush2.msra.mxu0 0.0
    %4705 = vmatprep.subr.mxu0 0.0
    %4706 = vmatpush2.msra.mxu0 0.0
    %4707 = vmatprep.subr.mxu0 0.0
    %4708 = vmatpush2.msra.mxu0 0.0
    %4709 = vmatprep.subr.mxu0 0.0
    %4710 = vmatpush2.msra.mxu0 0.0
    %4711 = vmatprep.subr.mxu0 0.0
    %4712 = vmatpush2.msra.mxu0 0.0
    %4713 = vmatprep.subr.mxu0 0.0
    %4714 = vmatpush2.msra.mxu0 0.0
    %4715 = vmatprep.mubr.f32.mxu0 0.0
    %4716 = vmatmul.mubr.f32.gmra.mxu0 %v4628
    %v4717 = vpop.f32.mrf.mxu0
    %v4718 = vadd.f32 %v4589, %v4717
    %v4719 = vpop.f32.mrf.mxu0
    %4720 = vmatprep.mubr.f32.mxu0 0.0
    %4721 = vmatmul.mubr.f32.gmra.mxu0 %v4631
    %v4722 = vpop.f32.mrf.mxu0
    %v4723 = vadd.f32 %v4594, %v4722
    %v4724 = vpop.f32.mrf.mxu0
    %4725 = vmatprep.mubr.f32.mxu0 0.0
    %4726 = vmatmul.mubr.f32.gmra.mxu0 %v4634
    %v4727 = vpop.f32.mrf.mxu0
    %v4728 = vadd.f32 %v4599, %v4727
    %v4729 = vpop.f32.mrf.mxu0
    %4730 = vmatprep.mubr.f32.mxu0 0.0
    %4731 = vmatmul.mubr.f32.gmra.mxu0 %v4637
    %v4732 = vpop.f32.mrf.mxu0
    %v4733 = vadd.f32 %v4604, %v4732
    %v4734 = vpop.f32.mrf.mxu0
    %4735 = vmatprep.mubr.f32.mxu0 0.0
    %4736 = vmatmul.mubr.f32.gmra.mxu0 %v4640
    %v4737 = vpop.f32.mrf.mxu0
    %v4738 = vadd.f32 %v4609, %v4737
    %v4739 = vpop.f32.mrf.mxu0
    %4740 = vmatprep.mubr.f32.mxu0 0.0
    %4741 = vmatmul.mubr.f32.gmra.mxu0 %v4643
    %v4742 = vpop.f32.mrf.mxu0
    %v4743 = vadd.f32 %v4614, %v4742
    %v4744 = vpop.f32.mrf.mxu0
    %4745 = vmatprep.mubr.f32.mxu0 0.0
    %4746 = vmatmul.mubr.f32.gmra.mxu0 %v4646
    %v4747 = vpop.f32.mrf.mxu0
    %v4748 = vadd.f32 %v4619, %v4747
    %v4749 = vpop.f32.mrf.mxu0
    %4750 = vmatprep.mubr.f32.mxu0 0.0
    %4751 = vmatmul.mubr.f32.gmra.mxu0 %v4649
    %v4752 = vpop.f32.mrf.mxu0
    %v4753 = vadd.f32 %v4624, %v4752
    %v4754 = vpop.f32.mrf.mxu0
    %4755 = vdwg.mxu0
    %4756 = vrot.lane.b32.xlu0 %v3670, 112
    %v4757 = vpop.permute.xlu0 %4756
    %4758 = vrot.lane.b32.xlu0 %v3671, 112
    %v4759 = vpop.permute.xlu0 %4758
    %4760 = vrot.lane.b32.xlu0 %v3672, 112
    %v4761 = vpop.permute.xlu0 %4760
    %4762 = vrot.lane.b32.xlu0 %v3673, 112
    %v4763 = vpop.permute.xlu0 %4762
    %4764 = vrot.lane.b32.xlu0 %v3674, 112
    %v4765 = vpop.permute.xlu0 %4764
    %4766 = vrot.lane.b32.xlu0 %v3675, 112
    %v4767 = vpop.permute.xlu0 %4766
    %4768 = vrot.lane.b32.xlu0 %v3676, 112
    %v4769 = vpop.permute.xlu0 %4768
    %4770 = vrot.lane.b32.xlu0 %v3677, 112
    %v4771 = vpop.permute.xlu0 %4770
    %4772 = vrot.lane.b32.xlu0 %v1423, 80
    %v4773 = vpop.permute.xlu0 %4772
    %4774 = vrot.lane.b32.xlu0 %v1428, 80
    %v4775 = vpop.permute.xlu0 %4774
    %4776 = vrot.lane.b32.xlu0 %v1433, 80
    %v4777 = vpop.permute.xlu0 %4776
    %4778 = vrot.lane.b32.xlu0 %v1438, 80
    %v4779 = vpop.permute.xlu0 %4778
    %4780 = vrot.lane.b32.xlu0 %v1443, 80
    %v4781 = vpop.permute.xlu0 %4780
    %4782 = vrot.lane.b32.xlu0 %v1448, 80
    %v4783 = vpop.permute.xlu0 %4782
    %4784 = vrot.lane.b32.xlu0 %v1453, 80
    %v4785 = vpop.permute.xlu0 %4784
    %4786 = vrot.lane.b32.xlu0 %v1458, 80
    %v4787 = vpop.permute.xlu0 %4786
    %v4788 = vsel %vm1498, %v4757, 0
    %v4790 = vsel %vm1498, %v4759, 0
    %v4792 = vsel %vm1498, %v4761, 0
    %v4794 = vsel %vm1498, %v4763, 0
    %v4796 = vsel %vm1498, %v4765, 0
    %v4798 = vsel %vm1498, %v4767, 0
    %v4800 = vsel %vm1498, %v4769, 0
    %v4802 = vsel %vm1498, %v4771, 0
    %v4804 = vsel %vm1498, %v4773, 0
    %v4806 = vsel %vm1498, %v4775, 0
    %v4808 = vsel %vm1498, %v4777, 0
    %v4810 = vsel %vm1498, %v4779, 0
    %v4812 = vsel %vm1498, %v4781, 0
    %v4814 = vsel %vm1498, %v4783, 0
    %v4816 = vsel %vm1498, %v4785, 0
    %v4818 = vsel %vm1498, %v4787, 0
    %4820 = vmatprep.subr.mxu0 0.0
    %4821 = vmatpush1.xpose.msra.mxu0 0.0
    %4822 = vmatprep.subr.mxu0 0.0
    %4823 = vmatpush1.xpose.msra.mxu0 0.0
    %4824 = vmatprep.subr.mxu0 0.0
    %4825 = vmatpush1.xpose.msra.mxu0 0.0
    %4826 = vmatprep.subr.mxu0 0.0
    %4827 = vmatpush1.xpose.msra.mxu0 0.0
    %4828 = vmatprep.subr.mxu0 0.0
    %4829 = vmatpush1.xpose.msra.mxu0 0.0
    %4830 = vmatprep.subr.mxu0 0.0
    %4831 = vmatpush1.xpose.msra.mxu0 0.0
    %4832 = vmatprep.subr.mxu0 0.0
    %4833 = vmatpush1.xpose.msra.mxu0 0.0
    %4834 = vmatprep.subr.mxu0 0.0
    %4835 = vmatpush1.xpose.msra.mxu0 0.0
    %4836 = vmatprep.subr.mxu0 0.0
    %4837 = vmatpush1.xpose.msra.mxu0 %v4818
    %4838 = vmatprep.subr.mxu0 0.0
    %4839 = vmatpush1.xpose.msra.mxu0 %v4816
    %4840 = vmatprep.subr.mxu0 0.0
    %4841 = vmatpush1.xpose.msra.mxu0 %v4814
    %4842 = vmatprep.subr.mxu0 0.0
    %4843 = vmatpush1.xpose.msra.mxu0 %v4812
    %4844 = vmatprep.subr.mxu0 0.0
    %4845 = vmatpush1.xpose.msra.mxu0 %v4810
    %4846 = vmatprep.subr.mxu0 0.0
    %4847 = vmatpush1.xpose.msra.mxu0 %v4808
    %4848 = vmatprep.subr.mxu0 0.0
    %4849 = vmatpush1.xpose.msra.mxu0 %v4806
    %4850 = vmatprep.subr.mxu0 0.0
    %4851 = vmatpush1.xpose.msra.mxu0 %v4804
    %4852 = vmatprep.subr.mxu0 0.0
    %4853 = vmatpush2.xpose.msra.mxu0 0.0
    %4854 = vmatprep.subr.mxu0 0.0
    %4855 = vmatpush2.xpose.msra.mxu0 0.0
    %4856 = vmatprep.subr.mxu0 0.0
    %4857 = vmatpush2.xpose.msra.mxu0 0.0
    %4858 = vmatprep.subr.mxu0 0.0
    %4859 = vmatpush2.xpose.msra.mxu0 0.0
    %4860 = vmatprep.subr.mxu0 0.0
    %4861 = vmatpush2.xpose.msra.mxu0 0.0
    %4862 = vmatprep.subr.mxu0 0.0
    %4863 = vmatpush2.xpose.msra.mxu0 0.0
    %4864 = vmatprep.subr.mxu0 0.0
    %4865 = vmatpush2.xpose.msra.mxu0 0.0
    %4866 = vmatprep.subr.mxu0 0.0
    %4867 = vmatpush2.xpose.msra.mxu0 0.0
    %4868 = vmatprep.subr.mxu0 0.0
    %4869 = vmatpush2.xpose.msra.mxu0 0.0
    %4870 = vmatprep.subr.mxu0 0.0
    %4871 = vmatpush2.xpose.msra.mxu0 0.0
    %4872 = vmatprep.subr.mxu0 0.0
    %4873 = vmatpush2.xpose.msra.mxu0 0.0
    %4874 = vmatprep.subr.mxu0 0.0
    %4875 = vmatpush2.xpose.msra.mxu0 0.0
    %4876 = vmatprep.subr.mxu0 0.0
    %4877 = vmatpush2.xpose.msra.mxu0 0.0
    %4878 = vmatprep.subr.mxu0 0.0
    %4879 = vmatpush2.xpose.msra.mxu0 0.0
    %4880 = vmatprep.subr.mxu0 0.0
    %4881 = vmatpush2.xpose.msra.mxu0 0.0
    %4882 = vmatprep.subr.mxu0 0.0
    %4883 = vmatpush2.xpose.msra.mxu0 0.0
    %4884 = vmatprep.mubr.f32.mxu0 0.0
    %4885 = vmatmul.mubr.f32.gmra.mxu0 %v4788
    %v4886 = vpop.f32.mrf.mxu0
    %v4887 = vadd.f32 0.0, %v4886
    %v4888 = vpop.f32.mrf.mxu0
    %4889 = vmatprep.mubr.f32.mxu0 0.0
    %4890 = vmatmul.mubr.f32.gmra.mxu0 %v4790
    %v4891 = vpop.f32.mrf.mxu0
    %v4892 = vadd.f32 0.0, %v4891
    %v4893 = vpop.f32.mrf.mxu0
    %4894 = vmatprep.mubr.f32.mxu0 0.0
    %4895 = vmatmul.mubr.f32.gmra.mxu0 %v4792
    %v4896 = vpop.f32.mrf.mxu0
    %v4897 = vadd.f32 0.0, %v4896
    %v4898 = vpop.f32.mrf.mxu0
    %4899 = vmatprep.mubr.f32.mxu0 0.0
    %4900 = vmatmul.mubr.f32.gmra.mxu0 %v4794
    %v4901 = vpop.f32.mrf.mxu0
    %v4902 = vadd.f32 0.0, %v4901
    %v4903 = vpop.f32.mrf.mxu0
    %4904 = vmatprep.mubr.f32.mxu0 0.0
    %4905 = vmatmul.mubr.f32.gmra.mxu0 %v4796
    %v4906 = vpop.f32.mrf.mxu0
    %v4907 = vadd.f32 0.0, %v4906
    %v4908 = vpop.f32.mrf.mxu0
    %4909 = vmatprep.mubr.f32.mxu0 0.0
    %4910 = vmatmul.mubr.f32.gmra.mxu0 %v4798
    %v4911 = vpop.f32.mrf.mxu0
    %v4912 = vadd.f32 0.0, %v4911
    %v4913 = vpop.f32.mrf.mxu0
    %4914 = vmatprep.mubr.f32.mxu0 0.0
    %4915 = vmatmul.mubr.f32.gmra.mxu0 %v4800
    %v4916 = vpop.f32.mrf.mxu0
    %v4917 = vadd.f32 0.0, %v4916
    %v4918 = vpop.f32.mrf.mxu0
    %4919 = vmatprep.mubr.f32.mxu0 0.0
    %4920 = vmatmul.mubr.f32.gmra.mxu0 %v4802
    %v4921 = vpop.f32.mrf.mxu0
    %v4922 = vadd.f32 0.0, %v4921
    %v4923 = vpop.f32.mrf.mxu0
    %4924 = vdwg.mxu0
    %v4925 = vsel %vm1644, %v4887, -inf
    %4926 = vmax.xlane.f32.xlu0 %v4925
    %v4927 = vpop.xlane.xlu0 %4926
    %v4928 = vsel %vm1644, %v4892, -inf
    %4929 = vmax.xlane.f32.xlu0 %v4928
    %v4930 = vpop.xlane.xlu0 %4929
    %v4931 = vsel %vm1644, %v4897, -inf
    %4932 = vmax.xlane.f32.xlu0 %v4931
    %v4933 = vpop.xlane.xlu0 %4932
    %v4934 = vsel %vm1644, %v4902, -inf
    %4935 = vmax.xlane.f32.xlu0 %v4934
    %v4936 = vpop.xlane.xlu0 %4935
    %v4937 = vsel %vm1644, %v4907, -inf
    %4938 = vmax.xlane.f32.xlu0 %v4937
    %v4939 = vpop.xlane.xlu0 %4938
    %v4940 = vsel %vm1644, %v4912, -inf
    %4941 = vmax.xlane.f32.xlu0 %v4940
    %v4942 = vpop.xlane.xlu0 %4941
    %v4943 = vsel %vm1644, %v4917, -inf
    %4944 = vmax.xlane.f32.xlu0 %v4943
    %v4945 = vpop.xlane.xlu0 %4944
    %v4946 = vsel %vm1644, %v4922, -inf
    %4947 = vmax.xlane.f32.xlu0 %v4946
    %v4948 = vpop.xlane.xlu0 %4947
    %v4949 = vsub.f32 %v4887, %v4927
    %v4950 = vsub.f32 %v4892, %v4930
    %v4951 = vsub.f32 %v4897, %v4933
    %v4952 = vsub.f32 %v4902, %v4936
    %v4953 = vsub.f32 %v4907, %v4939
    %v4954 = vsub.f32 %v4912, %v4942
    %v4955 = vsub.f32 %v4917, %v4945
    %v4956 = vsub.f32 %v4922, %v4948
    %v4957 = vmul.f32 %v4949, 1.442695
    %v4958 = vpow.pop %v4957
    %v4959 = vmul.f32 %v4950, 1.442695
    %v4960 = vpow.pop %v4959
    %v4961 = vmul.f32 %v4951, 1.442695
    %v4962 = vpow.pop %v4961
    %v4963 = vmul.f32 %v4952, 1.442695
    %v4964 = vpow.pop %v4963
    %v4965 = vmul.f32 %v4953, 1.442695
    %v4966 = vpow.pop %v4965
    %v4967 = vmul.f32 %v4954, 1.442695
    %v4968 = vpow.pop %v4967
    %v4969 = vmul.f32 %v4955, 1.442695
    %v4970 = vpow.pop %v4969
    %v4971 = vmul.f32 %v4956, 1.442695
    %v4972 = vpow.pop %v4971
    %v4973 = vsel %vm1644, %v4958, 0.0
    %4974 = vadd.xlane.f32.xlu0 %v4973
    %v4975 = vpop.xlane.xlu0 %4974
    %v4976 = vsel %vm1644, %v4960, 0.0
    %4977 = vadd.xlane.f32.xlu0 %v4976
    %v4978 = vpop.xlane.xlu0 %4977
    %v4979 = vsel %vm1644, %v4962, 0.0
    %4980 = vadd.xlane.f32.xlu0 %v4979
    %v4981 = vpop.xlane.xlu0 %4980
    %v4982 = vsel %vm1644, %v4964, 0.0
    %4983 = vadd.xlane.f32.xlu0 %v4982
    %v4984 = vpop.xlane.xlu0 %4983
    %v4985 = vsel %vm1644, %v4966, 0.0
    %4986 = vadd.xlane.f32.xlu0 %v4985
    %v4987 = vpop.xlane.xlu0 %4986
    %v4988 = vsel %vm1644, %v4968, 0.0
    %4989 = vadd.xlane.f32.xlu0 %v4988
    %v4990 = vpop.xlane.xlu0 %4989
    %v4991 = vsel %vm1644, %v4970, 0.0
    %4992 = vadd.xlane.f32.xlu0 %v4991
    %v4993 = vpop.xlane.xlu0 %4992
    %v4994 = vsel %vm1644, %v4972, 0.0
    %4995 = vadd.xlane.f32.xlu0 %v4994
    %v4996 = vpop.xlane.xlu0 %4995
    %v4997 = vrcp.pop %v4975
    %v4998 = vmul.f32 %v4958, %v4997
    %v4999 = vrcp.pop %v4978
    %v5000 = vmul.f32 %v4960, %v4999
    %v5001 = vrcp.pop %v4981
    %v5002 = vmul.f32 %v4962, %v5001
    %v5003 = vrcp.pop %v4984
    %v5004 = vmul.f32 %v4964, %v5003
    %v5005 = vrcp.pop %v4987
    %v5006 = vmul.f32 %v4966, %v5005
    %v5007 = vrcp.pop %v4990
    %v5008 = vmul.f32 %v4968, %v5007
    %v5009 = vrcp.pop %v4993
    %v5010 = vmul.f32 %v4970, %v5009
    %v5011 = vrcp.pop %v4996
    %v5012 = vmul.f32 %v4972, %v5011
    %5013 = vrot.lane.b32.xlu0 %v1423, 48
    %v5014 = vpop.permute.xlu0 %5013
    %5015 = vrot.lane.b32.xlu0 %v1428, 48
    %v5016 = vpop.permute.xlu0 %5015
    %5017 = vrot.lane.b32.xlu0 %v1433, 48
    %v5018 = vpop.permute.xlu0 %5017
    %5019 = vrot.lane.b32.xlu0 %v1438, 48
    %v5020 = vpop.permute.xlu0 %5019
    %5021 = vrot.lane.b32.xlu0 %v1443, 48
    %v5022 = vpop.permute.xlu0 %5021
    %5023 = vrot.lane.b32.xlu0 %v1448, 48
    %v5024 = vpop.permute.xlu0 %5023
    %5025 = vrot.lane.b32.xlu0 %v1453, 48
    %v5026 = vpop.permute.xlu0 %5025
    %5027 = vrot.lane.b32.xlu0 %v1458, 48
    %v5028 = vpop.permute.xlu0 %5027
    %v5038 = vsel %vm1644, %v4998, 0
    %v5041 = vsel %vm1644, %v5000, 0
    %v5044 = vsel %vm1644, %v5002, 0
    %v5047 = vsel %vm1644, %v5004, 0
    %v5050 = vsel %vm1644, %v5006, 0
    %v5053 = vsel %vm1644, %v5008, 0
    %v5056 = vsel %vm1644, %v5010, 0
    %v5059 = vsel %vm1644, %v5012, 0
    %5061 = vmatprep.subr.mxu0 0.0
    %5062 = vmatpush1.msra.mxu0 0.0
    %5063 = vmatprep.subr.mxu0 0.0
    %5064 = vmatpush1.msra.mxu0 0.0
    %5065 = vmatprep.subr.mxu0 0.0
    %5066 = vmatpush1.msra.mxu0 0.0
    %5067 = vmatprep.subr.mxu0 0.0
    %5068 = vmatpush1.msra.mxu0 0.0
    %5069 = vmatprep.subr.mxu0 0.0
    %5070 = vmatpush1.msra.mxu0 0.0
    %5071 = vmatprep.subr.mxu0 0.0
    %5072 = vmatpush1.msra.mxu0 0.0
    %5073 = vmatprep.subr.mxu0 0.0
    %5074 = vmatpush1.msra.mxu0 0.0
    %5075 = vmatprep.subr.mxu0 0.0
    %5076 = vmatpush1.msra.mxu0 0.0
    %5077 = vmatprep.subr.mxu0 0.0
    %5078 = vmatpush1.msra.mxu0 %v5028
    %5079 = vmatprep.subr.mxu0 0.0
    %5080 = vmatpush1.msra.mxu0 %v5026
    %5081 = vmatprep.subr.mxu0 0.0
    %5082 = vmatpush1.msra.mxu0 %v5024
    %5083 = vmatprep.subr.mxu0 0.0
    %5084 = vmatpush1.msra.mxu0 %v5022
    %5085 = vmatprep.subr.mxu0 0.0
    %5086 = vmatpush1.msra.mxu0 %v5020
    %5087 = vmatprep.subr.mxu0 0.0
    %5088 = vmatpush1.msra.mxu0 %v5018
    %5089 = vmatprep.subr.mxu0 0.0
    %5090 = vmatpush1.msra.mxu0 %v5016
    %5091 = vmatprep.subr.mxu0 0.0
    %5092 = vmatpush1.msra.mxu0 %v5014
    %5093 = vmatprep.subr.mxu0 0.0
    %5094 = vmatpush2.msra.mxu0 0.0
    %5095 = vmatprep.subr.mxu0 0.0
    %5096 = vmatpush2.msra.mxu0 0.0
    %5097 = vmatprep.subr.mxu0 0.0
    %5098 = vmatpush2.msra.mxu0 0.0
    %5099 = vmatprep.subr.mxu0 0.0
    %5100 = vmatpush2.msra.mxu0 0.0
    %5101 = vmatprep.subr.mxu0 0.0
    %5102 = vmatpush2.msra.mxu0 0.0
    %5103 = vmatprep.subr.mxu0 0.0
    %5104 = vmatpush2.msra.mxu0 0.0
    %5105 = vmatprep.subr.mxu0 0.0
    %5106 = vmatpush2.msra.mxu0 0.0
    %5107 = vmatprep.subr.mxu0 0.0
    %5108 = vmatpush2.msra.mxu0 0.0
    %5109 = vmatprep.subr.mxu0 0.0
    %5110 = vmatpush2.msra.mxu0 0.0
    %5111 = vmatprep.subr.mxu0 0.0
    %5112 = vmatpush2.msra.mxu0 0.0
    %5113 = vmatprep.subr.mxu0 0.0
    %5114 = vmatpush2.msra.mxu0 0.0
    %5115 = vmatprep.subr.mxu0 0.0
    %5116 = vmatpush2.msra.mxu0 0.0
    %5117 = vmatprep.subr.mxu0 0.0
    %5118 = vmatpush2.msra.mxu0 0.0
    %5119 = vmatprep.subr.mxu0 0.0
    %5120 = vmatpush2.msra.mxu0 0.0
    %5121 = vmatprep.subr.mxu0 0.0
    %5122 = vmatpush2.msra.mxu0 0.0
    %5123 = vmatprep.subr.mxu0 0.0
    %5124 = vmatpush2.msra.mxu0 0.0
    %5125 = vmatprep.mubr.f32.mxu0 0.0
    %5126 = vmatmul.mubr.f32.gmra.mxu0 %v5038
    %v5127 = vpop.f32.mrf.mxu0
    %v5128 = vadd.f32 0.0, %v5127
    %v5129 = vpop.f32.mrf.mxu0
    %5130 = vmatprep.mubr.f32.mxu0 0.0
    %5131 = vmatmul.mubr.f32.gmra.mxu0 %v5041
    %v5132 = vpop.f32.mrf.mxu0
    %v5133 = vadd.f32 0.0, %v5132
    %v5134 = vpop.f32.mrf.mxu0
    %5135 = vmatprep.mubr.f32.mxu0 0.0
    %5136 = vmatmul.mubr.f32.gmra.mxu0 %v5044
    %v5137 = vpop.f32.mrf.mxu0
    %v5138 = vadd.f32 0.0, %v5137
    %v5139 = vpop.f32.mrf.mxu0
    %5140 = vmatprep.mubr.f32.mxu0 0.0
    %5141 = vmatmul.mubr.f32.gmra.mxu0 %v5047
    %v5142 = vpop.f32.mrf.mxu0
    %v5143 = vadd.f32 0.0, %v5142
    %v5144 = vpop.f32.mrf.mxu0
    %5145 = vmatprep.mubr.f32.mxu0 0.0
    %5146 = vmatmul.mubr.f32.gmra.mxu0 %v5050
    %v5147 = vpop.f32.mrf.mxu0
    %v5148 = vadd.f32 0.0, %v5147
    %v5149 = vpop.f32.mrf.mxu0
    %5150 = vmatprep.mubr.f32.mxu0 0.0
    %5151 = vmatmul.mubr.f32.gmra.mxu0 %v5053
    %v5152 = vpop.f32.mrf.mxu0
    %v5153 = vadd.f32 0.0, %v5152
    %v5154 = vpop.f32.mrf.mxu0
    %5155 = vmatprep.mubr.f32.mxu0 0.0
    %5156 = vmatmul.mubr.f32.gmra.mxu0 %v5056
    %v5157 = vpop.f32.mrf.mxu0
    %v5158 = vadd.f32 0.0, %v5157
    %v5159 = vpop.f32.mrf.mxu0
    %5160 = vmatprep.mubr.f32.mxu0 0.0
    %5161 = vmatmul.mubr.f32.gmra.mxu0 %v5059
    %v5162 = vpop.f32.mrf.mxu0
    %v5163 = vadd.f32 0.0, %v5162
    %v5164 = vpop.f32.mrf.mxu0
    %5165 = vdwg.mxu0
    %v5167 = vsel %vm1498, %v5128, 0
    %v5170 = vsel %vm1498, %v5133, 0
    %v5173 = vsel %vm1498, %v5138, 0
    %v5176 = vsel %vm1498, %v5143, 0
    %v5179 = vsel %vm1498, %v5148, 0
    %v5182 = vsel %vm1498, %v5153, 0
    %v5185 = vsel %vm1498, %v5158, 0
    %v5188 = vsel %vm1498, %v5163, 0
    %5190 = vmatprep.subr.mxu0 0.0
    %5191 = vmatpush1.msra.mxu0 0.0
    %5192 = vmatprep.subr.mxu0 0.0
    %5193 = vmatpush1.msra.mxu0 0.0
    %5194 = vmatprep.subr.mxu0 0.0
    %5195 = vmatpush1.msra.mxu0 0.0
    %5196 = vmatprep.subr.mxu0 0.0
    %5197 = vmatpush1.msra.mxu0 0.0
    %5198 = vmatprep.subr.mxu0 0.0
    %5199 = vmatpush1.msra.mxu0 0.0
    %5200 = vmatprep.subr.mxu0 0.0
    %5201 = vmatpush1.msra.mxu0 0.0
    %5202 = vmatprep.subr.mxu0 0.0
    %5203 = vmatpush1.msra.mxu0 0.0
    %5204 = vmatprep.subr.mxu0 0.0
    %5205 = vmatpush1.msra.mxu0 0.0
    %5206 = vmatprep.subr.mxu0 0.0
    %5207 = vmatpush1.msra.mxu0 0.0
    %5208 = vmatprep.subr.mxu0 0.0
    %5209 = vmatpush1.msra.mxu0 0.0
    %5210 = vmatprep.subr.mxu0 0.0
    %5211 = vmatpush1.msra.mxu0 0.0
    %5212 = vmatprep.subr.mxu0 0.0
    %5213 = vmatpush1.msra.mxu0 0.0
    %5214 = vmatprep.subr.mxu0 0.0
    %5215 = vmatpush1.msra.mxu0 0.0
    %5216 = vmatprep.subr.mxu0 0.0
    %5217 = vmatpush1.msra.mxu0 0.0
    %5218 = vmatprep.subr.mxu0 0.0
    %5219 = vmatpush1.msra.mxu0 0.0
    %5220 = vmatprep.subr.mxu0 0.0
    %5221 = vmatpush1.msra.mxu0 %v1463
    %5222 = vmatprep.subr.mxu0 0.0
    %5223 = vmatpush2.msra.mxu0 0.0
    %5224 = vmatprep.subr.mxu0 0.0
    %5225 = vmatpush2.msra.mxu0 0.0
    %5226 = vmatprep.subr.mxu0 0.0
    %5227 = vmatpush2.msra.mxu0 0.0
    %5228 = vmatprep.subr.mxu0 0.0
    %5229 = vmatpush2.msra.mxu0 0.0
    %5230 = vmatprep.subr.mxu0 0.0
    %5231 = vmatpush2.msra.mxu0 0.0
    %5232 = vmatprep.subr.mxu0 0.0
    %5233 = vmatpush2.msra.mxu0 0.0
    %5234 = vmatprep.subr.mxu0 0.0
    %5235 = vmatpush2.msra.mxu0 0.0
    %5236 = vmatprep.subr.mxu0 0.0
    %5237 = vmatpush2.msra.mxu0 0.0
    %5238 = vmatprep.subr.mxu0 0.0
    %5239 = vmatpush2.msra.mxu0 0.0
    %5240 = vmatprep.subr.mxu0 0.0
    %5241 = vmatpush2.msra.mxu0 0.0
    %5242 = vmatprep.subr.mxu0 0.0
    %5243 = vmatpush2.msra.mxu0 0.0
    %5244 = vmatprep.subr.mxu0 0.0
    %5245 = vmatpush2.msra.mxu0 0.0
    %5246 = vmatprep.subr.mxu0 0.0
    %5247 = vmatpush2.msra.mxu0 0.0
    %5248 = vmatprep.subr.mxu0 0.0
    %5249 = vmatpush2.msra.mxu0 0.0
    %5250 = vmatprep.subr.mxu0 0.0
    %5251 = vmatpush2.msra.mxu0 0.0
    %5252 = vmatprep.subr.mxu0 0.0
    %5253 = vmatpush2.msra.mxu0 0.0
    %5254 = vmatprep.mubr.f32.mxu0 0.0
    %5255 = vmatmul.mubr.f32.gmra.mxu0 %v5167
    %v5256 = vpop.f32.mrf.mxu0
    %v5257 = vadd.f32 0.0, %v5256
    %v5258 = vpop.f32.mrf.mxu0
    %5259 = vmatprep.mubr.f32.mxu0 0.0
    %5260 = vmatmul.mubr.f32.gmra.mxu0 %v5170
    %v5261 = vpop.f32.mrf.mxu0
    %v5262 = vadd.f32 0.0, %v5261
    %v5263 = vpop.f32.mrf.mxu0
    %5264 = vmatprep.mubr.f32.mxu0 0.0
    %5265 = vmatmul.mubr.f32.gmra.mxu0 %v5173
    %v5266 = vpop.f32.mrf.mxu0
    %v5267 = vadd.f32 0.0, %v5266
    %v5268 = vpop.f32.mrf.mxu0
    %5269 = vmatprep.mubr.f32.mxu0 0.0
    %5270 = vmatmul.mubr.f32.gmra.mxu0 %v5176
    %v5271 = vpop.f32.mrf.mxu0
    %v5272 = vadd.f32 0.0, %v5271
    %v5273 = vpop.f32.mrf.mxu0
    %5274 = vmatprep.mubr.f32.mxu0 0.0
    %5275 = vmatmul.mubr.f32.gmra.mxu0 %v5179
    %v5276 = vpop.f32.mrf.mxu0
    %v5277 = vadd.f32 0.0, %v5276
    %v5278 = vpop.f32.mrf.mxu0
    %5279 = vmatprep.mubr.f32.mxu0 0.0
    %5280 = vmatmul.mubr.f32.gmra.mxu0 %v5182
    %v5281 = vpop.f32.mrf.mxu0
    %v5282 = vadd.f32 0.0, %v5281
    %v5283 = vpop.f32.mrf.mxu0
    %5284 = vmatprep.mubr.f32.mxu0 0.0
    %5285 = vmatmul.mubr.f32.gmra.mxu0 %v5185
    %v5286 = vpop.f32.mrf.mxu0
    %v5287 = vadd.f32 0.0, %v5286
    %v5288 = vpop.f32.mrf.mxu0
    %5289 = vmatprep.mubr.f32.mxu0 0.0
    %5290 = vmatmul.mubr.f32.gmra.mxu0 %v5188
    %v5291 = vpop.f32.mrf.mxu0
    %v5292 = vadd.f32 0.0, %v5291
    %v5293 = vpop.f32.mrf.mxu0
    %5294 = vdwg.mxu0
    %v5295 = vadd.f32 %v4718, %v5257
    %v5296 = vadd.f32 %v4723, %v5262
    %v5297 = vadd.f32 %v4728, %v5267
    %v5298 = vadd.f32 %v4733, %v5272
    %v5299 = vadd.f32 %v4738, %v5277
    %v5300 = vadd.f32 %v4743, %v5282
    %v5301 = vadd.f32 %v4748, %v5287
    %v5302 = vadd.f32 %v4753, %v5292
    %5303 = vrot.lane.b32.xlu0 %v3670, 104
    %v5304 = vpop.permute.xlu0 %5303
    %5305 = vrot.lane.b32.xlu0 %v3671, 104
    %v5306 = vpop.permute.xlu0 %5305
    %5307 = vrot.lane.b32.xlu0 %v3672, 104
    %v5308 = vpop.permute.xlu0 %5307
    %5309 = vrot.lane.b32.xlu0 %v3673, 104
    %v5310 = vpop.permute.xlu0 %5309
    %5311 = vrot.lane.b32.xlu0 %v3674, 104
    %v5312 = vpop.permute.xlu0 %5311
    %5313 = vrot.lane.b32.xlu0 %v3675, 104
    %v5314 = vpop.permute.xlu0 %5313
    %5315 = vrot.lane.b32.xlu0 %v3676, 104
    %v5316 = vpop.permute.xlu0 %5315
    %5317 = vrot.lane.b32.xlu0 %v3677, 104
    %v5318 = vpop.permute.xlu0 %5317
    %5319 = vrot.lane.b32.xlu0 %v1423, 72
    %v5320 = vpop.permute.xlu0 %5319
    %5321 = vrot.lane.b32.xlu0 %v1428, 72
    %v5322 = vpop.permute.xlu0 %5321
    %5323 = vrot.lane.b32.xlu0 %v1433, 72
    %v5324 = vpop.permute.xlu0 %5323
    %5325 = vrot.lane.b32.xlu0 %v1438, 72
    %v5326 = vpop.permute.xlu0 %5325
    %5327 = vrot.lane.b32.xlu0 %v1443, 72
    %v5328 = vpop.permute.xlu0 %5327
    %5329 = vrot.lane.b32.xlu0 %v1448, 72
    %v5330 = vpop.permute.xlu0 %5329
    %5331 = vrot.lane.b32.xlu0 %v1453, 72
    %v5332 = vpop.permute.xlu0 %5331
    %5333 = vrot.lane.b32.xlu0 %v1458, 72
    %v5334 = vpop.permute.xlu0 %5333
    %v5335 = vsel %vm1498, %v5304, 0
    %v5337 = vsel %vm1498, %v5306, 0
    %v5339 = vsel %vm1498, %v5308, 0
    %v5341 = vsel %vm1498, %v5310, 0
    %v5343 = vsel %vm1498, %v5312, 0
    %v5345 = vsel %vm1498, %v5314, 0
    %v5347 = vsel %vm1498, %v5316, 0
    %v5349 = vsel %vm1498, %v5318, 0
    %v5351 = vsel %vm1498, %v5320, 0
    %v5353 = vsel %vm1498, %v5322, 0
    %v5355 = vsel %vm1498, %v5324, 0
    %v5357 = vsel %vm1498, %v5326, 0
    %v5359 = vsel %vm1498, %v5328, 0
    %v5361 = vsel %vm1498, %v5330, 0
    %v5363 = vsel %vm1498, %v5332, 0
    %v5365 = vsel %vm1498, %v5334, 0
    %5367 = vmatprep.subr.mxu0 0.0
    %5368 = vmatpush1.xpose.msra.mxu0 0.0
    %5369 = vmatprep.subr.mxu0 0.0
    %5370 = vmatpush1.xpose.msra.mxu0 0.0
    %5371 = vmatprep.subr.mxu0 0.0
    %5372 = vmatpush1.xpose.msra.mxu0 0.0
    %5373 = vmatprep.subr.mxu0 0.0
    %5374 = vmatpush1.xpose.msra.mxu0 0.0
    %5375 = vmatprep.subr.mxu0 0.0
    %5376 = vmatpush1.xpose.msra.mxu0 0.0
    %5377 = vmatprep.subr.mxu0 0.0
    %5378 = vmatpush1.xpose.msra.mxu0 0.0
    %5379 = vmatprep.subr.mxu0 0.0
    %5380 = vmatpush1.xpose.msra.mxu0 0.0
    %5381 = vmatprep.subr.mxu0 0.0
    %5382 = vmatpush1.xpose.msra.mxu0 0.0
    %5383 = vmatprep.subr.mxu0 0.0
    %5384 = vmatpush1.xpose.msra.mxu0 %v5365
    %5385 = vmatprep.subr.mxu0 0.0
    %5386 = vmatpush1.xpose.msra.mxu0 %v5363
    %5387 = vmatprep.subr.mxu0 0.0
    %5388 = vmatpush1.xpose.msra.mxu0 %v5361
    %5389 = vmatprep.subr.mxu0 0.0
    %5390 = vmatpush1.xpose.msra.mxu0 %v5359
    %5391 = vmatprep.subr.mxu0 0.0
    %5392 = vmatpush1.xpose.msra.mxu0 %v5357
    %5393 = vmatprep.subr.mxu0 0.0
    %5394 = vmatpush1.xpose.msra.mxu0 %v5355
    %5395 = vmatprep.subr.mxu0 0.0
    %5396 = vmatpush1.xpose.msra.mxu0 %v5353
    %5397 = vmatprep.subr.mxu0 0.0
    %5398 = vmatpush1.xpose.msra.mxu0 %v5351
    %5399 = vmatprep.subr.mxu0 0.0
    %5400 = vmatpush2.xpose.msra.mxu0 0.0
    %5401 = vmatprep.subr.mxu0 0.0
    %5402 = vmatpush2.xpose.msra.mxu0 0.0
    %5403 = vmatprep.subr.mxu0 0.0
    %5404 = vmatpush2.xpose.msra.mxu0 0.0
    %5405 = vmatprep.subr.mxu0 0.0
    %5406 = vmatpush2.xpose.msra.mxu0 0.0
    %5407 = vmatprep.subr.mxu0 0.0
    %5408 = vmatpush2.xpose.msra.mxu0 0.0
    %5409 = vmatprep.subr.mxu0 0.0
    %5410 = vmatpush2.xpose.msra.mxu0 0.0
    %5411 = vmatprep.subr.mxu0 0.0
    %5412 = vmatpush2.xpose.msra.mxu0 0.0
    %5413 = vmatprep.subr.mxu0 0.0
    %5414 = vmatpush2.xpose.msra.mxu0 0.0
    %5415 = vmatprep.subr.mxu0 0.0
    %5416 = vmatpush2.xpose.msra.mxu0 0.0
    %5417 = vmatprep.subr.mxu0 0.0
    %5418 = vmatpush2.xpose.msra.mxu0 0.0
    %5419 = vmatprep.subr.mxu0 0.0
    %5420 = vmatpush2.xpose.msra.mxu0 0.0
    %5421 = vmatprep.subr.mxu0 0.0
    %5422 = vmatpush2.xpose.msra.mxu0 0.0
    %5423 = vmatprep.subr.mxu0 0.0
    %5424 = vmatpush2.xpose.msra.mxu0 0.0
    %5425 = vmatprep.subr.mxu0 0.0
    %5426 = vmatpush2.xpose.msra.mxu0 0.0
    %5427 = vmatprep.subr.mxu0 0.0
    %5428 = vmatpush2.xpose.msra.mxu0 0.0
    %5429 = vmatprep.subr.mxu0 0.0
    %5430 = vmatpush2.xpose.msra.mxu0 0.0
    %5431 = vmatprep.mubr.f32.mxu0 0.0
    %5432 = vmatmul.mubr.f32.gmra.mxu0 %v5335
    %v5433 = vpop.f32.mrf.mxu0
    %v5434 = vadd.f32 0.0, %v5433
    %v5435 = vpop.f32.mrf.mxu0
    %5436 = vmatprep.mubr.f32.mxu0 0.0
    %5437 = vmatmul.mubr.f32.gmra.mxu0 %v5337
    %v5438 = vpop.f32.mrf.mxu0
    %v5439 = vadd.f32 0.0, %v5438
    %v5440 = vpop.f32.mrf.mxu0
    %5441 = vmatprep.mubr.f32.mxu0 0.0
    %5442 = vmatmul.mubr.f32.gmra.mxu0 %v5339
    %v5443 = vpop.f32.mrf.mxu0
    %v5444 = vadd.f32 0.0, %v5443
    %v5445 = vpop.f32.mrf.mxu0
    %5446 = vmatprep.mubr.f32.mxu0 0.0
    %5447 = vmatmul.mubr.f32.gmra.mxu0 %v5341
    %v5448 = vpop.f32.mrf.mxu0
    %v5449 = vadd.f32 0.0, %v5448
    %v5450 = vpop.f32.mrf.mxu0
    %5451 = vmatprep.mubr.f32.mxu0 0.0
    %5452 = vmatmul.mubr.f32.gmra.mxu0 %v5343
    %v5453 = vpop.f32.mrf.mxu0
    %v5454 = vadd.f32 0.0, %v5453
    %v5455 = vpop.f32.mrf.mxu0
    %5456 = vmatprep.mubr.f32.mxu0 0.0
    %5457 = vmatmul.mubr.f32.gmra.mxu0 %v5345
    %v5458 = vpop.f32.mrf.mxu0
    %v5459 = vadd.f32 0.0, %v5458
    %v5460 = vpop.f32.mrf.mxu0
    %5461 = vmatprep.mubr.f32.mxu0 0.0
    %5462 = vmatmul.mubr.f32.gmra.mxu0 %v5347
    %v5463 = vpop.f32.mrf.mxu0
    %v5464 = vadd.f32 0.0, %v5463
    %v5465 = vpop.f32.mrf.mxu0
    %5466 = vmatprep.mubr.f32.mxu0 0.0
    %5467 = vmatmul.mubr.f32.gmra.mxu0 %v5349
    %v5468 = vpop.f32.mrf.mxu0
    %v5469 = vadd.f32 0.0, %v5468
    %v5470 = vpop.f32.mrf.mxu0
    %5471 = vdwg.mxu0
    %v5472 = vsel %vm1644, %v5434, -inf
    %5473 = vmax.xlane.f32.xlu0 %v5472
    %v5474 = vpop.xlane.xlu0 %5473
    %v5475 = vsel %vm1644, %v5439, -inf
    %5476 = vmax.xlane.f32.xlu0 %v5475
    %v5477 = vpop.xlane.xlu0 %5476
    %v5478 = vsel %vm1644, %v5444, -inf
    %5479 = vmax.xlane.f32.xlu0 %v5478
    %v5480 = vpop.xlane.xlu0 %5479
    %v5481 = vsel %vm1644, %v5449, -inf
    %5482 = vmax.xlane.f32.xlu0 %v5481
    %v5483 = vpop.xlane.xlu0 %5482
    %v5484 = vsel %vm1644, %v5454, -inf
    %5485 = vmax.xlane.f32.xlu0 %v5484
    %v5486 = vpop.xlane.xlu0 %5485
    %v5487 = vsel %vm1644, %v5459, -inf
    %5488 = vmax.xlane.f32.xlu0 %v5487
    %v5489 = vpop.xlane.xlu0 %5488
    %v5490 = vsel %vm1644, %v5464, -inf
    %5491 = vmax.xlane.f32.xlu0 %v5490
    %v5492 = vpop.xlane.xlu0 %5491
    %v5493 = vsel %vm1644, %v5469, -inf
    %5494 = vmax.xlane.f32.xlu0 %v5493
    %v5495 = vpop.xlane.xlu0 %5494
    %v5496 = vsub.f32 %v5434, %v5474
    %v5497 = vsub.f32 %v5439, %v5477
    %v5498 = vsub.f32 %v5444, %v5480
    %v5499 = vsub.f32 %v5449, %v5483
    %v5500 = vsub.f32 %v5454, %v5486
    %v5501 = vsub.f32 %v5459, %v5489
    %v5502 = vsub.f32 %v5464, %v5492
    %v5503 = vsub.f32 %v5469, %v5495
    %v5504 = vmul.f32 %v5496, 1.442695
    %v5505 = vpow.pop %v5504
    %v5506 = vmul.f32 %v5497, 1.442695
    %v5507 = vpow.pop %v5506
    %v5508 = vmul.f32 %v5498, 1.442695
    %v5509 = vpow.pop %v5508
    %v5510 = vmul.f32 %v5499, 1.442695
    %v5511 = vpow.pop %v5510
    %v5512 = vmul.f32 %v5500, 1.442695
    %v5513 = vpow.pop %v5512
    %v5514 = vmul.f32 %v5501, 1.442695
    %v5515 = vpow.pop %v5514
    %v5516 = vmul.f32 %v5502, 1.442695
    %v5517 = vpow.pop %v5516
    %v5518 = vmul.f32 %v5503, 1.442695
    %v5519 = vpow.pop %v5518
    %v5520 = vsel %vm1644, %v5505, 0.0
    %5521 = vadd.xlane.f32.xlu0 %v5520
    %v5522 = vpop.xlane.xlu0 %5521
    %v5523 = vsel %vm1644, %v5507, 0.0
    %5524 = vadd.xlane.f32.xlu0 %v5523
    %v5525 = vpop.xlane.xlu0 %5524
    %v5526 = vsel %vm1644, %v5509, 0.0
    %5527 = vadd.xlane.f32.xlu0 %v5526
    %v5528 = vpop.xlane.xlu0 %5527
    %v5529 = vsel %vm1644, %v5511, 0.0
    %5530 = vadd.xlane.f32.xlu0 %v5529
    %v5531 = vpop.xlane.xlu0 %5530
    %v5532 = vsel %vm1644, %v5513, 0.0
    %5533 = vadd.xlane.f32.xlu0 %v5532
    %v5534 = vpop.xlane.xlu0 %5533
    %v5535 = vsel %vm1644, %v5515, 0.0
    %5536 = vadd.xlane.f32.xlu0 %v5535
    %v5537 = vpop.xlane.xlu0 %5536
    %v5538 = vsel %vm1644, %v5517, 0.0
    %5539 = vadd.xlane.f32.xlu0 %v5538
    %v5540 = vpop.xlane.xlu0 %5539
    %v5541 = vsel %vm1644, %v5519, 0.0
    %5542 = vadd.xlane.f32.xlu0 %v5541
    %v5543 = vpop.xlane.xlu0 %5542
    %v5544 = vrcp.pop %v5522
    %v5545 = vmul.f32 %v5505, %v5544
    %v5546 = vrcp.pop %v5525
    %v5547 = vmul.f32 %v5507, %v5546
    %v5548 = vrcp.pop %v5528
    %v5549 = vmul.f32 %v5509, %v5548
    %v5550 = vrcp.pop %v5531
    %v5551 = vmul.f32 %v5511, %v5550
    %v5552 = vrcp.pop %v5534
    %v5553 = vmul.f32 %v5513, %v5552
    %v5554 = vrcp.pop %v5537
    %v5555 = vmul.f32 %v5515, %v5554
    %v5556 = vrcp.pop %v5540
    %v5557 = vmul.f32 %v5517, %v5556
    %v5558 = vrcp.pop %v5543
    %v5559 = vmul.f32 %v5519, %v5558
    %5560 = vrot.lane.b32.xlu0 %v1423, 40
    %v5561 = vpop.permute.xlu0 %5560
    %5562 = vrot.lane.b32.xlu0 %v1428, 40
    %v5563 = vpop.permute.xlu0 %5562
    %5564 = vrot.lane.b32.xlu0 %v1433, 40
    %v5565 = vpop.permute.xlu0 %5564
    %5566 = vrot.lane.b32.xlu0 %v1438, 40
    %v5567 = vpop.permute.xlu0 %5566
    %5568 = vrot.lane.b32.xlu0 %v1443, 40
    %v5569 = vpop.permute.xlu0 %5568
    %5570 = vrot.lane.b32.xlu0 %v1448, 40
    %v5571 = vpop.permute.xlu0 %5570
    %5572 = vrot.lane.b32.xlu0 %v1453, 40
    %v5573 = vpop.permute.xlu0 %5572
    %5574 = vrot.lane.b32.xlu0 %v1458, 40
    %v5575 = vpop.permute.xlu0 %5574
    %v5585 = vsel %vm1644, %v5545, 0
    %v5588 = vsel %vm1644, %v5547, 0
    %v5591 = vsel %vm1644, %v5549, 0
    %v5594 = vsel %vm1644, %v5551, 0
    %v5597 = vsel %vm1644, %v5553, 0
    %v5600 = vsel %vm1644, %v5555, 0
    %v5603 = vsel %vm1644, %v5557, 0
    %v5606 = vsel %vm1644, %v5559, 0
    %5608 = vmatprep.subr.mxu0 0.0
    %5609 = vmatpush1.msra.mxu0 0.0
    %5610 = vmatprep.subr.mxu0 0.0
    %5611 = vmatpush1.msra.mxu0 0.0
    %5612 = vmatprep.subr.mxu0 0.0
    %5613 = vmatpush1.msra.mxu0 0.0
    %5614 = vmatprep.subr.mxu0 0.0
    %5615 = vmatpush1.msra.mxu0 0.0
    %5616 = vmatprep.subr.mxu0 0.0
    %5617 = vmatpush1.msra.mxu0 0.0
    %5618 = vmatprep.subr.mxu0 0.0
    %5619 = vmatpush1.msra.mxu0 0.0
    %5620 = vmatprep.subr.mxu0 0.0
    %5621 = vmatpush1.msra.mxu0 0.0
    %5622 = vmatprep.subr.mxu0 0.0
    %5623 = vmatpush1.msra.mxu0 0.0
    %5624 = vmatprep.subr.mxu0 0.0
    %5625 = vmatpush1.msra.mxu0 %v5575
    %5626 = vmatprep.subr.mxu0 0.0
    %5627 = vmatpush1.msra.mxu0 %v5573
    %5628 = vmatprep.subr.mxu0 0.0
    %5629 = vmatpush1.msra.mxu0 %v5571
    %5630 = vmatprep.subr.mxu0 0.0
    %5631 = vmatpush1.msra.mxu0 %v5569
    %5632 = vmatprep.subr.mxu0 0.0
    %5633 = vmatpush1.msra.mxu0 %v5567
    %5634 = vmatprep.subr.mxu0 0.0
    %5635 = vmatpush1.msra.mxu0 %v5565
    %5636 = vmatprep.subr.mxu0 0.0
    %5637 = vmatpush1.msra.mxu0 %v5563
    %5638 = vmatprep.subr.mxu0 0.0
    %5639 = vmatpush1.msra.mxu0 %v5561
    %5640 = vmatprep.subr.mxu0 0.0
    %5641 = vmatpush2.msra.mxu0 0.0
    %5642 = vmatprep.subr.mxu0 0.0
    %5643 = vmatpush2.msra.mxu0 0.0
    %5644 = vmatprep.subr.mxu0 0.0
    %5645 = vmatpush2.msra.mxu0 0.0
    %5646 = vmatprep.subr.mxu0 0.0
    %5647 = vmatpush2.msra.mxu0 0.0
    %5648 = vmatprep.subr.mxu0 0.0
    %5649 = vmatpush2.msra.mxu0 0.0
    %5650 = vmatprep.subr.mxu0 0.0
    %5651 = vmatpush2.msra.mxu0 0.0
    %5652 = vmatprep.subr.mxu0 0.0
    %5653 = vmatpush2.msra.mxu0 0.0
    %5654 = vmatprep.subr.mxu0 0.0
    %5655 = vmatpush2.msra.mxu0 0.0
    %5656 = vmatprep.subr.mxu0 0.0
    %5657 = vmatpush2.msra.mxu0 0.0
    %5658 = vmatprep.subr.mxu0 0.0
    %5659 = vmatpush2.msra.mxu0 0.0
    %5660 = vmatprep.subr.mxu0 0.0
    %5661 = vmatpush2.msra.mxu0 0.0
    %5662 = vmatprep.subr.mxu0 0.0
    %5663 = vmatpush2.msra.mxu0 0.0
    %5664 = vmatprep.subr.mxu0 0.0
    %5665 = vmatpush2.msra.mxu0 0.0
    %5666 = vmatprep.subr.mxu0 0.0
    %5667 = vmatpush2.msra.mxu0 0.0
    %5668 = vmatprep.subr.mxu0 0.0
    %5669 = vmatpush2.msra.mxu0 0.0
    %5670 = vmatprep.subr.mxu0 0.0
    %5671 = vmatpush2.msra.mxu0 0.0
    %5672 = vmatprep.mubr.f32.mxu0 0.0
    %5673 = vmatmul.mubr.f32.gmra.mxu0 %v5585
    %v5674 = vpop.f32.mrf.mxu0
    %v5675 = vadd.f32 0.0, %v5674
    %v5676 = vpop.f32.mrf.mxu0
    %5677 = vmatprep.mubr.f32.mxu0 0.0
    %5678 = vmatmul.mubr.f32.gmra.mxu0 %v5588
    %v5679 = vpop.f32.mrf.mxu0
    %v5680 = vadd.f32 0.0, %v5679
    %v5681 = vpop.f32.mrf.mxu0
    %5682 = vmatprep.mubr.f32.mxu0 0.0
    %5683 = vmatmul.mubr.f32.gmra.mxu0 %v5591
    %v5684 = vpop.f32.mrf.mxu0
    %v5685 = vadd.f32 0.0, %v5684
    %v5686 = vpop.f32.mrf.mxu0
    %5687 = vmatprep.mubr.f32.mxu0 0.0
    %5688 = vmatmul.mubr.f32.gmra.mxu0 %v5594
    %v5689 = vpop.f32.mrf.mxu0
    %v5690 = vadd.f32 0.0, %v5689
    %v5691 = vpop.f32.mrf.mxu0
    %5692 = vmatprep.mubr.f32.mxu0 0.0
    %5693 = vmatmul.mubr.f32.gmra.mxu0 %v5597
    %v5694 = vpop.f32.mrf.mxu0
    %v5695 = vadd.f32 0.0, %v5694
    %v5696 = vpop.f32.mrf.mxu0
    %5697 = vmatprep.mubr.f32.mxu0 0.0
    %5698 = vmatmul.mubr.f32.gmra.mxu0 %v5600
    %v5699 = vpop.f32.mrf.mxu0
    %v5700 = vadd.f32 0.0, %v5699
    %v5701 = vpop.f32.mrf.mxu0
    %5702 = vmatprep.mubr.f32.mxu0 0.0
    %5703 = vmatmul.mubr.f32.gmra.mxu0 %v5603
    %v5704 = vpop.f32.mrf.mxu0
    %v5705 = vadd.f32 0.0, %v5704
    %v5706 = vpop.f32.mrf.mxu0
    %5707 = vmatprep.mubr.f32.mxu0 0.0
    %5708 = vmatmul.mubr.f32.gmra.mxu0 %v5606
    %v5709 = vpop.f32.mrf.mxu0
    %v5710 = vadd.f32 0.0, %v5709
    %v5711 = vpop.f32.mrf.mxu0
    %5712 = vdwg.mxu0
    %v5714 = vsel %vm1498, %v5675, 0
    %v5717 = vsel %vm1498, %v5680, 0
    %v5720 = vsel %vm1498, %v5685, 0
    %v5723 = vsel %vm1498, %v5690, 0
    %v5726 = vsel %vm1498, %v5695, 0
    %v5729 = vsel %vm1498, %v5700, 0
    %v5732 = vsel %vm1498, %v5705, 0
    %v5735 = vsel %vm1498, %v5710, 0
    %5737 = vmatprep.subr.mxu0 0.0
    %5738 = vmatpush1.msra.mxu0 0.0
    %5739 = vmatprep.subr.mxu0 0.0
    %5740 = vmatpush1.msra.mxu0 0.0
    %5741 = vmatprep.subr.mxu0 0.0
    %5742 = vmatpush1.msra.mxu0 0.0
    %5743 = vmatprep.subr.mxu0 0.0
    %5744 = vmatpush1.msra.mxu0 0.0
    %5745 = vmatprep.subr.mxu0 0.0
    %5746 = vmatpush1.msra.mxu0 0.0
    %5747 = vmatprep.subr.mxu0 0.0
    %5748 = vmatpush1.msra.mxu0 0.0
    %5749 = vmatprep.subr.mxu0 0.0
    %5750 = vmatpush1.msra.mxu0 0.0
    %5751 = vmatprep.subr.mxu0 0.0
    %5752 = vmatpush1.msra.mxu0 0.0
    %5753 = vmatprep.subr.mxu0 0.0
    %5754 = vmatpush1.msra.mxu0 0.0
    %5755 = vmatprep.subr.mxu0 0.0
    %5756 = vmatpush1.msra.mxu0 0.0
    %5757 = vmatprep.subr.mxu0 0.0
    %5758 = vmatpush1.msra.mxu0 0.0
    %5759 = vmatprep.subr.mxu0 0.0
    %5760 = vmatpush1.msra.mxu0 0.0
    %5761 = vmatprep.subr.mxu0 0.0
    %5762 = vmatpush1.msra.mxu0 0.0
    %5763 = vmatprep.subr.mxu0 0.0
    %5764 = vmatpush1.msra.mxu0 0.0
    %5765 = vmatprep.subr.mxu0 0.0
    %5766 = vmatpush1.msra.mxu0 0.0
    %5767 = vmatprep.subr.mxu0 0.0
    %5768 = vmatpush1.msra.mxu0 %v1464
    %5769 = vmatprep.subr.mxu0 0.0
    %5770 = vmatpush2.msra.mxu0 0.0
    %5771 = vmatprep.subr.mxu0 0.0
    %5772 = vmatpush2.msra.mxu0 0.0
    %5773 = vmatprep.subr.mxu0 0.0
    %5774 = vmatpush2.msra.mxu0 0.0
    %5775 = vmatprep.subr.mxu0 0.0
    %5776 = vmatpush2.msra.mxu0 0.0
    %5777 = vmatprep.subr.mxu0 0.0
    %5778 = vmatpush2.msra.mxu0 0.0
    %5779 = vmatprep.subr.mxu0 0.0
    %5780 = vmatpush2.msra.mxu0 0.0
    %5781 = vmatprep.subr.mxu0 0.0
    %5782 = vmatpush2.msra.mxu0 0.0
    %5783 = vmatprep.subr.mxu0 0.0
    %5784 = vmatpush2.msra.mxu0 0.0
    %5785 = vmatprep.subr.mxu0 0.0
    %5786 = vmatpush2.msra.mxu0 0.0
    %5787 = vmatprep.subr.mxu0 0.0
    %5788 = vmatpush2.msra.mxu0 0.0
    %5789 = vmatprep.subr.mxu0 0.0
    %5790 = vmatpush2.msra.mxu0 0.0
    %5791 = vmatprep.subr.mxu0 0.0
    %5792 = vmatpush2.msra.mxu0 0.0
    %5793 = vmatprep.subr.mxu0 0.0
    %5794 = vmatpush2.msra.mxu0 0.0
    %5795 = vmatprep.subr.mxu0 0.0
    %5796 = vmatpush2.msra.mxu0 0.0
    %5797 = vmatprep.subr.mxu0 0.0
    %5798 = vmatpush2.msra.mxu0 0.0
    %5799 = vmatprep.subr.mxu0 0.0
    %5800 = vmatpush2.msra.mxu0 0.0
    %5801 = vmatprep.mubr.f32.mxu0 0.0
    %5802 = vmatmul.mubr.f32.gmra.mxu0 %v5714
    %v5803 = vpop.f32.mrf.mxu0
    %v5804 = vadd.f32 0.0, %v5803
    %v5805 = vpop.f32.mrf.mxu0
    %5806 = vmatprep.mubr.f32.mxu0 0.0
    %5807 = vmatmul.mubr.f32.gmra.mxu0 %v5717
    %v5808 = vpop.f32.mrf.mxu0
    %v5809 = vadd.f32 0.0, %v5808
    %v5810 = vpop.f32.mrf.mxu0
    %5811 = vmatprep.mubr.f32.mxu0 0.0
    %5812 = vmatmul.mubr.f32.gmra.mxu0 %v5720
    %v5813 = vpop.f32.mrf.mxu0
    %v5814 = vadd.f32 0.0, %v5813
    %v5815 = vpop.f32.mrf.mxu0
    %5816 = vmatprep.mubr.f32.mxu0 0.0
    %5817 = vmatmul.mubr.f32.gmra.mxu0 %v5723
    %v5818 = vpop.f32.mrf.mxu0
    %v5819 = vadd.f32 0.0, %v5818
    %v5820 = vpop.f32.mrf.mxu0
    %5821 = vmatprep.mubr.f32.mxu0 0.0
    %5822 = vmatmul.mubr.f32.gmra.mxu0 %v5726
    %v5823 = vpop.f32.mrf.mxu0
    %v5824 = vadd.f32 0.0, %v5823
    %v5825 = vpop.f32.mrf.mxu0
    %5826 = vmatprep.mubr.f32.mxu0 0.0
    %5827 = vmatmul.mubr.f32.gmra.mxu0 %v5729
    %v5828 = vpop.f32.mrf.mxu0
    %v5829 = vadd.f32 0.0, %v5828
    %v5830 = vpop.f32.mrf.mxu0
    %5831 = vmatprep.mubr.f32.mxu0 0.0
    %5832 = vmatmul.mubr.f32.gmra.mxu0 %v5732
    %v5833 = vpop.f32.mrf.mxu0
    %v5834 = vadd.f32 0.0, %v5833
    %v5835 = vpop.f32.mrf.mxu0
    %5836 = vmatprep.mubr.f32.mxu0 0.0
    %5837 = vmatmul.mubr.f32.gmra.mxu0 %v5735
    %v5838 = vpop.f32.mrf.mxu0
    %v5839 = vadd.f32 0.0, %v5838
    %v5840 = vpop.f32.mrf.mxu0
    %5841 = vdwg.mxu0
    %v5842 = vadd.f32 %v5295, %v5804
    %v5843 = vadd.f32 %v5296, %v5809
    %v5844 = vadd.f32 %v5297, %v5814
    %v5845 = vadd.f32 %v5298, %v5819
    %v5846 = vadd.f32 %v5299, %v5824
    %v5847 = vadd.f32 %v5300, %v5829
    %v5848 = vadd.f32 %v5301, %v5834
    %v5849 = vadd.f32 %v5302, %v5839
    %v5850 = vadd.f32 %v5842, %v3652
    %v5851 = vadd.f32 %v5843, %v3652
    %v5852 = vadd.f32 %v5844, %v3652
    %v5853 = vadd.f32 %v5845, %v3652
    %v5854 = vadd.f32 %v5846, %v3652
    %v5855 = vadd.f32 %v5847, %v3652
    %v5856 = vadd.f32 %v5848, %v3652
    %v5857 = vadd.f32 %v5849, %v3652
    %5858 = vst.msk [vmem:[#allocation2 + $0x40] sm:$0xff] %vm289, %v5850
    %5859 = vst.msk [vmem:[#allocation2 + $0x48] sm:$0xff] %vm289, %v5851
    %5860 = vst.msk [vmem:[#allocation2 + $0x50] sm:$0xff] %vm289, %v5852
    %5861 = vst.msk [vmem:[#allocation2 + $0x58] sm:$0xff] %vm289, %v5853
    %5862 = vst.msk [vmem:[#allocation2 + $0x60] sm:$0xff] %vm289, %v5854
    %5863 = vst.msk [vmem:[#allocation2 + $0x68] sm:$0xff] %vm289, %v5855
    %5864 = vst.msk [vmem:[#allocation2 + $0x70] sm:$0xff] %vm289, %v5856
    %5865 = vst.msk [vmem:[#allocation2 + $0x78] sm:$0xff] %vm289, %v5857
    %v5866 = vld [vmem:[#allocation2] sm:$0xff]
    %v5867 = vld [vmem:[#allocation2 + $0x8] sm:$0xff]
    %v5868 = vld [vmem:[#allocation2 + $0x10] sm:$0xff]
    %v5869 = vld [vmem:[#allocation2 + $0x18] sm:$0xff]
    %v5870 = vld [vmem:[#allocation2 + $0x20] sm:$0xff]
    %v5871 = vld [vmem:[#allocation2 + $0x28] sm:$0xff]
    %v5872 = vld [vmem:[#allocation2 + $0x30] sm:$0xff]
    %v5873 = vld [vmem:[#allocation2 + $0x38] sm:$0xff]
    %v5874 = vld [vmem:[#allocation2 + $0x40] sm:$0xff]
    %v5875 = vld [vmem:[#allocation2 + $0x48] sm:$0xff]
    %v5876 = vld [vmem:[#allocation2 + $0x50] sm:$0xff]
    %v5877 = vld [vmem:[#allocation2 + $0x58] sm:$0xff]
    %v5878 = vld [vmem:[#allocation2 + $0x60] sm:$0xff]
    %v5879 = vld [vmem:[#allocation2 + $0x68] sm:$0xff]
    %v5880 = vld [vmem:[#allocation2 + $0x70] sm:$0xff]
    %v5881 = vld [vmem:[#allocation2 + $0x78] sm:$0xff]
    %v5882 = vld [vmem:[%s51] sm:$0xff]
    %v5883 = vld [vmem:[%s51 + $0x8] sm:$0xff]
    %v5884 = vld [vmem:[%s51 + $0x10] sm:$0xff]
    %v5885 = vld [vmem:[%s51 + $0x18] sm:$0xff]
    %v5886 = vld [vmem:[%s51 + $0x20] sm:$0xff]
    %v5887 = vld [vmem:[%s51 + $0x28] sm:$0xff]
    %v5888 = vld [vmem:[%s51 + $0x30] sm:$0xff]
    %v5889 = vld [vmem:[%s51 + $0x38] sm:$0xff]
    %v5890 = vld [vmem:[%s53] sm:$0xff]
    %v5891 = vld [vmem:[%s53 + $0x8] sm:$0xff]
    %v5892 = vld [vmem:[%s55] sm:$0x1]
    %v5894 = vlaneseq
    %v5895 = vshrl.u32 %v5894, 7
    %v5896 = vsub.s32 0, %v5895
    %v5897 = vrot.slane %v5892, %v5896
    %v5900 = vsel %vm348, %v5882, 0
    %v5903 = vsel %vm348, %v5883, 0
    %v5906 = vsel %vm348, %v5884, 0
    %v5909 = vsel %vm348, %v5885, 0
    %v5912 = vsel %vm348, %v5886, 0
    %v5915 = vsel %vm348, %v5887, 0
    %v5918 = vsel %vm348, %v5888, 0
    %v5921 = vsel %vm348, %v5889, 0
    %5923 = vmatprep.subr.mxu0 0.0
    %5924 = vmatpush1.msra.mxu0 0.0
    %5925 = vmatprep.subr.mxu0 0.0
    %5926 = vmatpush1.msra.mxu0 0.0
    %5927 = vmatprep.subr.mxu0 0.0
    %5928 = vmatpush1.msra.mxu0 0.0
    %5929 = vmatprep.subr.mxu0 0.0
    %5930 = vmatpush1.msra.mxu0 0.0
    %5931 = vmatprep.subr.mxu0 0.0
    %5932 = vmatpush1.msra.mxu0 0.0
    %5933 = vmatprep.subr.mxu0 0.0
    %5934 = vmatpush1.msra.mxu0 0.0
    %5935 = vmatprep.subr.mxu0 0.0
    %5936 = vmatpush1.msra.mxu0 0.0
    %5937 = vmatprep.subr.mxu0 0.0
    %5938 = vmatpush1.msra.mxu0 0.0
    %5939 = vmatprep.subr.mxu0 0.0
    %5940 = vmatpush1.msra.mxu0 0.0
    %5941 = vmatprep.subr.mxu0 0.0
    %5942 = vmatpush1.msra.mxu0 0.0
    %5943 = vmatprep.subr.mxu0 0.0
    %5944 = vmatpush1.msra.mxu0 0.0
    %5945 = vmatprep.subr.mxu0 0.0
    %5946 = vmatpush1.msra.mxu0 0.0
    %5947 = vmatprep.subr.mxu0 0.0
    %5948 = vmatpush1.msra.mxu0 0.0
    %5949 = vmatprep.subr.mxu0 0.0
    %5950 = vmatpush1.msra.mxu0 0.0
    %5951 = vmatprep.subr.mxu0 0.0
    %5952 = vmatpush1.msra.mxu0 %v5891
    %5953 = vmatprep.subr.mxu0 0.0
    %5954 = vmatpush1.msra.mxu0 %v5890
    %5955 = vmatprep.subr.mxu0 0.0
    %5956 = vmatpush2.msra.mxu0 0.0
    %5957 = vmatprep.subr.mxu0 0.0
    %5958 = vmatpush2.msra.mxu0 0.0
    %5959 = vmatprep.subr.mxu0 0.0
    %5960 = vmatpush2.msra.mxu0 0.0
    %5961 = vmatprep.subr.mxu0 0.0
    %5962 = vmatpush2.msra.mxu0 0.0
    %5963 = vmatprep.subr.mxu0 0.0
    %5964 = vmatpush2.msra.mxu0 0.0
    %5965 = vmatprep.subr.mxu0 0.0
    %5966 = vmatpush2.msra.mxu0 0.0
    %5967 = vmatprep.subr.mxu0 0.0
    %5968 = vmatpush2.msra.mxu0 0.0
    %5969 = vmatprep.subr.mxu0 0.0
    %5970 = vmatpush2.msra.mxu0 0.0
    %5971 = vmatprep.subr.mxu0 0.0
    %5972 = vmatpush2.msra.mxu0 0.0
    %5973 = vmatprep.subr.mxu0 0.0
    %5974 = vmatpush2.msra.mxu0 0.0
    %5975 = vmatprep.subr.mxu0 0.0
    %5976 = vmatpush2.msra.mxu0 0.0
    %5977 = vmatprep.subr.mxu0 0.0
    %5978 = vmatpush2.msra.mxu0 0.0
    %5979 = vmatprep.subr.mxu0 0.0
    %5980 = vmatpush2.msra.mxu0 0.0
    %5981 = vmatprep.subr.mxu0 0.0
    %5982 = vmatpush2.msra.mxu0 0.0
    %5983 = vmatprep.subr.mxu0 0.0
    %5984 = vmatpush2.msra.mxu0 0.0
    %5985 = vmatprep.subr.mxu0 0.0
    %5986 = vmatpush2.msra.mxu0 0.0
    %5987 = vmatprep.mubr.f32.mxu0 0.0
    %5988 = vmatmul.mubr.f32.gmra.mxu0 %v5900
    %v5989 = vpop.f32.mrf.mxu0
    %v5990 = vadd.f32 %v5897, %v5989
    %v5991 = vpop.f32.mrf.mxu0
    %5992 = vmatprep.mubr.f32.mxu0 0.0
    %5993 = vmatmul.mubr.f32.gmra.mxu0 %v5903
    %v5994 = vpop.f32.mrf.mxu0
    %v5995 = vadd.f32 %v5897, %v5994
    %v5996 = vpop.f32.mrf.mxu0
    %5997 = vmatprep.mubr.f32.mxu0 0.0
    %5998 = vmatmul.mubr.f32.gmra.mxu0 %v5906
    %v5999 = vpop.f32.mrf.mxu0
    %v6000 = vadd.f32 %v5897, %v5999
    %v6001 = vpop.f32.mrf.mxu0
    %6002 = vmatprep.mubr.f32.mxu0 0.0
    %6003 = vmatmul.mubr.f32.gmra.mxu0 %v5909
    %v6004 = vpop.f32.mrf.mxu0
    %v6005 = vadd.f32 %v5897, %v6004
    %v6006 = vpop.f32.mrf.mxu0
    %6007 = vmatprep.mubr.f32.mxu0 0.0
    %6008 = vmatmul.mubr.f32.gmra.mxu0 %v5912
    %v6009 = vpop.f32.mrf.mxu0
    %v6010 = vadd.f32 %v5897, %v6009
    %v6011 = vpop.f32.mrf.mxu0
    %6012 = vmatprep.mubr.f32.mxu0 0.0
    %6013 = vmatmul.mubr.f32.gmra.mxu0 %v5915
    %v6014 = vpop.f32.mrf.mxu0
    %v6015 = vadd.f32 %v5897, %v6014
    %v6016 = vpop.f32.mrf.mxu0
    %6017 = vmatprep.mubr.f32.mxu0 0.0
    %6018 = vmatmul.mubr.f32.gmra.mxu0 %v5918
    %v6019 = vpop.f32.mrf.mxu0
    %v6020 = vadd.f32 %v5897, %v6019
    %v6021 = vpop.f32.mrf.mxu0
    %6022 = vmatprep.mubr.f32.mxu0 0.0
    %6023 = vmatmul.mubr.f32.gmra.mxu0 %v5921
    %v6024 = vpop.f32.mrf.mxu0
    %v6025 = vadd.f32 %v5897, %v6024
    %v6026 = vpop.f32.mrf.mxu0
    %6027 = vdwg.mxu0
    %v6028 = vxor.u32 %v5990, 2147483648
    %v6029 = vxor.u32 %v5995, 2147483648
    %v6030 = vxor.u32 %v6000, 2147483648
    %v6031 = vxor.u32 %v6005, 2147483648
    %v6032 = vxor.u32 %v6010, 2147483648
    %v6033 = vxor.u32 %v6015, 2147483648
    %v6034 = vxor.u32 %v6020, 2147483648
    %v6035 = vxor.u32 %v6025, 2147483648
    %v6036 = vmul.f32 %v6028, 1.442695
    %v6037 = vpow.pop %v6036
    %v6038 = vmul.f32 %v6029, 1.442695
    %v6039 = vpow.pop %v6038
    %v6040 = vmul.f32 %v6030, 1.442695
    %v6041 = vpow.pop %v6040
    %v6042 = vmul.f32 %v6031, 1.442695
    %v6043 = vpow.pop %v6042
    %v6044 = vmul.f32 %v6032, 1.442695
    %v6045 = vpow.pop %v6044
    %v6046 = vmul.f32 %v6033, 1.442695
    %v6047 = vpow.pop %v6046
    %v6048 = vmul.f32 %v6034, 1.442695
    %v6049 = vpow.pop %v6048
    %v6050 = vmul.f32 %v6035, 1.442695
    %v6051 = vpow.pop %v6050
    %v6052 = vadd.f32 %v6037, 1.0
    %v6053 = vadd.f32 %v6039, 1.0
    %v6054 = vadd.f32 %v6041, 1.0
    %v6055 = vadd.f32 %v6043, 1.0
    %v6056 = vadd.f32 %v6045, 1.0
    %v6057 = vadd.f32 %v6047, 1.0
    %v6058 = vadd.f32 %v6049, 1.0
    %v6059 = vadd.f32 %v6051, 1.0
    %v6060 = vrcp.pop %v6052
    %v6061 = vmul.f32 1.0, %v6060
    %v6062 = vrcp.pop %v6053
    %v6063 = vmul.f32 1.0, %v6062
    %v6064 = vrcp.pop %v6054
    %v6065 = vmul.f32 1.0, %v6064
    %v6066 = vrcp.pop %v6055
    %v6067 = vmul.f32 1.0, %v6066
    %v6068 = vrcp.pop %v6056
    %v6069 = vmul.f32 1.0, %v6068
    %v6070 = vrcp.pop %v6057
    %v6071 = vmul.f32 1.0, %v6070
    %v6072 = vrcp.pop %v6058
    %v6073 = vmul.f32 1.0, %v6072
    %v6074 = vrcp.pop %v6059
    %v6075 = vmul.f32 1.0, %v6074
    %v6076 = vmul.f32 %v5990, %v6061
    %v6077 = vmul.f32 %v5995, %v6063
    %v6078 = vmul.f32 %v6000, %v6065
    %v6079 = vmul.f32 %v6005, %v6067
    %v6080 = vmul.f32 %v6010, %v6069
    %v6081 = vmul.f32 %v6015, %v6071
    %v6082 = vmul.f32 %v6020, %v6073
    %v6083 = vmul.f32 %v6025, %v6075
    %v6084 = vld [vmem:[%s57] sm:$0xff]
    %v6085 = vld [vmem:[%s57 + $0x8] sm:$0xff]
    %v6086 = vld [vmem:[%s57 + $0x10] sm:$0xff]
    %v6087 = vld [vmem:[%s57 + $0x18] sm:$0xff]
    %v6088 = vld [vmem:[%s59] sm:$0x1]
    %v6090 = vlaneseq
    %v6091 = vshrl.u32 %v6090, 7
    %v6092 = vsub.s32 0, %v6091
    %v6093 = vrot.slane %v6088, %v6092
    %v6096 = vsel %vm289, %v6076, 0
    %v6099 = vsel %vm289, %v6077, 0
    %v6102 = vsel %vm289, %v6078, 0
    %v6105 = vsel %vm289, %v6079, 0
    %v6108 = vsel %vm289, %v6080, 0
    %v6111 = vsel %vm289, %v6081, 0
    %v6114 = vsel %vm289, %v6082, 0
    %v6117 = vsel %vm289, %v6083, 0
    %6119 = vmatprep.subr.mxu0 0.0
    %6120 = vmatpush1.msra.mxu0 0.0
    %6121 = vmatprep.subr.mxu0 0.0
    %6122 = vmatpush1.msra.mxu0 0.0
    %6123 = vmatprep.subr.mxu0 0.0
    %6124 = vmatpush1.msra.mxu0 0.0
    %6125 = vmatprep.subr.mxu0 0.0
    %6126 = vmatpush1.msra.mxu0 0.0
    %6127 = vmatprep.subr.mxu0 0.0
    %6128 = vmatpush1.msra.mxu0 0.0
    %6129 = vmatprep.subr.mxu0 0.0
    %6130 = vmatpush1.msra.mxu0 0.0
    %6131 = vmatprep.subr.mxu0 0.0
    %6132 = vmatpush1.msra.mxu0 0.0
    %6133 = vmatprep.subr.mxu0 0.0
    %6134 = vmatpush1.msra.mxu0 0.0
    %6135 = vmatprep.subr.mxu0 0.0
    %6136 = vmatpush1.msra.mxu0 0.0
    %6137 = vmatprep.subr.mxu0 0.0
    %6138 = vmatpush1.msra.mxu0 0.0
    %6139 = vmatprep.subr.mxu0 0.0
    %6140 = vmatpush1.msra.mxu0 0.0
    %6141 = vmatprep.subr.mxu0 0.0
    %6142 = vmatpush1.msra.mxu0 0.0
    %6143 = vmatprep.subr.mxu0 0.0
    %6144 = vmatpush1.msra.mxu0 %v6087
    %6145 = vmatprep.subr.mxu0 0.0
    %6146 = vmatpush1.msra.mxu0 %v6086
    %6147 = vmatprep.subr.mxu0 0.0
    %6148 = vmatpush1.msra.mxu0 %v6085
    %6149 = vmatprep.subr.mxu0 0.0
    %6150 = vmatpush1.msra.mxu0 %v6084
    %6151 = vmatprep.subr.mxu0 0.0
    %6152 = vmatpush2.msra.mxu0 0.0
    %6153 = vmatprep.subr.mxu0 0.0
    %6154 = vmatpush2.msra.mxu0 0.0
    %6155 = vmatprep.subr.mxu0 0.0
    %6156 = vmatpush2.msra.mxu0 0.0
    %6157 = vmatprep.subr.mxu0 0.0
    %6158 = vmatpush2.msra.mxu0 0.0
    %6159 = vmatprep.subr.mxu0 0.0
    %6160 = vmatpush2.msra.mxu0 0.0
    %6161 = vmatprep.subr.mxu0 0.0
    %6162 = vmatpush2.msra.mxu0 0.0
    %6163 = vmatprep.subr.mxu0 0.0
    %6164 = vmatpush2.msra.mxu0 0.0
    %6165 = vmatprep.subr.mxu0 0.0
    %6166 = vmatpush2.msra.mxu0 0.0
    %6167 = vmatprep.subr.mxu0 0.0
    %6168 = vmatpush2.msra.mxu0 0.0
    %6169 = vmatprep.subr.mxu0 0.0
    %6170 = vmatpush2.msra.mxu0 0.0
    %6171 = vmatprep.subr.mxu0 0.0
    %6172 = vmatpush2.msra.mxu0 0.0
    %6173 = vmatprep.subr.mxu0 0.0
    %6174 = vmatpush2.msra.mxu0 0.0
    %6175 = vmatprep.subr.mxu0 0.0
    %6176 = vmatpush2.msra.mxu0 0.0
    %6177 = vmatprep.subr.mxu0 0.0
    %6178 = vmatpush2.msra.mxu0 0.0
    %6179 = vmatprep.subr.mxu0 0.0
    %6180 = vmatpush2.msra.mxu0 0.0
    %6181 = vmatprep.subr.mxu0 0.0
    %6182 = vmatpush2.msra.mxu0 0.0
    %6183 = vmatprep.mubr.f32.mxu0 0.0
    %6184 = vmatmul.mubr.f32.gmra.mxu0 %v6096
    %v6185 = vpop.f32.mrf.mxu0
    %v6186 = vadd.f32 %v6093, %v6185
    %v6187 = vpop.f32.mrf.mxu0
    %6188 = vmatprep.mubr.f32.mxu0 0.0
    %6189 = vmatmul.mubr.f32.gmra.mxu0 %v6099
    %v6190 = vpop.f32.mrf.mxu0
    %v6191 = vadd.f32 %v6093, %v6190
    %v6192 = vpop.f32.mrf.mxu0
    %6193 = vmatprep.mubr.f32.mxu0 0.0
    %6194 = vmatmul.mubr.f32.gmra.mxu0 %v6102
    %v6195 = vpop.f32.mrf.mxu0
    %v6196 = vadd.f32 %v6093, %v6195
    %v6197 = vpop.f32.mrf.mxu0
    %6198 = vmatprep.mubr.f32.mxu0 0.0
    %6199 = vmatmul.mubr.f32.gmra.mxu0 %v6105
    %v6200 = vpop.f32.mrf.mxu0
    %v6201 = vadd.f32 %v6093, %v6200
    %v6202 = vpop.f32.mrf.mxu0
    %6203 = vmatprep.mubr.f32.mxu0 0.0
    %6204 = vmatmul.mubr.f32.gmra.mxu0 %v6108
    %v6205 = vpop.f32.mrf.mxu0
    %v6206 = vadd.f32 %v6093, %v6205
    %v6207 = vpop.f32.mrf.mxu0
    %6208 = vmatprep.mubr.f32.mxu0 0.0
    %6209 = vmatmul.mubr.f32.gmra.mxu0 %v6111
    %v6210 = vpop.f32.mrf.mxu0
    %v6211 = vadd.f32 %v6093, %v6210
    %v6212 = vpop.f32.mrf.mxu0
    %6213 = vmatprep.mubr.f32.mxu0 0.0
    %6214 = vmatmul.mubr.f32.gmra.mxu0 %v6114
    %v6215 = vpop.f32.mrf.mxu0
    %v6216 = vadd.f32 %v6093, %v6215
    %v6217 = vpop.f32.mrf.mxu0
    %6218 = vmatprep.mubr.f32.mxu0 0.0
    %6219 = vmatmul.mubr.f32.gmra.mxu0 %v6117
    %v6220 = vpop.f32.mrf.mxu0
    %v6221 = vadd.f32 %v6093, %v6220
    %v6222 = vpop.f32.mrf.mxu0
    %6223 = vdwg.mxu0
    %v6224 = vld [vmem:[%s49] sm:$0xff]
    %v6225 = vld [vmem:[%s49 + $0x8] sm:$0xff]
    %v6226 = vld [vmem:[%s49 + $0x10] sm:$0xff]
    %v6227 = vld [vmem:[%s49 + $0x18] sm:$0xff]
    %v6228 = vld [vmem:[%s49 + $0x20] sm:$0xff]
    %v6229 = vld [vmem:[%s49 + $0x28] sm:$0xff]
    %v6230 = vld [vmem:[%s49 + $0x30] sm:$0xff]
    %v6231 = vld [vmem:[%s49 + $0x38] sm:$0xff]
    %6233 = vset.pattern.permute.xlu0 0
    %6234 = vperm.xlu0 %6233, %v6224
    %v6235 = vpop.permute.xlu0 %6234
    %6238 = vset.pattern.permute.xlu0 0
    %6239 = vperm.xlu0 %6238, %v6225
    %v6240 = vpop.permute.xlu0 %6239
    %6243 = vset.pattern.permute.xlu0 0
    %6244 = vperm.xlu0 %6243, %v6226
    %v6245 = vpop.permute.xlu0 %6244
    %6248 = vset.pattern.permute.xlu0 0
    %6249 = vperm.xlu0 %6248, %v6227
    %v6250 = vpop.permute.xlu0 %6249
    %6253 = vset.pattern.permute.xlu0 0
    %6254 = vperm.xlu0 %6253, %v6228
    %v6255 = vpop.permute.xlu0 %6254
    %6258 = vset.pattern.permute.xlu0 0
    %6259 = vperm.xlu0 %6258, %v6229
    %v6260 = vpop.permute.xlu0 %6259
    %6263 = vset.pattern.permute.xlu0 0
    %6264 = vperm.xlu0 %6263, %v6230
    %v6265 = vpop.permute.xlu0 %6264
    %6268 = vset.pattern.permute.xlu0 0
    %6269 = vperm.xlu0 %6268, %v6231
    %v6270 = vpop.permute.xlu0 %6269
    %v6272 = vmul.f32 %v6186, %v6235
    %v6273 = vmul.f32 %v6191, %v6240
    %v6274 = vmul.f32 %v6196, %v6245
    %v6275 = vmul.f32 %v6201, %v6250
    %v6276 = vmul.f32 %v6206, %v6255
    %v6277 = vmul.f32 %v6211, %v6260
    %v6278 = vmul.f32 %v6216, %v6265
    %v6279 = vmul.f32 %v6221, %v6270
    %v6280 = vld [vmem:[%s61] sm:$0xff]
    %v6281 = vld [vmem:[%s61 + $0x8] sm:$0xff]
    %v6282 = vld [vmem:[%s61 + $0x10] sm:$0xff]
    %v6283 = vld [vmem:[%s61 + $0x18] sm:$0xff]
    %v6284 = vld [vmem:[%s63] sm:$0x1]
    %v6286 = vlaneseq
    %v6287 = vshrl.u32 %v6286, 7
    %v6288 = vsub.s32 0, %v6287
    %v6289 = vrot.slane %v6284, %v6288
    %v6292 = vsel %vm289, %v995, 0
    %v6295 = vsel %vm289, %v1000, 0
    %6297 = vmatprep.subr.mxu0 0.0
    %6298 = vmatpush1.msra.mxu0 0.0
    %6299 = vmatprep.subr.mxu0 0.0
    %6300 = vmatpush1.msra.mxu0 0.0
    %6301 = vmatprep.subr.mxu0 0.0
    %6302 = vmatpush1.msra.mxu0 0.0
    %6303 = vmatprep.subr.mxu0 0.0
    %6304 = vmatpush1.msra.mxu0 0.0
    %6305 = vmatprep.subr.mxu0 0.0
    %6306 = vmatpush1.msra.mxu0 0.0
    %6307 = vmatprep.subr.mxu0 0.0
    %6308 = vmatpush1.msra.mxu0 0.0
    %6309 = vmatprep.subr.mxu0 0.0
    %6310 = vmatpush1.msra.mxu0 0.0
    %6311 = vmatprep.subr.mxu0 0.0
    %6312 = vmatpush1.msra.mxu0 0.0
    %6313 = vmatprep.subr.mxu0 0.0
    %6314 = vmatpush1.msra.mxu0 0.0
    %6315 = vmatprep.subr.mxu0 0.0
    %6316 = vmatpush1.msra.mxu0 0.0
    %6317 = vmatprep.subr.mxu0 0.0
    %6318 = vmatpush1.msra.mxu0 0.0
    %6319 = vmatprep.subr.mxu0 0.0
    %6320 = vmatpush1.msra.mxu0 0.0
    %6321 = vmatprep.subr.mxu0 0.0
    %6322 = vmatpush1.msra.mxu0 %v6283
    %6323 = vmatprep.subr.mxu0 0.0
    %6324 = vmatpush1.msra.mxu0 %v6282
    %6325 = vmatprep.subr.mxu0 0.0
    %6326 = vmatpush1.msra.mxu0 %v6281
    %6327 = vmatprep.subr.mxu0 0.0
    %6328 = vmatpush1.msra.mxu0 %v6280
    %6329 = vmatprep.subr.mxu0 0.0
    %6330 = vmatpush2.msra.mxu0 0.0
    %6331 = vmatprep.subr.mxu0 0.0
    %6332 = vmatpush2.msra.mxu0 0.0
    %6333 = vmatprep.subr.mxu0 0.0
    %6334 = vmatpush2.msra.mxu0 0.0
    %6335 = vmatprep.subr.mxu0 0.0
    %6336 = vmatpush2.msra.mxu0 0.0
    %6337 = vmatprep.subr.mxu0 0.0
    %6338 = vmatpush2.msra.mxu0 0.0
    %6339 = vmatprep.subr.mxu0 0.0
    %6340 = vmatpush2.msra.mxu0 0.0
    %6341 = vmatprep.subr.mxu0 0.0
    %6342 = vmatpush2.msra.mxu0 0.0
    %6343 = vmatprep.subr.mxu0 0.0
    %6344 = vmatpush2.msra.mxu0 0.0
    %6345 = vmatprep.subr.mxu0 0.0
    %6346 = vmatpush2.msra.mxu0 0.0
    %6347 = vmatprep.subr.mxu0 0.0
    %6348 = vmatpush2.msra.mxu0 0.0
    %6349 = vmatprep.subr.mxu0 0.0
    %6350 = vmatpush2.msra.mxu0 0.0
    %6351 = vmatprep.subr.mxu0 0.0
    %6352 = vmatpush2.msra.mxu0 0.0
    %6353 = vmatprep.subr.mxu0 0.0
    %6354 = vmatpush2.msra.mxu0 0.0
    %6355 = vmatprep.subr.mxu0 0.0
    %6356 = vmatpush2.msra.mxu0 0.0
    %6357 = vmatprep.subr.mxu0 0.0
    %6358 = vmatpush2.msra.mxu0 0.0
    %6359 = vmatprep.subr.mxu0 0.0
    %6360 = vmatpush2.msra.mxu0 0.0
    %6361 = vmatprep.mubr.f32.mxu0 0.0
    %6362 = vmatmul.mubr.f32.gmra.mxu0 %v6292
    %v6363 = vpop.f32.mrf.mxu0
    %v6364 = vadd.f32 %v6289, %v6363
    %v6365 = vpop.f32.mrf.mxu0
    %6366 = vmatprep.mubr.f32.mxu0 0.0
    %6367 = vmatmul.mubr.f32.gmra.mxu0 %v6295
    %v6368 = vpop.f32.mrf.mxu0
    %v6369 = vadd.f32 %v6289, %v6368
    %v6370 = vpop.f32.mrf.mxu0
    %6371 = vdwg.mxu0
    %v6372 = vld [vmem:[%s45] sm:$0xf]
    %v6373 = vld [vmem:[%s45 + $0x4] sm:$0xf]
    %v6374 = vld [vmem:[%s45 + $0x8] sm:$0xf]
    %v6375 = vld [vmem:[%s45 + $0xc] sm:$0xf]
    %v6376 = vld [vmem:[%s45 + $0x10] sm:$0xf]
    %v6377 = vld [vmem:[%s45 + $0x14] sm:$0xf]
    %v6378 = vld [vmem:[%s45 + $0x18] sm:$0xf]
    %v6379 = vld [vmem:[%s45 + $0x1c] sm:$0xf]
    %v6380 = vpack.c.bf16 %v6369, %v6364
    %v6389 = vunpack.c.l.b16 %v6372
    %v6390 = vunpack.c.l.b16 %v6373
    %v6391 = vunpack.c.l.b16 %v6374
    %v6392 = vunpack.c.l.b16 %v6375
    %v6393 = vunpack.c.l.b16 %v6376
    %v6394 = vunpack.c.l.b16 %v6377
    %v6395 = vunpack.c.l.b16 %v6378
    %v6396 = vunpack.c.l.b16 %v6379
    %v6397 = vpack.c.b16 %v6390, %v6389
    %v6398 = vpack.c.b16 %v6392, %v6391
    %v6399 = vpack.c.b16 %v6394, %v6393
    %v6400 = vpack.c.b16 %v6396, %v6395
    %v6402 = vsel %vm348, %v6397, 0
    %v6405 = vsel %vm348, %v6398, 0
    %v6408 = vsel %vm348, %v6399, 0
    %v6411 = vsel %vm348, %v6400, 0
    %6413 = vmatprep.subr.bf16.mxu0 0
    %6414 = vmatpush1.bf16.msra.mxu0 0
    %6415 = vmatprep.subr.bf16.mxu0 0
    %6416 = vmatpush1.bf16.msra.mxu0 0
    %6417 = vmatprep.subr.bf16.mxu0 0
    %6418 = vmatpush1.bf16.msra.mxu0 0
    %6419 = vmatprep.subr.bf16.mxu0 0
    %6420 = vmatpush1.bf16.msra.mxu0 0
    %6421 = vmatprep.subr.bf16.mxu0 0
    %6422 = vmatpush1.bf16.msra.mxu0 0
    %6423 = vmatprep.subr.bf16.mxu0 0
    %6424 = vmatpush1.bf16.msra.mxu0 0
    %6425 = vmatprep.subr.bf16.mxu0 0
    %6426 = vmatpush1.bf16.msra.mxu0 0
    %6427 = vmatprep.subr.bf16.mxu0 0
    %6428 = vmatpush1.bf16.msra.mxu0 %v6380
    %6429 = vmatprep.subr.bf16.mxu0 0
    %6430 = vmatpush2.bf16.msra.mxu0 0
    %6431 = vmatprep.subr.bf16.mxu0 0
    %6432 = vmatpush2.bf16.msra.mxu0 0
    %6433 = vmatprep.subr.bf16.mxu0 0
    %6434 = vmatpush2.bf16.msra.mxu0 0
    %6435 = vmatprep.subr.bf16.mxu0 0
    %6436 = vmatpush2.bf16.msra.mxu0 0
    %6437 = vmatprep.subr.bf16.mxu0 0
    %6438 = vmatpush2.bf16.msra.mxu0 0
    %6439 = vmatprep.subr.bf16.mxu0 0
    %6440 = vmatpush2.bf16.msra.mxu0 0
    %6441 = vmatprep.subr.bf16.mxu0 0
    %6442 = vmatpush2.bf16.msra.mxu0 0
    %6443 = vmatprep.subr.bf16.mxu0 0
    %6444 = vmatpush2.bf16.msra.mxu0 0
    %6445 = vmatprep.mubr.bf16.mxu0 0
    %6446 = vmatmul.mubr.bf16.gmra.mxu0 %v6402
    %v6447 = vpop.f32.mrf.mxu0
    %v6448 = vadd.f32 0.0, %v6447
    %v6449 = vpop.f32.mrf.mxu0
    %v6450 = vpop.f32.mrf.mxu0
    %v6451 = vadd.f32 0.0, %v6450
    %v6452 = vpop.f32.mrf.mxu0
    %6453 = vmatprep.mubr.bf16.mxu0 0
    %6454 = vmatmul.mubr.bf16.gmra.mxu0 %v6405
    %v6455 = vpop.f32.mrf.mxu0
    %v6456 = vadd.f32 0.0, %v6455
    %v6457 = vpop.f32.mrf.mxu0
    %v6458 = vpop.f32.mrf.mxu0
    %v6459 = vadd.f32 0.0, %v6458
    %v6460 = vpop.f32.mrf.mxu0
    %6461 = vmatprep.mubr.bf16.mxu0 0
    %6462 = vmatmul.mubr.bf16.gmra.mxu0 %v6408
    %v6463 = vpop.f32.mrf.mxu0
    %v6464 = vadd.f32 0.0, %v6463
    %v6465 = vpop.f32.mrf.mxu0
    %v6466 = vpop.f32.mrf.mxu0
    %v6467 = vadd.f32 0.0, %v6466
    %v6468 = vpop.f32.mrf.mxu0
    %6469 = vmatprep.mubr.bf16.mxu0 0
    %6470 = vmatmul.mubr.bf16.gmra.mxu0 %v6411
    %v6471 = vpop.f32.mrf.mxu0
    %v6472 = vadd.f32 0.0, %v6471
    %v6473 = vpop.f32.mrf.mxu0
    %v6474 = vpop.f32.mrf.mxu0
    %v6475 = vadd.f32 0.0, %v6474
    %v6476 = vpop.f32.mrf.mxu0
    %6477 = vdwg.mxu0
    %v6478 = vmul.f32 %v6448, %v6272
    %v6479 = vmul.f32 %v6451, %v6273
    %v6480 = vmul.f32 %v6456, %v6274
    %v6481 = vmul.f32 %v6459, %v6275
    %v6482 = vmul.f32 %v6464, %v6276
    %v6483 = vmul.f32 %v6467, %v6277
    %v6484 = vmul.f32 %v6472, %v6278
    %v6485 = vmul.f32 %v6475, %v6279
    %v6486 = vld [vmem:[%s47] sm:$0xf]
    %v6487 = vld [vmem:[%s47 + $0x4] sm:$0xf]
    %v6488 = vld [vmem:[%s47 + $0x8] sm:$0xf]
    %v6489 = vld [vmem:[%s47 + $0xc] sm:$0xf]
    %v6490 = vld [vmem:[%s47 + $0x10] sm:$0xf]
    %v6491 = vld [vmem:[%s47 + $0x14] sm:$0xf]
    %v6492 = vld [vmem:[%s47 + $0x18] sm:$0xf]
    %v6493 = vld [vmem:[%s47 + $0x1c] sm:$0xf]
    %v6494 = vld [vmem:[%s47 + $0x20] sm:$0xf]
    %v6495 = vld [vmem:[%s47 + $0x24] sm:$0xf]
    %v6496 = vld [vmem:[%s47 + $0x28] sm:$0xf]
    %v6497 = vld [vmem:[%s47 + $0x2c] sm:$0xf]
    %v6498 = vld [vmem:[%s47 + $0x30] sm:$0xf]
    %v6499 = vld [vmem:[%s47 + $0x34] sm:$0xf]
    %v6500 = vld [vmem:[%s47 + $0x38] sm:$0xf]
    %v6501 = vld [vmem:[%s47 + $0x3c] sm:$0xf]
    %v6502 = vpack.c.bf16 %v6479, %v6478
    %v6503 = vpack.c.bf16 %v6481, %v6480
    %v6504 = vpack.c.bf16 %v6483, %v6482
    %v6505 = vpack.c.bf16 %v6485, %v6484
    %v6522 = vunpack.c.l.b16 %v6486
    %v6523 = vunpack.c.l.b16 %v6487
    %v6524 = vunpack.c.l.b16 %v6488
    %v6525 = vunpack.c.l.b16 %v6489
    %v6526 = vunpack.c.l.b16 %v6490
    %v6527 = vunpack.c.l.b16 %v6491
    %v6528 = vunpack.c.l.b16 %v6492
    %v6529 = vunpack.c.l.b16 %v6493
    %v6530 = vunpack.c.l.b16 %v6494
    %v6531 = vunpack.c.l.b16 %v6495
    %v6532 = vunpack.c.l.b16 %v6496
    %v6533 = vunpack.c.l.b16 %v6497
    %v6534 = vunpack.c.l.b16 %v6498
    %v6535 = vunpack.c.l.b16 %v6499
    %v6536 = vunpack.c.l.b16 %v6500
    %v6537 = vunpack.c.l.b16 %v6501
    %v6538 = vpack.c.b16 %v6523, %v6522
    %v6539 = vpack.c.b16 %v6525, %v6524
    %v6540 = vpack.c.b16 %v6527, %v6526
    %v6541 = vpack.c.b16 %v6529, %v6528
    %v6542 = vpack.c.b16 %v6531, %v6530
    %v6543 = vpack.c.b16 %v6533, %v6532
    %v6544 = vpack.c.b16 %v6535, %v6534
    %v6545 = vpack.c.b16 %v6537, %v6536
    %v6547 = vsel %vm1644, %v6538, 0
    %v6550 = vsel %vm1644, %v6539, 0
    %v6553 = vsel %vm1644, %v6540, 0
    %v6556 = vsel %vm1644, %v6541, 0
    %v6559 = vsel %vm1644, %v6542, 0
    %v6562 = vsel %vm1644, %v6543, 0
    %v6565 = vsel %vm1644, %v6544, 0
    %v6568 = vsel %vm1644, %v6545, 0
    %6570 = vmatprep.subr.bf16.mxu0 0
    %6571 = vmatpush1.bf16.msra.mxu0 0
    %6572 = vmatprep.subr.bf16.mxu0 0
    %6573 = vmatpush1.bf16.msra.mxu0 0
    %6574 = vmatprep.subr.bf16.mxu0 0
    %6575 = vmatpush1.bf16.msra.mxu0 0
    %6576 = vmatprep.subr.bf16.mxu0 0
    %6577 = vmatpush1.bf16.msra.mxu0 0
    %6578 = vmatprep.subr.bf16.mxu0 0
    %6579 = vmatpush1.bf16.msra.mxu0 %v6505
    %6580 = vmatprep.subr.bf16.mxu0 0
    %6581 = vmatpush1.bf16.msra.mxu0 %v6504
    %6582 = vmatprep.subr.bf16.mxu0 0
    %6583 = vmatpush1.bf16.msra.mxu0 %v6503
    %6584 = vmatprep.subr.bf16.mxu0 0
    %6585 = vmatpush1.bf16.msra.mxu0 %v6502
    %6586 = vmatprep.subr.bf16.mxu0 0
    %6587 = vmatpush2.bf16.msra.mxu0 0
    %6588 = vmatprep.subr.bf16.mxu0 0
    %6589 = vmatpush2.bf16.msra.mxu0 0
    %6590 = vmatprep.subr.bf16.mxu0 0
    %6591 = vmatpush2.bf16.msra.mxu0 0
    %6592 = vmatprep.subr.bf16.mxu0 0
    %6593 = vmatpush2.bf16.msra.mxu0 0
    %6594 = vmatprep.subr.bf16.mxu0 0
    %6595 = vmatpush2.bf16.msra.mxu0 0
    %6596 = vmatprep.subr.bf16.mxu0 0
    %6597 = vmatpush2.bf16.msra.mxu0 0
    %6598 = vmatprep.subr.bf16.mxu0 0
    %6599 = vmatpush2.bf16.msra.mxu0 0
    %6600 = vmatprep.subr.bf16.mxu0 0
    %6601 = vmatpush2.bf16.msra.mxu0 0
    %6602 = vmatprep.mubr.bf16.mxu0 0
    %6603 = vmatmul.mubr.bf16.gmra.mxu0 %v6547
    %v6604 = vpop.f32.mrf.mxu0
    %v6605 = vadd.f32 0.0, %v6604
    %v6606 = vpop.f32.mrf.mxu0
    %v6607 = vpop.f32.mrf.mxu0
    %v6608 = vadd.f32 0.0, %v6607
    %v6609 = vpop.f32.mrf.mxu0
    %6610 = vmatprep.mubr.bf16.mxu0 0
    %6611 = vmatmul.mubr.bf16.gmra.mxu0 %v6550
    %v6612 = vpop.f32.mrf.mxu0
    %v6613 = vadd.f32 0.0, %v6612
    %v6614 = vpop.f32.mrf.mxu0
    %v6615 = vpop.f32.mrf.mxu0
    %v6616 = vadd.f32 0.0, %v6615
    %v6617 = vpop.f32.mrf.mxu0
    %6618 = vmatprep.mubr.bf16.mxu0 0
    %6619 = vmatmul.mubr.bf16.gmra.mxu0 %v6553
    %v6620 = vpop.f32.mrf.mxu0
    %v6621 = vadd.f32 0.0, %v6620
    %v6622 = vpop.f32.mrf.mxu0
    %v6623 = vpop.f32.mrf.mxu0
    %v6624 = vadd.f32 0.0, %v6623
    %v6625 = vpop.f32.mrf.mxu0
    %6626 = vmatprep.mubr.bf16.mxu0 0
    %6627 = vmatmul.mubr.bf16.gmra.mxu0 %v6556
    %v6628 = vpop.f32.mrf.mxu0
    %v6629 = vadd.f32 0.0, %v6628
    %v6630 = vpop.f32.mrf.mxu0
    %v6631 = vpop.f32.mrf.mxu0
    %v6632 = vadd.f32 0.0, %v6631
    %v6633 = vpop.f32.mrf.mxu0
    %6634 = vmatprep.mubr.bf16.mxu0 0
    %6635 = vmatmul.mubr.bf16.gmra.mxu0 %v6559
    %v6636 = vpop.f32.mrf.mxu0
    %v6637 = vadd.f32 0.0, %v6636
    %v6638 = vpop.f32.mrf.mxu0
    %v6639 = vpop.f32.mrf.mxu0
    %v6640 = vadd.f32 0.0, %v6639
    %v6641 = vpop.f32.mrf.mxu0
    %6642 = vmatprep.mubr.bf16.mxu0 0
    %6643 = vmatmul.mubr.bf16.gmra.mxu0 %v6562
    %v6644 = vpop.f32.mrf.mxu0
    %v6645 = vadd.f32 0.0, %v6644
    %v6646 = vpop.f32.mrf.mxu0
    %v6647 = vpop.f32.mrf.mxu0
    %v6648 = vadd.f32 0.0, %v6647
    %v6649 = vpop.f32.mrf.mxu0
    %6650 = vmatprep.mubr.bf16.mxu0 0
    %6651 = vmatmul.mubr.bf16.gmra.mxu0 %v6565
    %v6652 = vpop.f32.mrf.mxu0
    %v6653 = vadd.f32 0.0, %v6652
    %v6654 = vpop.f32.mrf.mxu0
    %v6655 = vpop.f32.mrf.mxu0
    %v6656 = vadd.f32 0.0, %v6655
    %v6657 = vpop.f32.mrf.mxu0
    %6658 = vmatprep.mubr.bf16.mxu0 0
    %6659 = vmatmul.mubr.bf16.gmra.mxu0 %v6568
    %v6660 = vpop.f32.mrf.mxu0
    %v6661 = vadd.f32 0.0, %v6660
    %v6662 = vpop.f32.mrf.mxu0
    %v6663 = vpop.f32.mrf.mxu0
    %v6664 = vadd.f32 0.0, %v6663
    %v6665 = vpop.f32.mrf.mxu0
    %6666 = vdwg.mxu0
    %v6667 = vld [vmem:[%s65] sm:$0xff]
    %v6668 = vld [vmem:[%s65 + $0x8] sm:$0xff]
    %v6669 = vld [vmem:[%s65 + $0x10] sm:$0xff]
    %v6670 = vld [vmem:[%s65 + $0x18] sm:$0xff]
    %v6671 = vld [vmem:[%s67] sm:$0x1]
    %v6673 = vlaneseq
    %v6674 = vshrl.u32 %v6673, 7
    %v6675 = vsub.s32 0, %v6674
    %v6676 = vrot.slane %v6671, %v6675
    %v6679 = vsel %vm289, %v6605, 0
    %v6682 = vsel %vm289, %v6608, 0
    %v6685 = vsel %vm289, %v6613, 0
    %v6688 = vsel %vm289, %v6616, 0
    %v6691 = vsel %vm289, %v6621, 0
    %v6694 = vsel %vm289, %v6624, 0
    %v6697 = vsel %vm289, %v6629, 0
    %v6700 = vsel %vm289, %v6632, 0
    %v6703 = vsel %vm289, %v6637, 0
    %v6706 = vsel %vm289, %v6640, 0
    %v6709 = vsel %vm289, %v6645, 0
    %v6712 = vsel %vm289, %v6648, 0
    %v6715 = vsel %vm289, %v6653, 0
    %v6718 = vsel %vm289, %v6656, 0
    %v6721 = vsel %vm289, %v6661, 0
    %v6724 = vsel %vm289, %v6664, 0
    %6726 = vmatprep.subr.mxu0 0.0
    %6727 = vmatpush1.msra.mxu0 0.0
    %6728 = vmatprep.subr.mxu0 0.0
    %6729 = vmatpush1.msra.mxu0 0.0
    %6730 = vmatprep.subr.mxu0 0.0
    %6731 = vmatpush1.msra.mxu0 0.0
    %6732 = vmatprep.subr.mxu0 0.0
    %6733 = vmatpush1.msra.mxu0 0.0
    %6734 = vmatprep.subr.mxu0 0.0
    %6735 = vmatpush1.msra.mxu0 0.0
    %6736 = vmatprep.subr.mxu0 0.0
    %6737 = vmatpush1.msra.mxu0 0.0
    %6738 = vmatprep.subr.mxu0 0.0
    %6739 = vmatpush1.msra.mxu0 0.0
    %6740 = vmatprep.subr.mxu0 0.0
    %6741 = vmatpush1.msra.mxu0 0.0
    %6742 = vmatprep.subr.mxu0 0.0
    %6743 = vmatpush1.msra.mxu0 0.0
    %6744 = vmatprep.subr.mxu0 0.0
    %6745 = vmatpush1.msra.mxu0 0.0
    %6746 = vmatprep.subr.mxu0 0.0
    %6747 = vmatpush1.msra.mxu0 0.0
    %6748 = vmatprep.subr.mxu0 0.0
    %6749 = vmatpush1.msra.mxu0 0.0
    %6750 = vmatprep.subr.mxu0 0.0
    %6751 = vmatpush1.msra.mxu0 %v6670
    %6752 = vmatprep.subr.mxu0 0.0
    %6753 = vmatpush1.msra.mxu0 %v6669
    %6754 = vmatprep.subr.mxu0 0.0
    %6755 = vmatpush1.msra.mxu0 %v6668
    %6756 = vmatprep.subr.mxu0 0.0
    %6757 = vmatpush1.msra.mxu0 %v6667
    %6758 = vmatprep.subr.mxu0 0.0
    %6759 = vmatpush2.msra.mxu0 0.0
    %6760 = vmatprep.subr.mxu0 0.0
    %6761 = vmatpush2.msra.mxu0 0.0
    %6762 = vmatprep.subr.mxu0 0.0
    %6763 = vmatpush2.msra.mxu0 0.0
    %6764 = vmatprep.subr.mxu0 0.0
    %6765 = vmatpush2.msra.mxu0 0.0
    %6766 = vmatprep.subr.mxu0 0.0
    %6767 = vmatpush2.msra.mxu0 0.0
    %6768 = vmatprep.subr.mxu0 0.0
    %6769 = vmatpush2.msra.mxu0 0.0
    %6770 = vmatprep.subr.mxu0 0.0
    %6771 = vmatpush2.msra.mxu0 0.0
    %6772 = vmatprep.subr.mxu0 0.0
    %6773 = vmatpush2.msra.mxu0 0.0
    %6774 = vmatprep.subr.mxu0 0.0
    %6775 = vmatpush2.msra.mxu0 0.0
    %6776 = vmatprep.subr.mxu0 0.0
    %6777 = vmatpush2.msra.mxu0 0.0
    %6778 = vmatprep.subr.mxu0 0.0
    %6779 = vmatpush2.msra.mxu0 0.0
    %6780 = vmatprep.subr.mxu0 0.0
    %6781 = vmatpush2.msra.mxu0 0.0
    %6782 = vmatprep.subr.mxu0 0.0
    %6783 = vmatpush2.msra.mxu0 0.0
    %6784 = vmatprep.subr.mxu0 0.0
    %6785 = vmatpush2.msra.mxu0 0.0
    %6786 = vmatprep.subr.mxu0 0.0
    %6787 = vmatpush2.msra.mxu0 0.0
    %6788 = vmatprep.subr.mxu0 0.0
    %6789 = vmatpush2.msra.mxu0 0.0
    %6790 = vmatprep.mubr.f32.mxu0 0.0
    %6791 = vmatmul.mubr.f32.gmra.mxu0 %v6679
    %v6792 = vpop.f32.mrf.mxu0
    %v6793 = vadd.f32 %v6676, %v6792
    %v6794 = vpop.f32.mrf.mxu0
    %6795 = vmatprep.mubr.f32.mxu0 0.0
    %6796 = vmatmul.mubr.f32.gmra.mxu0 %v6682
    %v6797 = vpop.f32.mrf.mxu0
    %v6798 = vadd.f32 %v6676, %v6797
    %v6799 = vpop.f32.mrf.mxu0
    %6800 = vmatprep.mubr.f32.mxu0 0.0
    %6801 = vmatmul.mubr.f32.gmra.mxu0 %v6685
    %v6802 = vpop.f32.mrf.mxu0
    %v6803 = vadd.f32 %v6676, %v6802
    %v6804 = vpop.f32.mrf.mxu0
    %6805 = vmatprep.mubr.f32.mxu0 0.0
    %6806 = vmatmul.mubr.f32.gmra.mxu0 %v6688
    %v6807 = vpop.f32.mrf.mxu0
    %v6808 = vadd.f32 %v6676, %v6807
    %v6809 = vpop.f32.mrf.mxu0
    %6810 = vmatprep.mubr.f32.mxu0 0.0
    %6811 = vmatmul.mubr.f32.gmra.mxu0 %v6691
    %v6812 = vpop.f32.mrf.mxu0
    %v6813 = vadd.f32 %v6676, %v6812
    %v6814 = vpop.f32.mrf.mxu0
    %6815 = vmatprep.mubr.f32.mxu0 0.0
    %6816 = vmatmul.mubr.f32.gmra.mxu0 %v6694
    %v6817 = vpop.f32.mrf.mxu0
    %v6818 = vadd.f32 %v6676, %v6817
    %v6819 = vpop.f32.mrf.mxu0
    %6820 = vmatprep.mubr.f32.mxu0 0.0
    %6821 = vmatmul.mubr.f32.gmra.mxu0 %v6697
    %v6822 = vpop.f32.mrf.mxu0
    %v6823 = vadd.f32 %v6676, %v6822
    %v6824 = vpop.f32.mrf.mxu0
    %6825 = vmatprep.mubr.f32.mxu0 0.0
    %6826 = vmatmul.mubr.f32.gmra.mxu0 %v6700
    %v6827 = vpop.f32.mrf.mxu0
    %v6828 = vadd.f32 %v6676, %v6827
    %v6829 = vpop.f32.mrf.mxu0
    %6830 = vmatprep.mubr.f32.mxu0 0.0
    %6831 = vmatmul.mubr.f32.gmra.mxu0 %v6703
    %v6832 = vpop.f32.mrf.mxu0
    %v6833 = vadd.f32 %v6676, %v6832
    %v6834 = vpop.f32.mrf.mxu0
    %6835 = vmatprep.mubr.f32.mxu0 0.0
    %6836 = vmatmul.mubr.f32.gmra.mxu0 %v6706
    %v6837 = vpop.f32.mrf.mxu0
    %v6838 = vadd.f32 %v6676, %v6837
    %v6839 = vpop.f32.mrf.mxu0
    %6840 = vmatprep.mubr.f32.mxu0 0.0
    %6841 = vmatmul.mubr.f32.gmra.mxu0 %v6709
    %v6842 = vpop.f32.mrf.mxu0
    %v6843 = vadd.f32 %v6676, %v6842
    %v6844 = vpop.f32.mrf.mxu0
    %6845 = vmatprep.mubr.f32.mxu0 0.0
    %6846 = vmatmul.mubr.f32.gmra.mxu0 %v6712
    %v6847 = vpop.f32.mrf.mxu0
    %v6848 = vadd.f32 %v6676, %v6847
    %v6849 = vpop.f32.mrf.mxu0
    %6850 = vmatprep.mubr.f32.mxu0 0.0
    %6851 = vmatmul.mubr.f32.gmra.mxu0 %v6715
    %v6852 = vpop.f32.mrf.mxu0
    %v6853 = vadd.f32 %v6676, %v6852
    %v6854 = vpop.f32.mrf.mxu0
    %6855 = vmatprep.mubr.f32.mxu0 0.0
    %6856 = vmatmul.mubr.f32.gmra.mxu0 %v6718
    %v6857 = vpop.f32.mrf.mxu0
    %v6858 = vadd.f32 %v6676, %v6857
    %v6859 = vpop.f32.mrf.mxu0
    %6860 = vmatprep.mubr.f32.mxu0 0.0
    %6861 = vmatmul.mubr.f32.gmra.mxu0 %v6721
    %v6862 = vpop.f32.mrf.mxu0
    %v6863 = vadd.f32 %v6676, %v6862
    %v6864 = vpop.f32.mrf.mxu0
    %6865 = vmatprep.mubr.f32.mxu0 0.0
    %6866 = vmatmul.mubr.f32.gmra.mxu0 %v6724
    %v6867 = vpop.f32.mrf.mxu0
    %v6868 = vadd.f32 %v6676, %v6867
    %v6869 = vpop.f32.mrf.mxu0
    %6870 = vdwg.mxu0
    %v6871 = vld [vmem:[%s13] sm:$0x1]
    %v6872 = vld [vmem:[%s15] sm:$0x1]
    %v6873 = vsel %vm289, %v6793, 0.0
    %6874 = vadd.xlane.f32.xlu0 %v6873
    %v6875 = vpop.xlane.xlu0 %6874
    %v6876 = vsel %vm289, %v6798, 0.0
    %6877 = vadd.xlane.f32.xlu0 %v6876
    %v6878 = vpop.xlane.xlu0 %6877
    %v6879 = vsel %vm289, %v6803, 0.0
    %6880 = vadd.xlane.f32.xlu0 %v6879
    %v6881 = vpop.xlane.xlu0 %6880
    %v6882 = vsel %vm289, %v6808, 0.0
    %6883 = vadd.xlane.f32.xlu0 %v6882
    %v6884 = vpop.xlane.xlu0 %6883
    %v6885 = vsel %vm289, %v6813, 0.0
    %6886 = vadd.xlane.f32.xlu0 %v6885
    %v6887 = vpop.xlane.xlu0 %6886
    %v6888 = vsel %vm289, %v6818, 0.0
    %6889 = vadd.xlane.f32.xlu0 %v6888
    %v6890 = vpop.xlane.xlu0 %6889
    %v6891 = vsel %vm289, %v6823, 0.0
    %6892 = vadd.xlane.f32.xlu0 %v6891
    %v6893 = vpop.xlane.xlu0 %6892
    %v6894 = vsel %vm289, %v6828, 0.0
    %6895 = vadd.xlane.f32.xlu0 %v6894
    %v6896 = vpop.xlane.xlu0 %6895
    %v6897 = vsel %vm289, %v6833, 0.0
    %6898 = vadd.xlane.f32.xlu0 %v6897
    %v6899 = vpop.xlane.xlu0 %6898
    %v6900 = vsel %vm289, %v6838, 0.0
    %6901 = vadd.xlane.f32.xlu0 %v6900
    %v6902 = vpop.xlane.xlu0 %6901
    %v6903 = vsel %vm289, %v6843, 0.0
    %6904 = vadd.xlane.f32.xlu0 %v6903
    %v6905 = vpop.xlane.xlu0 %6904
    %v6906 = vsel %vm289, %v6848, 0.0
    %6907 = vadd.xlane.f32.xlu0 %v6906
    %v6908 = vpop.xlane.xlu0 %6907
    %v6909 = vsel %vm289, %v6853, 0.0
    %6910 = vadd.xlane.f32.xlu0 %v6909
    %v6911 = vpop.xlane.xlu0 %6910
    %v6912 = vsel %vm289, %v6858, 0.0
    %6913 = vadd.xlane.f32.xlu0 %v6912
    %v6914 = vpop.xlane.xlu0 %6913
    %v6915 = vsel %vm289, %v6863, 0.0
    %6916 = vadd.xlane.f32.xlu0 %v6915
    %v6917 = vpop.xlane.xlu0 %6916
    %v6918 = vsel %vm289, %v6868, 0.0
    %6919 = vadd.xlane.f32.xlu0 %v6918
    %v6920 = vpop.xlane.xlu0 %6919
    %v6921 = vmul.f32 %v6875, %v296
    %v6922 = vmul.f32 %v6878, %v296
    %v6923 = vmul.f32 %v6881, %v296
    %v6924 = vmul.f32 %v6884, %v296
    %v6925 = vmul.f32 %v6887, %v296
    %v6926 = vmul.f32 %v6890, %v296
    %v6927 = vmul.f32 %v6893, %v296
    %v6928 = vmul.f32 %v6896, %v296
    %v6929 = vmul.f32 %v6899, %v296
    %v6930 = vmul.f32 %v6902, %v296
    %v6931 = vmul.f32 %v6905, %v296
    %v6932 = vmul.f32 %v6908, %v296
    %v6933 = vmul.f32 %v6911, %v296
    %v6934 = vmul.f32 %v6914, %v296
    %v6935 = vmul.f32 %v6917, %v296
    %v6936 = vmul.f32 %v6920, %v296
    %v6937 = vsub.f32 %v6793, %v6921
    %v6938 = vsub.f32 %v6798, %v6922
    %v6939 = vsub.f32 %v6803, %v6923
    %v6940 = vsub.f32 %v6808, %v6924
    %v6941 = vsub.f32 %v6813, %v6925
    %v6942 = vsub.f32 %v6818, %v6926
    %v6943 = vsub.f32 %v6823, %v6927
    %v6944 = vsub.f32 %v6828, %v6928
    %v6945 = vsub.f32 %v6833, %v6929
    %v6946 = vsub.f32 %v6838, %v6930
    %v6947 = vsub.f32 %v6843, %v6931
    %v6948 = vsub.f32 %v6848, %v6932
    %v6949 = vsub.f32 %v6853, %v6933
    %v6950 = vsub.f32 %v6858, %v6934
    %v6951 = vsub.f32 %v6863, %v6935
    %v6952 = vsub.f32 %v6868, %v6936
    %v6953 = vmul.f32 %v6937, %v6937
    %v6954 = vmul.f32 %v6938, %v6938
    %v6955 = vmul.f32 %v6939, %v6939
    %v6956 = vmul.f32 %v6940, %v6940
    %v6957 = vmul.f32 %v6941, %v6941
    %v6958 = vmul.f32 %v6942, %v6942
    %v6959 = vmul.f32 %v6943, %v6943
    %v6960 = vmul.f32 %v6944, %v6944
    %v6961 = vmul.f32 %v6945, %v6945
    %v6962 = vmul.f32 %v6946, %v6946
    %v6963 = vmul.f32 %v6947, %v6947
    %v6964 = vmul.f32 %v6948, %v6948
    %v6965 = vmul.f32 %v6949, %v6949
    %v6966 = vmul.f32 %v6950, %v6950
    %v6967 = vmul.f32 %v6951, %v6951
    %v6968 = vmul.f32 %v6952, %v6952
    %v6969 = vsel %vm289, %v6953, 0.0
    %6970 = vadd.xlane.f32.xlu0 %v6969
    %v6971 = vpop.xlane.xlu0 %6970
    %v6972 = vsel %vm289, %v6954, 0.0
    %6973 = vadd.xlane.f32.xlu0 %v6972
    %v6974 = vpop.xlane.xlu0 %6973
    %v6975 = vsel %vm289, %v6955, 0.0
    %6976 = vadd.xlane.f32.xlu0 %v6975
    %v6977 = vpop.xlane.xlu0 %6976
    %v6978 = vsel %vm289, %v6956, 0.0
    %6979 = vadd.xlane.f32.xlu0 %v6978
    %v6980 = vpop.xlane.xlu0 %6979
    %v6981 = vsel %vm289, %v6957, 0.0
    %6982 = vadd.xlane.f32.xlu0 %v6981
    %v6983 = vpop.xlane.xlu0 %6982
    %v6984 = vsel %vm289, %v6958, 0.0
    %6985 = vadd.xlane.f32.xlu0 %v6984
    %v6986 = vpop.xlane.xlu0 %6985
    %v6987 = vsel %vm289, %v6959, 0.0
    %6988 = vadd.xlane.f32.xlu0 %v6987
    %v6989 = vpop.xlane.xlu0 %6988
    %v6990 = vsel %vm289, %v6960, 0.0
    %6991 = vadd.xlane.f32.xlu0 %v6990
    %v6992 = vpop.xlane.xlu0 %6991
    %v6993 = vsel %vm289, %v6961, 0.0
    %6994 = vadd.xlane.f32.xlu0 %v6993
    %v6995 = vpop.xlane.xlu0 %6994
    %v6996 = vsel %vm289, %v6962, 0.0
    %6997 = vadd.xlane.f32.xlu0 %v6996
    %v6998 = vpop.xlane.xlu0 %6997
    %v6999 = vsel %vm289, %v6963, 0.0
    %7000 = vadd.xlane.f32.xlu0 %v6999
    %v7001 = vpop.xlane.xlu0 %7000
    %v7002 = vsel %vm289, %v6964, 0.0
    %7003 = vadd.xlane.f32.xlu0 %v7002
    %v7004 = vpop.xlane.xlu0 %7003
    %v7005 = vsel %vm289, %v6965, 0.0
    %7006 = vadd.xlane.f32.xlu0 %v7005
    %v7007 = vpop.xlane.xlu0 %7006
    %v7008 = vsel %vm289, %v6966, 0.0
    %7009 = vadd.xlane.f32.xlu0 %v7008
    %v7010 = vpop.xlane.xlu0 %7009
    %v7011 = vsel %vm289, %v6967, 0.0
    %7012 = vadd.xlane.f32.xlu0 %v7011
    %v7013 = vpop.xlane.xlu0 %7012
    %v7014 = vsel %vm289, %v6968, 0.0
    %7015 = vadd.xlane.f32.xlu0 %v7014
    %v7016 = vpop.xlane.xlu0 %7015
    %v7017 = vmul.f32 %v6971, %v296
    %v7018 = vmul.f32 %v6974, %v296
    %v7019 = vmul.f32 %v6977, %v296
    %v7020 = vmul.f32 %v6980, %v296
    %v7021 = vmul.f32 %v6983, %v296
    %v7022 = vmul.f32 %v6986, %v296
    %v7023 = vmul.f32 %v6989, %v296
    %v7024 = vmul.f32 %v6992, %v296
    %v7025 = vmul.f32 %v6995, %v296
    %v7026 = vmul.f32 %v6998, %v296
    %v7027 = vmul.f32 %v7001, %v296
    %v7028 = vmul.f32 %v7004, %v296
    %v7029 = vmul.f32 %v7007, %v296
    %v7030 = vmul.f32 %v7010, %v296
    %v7031 = vmul.f32 %v7013, %v296
    %v7032 = vmul.f32 %v7016, %v296
    %v7033 = vadd.f32 %v7017, 1e-05
    %v7034 = vadd.f32 %v7018, 1e-05
    %v7035 = vadd.f32 %v7019, 1e-05
    %v7036 = vadd.f32 %v7020, 1e-05
    %v7037 = vadd.f32 %v7021, 1e-05
    %v7038 = vadd.f32 %v7022, 1e-05
    %v7039 = vadd.f32 %v7023, 1e-05
    %v7040 = vadd.f32 %v7024, 1e-05
    %v7041 = vadd.f32 %v7025, 1e-05
    %v7042 = vadd.f32 %v7026, 1e-05
    %v7043 = vadd.f32 %v7027, 1e-05
    %v7044 = vadd.f32 %v7028, 1e-05
    %v7045 = vadd.f32 %v7029, 1e-05
    %v7046 = vadd.f32 %v7030, 1e-05
    %v7047 = vadd.f32 %v7031, 1e-05
    %v7048 = vadd.f32 %v7032, 1e-05
    %v7049 = vrsqrt.pop %v7033
    %v7050 = vrsqrt.pop %v7034
    %v7051 = vrsqrt.pop %v7035
    %v7052 = vrsqrt.pop %v7036
    %v7053 = vrsqrt.pop %v7037
    %v7054 = vrsqrt.pop %v7038
    %v7055 = vrsqrt.pop %v7039
    %v7056 = vrsqrt.pop %v7040
    %v7057 = vrsqrt.pop %v7041
    %v7058 = vrsqrt.pop %v7042
    %v7059 = vrsqrt.pop %v7043
    %v7060 = vrsqrt.pop %v7044
    %v7061 = vrsqrt.pop %v7045
    %v7062 = vrsqrt.pop %v7046
    %v7063 = vrsqrt.pop %v7047
    %v7064 = vrsqrt.pop %v7048
    %v7065 = vmul.f32 %v6937, %v7049
    %v7066 = vmul.f32 %v6938, %v7050
    %v7067 = vmul.f32 %v6939, %v7051
    %v7068 = vmul.f32 %v6940, %v7052
    %v7069 = vmul.f32 %v6941, %v7053
    %v7070 = vmul.f32 %v6942, %v7054
    %v7071 = vmul.f32 %v6943, %v7055
    %v7072 = vmul.f32 %v6944, %v7056
    %v7073 = vmul.f32 %v6945, %v7057
    %v7074 = vmul.f32 %v6946, %v7058
    %v7075 = vmul.f32 %v6947, %v7059
    %v7076 = vmul.f32 %v6948, %v7060
    %v7077 = vmul.f32 %v6949, %v7061
    %v7078 = vmul.f32 %v6950, %v7062
    %v7079 = vmul.f32 %v6951, %v7063
    %v7080 = vmul.f32 %v6952, %v7064
    %v7082 = vlaneseq
    %v7083 = vshrl.u32 %v7082, 7
    %v7084 = vsub.s32 0, %v7083
    %v7085 = vrot.slane %v6871, %v7084
    %v7087 = vmul.f32 %v7065, %v7085
    %v7088 = vmul.f32 %v7066, %v7085
    %v7089 = vmul.f32 %v7067, %v7085
    %v7090 = vmul.f32 %v7068, %v7085
    %v7091 = vmul.f32 %v7069, %v7085
    %v7092 = vmul.f32 %v7070, %v7085
    %v7093 = vmul.f32 %v7071, %v7085
    %v7094 = vmul.f32 %v7072, %v7085
    %v7095 = vmul.f32 %v7073, %v7085
    %v7096 = vmul.f32 %v7074, %v7085
    %v7097 = vmul.f32 %v7075, %v7085
    %v7098 = vmul.f32 %v7076, %v7085
    %v7099 = vmul.f32 %v7077, %v7085
    %v7100 = vmul.f32 %v7078, %v7085
    %v7101 = vmul.f32 %v7079, %v7085
    %v7102 = vmul.f32 %v7080, %v7085
    %v7104 = vlaneseq
    %v7105 = vshrl.u32 %v7104, 7
    %v7106 = vsub.s32 0, %v7105
    %v7107 = vrot.slane %v6872, %v7106
    %v7109 = vadd.f32 %v7087, %v7107
    %v7110 = vadd.f32 %v7088, %v7107
    %v7111 = vadd.f32 %v7089, %v7107
    %v7112 = vadd.f32 %v7090, %v7107
    %v7113 = vadd.f32 %v7091, %v7107
    %v7114 = vadd.f32 %v7092, %v7107
    %v7115 = vadd.f32 %v7093, %v7107
    %v7116 = vadd.f32 %v7094, %v7107
    %v7117 = vadd.f32 %v7095, %v7107
    %v7118 = vadd.f32 %v7096, %v7107
    %v7119 = vadd.f32 %v7097, %v7107
    %v7120 = vadd.f32 %v7098, %v7107
    %v7121 = vadd.f32 %v7099, %v7107
    %v7122 = vadd.f32 %v7100, %v7107
    %v7123 = vadd.f32 %v7101, %v7107
    %v7124 = vadd.f32 %v7102, %v7107
    %v7125 = vld [vmem:[%s75] sm:$0xff]
    %v7126 = vld [vmem:[%s75 + $0x8] sm:$0xff]
    %v7127 = vld [vmem:[%s75 + $0x10] sm:$0xff]
    %v7128 = vld [vmem:[%s75 + $0x18] sm:$0xff]
    %v7129 = vld [vmem:[%s75 + $0x20] sm:$0xff]
    %v7130 = vld [vmem:[%s75 + $0x28] sm:$0xff]
    %v7131 = vld [vmem:[%s75 + $0x30] sm:$0xff]
    %v7132 = vld [vmem:[%s75 + $0x38] sm:$0xff]
    %v7133 = vld [vmem:[%s77] sm:$0xff]
    %v7134 = vld [vmem:[%s77 + $0x8] sm:$0xff]
    %v7135 = vld [vmem:[%s79] sm:$0x1]
    %v7137 = vlaneseq
    %v7138 = vshrl.u32 %v7137, 7
    %v7139 = vsub.s32 0, %v7138
    %v7140 = vrot.slane %v7135, %v7139
    %v7143 = vsel %vm348, %v7125, 0
    %v7146 = vsel %vm348, %v7126, 0
    %v7149 = vsel %vm348, %v7127, 0
    %v7152 = vsel %vm348, %v7128, 0
    %v7155 = vsel %vm348, %v7129, 0
    %v7158 = vsel %vm348, %v7130, 0
    %v7161 = vsel %vm348, %v7131, 0
    %v7164 = vsel %vm348, %v7132, 0
    %7166 = vmatprep.subr.mxu0 0.0
    %7167 = vmatpush1.msra.mxu0 0.0
    %7168 = vmatprep.subr.mxu0 0.0
    %7169 = vmatpush1.msra.mxu0 0.0
    %7170 = vmatprep.subr.mxu0 0.0
    %7171 = vmatpush1.msra.mxu0 0.0
    %7172 = vmatprep.subr.mxu0 0.0
    %7173 = vmatpush1.msra.mxu0 0.0
    %7174 = vmatprep.subr.mxu0 0.0
    %7175 = vmatpush1.msra.mxu0 0.0
    %7176 = vmatprep.subr.mxu0 0.0
    %7177 = vmatpush1.msra.mxu0 0.0
    %7178 = vmatprep.subr.mxu0 0.0
    %7179 = vmatpush1.msra.mxu0 0.0
    %7180 = vmatprep.subr.mxu0 0.0
    %7181 = vmatpush1.msra.mxu0 0.0
    %7182 = vmatprep.subr.mxu0 0.0
    %7183 = vmatpush1.msra.mxu0 0.0
    %7184 = vmatprep.subr.mxu0 0.0
    %7185 = vmatpush1.msra.mxu0 0.0
    %7186 = vmatprep.subr.mxu0 0.0
    %7187 = vmatpush1.msra.mxu0 0.0
    %7188 = vmatprep.subr.mxu0 0.0
    %7189 = vmatpush1.msra.mxu0 0.0
    %7190 = vmatprep.subr.mxu0 0.0
    %7191 = vmatpush1.msra.mxu0 0.0
    %7192 = vmatprep.subr.mxu0 0.0
    %7193 = vmatpush1.msra.mxu0 0.0
    %7194 = vmatprep.subr.mxu0 0.0
    %7195 = vmatpush1.msra.mxu0 %v7134
    %7196 = vmatprep.subr.mxu0 0.0
    %7197 = vmatpush1.msra.mxu0 %v7133
    %7198 = vmatprep.subr.mxu0 0.0
    %7199 = vmatpush2.msra.mxu0 0.0
    %7200 = vmatprep.subr.mxu0 0.0
    %7201 = vmatpush2.msra.mxu0 0.0
    %7202 = vmatprep.subr.mxu0 0.0
    %7203 = vmatpush2.msra.mxu0 0.0
    %7204 = vmatprep.subr.mxu0 0.0
    %7205 = vmatpush2.msra.mxu0 0.0
    %7206 = vmatprep.subr.mxu0 0.0
    %7207 = vmatpush2.msra.mxu0 0.0
    %7208 = vmatprep.subr.mxu0 0.0
    %7209 = vmatpush2.msra.mxu0 0.0
    %7210 = vmatprep.subr.mxu0 0.0
    %7211 = vmatpush2.msra.mxu0 0.0
    %7212 = vmatprep.subr.mxu0 0.0
    %7213 = vmatpush2.msra.mxu0 0.0
    %7214 = vmatprep.subr.mxu0 0.0
    %7215 = vmatpush2.msra.mxu0 0.0
    %7216 = vmatprep.subr.mxu0 0.0
    %7217 = vmatpush2.msra.mxu0 0.0
    %7218 = vmatprep.subr.mxu0 0.0
    %7219 = vmatpush2.msra.mxu0 0.0
    %7220 = vmatprep.subr.mxu0 0.0
    %7221 = vmatpush2.msra.mxu0 0.0
    %7222 = vmatprep.subr.mxu0 0.0
    %7223 = vmatpush2.msra.mxu0 0.0
    %7224 = vmatprep.subr.mxu0 0.0
    %7225 = vmatpush2.msra.mxu0 0.0
    %7226 = vmatprep.subr.mxu0 0.0
    %7227 = vmatpush2.msra.mxu0 0.0
    %7228 = vmatprep.subr.mxu0 0.0
    %7229 = vmatpush2.msra.mxu0 0.0
    %7230 = vmatprep.mubr.f32.mxu0 0.0
    %7231 = vmatmul.mubr.f32.gmra.mxu0 %v7143
    %v7232 = vpop.f32.mrf.mxu0
    %v7233 = vadd.f32 %v7140, %v7232
    %v7234 = vpop.f32.mrf.mxu0
    %7235 = vmatprep.mubr.f32.mxu0 0.0
    %7236 = vmatmul.mubr.f32.gmra.mxu0 %v7146
    %v7237 = vpop.f32.mrf.mxu0
    %v7238 = vadd.f32 %v7140, %v7237
    %v7239 = vpop.f32.mrf.mxu0
    %7240 = vmatprep.mubr.f32.mxu0 0.0
    %7241 = vmatmul.mubr.f32.gmra.mxu0 %v7149
    %v7242 = vpop.f32.mrf.mxu0
    %v7243 = vadd.f32 %v7140, %v7242
    %v7244 = vpop.f32.mrf.mxu0
    %7245 = vmatprep.mubr.f32.mxu0 0.0
    %7246 = vmatmul.mubr.f32.gmra.mxu0 %v7152
    %v7247 = vpop.f32.mrf.mxu0
    %v7248 = vadd.f32 %v7140, %v7247
    %v7249 = vpop.f32.mrf.mxu0
    %7250 = vmatprep.mubr.f32.mxu0 0.0
    %7251 = vmatmul.mubr.f32.gmra.mxu0 %v7155
    %v7252 = vpop.f32.mrf.mxu0
    %v7253 = vadd.f32 %v7140, %v7252
    %v7254 = vpop.f32.mrf.mxu0
    %7255 = vmatprep.mubr.f32.mxu0 0.0
    %7256 = vmatmul.mubr.f32.gmra.mxu0 %v7158
    %v7257 = vpop.f32.mrf.mxu0
    %v7258 = vadd.f32 %v7140, %v7257
    %v7259 = vpop.f32.mrf.mxu0
    %7260 = vmatprep.mubr.f32.mxu0 0.0
    %7261 = vmatmul.mubr.f32.gmra.mxu0 %v7161
    %v7262 = vpop.f32.mrf.mxu0
    %v7263 = vadd.f32 %v7140, %v7262
    %v7264 = vpop.f32.mrf.mxu0
    %7265 = vmatprep.mubr.f32.mxu0 0.0
    %7266 = vmatmul.mubr.f32.gmra.mxu0 %v7164
    %v7267 = vpop.f32.mrf.mxu0
    %v7268 = vadd.f32 %v7140, %v7267
    %v7269 = vpop.f32.mrf.mxu0
    %7270 = vdwg.mxu0
    %v7271 = vxor.u32 %v7233, 2147483648
    %v7272 = vxor.u32 %v7238, 2147483648
    %v7273 = vxor.u32 %v7243, 2147483648
    %v7274 = vxor.u32 %v7248, 2147483648
    %v7275 = vxor.u32 %v7253, 2147483648
    %v7276 = vxor.u32 %v7258, 2147483648
    %v7277 = vxor.u32 %v7263, 2147483648
    %v7278 = vxor.u32 %v7268, 2147483648
    %v7279 = vmul.f32 %v7271, 1.442695
    %v7280 = vpow.pop %v7279
    %v7281 = vmul.f32 %v7272, 1.442695
    %v7282 = vpow.pop %v7281
    %v7283 = vmul.f32 %v7273, 1.442695
    %v7284 = vpow.pop %v7283
    %v7285 = vmul.f32 %v7274, 1.442695
    %v7286 = vpow.pop %v7285
    %v7287 = vmul.f32 %v7275, 1.442695
    %v7288 = vpow.pop %v7287
    %v7289 = vmul.f32 %v7276, 1.442695
    %v7290 = vpow.pop %v7289
    %v7291 = vmul.f32 %v7277, 1.442695
    %v7292 = vpow.pop %v7291
    %v7293 = vmul.f32 %v7278, 1.442695
    %v7294 = vpow.pop %v7293
    %v7295 = vadd.f32 %v7280, 1.0
    %v7296 = vadd.f32 %v7282, 1.0
    %v7297 = vadd.f32 %v7284, 1.0
    %v7298 = vadd.f32 %v7286, 1.0
    %v7299 = vadd.f32 %v7288, 1.0
    %v7300 = vadd.f32 %v7290, 1.0
    %v7301 = vadd.f32 %v7292, 1.0
    %v7302 = vadd.f32 %v7294, 1.0
    %v7303 = vrcp.pop %v7295
    %v7304 = vmul.f32 1.0, %v7303
    %v7305 = vrcp.pop %v7296
    %v7306 = vmul.f32 1.0, %v7305
    %v7307 = vrcp.pop %v7297
    %v7308 = vmul.f32 1.0, %v7307
    %v7309 = vrcp.pop %v7298
    %v7310 = vmul.f32 1.0, %v7309
    %v7311 = vrcp.pop %v7299
    %v7312 = vmul.f32 1.0, %v7311
    %v7313 = vrcp.pop %v7300
    %v7314 = vmul.f32 1.0, %v7313
    %v7315 = vrcp.pop %v7301
    %v7316 = vmul.f32 1.0, %v7315
    %v7317 = vrcp.pop %v7302
    %v7318 = vmul.f32 1.0, %v7317
    %v7319 = vmul.f32 %v7233, %v7304
    %v7320 = vmul.f32 %v7238, %v7306
    %v7321 = vmul.f32 %v7243, %v7308
    %v7322 = vmul.f32 %v7248, %v7310
    %v7323 = vmul.f32 %v7253, %v7312
    %v7324 = vmul.f32 %v7258, %v7314
    %v7325 = vmul.f32 %v7263, %v7316
    %v7326 = vmul.f32 %v7268, %v7318
    %v7327 = vld [vmem:[%s81] sm:$0xff]
    %v7328 = vld [vmem:[%s81 + $0x8] sm:$0xff]
    %v7329 = vld [vmem:[%s81 + $0x10] sm:$0xff]
    %v7330 = vld [vmem:[%s81 + $0x18] sm:$0xff]
    %v7331 = vld [vmem:[#allocation3] sm:$0x1]
    %v7333 = vlaneseq
    %v7334 = vshrl.u32 %v7333, 7
    %v7335 = vsub.s32 0, %v7334
    %v7336 = vrot.slane %v7331, %v7335
    %v7339 = vsel %vm289, %v7319, 0
    %v7342 = vsel %vm289, %v7320, 0
    %v7345 = vsel %vm289, %v7321, 0
    %v7348 = vsel %vm289, %v7322, 0
    %v7351 = vsel %vm289, %v7323, 0
    %v7354 = vsel %vm289, %v7324, 0
    %v7357 = vsel %vm289, %v7325, 0
    %v7360 = vsel %vm289, %v7326, 0
    %7362 = vmatprep.subr.mxu0 0.0
    %7363 = vmatpush1.msra.mxu0 0.0
    %7364 = vmatprep.subr.mxu0 0.0
    %7365 = vmatpush1.msra.mxu0 0.0
    %7366 = vmatprep.subr.mxu0 0.0
    %7367 = vmatpush1.msra.mxu0 0.0
    %7368 = vmatprep.subr.mxu0 0.0
    %7369 = vmatpush1.msra.mxu0 0.0
    %7370 = vmatprep.subr.mxu0 0.0
    %7371 = vmatpush1.msra.mxu0 0.0
    %7372 = vmatprep.subr.mxu0 0.0
    %7373 = vmatpush1.msra.mxu0 0.0
    %7374 = vmatprep.subr.mxu0 0.0
    %7375 = vmatpush1.msra.mxu0 0.0
    %7376 = vmatprep.subr.mxu0 0.0
    %7377 = vmatpush1.msra.mxu0 0.0
    %7378 = vmatprep.subr.mxu0 0.0
    %7379 = vmatpush1.msra.mxu0 0.0
    %7380 = vmatprep.subr.mxu0 0.0
    %7381 = vmatpush1.msra.mxu0 0.0
    %7382 = vmatprep.subr.mxu0 0.0
    %7383 = vmatpush1.msra.mxu0 0.0
    %7384 = vmatprep.subr.mxu0 0.0
    %7385 = vmatpush1.msra.mxu0 0.0
    %7386 = vmatprep.subr.mxu0 0.0
    %7387 = vmatpush1.msra.mxu0 %v7330
    %7388 = vmatprep.subr.mxu0 0.0
    %7389 = vmatpush1.msra.mxu0 %v7329
    %7390 = vmatprep.subr.mxu0 0.0
    %7391 = vmatpush1.msra.mxu0 %v7328
    %7392 = vmatprep.subr.mxu0 0.0
    %7393 = vmatpush1.msra.mxu0 %v7327
    %7394 = vmatprep.subr.mxu0 0.0
    %7395 = vmatpush2.msra.mxu0 0.0
    %7396 = vmatprep.subr.mxu0 0.0
    %7397 = vmatpush2.msra.mxu0 0.0
    %7398 = vmatprep.subr.mxu0 0.0
    %7399 = vmatpush2.msra.mxu0 0.0
    %7400 = vmatprep.subr.mxu0 0.0
    %7401 = vmatpush2.msra.mxu0 0.0
    %7402 = vmatprep.subr.mxu0 0.0
    %7403 = vmatpush2.msra.mxu0 0.0
    %7404 = vmatprep.subr.mxu0 0.0
    %7405 = vmatpush2.msra.mxu0 0.0
    %7406 = vmatprep.subr.mxu0 0.0
    %7407 = vmatpush2.msra.mxu0 0.0
    %7408 = vmatprep.subr.mxu0 0.0
    %7409 = vmatpush2.msra.mxu0 0.0
    %7410 = vmatprep.subr.mxu0 0.0
    %7411 = vmatpush2.msra.mxu0 0.0
    %7412 = vmatprep.subr.mxu0 0.0
    %7413 = vmatpush2.msra.mxu0 0.0
    %7414 = vmatprep.subr.mxu0 0.0
    %7415 = vmatpush2.msra.mxu0 0.0
    %7416 = vmatprep.subr.mxu0 0.0
    %7417 = vmatpush2.msra.mxu0 0.0
    %7418 = vmatprep.subr.mxu0 0.0
    %7419 = vmatpush2.msra.mxu0 0.0
    %7420 = vmatprep.subr.mxu0 0.0
    %7421 = vmatpush2.msra.mxu0 0.0
    %7422 = vmatprep.subr.mxu0 0.0
    %7423 = vmatpush2.msra.mxu0 0.0
    %7424 = vmatprep.subr.mxu0 0.0
    %7425 = vmatpush2.msra.mxu0 0.0
    %7426 = vmatprep.mubr.f32.mxu0 0.0
    %7427 = vmatmul.mubr.f32.gmra.mxu0 %v7339
    %v7428 = vpop.f32.mrf.mxu0
    %v7429 = vadd.f32 %v7336, %v7428
    %v7430 = vpop.f32.mrf.mxu0
    %7431 = vmatprep.mubr.f32.mxu0 0.0
    %7432 = vmatmul.mubr.f32.gmra.mxu0 %v7342
    %v7433 = vpop.f32.mrf.mxu0
    %v7434 = vadd.f32 %v7336, %v7433
    %v7435 = vpop.f32.mrf.mxu0
    %7436 = vmatprep.mubr.f32.mxu0 0.0
    %7437 = vmatmul.mubr.f32.gmra.mxu0 %v7345
    %v7438 = vpop.f32.mrf.mxu0
    %v7439 = vadd.f32 %v7336, %v7438
    %v7440 = vpop.f32.mrf.mxu0
    %7441 = vmatprep.mubr.f32.mxu0 0.0
    %7442 = vmatmul.mubr.f32.gmra.mxu0 %v7348
    %v7443 = vpop.f32.mrf.mxu0
    %v7444 = vadd.f32 %v7336, %v7443
    %v7445 = vpop.f32.mrf.mxu0
    %7446 = vmatprep.mubr.f32.mxu0 0.0
    %7447 = vmatmul.mubr.f32.gmra.mxu0 %v7351
    %v7448 = vpop.f32.mrf.mxu0
    %v7449 = vadd.f32 %v7336, %v7448
    %v7450 = vpop.f32.mrf.mxu0
    %7451 = vmatprep.mubr.f32.mxu0 0.0
    %7452 = vmatmul.mubr.f32.gmra.mxu0 %v7354
    %v7453 = vpop.f32.mrf.mxu0
    %v7454 = vadd.f32 %v7336, %v7453
    %v7455 = vpop.f32.mrf.mxu0
    %7456 = vmatprep.mubr.f32.mxu0 0.0
    %7457 = vmatmul.mubr.f32.gmra.mxu0 %v7357
    %v7458 = vpop.f32.mrf.mxu0
    %v7459 = vadd.f32 %v7336, %v7458
    %v7460 = vpop.f32.mrf.mxu0
    %7461 = vmatprep.mubr.f32.mxu0 0.0
    %7462 = vmatmul.mubr.f32.gmra.mxu0 %v7360
    %v7463 = vpop.f32.mrf.mxu0
    %v7464 = vadd.f32 %v7336, %v7463
    %v7465 = vpop.f32.mrf.mxu0
    %7466 = vdwg.mxu0
    %v7467 = vld [vmem:[%s73] sm:$0xff]
    %v7468 = vld [vmem:[%s73 + $0x8] sm:$0xff]
    %v7469 = vld [vmem:[%s73 + $0x10] sm:$0xff]
    %v7470 = vld [vmem:[%s73 + $0x18] sm:$0xff]
    %v7471 = vld [vmem:[%s73 + $0x20] sm:$0xff]
    %v7472 = vld [vmem:[%s73 + $0x28] sm:$0xff]
    %v7473 = vld [vmem:[%s73 + $0x30] sm:$0xff]
    %v7474 = vld [vmem:[%s73 + $0x38] sm:$0xff]
    %7476 = vset.pattern.permute.xlu0 0
    %7477 = vperm.xlu0 %7476, %v7467
    %v7478 = vpop.permute.xlu0 %7477
    %7481 = vset.pattern.permute.xlu0 0
    %7482 = vperm.xlu0 %7481, %v7468
    %v7483 = vpop.permute.xlu0 %7482
    %7486 = vset.pattern.permute.xlu0 0
    %7487 = vperm.xlu0 %7486, %v7469
    %v7488 = vpop.permute.xlu0 %7487
    %7491 = vset.pattern.permute.xlu0 0
    %7492 = vperm.xlu0 %7491, %v7470
    %v7493 = vpop.permute.xlu0 %7492
    %7496 = vset.pattern.permute.xlu0 0
    %7497 = vperm.xlu0 %7496, %v7471
    %v7498 = vpop.permute.xlu0 %7497
    %7501 = vset.pattern.permute.xlu0 0
    %7502 = vperm.xlu0 %7501, %v7472
    %v7503 = vpop.permute.xlu0 %7502
    %7506 = vset.pattern.permute.xlu0 0
    %7507 = vperm.xlu0 %7506, %v7473
    %v7508 = vpop.permute.xlu0 %7507
    %7511 = vset.pattern.permute.xlu0 0
    %7512 = vperm.xlu0 %7511, %v7474
    %v7513 = vpop.permute.xlu0 %7512
    %v7515 = vmul.f32 %v7429, %v7478
    %v7516 = vmul.f32 %v7434, %v7483
    %v7517 = vmul.f32 %v7439, %v7488
    %v7518 = vmul.f32 %v7444, %v7493
    %v7519 = vmul.f32 %v7449, %v7498
    %v7520 = vmul.f32 %v7454, %v7503
    %v7521 = vmul.f32 %v7459, %v7508
    %v7522 = vmul.f32 %v7464, %v7513
    %v7523 = vld [vmem:[%s85] sm:$0xff]
    %v7524 = vld [vmem:[%s85 + $0x8] sm:$0xff]
    %v7525 = vld [vmem:[%s85 + $0x10] sm:$0xff]
    %v7526 = vld [vmem:[%s85 + $0x18] sm:$0xff]
    %v7527 = vld [vmem:[#allocation6] sm:$0x1]
    %v7529 = vlaneseq
    %v7530 = vshrl.u32 %v7529, 7
    %v7531 = vsub.s32 0, %v7530
    %v7532 = vrot.slane %v7527, %v7531
    %v7535 = vsel %vm289, %v5866, 0
    %v7538 = vsel %vm289, %v5867, 0
    %v7541 = vsel %vm289, %v5868, 0
    %v7544 = vsel %vm289, %v5869, 0
    %v7547 = vsel %vm289, %v5870, 0
    %v7550 = vsel %vm289, %v5871, 0
    %v7553 = vsel %vm289, %v5872, 0
    %v7556 = vsel %vm289, %v5873, 0
    %v7559 = vsel %vm289, %v5874, 0
    %v7562 = vsel %vm289, %v5875, 0
    %v7565 = vsel %vm289, %v5876, 0
    %v7568 = vsel %vm289, %v5877, 0
    %v7571 = vsel %vm289, %v5878, 0
    %v7574 = vsel %vm289, %v5879, 0
    %v7577 = vsel %vm289, %v5880, 0
    %v7580 = vsel %vm289, %v5881, 0
    %7582 = vmatprep.subr.mxu0 0.0
    %7583 = vmatpush1.msra.mxu0 0.0
    %7584 = vmatprep.subr.mxu0 0.0
    %7585 = vmatpush1.msra.mxu0 0.0
    %7586 = vmatprep.subr.mxu0 0.0
    %7587 = vmatpush1.msra.mxu0 0.0
    %7588 = vmatprep.subr.mxu0 0.0
    %7589 = vmatpush1.msra.mxu0 0.0
    %7590 = vmatprep.subr.mxu0 0.0
    %7591 = vmatpush1.msra.mxu0 0.0
    %7592 = vmatprep.subr.mxu0 0.0
    %7593 = vmatpush1.msra.mxu0 0.0
    %7594 = vmatprep.subr.mxu0 0.0
    %7595 = vmatpush1.msra.mxu0 0.0
    %7596 = vmatprep.subr.mxu0 0.0
    %7597 = vmatpush1.msra.mxu0 0.0
    %7598 = vmatprep.subr.mxu0 0.0
    %7599 = vmatpush1.msra.mxu0 0.0
    %7600 = vmatprep.subr.mxu0 0.0
    %7601 = vmatpush1.msra.mxu0 0.0
    %7602 = vmatprep.subr.mxu0 0.0
    %7603 = vmatpush1.msra.mxu0 0.0
    %7604 = vmatprep.subr.mxu0 0.0
    %7605 = vmatpush1.msra.mxu0 0.0
    %7606 = vmatprep.subr.mxu0 0.0
    %7607 = vmatpush1.msra.mxu0 %v7526
    %7608 = vmatprep.subr.mxu0 0.0
    %7609 = vmatpush1.msra.mxu0 %v7525
    %7610 = vmatprep.subr.mxu0 0.0
    %7611 = vmatpush1.msra.mxu0 %v7524
    %7612 = vmatprep.subr.mxu0 0.0
    %7613 = vmatpush1.msra.mxu0 %v7523
    %7614 = vmatprep.subr.mxu0 0.0
    %7615 = vmatpush2.msra.mxu0 0.0
    %7616 = vmatprep.subr.mxu0 0.0
    %7617 = vmatpush2.msra.mxu0 0.0
    %7618 = vmatprep.subr.mxu0 0.0
    %7619 = vmatpush2.msra.mxu0 0.0
    %7620 = vmatprep.subr.mxu0 0.0
    %7621 = vmatpush2.msra.mxu0 0.0
    %7622 = vmatprep.subr.mxu0 0.0
    %7623 = vmatpush2.msra.mxu0 0.0
    %7624 = vmatprep.subr.mxu0 0.0
    %7625 = vmatpush2.msra.mxu0 0.0
    %7626 = vmatprep.subr.mxu0 0.0
    %7627 = vmatpush2.msra.mxu0 0.0
    %7628 = vmatprep.subr.mxu0 0.0
    %7629 = vmatpush2.msra.mxu0 0.0
    %7630 = vmatprep.subr.mxu0 0.0
    %7631 = vmatpush2.msra.mxu0 0.0
    %7632 = vmatprep.subr.mxu0 0.0
    %7633 = vmatpush2.msra.mxu0 0.0
    %7634 = vmatprep.subr.mxu0 0.0
    %7635 = vmatpush2.msra.mxu0 0.0
    %7636 = vmatprep.subr.mxu0 0.0
    %7637 = vmatpush2.msra.mxu0 0.0
    %7638 = vmatprep.subr.mxu0 0.0
    %7639 = vmatpush2.msra.mxu0 0.0
    %7640 = vmatprep.subr.mxu0 0.0
    %7641 = vmatpush2.msra.mxu0 0.0
    %7642 = vmatprep.subr.mxu0 0.0
    %7643 = vmatpush2.msra.mxu0 0.0
    %7644 = vmatprep.subr.mxu0 0.0
    %7645 = vmatpush2.msra.mxu0 0.0
    %7646 = vmatprep.mubr.f32.mxu0 0.0
    %7647 = vmatmul.mubr.f32.gmra.mxu0 %v7535
    %v7648 = vpop.f32.mrf.mxu0
    %v7649 = vadd.f32 %v7532, %v7648
    %v7650 = vpop.f32.mrf.mxu0
    %7651 = vmatprep.mubr.f32.mxu0 0.0
    %7652 = vmatmul.mubr.f32.gmra.mxu0 %v7538
    %v7653 = vpop.f32.mrf.mxu0
    %v7654 = vadd.f32 %v7532, %v7653
    %v7655 = vpop.f32.mrf.mxu0
    %7656 = vmatprep.mubr.f32.mxu0 0.0
    %7657 = vmatmul.mubr.f32.gmra.mxu0 %v7541
    %v7658 = vpop.f32.mrf.mxu0
    %v7659 = vadd.f32 %v7532, %v7658
    %v7660 = vpop.f32.mrf.mxu0
    %7661 = vmatprep.mubr.f32.mxu0 0.0
    %7662 = vmatmul.mubr.f32.gmra.mxu0 %v7544
    %v7663 = vpop.f32.mrf.mxu0
    %v7664 = vadd.f32 %v7532, %v7663
    %v7665 = vpop.f32.mrf.mxu0
    %7666 = vmatprep.mubr.f32.mxu0 0.0
    %7667 = vmatmul.mubr.f32.gmra.mxu0 %v7547
    %v7668 = vpop.f32.mrf.mxu0
    %v7669 = vadd.f32 %v7532, %v7668
    %v7670 = vpop.f32.mrf.mxu0
    %7671 = vmatprep.mubr.f32.mxu0 0.0
    %7672 = vmatmul.mubr.f32.gmra.mxu0 %v7550
    %v7673 = vpop.f32.mrf.mxu0
    %v7674 = vadd.f32 %v7532, %v7673
    %v7675 = vpop.f32.mrf.mxu0
    %7676 = vmatprep.mubr.f32.mxu0 0.0
    %7677 = vmatmul.mubr.f32.gmra.mxu0 %v7553
    %v7678 = vpop.f32.mrf.mxu0
    %v7679 = vadd.f32 %v7532, %v7678
    %v7680 = vpop.f32.mrf.mxu0
    %7681 = vmatprep.mubr.f32.mxu0 0.0
    %7682 = vmatmul.mubr.f32.gmra.mxu0 %v7556
    %v7683 = vpop.f32.mrf.mxu0
    %v7684 = vadd.f32 %v7532, %v7683
    %v7685 = vpop.f32.mrf.mxu0
    %7686 = vmatprep.mubr.f32.mxu0 0.0
    %7687 = vmatmul.mubr.f32.gmra.mxu0 %v7559
    %v7688 = vpop.f32.mrf.mxu0
    %v7689 = vadd.f32 %v7532, %v7688
    %v7690 = vpop.f32.mrf.mxu0
    %7691 = vmatprep.mubr.f32.mxu0 0.0
    %7692 = vmatmul.mubr.f32.gmra.mxu0 %v7562
    %v7693 = vpop.f32.mrf.mxu0
    %v7694 = vadd.f32 %v7532, %v7693
    %v7695 = vpop.f32.mrf.mxu0
    %7696 = vmatprep.mubr.f32.mxu0 0.0
    %7697 = vmatmul.mubr.f32.gmra.mxu0 %v7565
    %v7698 = vpop.f32.mrf.mxu0
    %v7699 = vadd.f32 %v7532, %v7698
    %v7700 = vpop.f32.mrf.mxu0
    %7701 = vmatprep.mubr.f32.mxu0 0.0
    %7702 = vmatmul.mubr.f32.gmra.mxu0 %v7568
    %v7703 = vpop.f32.mrf.mxu0
    %v7704 = vadd.f32 %v7532, %v7703
    %v7705 = vpop.f32.mrf.mxu0
    %7706 = vmatprep.mubr.f32.mxu0 0.0
    %7707 = vmatmul.mubr.f32.gmra.mxu0 %v7571
    %v7708 = vpop.f32.mrf.mxu0
    %v7709 = vadd.f32 %v7532, %v7708
    %v7710 = vpop.f32.mrf.mxu0
    %7711 = vmatprep.mubr.f32.mxu0 0.0
    %7712 = vmatmul.mubr.f32.gmra.mxu0 %v7574
    %v7713 = vpop.f32.mrf.mxu0
    %v7714 = vadd.f32 %v7532, %v7713
    %v7715 = vpop.f32.mrf.mxu0
    %7716 = vmatprep.mubr.f32.mxu0 0.0
    %7717 = vmatmul.mubr.f32.gmra.mxu0 %v7577
    %v7718 = vpop.f32.mrf.mxu0
    %v7719 = vadd.f32 %v7532, %v7718
    %v7720 = vpop.f32.mrf.mxu0
    %7721 = vmatprep.mubr.f32.mxu0 0.0
    %7722 = vmatmul.mubr.f32.gmra.mxu0 %v7580
    %v7723 = vpop.f32.mrf.mxu0
    %v7724 = vadd.f32 %v7532, %v7723
    %v7725 = vpop.f32.mrf.mxu0
    %7726 = vdwg.mxu0
    %v7727 = vld [vmem:[%s69] sm:$0xf]
    %v7728 = vld [vmem:[%s69 + $0x4] sm:$0xf]
    %v7729 = vld [vmem:[%s69 + $0x8] sm:$0xf]
    %v7730 = vld [vmem:[%s69 + $0xc] sm:$0xf]
    %v7731 = vld [vmem:[%s69 + $0x10] sm:$0xf]
    %v7732 = vld [vmem:[%s69 + $0x14] sm:$0xf]
    %v7733 = vld [vmem:[%s69 + $0x18] sm:$0xf]
    %v7734 = vld [vmem:[%s69 + $0x1c] sm:$0xf]
    %v7735 = vpack.c.bf16 %v7654, %v7649
    %v7736 = vpack.c.bf16 %v7664, %v7659
    %v7737 = vpack.c.bf16 %v7674, %v7669
    %v7738 = vpack.c.bf16 %v7684, %v7679
    %v7739 = vpack.c.bf16 %v7694, %v7689
    %v7740 = vpack.c.bf16 %v7704, %v7699
    %v7741 = vpack.c.bf16 %v7714, %v7709
    %v7742 = vpack.c.bf16 %v7724, %v7719
    %v7751 = vunpack.c.l.b16 %v7727
    %v7752 = vunpack.c.l.b16 %v7728
    %v7753 = vunpack.c.l.b16 %v7729
    %v7754 = vunpack.c.l.b16 %v7730
    %v7755 = vunpack.c.l.b16 %v7731
    %v7756 = vunpack.c.l.b16 %v7732
    %v7757 = vunpack.c.l.b16 %v7733
    %v7758 = vunpack.c.l.b16 %v7734
    %v7759 = vpack.c.b16 %v7752, %v7751
    %v7760 = vpack.c.b16 %v7754, %v7753
    %v7761 = vpack.c.b16 %v7756, %v7755
    %v7762 = vpack.c.b16 %v7758, %v7757
    %7767 = vmatprep.subr.bf16.mxu0 0
    %7768 = vmatpush1.bf16.msra.mxu0 %v7742
    %7769 = vmatprep.subr.bf16.mxu0 0
    %7770 = vmatpush1.bf16.msra.mxu0 %v7741
    %7771 = vmatprep.subr.bf16.mxu0 0
    %7772 = vmatpush1.bf16.msra.mxu0 %v7740
    %7773 = vmatprep.subr.bf16.mxu0 0
    %7774 = vmatpush1.bf16.msra.mxu0 %v7739
    %7775 = vmatprep.subr.bf16.mxu0 0
    %7776 = vmatpush1.bf16.msra.mxu0 %v7738
    %7777 = vmatprep.subr.bf16.mxu0 0
    %7778 = vmatpush1.bf16.msra.mxu0 %v7737
    %7779 = vmatprep.subr.bf16.mxu0 0
    %7780 = vmatpush1.bf16.msra.mxu0 %v7736
    %7781 = vmatprep.subr.bf16.mxu0 0
    %7782 = vmatpush1.bf16.msra.mxu0 %v7735
    %7783 = vmatprep.subr.bf16.mxu0 0
    %7784 = vmatpush2.bf16.msra.mxu0 0
    %7785 = vmatprep.subr.bf16.mxu0 0
    %7786 = vmatpush2.bf16.msra.mxu0 0
    %7787 = vmatprep.subr.bf16.mxu0 0
    %7788 = vmatpush2.bf16.msra.mxu0 0
    %7789 = vmatprep.subr.bf16.mxu0 0
    %7790 = vmatpush2.bf16.msra.mxu0 0
    %7791 = vmatprep.subr.bf16.mxu0 0
    %7792 = vmatpush2.bf16.msra.mxu0 0
    %7793 = vmatprep.subr.bf16.mxu0 0
    %7794 = vmatpush2.bf16.msra.mxu0 0
    %7795 = vmatprep.subr.bf16.mxu0 0
    %7796 = vmatpush2.bf16.msra.mxu0 0
    %7797 = vmatprep.subr.bf16.mxu0 0
    %7798 = vmatpush2.bf16.msra.mxu0 0
    %7799 = vmatprep.mubr.bf16.mxu0 0
    %7800 = vmatmul.mubr.bf16.gmra.mxu0 %v7759
    %v7801 = vpop.f32.mrf.mxu0
    %v7802 = vadd.f32 0.0, %v7801
    %v7803 = vpop.f32.mrf.mxu0
    %v7804 = vpop.f32.mrf.mxu0
    %v7805 = vadd.f32 0.0, %v7804
    %v7806 = vpop.f32.mrf.mxu0
    %7807 = vmatprep.mubr.bf16.mxu0 0
    %7808 = vmatmul.mubr.bf16.gmra.mxu0 %v7760
    %v7809 = vpop.f32.mrf.mxu0
    %v7810 = vadd.f32 0.0, %v7809
    %v7811 = vpop.f32.mrf.mxu0
    %v7812 = vpop.f32.mrf.mxu0
    %v7813 = vadd.f32 0.0, %v7812
    %v7814 = vpop.f32.mrf.mxu0
    %7815 = vmatprep.mubr.bf16.mxu0 0
    %7816 = vmatmul.mubr.bf16.gmra.mxu0 %v7761
    %v7817 = vpop.f32.mrf.mxu0
    %v7818 = vadd.f32 0.0, %v7817
    %v7819 = vpop.f32.mrf.mxu0
    %v7820 = vpop.f32.mrf.mxu0
    %v7821 = vadd.f32 0.0, %v7820
    %v7822 = vpop.f32.mrf.mxu0
    %7823 = vmatprep.mubr.bf16.mxu0 0
    %7824 = vmatmul.mubr.bf16.gmra.mxu0 %v7762
    %v7825 = vpop.f32.mrf.mxu0
    %v7826 = vadd.f32 0.0, %v7825
    %v7827 = vpop.f32.mrf.mxu0
    %v7828 = vpop.f32.mrf.mxu0
    %v7829 = vadd.f32 0.0, %v7828
    %v7830 = vpop.f32.mrf.mxu0
    %7831 = vdwg.mxu0
    %v7832 = vmul.f32 %v7802, %v7515
    %v7833 = vmul.f32 %v7805, %v7516
    %v7834 = vmul.f32 %v7810, %v7517
    %v7835 = vmul.f32 %v7813, %v7518
    %v7836 = vmul.f32 %v7818, %v7519
    %v7837 = vmul.f32 %v7821, %v7520
    %v7838 = vmul.f32 %v7826, %v7521
    %v7839 = vmul.f32 %v7829, %v7522
    %v7840 = vld [vmem:[%s71] sm:$0xf]
    %v7841 = vld [vmem:[%s71 + $0x4] sm:$0xf]
    %v7842 = vpack.c.bf16 %v7833, %v7832
    %v7843 = vpack.c.bf16 %v7835, %v7834
    %v7844 = vpack.c.bf16 %v7837, %v7836
    %v7845 = vpack.c.bf16 %v7839, %v7838
    %v7848 = vunpack.c.l.b16 %v7840
    %v7849 = vunpack.c.l.b16 %v7841
    %v7850 = vpack.c.b16 %v7849, %v7848
    %v7852 = vsel %vm1644, %v7850, 0
    %7854 = vmatprep.subr.bf16.mxu0 0
    %7855 = vmatpush1.bf16.msra.mxu0 0
    %7856 = vmatprep.subr.bf16.mxu0 0
    %7857 = vmatpush1.bf16.msra.mxu0 0
    %7858 = vmatprep.subr.bf16.mxu0 0
    %7859 = vmatpush1.bf16.msra.mxu0 0
    %7860 = vmatprep.subr.bf16.mxu0 0
    %7861 = vmatpush1.bf16.msra.mxu0 0
    %7862 = vmatprep.subr.bf16.mxu0 0
    %7863 = vmatpush1.bf16.msra.mxu0 %v7845
    %7864 = vmatprep.subr.bf16.mxu0 0
    %7865 = vmatpush1.bf16.msra.mxu0 %v7844
    %7866 = vmatprep.subr.bf16.mxu0 0
    %7867 = vmatpush1.bf16.msra.mxu0 %v7843
    %7868 = vmatprep.subr.bf16.mxu0 0
    %7869 = vmatpush1.bf16.msra.mxu0 %v7842
    %7870 = vmatprep.subr.bf16.mxu0 0
    %7871 = vmatpush2.bf16.msra.mxu0 0
    %7872 = vmatprep.subr.bf16.mxu0 0
    %7873 = vmatpush2.bf16.msra.mxu0 0
    %7874 = vmatprep.subr.bf16.mxu0 0
    %7875 = vmatpush2.bf16.msra.mxu0 0
    %7876 = vmatprep.subr.bf16.mxu0 0
    %7877 = vmatpush2.bf16.msra.mxu0 0
    %7878 = vmatprep.subr.bf16.mxu0 0
    %7879 = vmatpush2.bf16.msra.mxu0 0
    %7880 = vmatprep.subr.bf16.mxu0 0
    %7881 = vmatpush2.bf16.msra.mxu0 0
    %7882 = vmatprep.subr.bf16.mxu0 0
    %7883 = vmatpush2.bf16.msra.mxu0 0
    %7884 = vmatprep.subr.bf16.mxu0 0
    %7885 = vmatpush2.bf16.msra.mxu0 0
    %7886 = vmatprep.mubr.bf16.mxu0 0
    %7887 = vmatmul.mubr.bf16.gmra.mxu0 %v7852
    %v7888 = vpop.f32.mrf.mxu0
    %v7889 = vadd.f32 0.0, %v7888
    %v7890 = vpop.f32.mrf.mxu0
    %v7891 = vpop.f32.mrf.mxu0
    %v7892 = vadd.f32 0.0, %v7891
    %v7893 = vpop.f32.mrf.mxu0
    %7894 = vdwg.mxu0
    %v7895 = vld [vmem:[%s89] sm:$0xff]
    %v7896 = vld [vmem:[%s89 + $0x8] sm:$0xff]
    %v7897 = vld [vmem:[%s89 + $0x10] sm:$0xff]
    %v7898 = vld [vmem:[%s89 + $0x18] sm:$0xff]
    %v7899 = vld [vmem:[#allocation8] sm:$0x1]
    %v7901 = vlaneseq
    %v7902 = vshrl.u32 %v7901, 7
    %v7903 = vsub.s32 0, %v7902
    %v7904 = vrot.slane %v7899, %v7903
    %v7907 = vsel %vm289, %v7889, 0
    %v7910 = vsel %vm289, %v7892, 0
    %7912 = vmatprep.subr.mxu0 0.0
    %7913 = vmatpush1.msra.mxu0 0.0
    %7914 = vmatprep.subr.mxu0 0.0
    %7915 = vmatpush1.msra.mxu0 0.0
    %7916 = vmatprep.subr.mxu0 0.0
    %7917 = vmatpush1.msra.mxu0 0.0
    %7918 = vmatprep.subr.mxu0 0.0
    %7919 = vmatpush1.msra.mxu0 0.0
    %7920 = vmatprep.subr.mxu0 0.0
    %7921 = vmatpush1.msra.mxu0 0.0
    %7922 = vmatprep.subr.mxu0 0.0
    %7923 = vmatpush1.msra.mxu0 0.0
    %7924 = vmatprep.subr.mxu0 0.0
    %7925 = vmatpush1.msra.mxu0 0.0
    %7926 = vmatprep.subr.mxu0 0.0
    %7927 = vmatpush1.msra.mxu0 0.0
    %7928 = vmatprep.subr.mxu0 0.0
    %7929 = vmatpush1.msra.mxu0 0.0
    %7930 = vmatprep.subr.mxu0 0.0
    %7931 = vmatpush1.msra.mxu0 0.0
    %7932 = vmatprep.subr.mxu0 0.0
    %7933 = vmatpush1.msra.mxu0 0.0
    %7934 = vmatprep.subr.mxu0 0.0
    %7935 = vmatpush1.msra.mxu0 0.0
    %7936 = vmatprep.subr.mxu0 0.0
    %7937 = vmatpush1.msra.mxu0 %v7898
    %7938 = vmatprep.subr.mxu0 0.0
    %7939 = vmatpush1.msra.mxu0 %v7897
    %7940 = vmatprep.subr.mxu0 0.0
    %7941 = vmatpush1.msra.mxu0 %v7896
    %7942 = vmatprep.subr.mxu0 0.0
    %7943 = vmatpush1.msra.mxu0 %v7895
    %7944 = vmatprep.subr.mxu0 0.0
    %7945 = vmatpush2.msra.mxu0 0.0
    %7946 = vmatprep.subr.mxu0 0.0
    %7947 = vmatpush2.msra.mxu0 0.0
    %7948 = vmatprep.subr.mxu0 0.0
    %7949 = vmatpush2.msra.mxu0 0.0
    %7950 = vmatprep.subr.mxu0 0.0
    %7951 = vmatpush2.msra.mxu0 0.0
    %7952 = vmatprep.subr.mxu0 0.0
    %7953 = vmatpush2.msra.mxu0 0.0
    %7954 = vmatprep.subr.mxu0 0.0
    %7955 = vmatpush2.msra.mxu0 0.0
    %7956 = vmatprep.subr.mxu0 0.0
    %7957 = vmatpush2.msra.mxu0 0.0
    %7958 = vmatprep.subr.mxu0 0.0
    %7959 = vmatpush2.msra.mxu0 0.0
    %7960 = vmatprep.subr.mxu0 0.0
    %7961 = vmatpush2.msra.mxu0 0.0
    %7962 = vmatprep.subr.mxu0 0.0
    %7963 = vmatpush2.msra.mxu0 0.0
    %7964 = vmatprep.subr.mxu0 0.0
    %7965 = vmatpush2.msra.mxu0 0.0
    %7966 = vmatprep.subr.mxu0 0.0
    %7967 = vmatpush2.msra.mxu0 0.0
    %7968 = vmatprep.subr.mxu0 0.0
    %7969 = vmatpush2.msra.mxu0 0.0
    %7970 = vmatprep.subr.mxu0 0.0
    %7971 = vmatpush2.msra.mxu0 0.0
    %7972 = vmatprep.subr.mxu0 0.0
    %7973 = vmatpush2.msra.mxu0 0.0
    %7974 = vmatprep.subr.mxu0 0.0
    %7975 = vmatpush2.msra.mxu0 0.0
    %7976 = vmatprep.mubr.f32.mxu0 0.0
    %7977 = vmatmul.mubr.f32.gmra.mxu0 %v7907
    %v7978 = vpop.f32.mrf.mxu0
    %v7979 = vadd.f32 %v7904, %v7978
    %v7980 = vpop.f32.mrf.mxu0
    %7981 = vmatprep.mubr.f32.mxu0 0.0
    %7982 = vmatmul.mubr.f32.gmra.mxu0 %v7910
    %v7983 = vpop.f32.mrf.mxu0
    %v7984 = vadd.f32 %v7904, %v7983
    %v7985 = vpop.f32.mrf.mxu0
    %7986 = vdwg.mxu0
    %v7987 = vld [vmem:[%s17] sm:$0x1]
    %v7988 = vld [vmem:[%s19] sm:$0x1]
    %v7989 = vsel %vm289, %v7979, 0.0
    %7990 = vadd.xlane.f32.xlu0 %v7989
    %v7991 = vpop.xlane.xlu0 %7990
    %v7992 = vsel %vm289, %v7984, 0.0
    %7993 = vadd.xlane.f32.xlu0 %v7992
    %v7994 = vpop.xlane.xlu0 %7993
    %v7995 = vmul.f32 %v7991, %v296
    %v7996 = vmul.f32 %v7994, %v296
    %v7997 = vsub.f32 %v7979, %v7995
    %v7998 = vsub.f32 %v7984, %v7996
    %v7999 = vmul.f32 %v7997, %v7997
    %v8000 = vmul.f32 %v7998, %v7998
    %v8001 = vsel %vm289, %v7999, 0.0
    %8002 = vadd.xlane.f32.xlu0 %v8001
    %v8003 = vpop.xlane.xlu0 %8002
    %v8004 = vsel %vm289, %v8000, 0.0
    %8005 = vadd.xlane.f32.xlu0 %v8004
    %v8006 = vpop.xlane.xlu0 %8005
    %v8007 = vmul.f32 %v8003, %v296
    %v8008 = vmul.f32 %v8006, %v296
    %v8009 = vadd.f32 %v8007, 1e-05
    %v8010 = vadd.f32 %v8008, 1e-05
    %v8011 = vrsqrt.pop %v8009
    %v8012 = vrsqrt.pop %v8010
    %v8013 = vmul.f32 %v7997, %v8011
    %v8014 = vmul.f32 %v7998, %v8012
    %v8016 = vlaneseq
    %v8017 = vshrl.u32 %v8016, 7
    %v8018 = vsub.s32 0, %v8017
    %v8019 = vrot.slane %v7987, %v8018
    %v8021 = vmul.f32 %v8013, %v8019
    %v8022 = vmul.f32 %v8014, %v8019
    %v8024 = vlaneseq
    %v8025 = vshrl.u32 %v8024, 7
    %v8026 = vsub.s32 0, %v8025
    %v8027 = vrot.slane %v7988, %v8026
    %v8029 = vadd.f32 %v8021, %v8027
    %v8030 = vadd.f32 %v8022, %v8027
    %v8031 = vadd.f32 %v995, %v8029
    %v8032 = vadd.f32 %v1000, %v8030
    %v8033 = vadd.f32 %v8031, %v269
    %v8034 = vadd.f32 %v8032, %v270
    %8035 = vst.msk [vmem:[#allocation12] sm:$0xff] %vm289, %v8033
    %8036 = vst.msk [vmem:[#allocation12 + $0x8] sm:$0xff] %vm289, %v8034
    %v8037 = vadd.f32 %v5866, %v7109
    %v8038 = vadd.f32 %v5867, %v7110
    %v8039 = vadd.f32 %v5868, %v7111
    %v8040 = vadd.f32 %v5869, %v7112
    %v8041 = vadd.f32 %v5870, %v7113
    %v8042 = vadd.f32 %v5871, %v7114
    %v8043 = vadd.f32 %v5872, %v7115
    %v8044 = vadd.f32 %v5873, %v7116
    %v8045 = vadd.f32 %v5874, %v7117
    %v8046 = vadd.f32 %v5875, %v7118
    %v8047 = vadd.f32 %v5876, %v7119
    %v8048 = vadd.f32 %v5877, %v7120
    %v8049 = vadd.f32 %v5878, %v7121
    %v8050 = vadd.f32 %v5879, %v7122
    %v8051 = vadd.f32 %v5880, %v7123
    %v8052 = vadd.f32 %v5881, %v7124
    %v8053 = vadd.f32 %v8037, %v271
    %v8054 = vadd.f32 %v8038, %v272
    %v8055 = vadd.f32 %v8039, %v273
    %v8056 = vadd.f32 %v8040, %v274
    %v8057 = vadd.f32 %v8041, %v275
    %v8058 = vadd.f32 %v8042, %v276
    %v8059 = vadd.f32 %v8043, %v277
    %v8060 = vadd.f32 %v8044, %v278
    %v8061 = vadd.f32 %v8045, %v279
    %v8062 = vadd.f32 %v8046, %v280
    %v8063 = vadd.f32 %v8047, %v281
    %v8064 = vadd.f32 %v8048, %v282
    %v8065 = vadd.f32 %v8049, %v283
    %v8066 = vadd.f32 %v8050, %v284
    %v8067 = vadd.f32 %v8051, %v285
    %v8068 = vadd.f32 %v8052, %v286
    %8069 = vst.msk [vmem:[%s103] sm:$0xff] %vm289, %v8053
    %8070 = vst.msk [vmem:[%s103 + $0x8] sm:$0xff] %vm289, %v8054
    %8071 = vst.msk [vmem:[%s103 + $0x10] sm:$0xff] %vm289, %v8055
    %8072 = vst.msk [vmem:[%s103 + $0x18] sm:$0xff] %vm289, %v8056
    %8073 = vst.msk [vmem:[%s103 + $0x20] sm:$0xff] %vm289, %v8057
    %8074 = vst.msk [vmem:[%s103 + $0x28] sm:$0xff] %vm289, %v8058
    %8075 = vst.msk [vmem:[%s103 + $0x30] sm:$0xff] %vm289, %v8059
    %8076 = vst.msk [vmem:[%s103 + $0x38] sm:$0xff] %vm289, %v8060
    %8077 = vst.msk [vmem:[%s103 + $0x40] sm:$0xff] %vm289, %v8061
    %8078 = vst.msk [vmem:[%s103 + $0x48] sm:$0xff] %vm289, %v8062
    %8079 = vst.msk [vmem:[%s103 + $0x50] sm:$0xff] %vm289, %v8063
    %8080 = vst.msk [vmem:[%s103 + $0x58] sm:$0xff] %vm289, %v8064
    %8081 = vst.msk [vmem:[%s103 + $0x60] sm:$0xff] %vm289, %v8065
    %8082 = vst.msk [vmem:[%s103 + $0x68] sm:$0xff] %vm289, %v8066
    %8083 = vst.msk [vmem:[%s103 + $0x70] sm:$0xff] %vm289, %v8067
    %8084 = vst.msk [vmem:[%s103 + $0x78] sm:$0xff] %vm289, %v8068
    // Predicated region
    $region222: #{tpu_custom_call.1} parent=1 // pred_check
      _
    $region223: #{tpu_custom_call.1} parent=1 // pred_check_branch
      %8086 = sbr.rel (0) target = $region225
    $region224: #{tpu_custom_call.1} parent=1 // pred_region
      %s8088 = ssub.s32 256, 256
      %8089 = vsyncadd [#allocation5], %s8088
      %s8090 = sshll.u32 [#allocation12], 4
      %s8091 = int_to_ptr.vmem [resolvable:$true] %s8090
      %8096 = dma.vmem_to_hbm [thread:$0]  %s8091, 256, %s101, [#allocation5], 128, 128, 8
    $region225: #{tpu_custom_call.1} parent=1 // pred_fallthru
      _
    // Predicated region
    $region226: #{tpu_custom_call.1} parent=1 // pred_check
      _
    $region227: #{tpu_custom_call.1} parent=1 // pred_check_branch
      %8098 = sbr.rel (0) target = $region229
    $region228: #{tpu_custom_call.1} parent=1 // pred_region
      _
    $region229: #{tpu_custom_call.1} parent=1 // pred_fallthru
      _
    // Predicated region
    $region230: #{tpu_custom_call.1} parent=1 // pred_check
      _
    $region231: #{tpu_custom_call.1} parent=1 // pred_check_branch
      %8100 = sbr.rel (0) target = $region233
    $region232: #{tpu_custom_call.1} parent=1 // pred_region
      %8101 = dma.done [#allocation5], 256
    $region233: #{tpu_custom_call.1} parent=1 // pred_fallthru
      _
    // Predicated region
    $region234: #{tpu_custom_call.1} parent=1 // pred_check
      _
    $region235: #{tpu_custom_call.1} parent=1 // pred_check_branch
      %8103 = sbr.rel (0) target = $region237
    $region236: #{tpu_custom_call.1} parent=1 // pred_region
      _
    $region237: #{tpu_custom_call.1} parent=1 // pred_fallthru
      _
    %8104 = vsyncpa [#allocation4], 1
    %8105 = vsyncpa [#allocation7], 1
    %8106 = vsyncpa [#allocation10], 1
    %8107 = vsyncpa [#allocation5], 1

</llo_original>
